<compile_context>
chip_gen: v5e
topology: v5e:2x2
jax: 0.10.0
libtpu: 0.0.40
codegen_flags: <defaults>
</compile_context>

<pallas_src>
import numpy as np
import jax
import jax.numpy as jnp
from jax.experimental import pallas as pl
from jax.experimental.pallas import tpu as pltpu

W0 = 30.0  # default SIREN frequency


# ----------------------------- Pallas kernel --------------------------------
def _siren_packed_kernel(coords_ref, w1_ref, b1_ref, w2_ref, b2_ref, w3_ref,
                         b3_ref, out_ref):
    # coords_ref: (N_pad, IN)        -- fully resident, sliced per tile
    # w1_ref: (1, IN, GH)   b1_ref: (1, 1, GH)     (W0 already folded in)
    # w2_ref: (1, GH, GH)   b2_ref: (1, 1, GH)     (block-diagonal, W0 folded)
    # w3_ref: (1, GH, GO)   b3_ref: (1, 1, GO)     (block-diagonal, +0.5 folded)
    # out_ref: (1, TN, GO)  -- lane-dense packed output slab
    tn = out_ref.shape[1]
    n = pl.program_id(1)
    start = pl.multiple_of(n * tn, tn)

    x = coords_ref[pl.ds(start, tn), :].astype(jnp.float32)      # (TN, IN)
    in_f = x.shape[1]
    w1 = w1_ref[0]                                               # (IN, GH)

    # Layer 1: contraction K = in_f (=2) -> VPU broadcast-FMAs, not the MXU.
    h = x[:, 0:1] * w1[0:1, :]
    for i in range(1, in_f):
        h = h + x[:, i:i + 1] * w1[i:i + 1, :]
    h = jnp.sin(h + b1_ref[0])

    # Layer 2: lane-dense (TN, GH) @ (GH, GH) block-diagonal MXU matmul.
    h = jnp.dot(h, w2_ref[0], preferred_element_type=jnp.float32) + b2_ref[0]
    h = jnp.sin(h)

    # Layer 3: (TN, GH) @ (GH, GO) block-diagonal; +0.5 folded into b3.
    y = jnp.dot(h, w3_ref[0], preferred_element_type=jnp.float32) + b3_ref[0]
    out_ref[0] = y.astype(out_ref.dtype)                          # dense store


# ------------------------------ Python wrapper -------------------------------
def batch_siren_forward(weights, biases, coords, *, group=4, tile_n=2048):
    """weights: list of 3 arrays (B, in_l, out_l, 1); biases: list of 3 arrays
    (B, out_l, 1); coords: (N, in_features). Returns (B, N, out_features)."""
    # Strip trailing 1 (the torch flatten/unflatten round-trip is an identity).
    w1, w2, w3 = (w[..., 0].astype(jnp.float32) for w in weights)   # (B, in, out)
    b1, b2, b3 = (b[..., 0].astype(jnp.float32) for b in biases)    # (B, out)

    B, in_f, hid = w1.shape
    out_f = w3.shape[-1]
    N = coords.shape[0]

    # ---- batch packing: G batch elements per grid step ----
    G = max(1, int(group))
    B_pad = ((B + G - 1) // G) * G
    if B_pad != B:
        pad = B_pad - B
        w1 = jnp.pad(w1, ((0, pad), (0, 0), (0, 0)))
        w2 = jnp.pad(w2, ((0, pad), (0, 0), (0, 0)))
        w3 = jnp.pad(w3, ((0, pad), (0, 0), (0, 0)))
        b1 = jnp.pad(b1, ((0, pad), (0, 0)))
        b2 = jnp.pad(b2, ((0, pad), (0, 0)))
        b3 = jnp.pad(b3, ((0, pad), (0, 0)))
    BG = B_pad // G

    # ---- pad out_features so the packed output width is lane-dense ----
    lane = 128
    if lane % G == 0:
        out_pad = max(out_f, ((out_f * G + lane - 1) // lane) * lane // G)
    else:
        out_pad = out_f
    GH = G * hid
    GO = G * out_pad

    # ---- tile / pad the coordinate axis ----
    tile_n = int(tile_n)
    tile_n = min(tile_n, ((N + 7) // 8) * 8)
    tile_n = max(8, (tile_n // 8) * 8)
    N_pad = ((N + tile_n - 1) // tile_n) * tile_n
    coords_p = jnp.pad(coords.astype(jnp.float32), ((0, N_pad - N), (0, 0)))

    # ---- pack weights: concat W1, block-diagonal W2/W3; fold W0 and +0.5 ----
    w1g = w1.reshape(BG, G, in_f, hid) * W0
    b1g = b1.reshape(BG, G, hid) * W0
    w2g = w2.reshape(BG, G, hid, hid) * W0
    b2g = b2.reshape(BG, G, hid) * W0
    w3g = w3.reshape(BG, G, hid, out_f)
    b3g = b3.reshape(BG, G, out_f) + 0.5
    if out_pad != out_f:
        w3g = jnp.pad(w3g, ((0, 0), (0, 0), (0, 0), (0, out_pad - out_f)))
        b3g = jnp.pad(b3g, ((0, 0), (0, 0), (0, out_pad - out_f)))

    eye = jnp.eye(G, dtype=jnp.float32)
    w1_p = jnp.transpose(w1g, (0, 2, 1, 3)).reshape(BG, in_f, GH)
    b1_p = b1g.reshape(BG, 1, GH)
    w2_p = jnp.einsum("bgij,gh->bgihj", w2g, eye).reshape(BG, GH, GH)
    b2_p = b2g.reshape(BG, 1, GH)
    w3_p = jnp.einsum("bgij,gh->bgihj", w3g, eye).reshape(BG, GH, GO)
    b3_p = b3g.reshape(BG, 1, GO)

    grid = (BG, N_pad // tile_n)

    out = pl.pallas_call(
        _siren_packed_kernel,
        out_shape=jax.ShapeDtypeStruct((BG, N_pad, GO), jnp.float32),
        grid_spec=pltpu.PrefetchScalarGridSpec(
            num_scalar_prefetch=0,
            grid=grid,
            in_specs=[
                # coords: constant index map -> loaded once, resident in VMEM
                pl.BlockSpec((N_pad, in_f), lambda g, n: (0, 0)),
                pl.BlockSpec((1, in_f, GH), lambda g, n: (g, 0, 0)),   # W1 (packed)
                pl.BlockSpec((1, 1, GH),    lambda g, n: (g, 0, 0)),   # b1
                pl.BlockSpec((1, GH, GH),   lambda g, n: (g, 0, 0)),   # W2 (blkdiag)
                pl.BlockSpec((1, 1, GH),    lambda g, n: (g, 0, 0)),   # b2
                pl.BlockSpec((1, GH, GO),   lambda g, n: (g, 0, 0)),   # W3 (blkdiag)
                pl.BlockSpec((1, 1, GO),    lambda g, n: (g, 0, 0)),   # b3
            ],
            out_specs=pl.BlockSpec((1, tile_n, GO), lambda g, n: (g, n, 0)),
        ),
        compiler_params=pltpu.CompilerParams(
            dimension_semantics=("parallel", "parallel")),
    )(coords_p, w1_p, b1_p, w2_p, b2_p, w3_p, b3_p)

    # Unpack: (BG, N_pad, G*out_pad) -> (B, N, out_f)
    out = out.reshape(BG, N_pad, G, out_pad)
    out = jnp.transpose(out, (0, 2, 1, 3)).reshape(B_pad, N_pad, out_pad)
    return out[:B, :N, :out_f]


# ------------------------------ helpers / init -------------------------------
def make_coordinates(img_shape):
    """Same convention as the neural-graphs make_coordinates (np.meshgrid 'xy',
    stacked (x, y), over [-1, 1])."""
    xs = np.linspace(-1.0, 1.0, img_shape[0])
    ys = np.linspace(-1.0, 1.0, img_shape[1])
    xg, yg = np.meshgrid(xs, ys)
    coords = np.stack([xg.flatten(), yg.flatten()], axis=-1)
    return jnp.asarray(coords, dtype=jnp.float32)


def init_siren_params(key, batch, in_features, hidden_features, out_features):
    """Deterministic SIREN-style init in the (b, i, o, 1) / (b, o, 1) layout the
    torch forward() expects."""
    dims = [(in_features, hidden_features),
            (hidden_features, hidden_features),
            (hidden_features, out_features)]
    weights, biases = [], []
    for li, (di, do) in enumerate(dims):
        key, kw, kb = jax.random.split(key, 3)
        bound = (1.0 / di) if li == 0 else (np.sqrt(6.0 / di) / W0)
        w = jax.random.uniform(kw, (batch, di, do, 1), jnp.float32, -bound, bound)
        b = jax.random.uniform(kb, (batch, do, 1), jnp.float32, -bound, bound)
        weights.append(w)
        biases.append(b)
    return weights, biases


def reference_forward(weights, biases, coords):
    """Pure-JAX reference (mirrors the torch vmapped INR)."""
    B = weights[0].shape[0]
    x = jnp.broadcast_to(coords[None], (B,) + coords.shape)
    h = jnp.sin(W0 * (jnp.einsum("bni,bio->bno", x, weights[0][..., 0])
                      + biases[0][:, None, :, 0]))
    h = jnp.sin(W0 * (jnp.einsum("bni,bio->bno", h, weights[1][..., 0])
                      + biases[1][:, None, :, 0]))
    y = (jnp.einsum("bni,bio->bno", h, weights[2][..., 0])
         + biases[2][:, None, :, 0])
    return y + 0.5


# ---------------------------------- main --------------------------------------
if __name__ == "__main__":
    B = 2
    in_features = 2
    hidden_features = 32
    out_features = 3
    img_shape = (16, 16)          # N = 256 coordinate points

    key = jax.random.PRNGKey(0)
    weights, biases = init_siren_params(key, B, in_features, hidden_features,
                                        out_features)
    coords = make_coordinates(img_shape)                 # (256, 2)

    out = batch_siren_forward(weights, biases, coords, group=4, tile_n=2048)
    out = jax.block_until_ready(out)

    ref = jax.block_until_ready(reference_forward(weights, biases, coords))
    assert out.shape == (B, img_shape[0] * img_shape[1], out_features)
    np.testing.assert_allclose(np.asarray(out), np.asarray(ref),
                               rtol=2e-4, atol=2e-4)

    print("KERNEL_OK")
</pallas_src>

<mosaic_0001>
module attributes {stable_mosaic.version = 11 : i64} {
  func.func @_siren_packed_kernel(%arg0: i32, %arg1: i32, %arg2: memref<256x2xf32, #tpu.memory_space<vmem>>, %arg3: memref<1x2x128xf32, #tpu.memory_space<vmem>>, %arg4: memref<1x1x128xf32, #tpu.memory_space<vmem>>, %arg5: memref<1x128x128xf32, #tpu.memory_space<vmem>>, %arg6: memref<1x1x128xf32, #tpu.memory_space<vmem>>, %arg7: memref<1x128x128xf32, #tpu.memory_space<vmem>>, %arg8: memref<1x1x128xf32, #tpu.memory_space<vmem>>, %arg9: memref<1x256x128xf32, #tpu.memory_space<vmem>>) attributes {dimension_semantics = [#tpu.dimension_semantics<parallel>, #tpu.dimension_semantics<parallel>], iteration_bounds = array<i64: 1, 1>, scalar_prefetch = 0 : i64, scratch_operands = 0 : i64, tpu.core_type = #tpu.core_type<tc>, window_params = [{pipeline_mode = #tpu.pipeline_mode<synchronous>, transform_indices = @transform_0, window_bounds = array<i64: 256, 2>}, {transform_indices = @transform_1, window_bounds = array<i64: 1, 2, 128>}, {transform_indices = @transform_2, window_bounds = array<i64: 1, 1, 128>}, {transform_indices = @transform_3, window_bounds = array<i64: 1, 128, 128>}, {transform_indices = @transform_4, window_bounds = array<i64: 1, 1, 128>}, {transform_indices = @transform_5, window_bounds = array<i64: 1, 128, 128>}, {transform_indices = @transform_6, window_bounds = array<i64: 1, 1, 128>}, {transform_indices = @transform_7, window_bounds = array<i64: 1, 256, 128>}]} {
    %c256_i32 = arith.constant 256 : i32
    %0 = arith.muli %arg1, %c256_i32 : i32
    %1 = tpu.assume_multiple %0, 256 : i32
    %2 = arith.index_cast %1 : i32 to index
    %c0 = arith.constant 0 : index
    %3 = vector.load %arg2[%2, %c0] : memref<256x2xf32, #tpu.memory_space<vmem>>, vector<256x2xf32>
    %c0_0 = arith.constant 0 : index
    %c0_1 = arith.constant 0 : index
    %c0_2 = arith.constant 0 : index
    %4 = vector.load %arg3[%c0_0, %c0_1, %c0_2] : memref<1x2x128xf32, #tpu.memory_space<vmem>>, vector<1x2x128xf32>
    %5 = vector.shape_cast %4 : vector<1x2x128xf32> to vector<2x128xf32>
    %6 = vector.extract_strided_slice %3 {offsets = [0, 0], sizes = [256, 1], strides = [1, 1]} : vector<256x2xf32> to vector<256x1xf32>
    %7 = vector.extract_strided_slice %5 {offsets = [0, 0], sizes = [1, 128], strides = [1, 1]} : vector<2x128xf32> to vector<1x128xf32>
    %8 = vector.broadcast %6 : vector<256x1xf32> to vector<256x128xf32>
    %9 = vector.broadcast %7 : vector<1x128xf32> to vector<256x128xf32>
    %10 = arith.mulf %8, %9 : vector<256x128xf32>
    %11 = vector.extract_strided_slice %3 {offsets = [0, 1], sizes = [256, 1], strides = [1, 1]} : vector<256x2xf32> to vector<256x1xf32>
    %12 = vector.extract_strided_slice %5 {offsets = [1, 0], sizes = [1, 128], strides = [1, 1]} : vector<2x128xf32> to vector<1x128xf32>
    %13 = vector.broadcast %11 : vector<256x1xf32> to vector<256x128xf32>
    %14 = vector.broadcast %12 : vector<1x128xf32> to vector<256x128xf32>
    %15 = arith.mulf %13, %14 : vector<256x128xf32>
    %16 = arith.addf %10, %15 : vector<256x128xf32>
    %c0_3 = arith.constant 0 : index
    %c0_4 = arith.constant 0 : index
    %c0_5 = arith.constant 0 : index
    %17 = vector.load %arg4[%c0_3, %c0_4, %c0_5] : memref<1x1x128xf32, #tpu.memory_space<vmem>>, vector<1x1x128xf32>
    %18 = vector.shape_cast %17 : vector<1x1x128xf32> to vector<1x128xf32>
    %19 = vector.broadcast %18 : vector<1x128xf32> to vector<256x128xf32>
    %20 = arith.addf %16, %19 : vector<256x128xf32>
    %21 = math.sin %20 : vector<256x128xf32>
    %c0_6 = arith.constant 0 : index
    %c0_7 = arith.constant 0 : index
    %c0_8 = arith.constant 0 : index
    %22 = vector.load %arg5[%c0_6, %c0_7, %c0_8] : memref<1x128x128xf32, #tpu.memory_space<vmem>>, vector<1x128x128xf32>
    %23 = vector.shape_cast %22 : vector<1x128x128xf32> to vector<128x128xf32>
    %cst = arith.constant dense<0.000000e+00> : vector<256x128xf32>
    %24 = tpu.matmul %21, %23, %cst {dimension_numbers = #tpu.dot_dimension_numbers<[1], [0], [0], [1], [0, 0, 1, 1], [], []>} : vector<256x128xf32>, vector<128x128xf32>, vector<256x128xf32> -> vector<256x128xf32>
    %c0_9 = arith.constant 0 : index
    %c0_10 = arith.constant 0 : index
    %c0_11 = arith.constant 0 : index
    %25 = vector.load %arg6[%c0_9, %c0_10, %c0_11] : memref<1x1x128xf32, #tpu.memory_space<vmem>>, vector<1x1x128xf32>
    %26 = vector.shape_cast %25 : vector<1x1x128xf32> to vector<1x128xf32>
    %27 = vector.broadcast %26 : vector<1x128xf32> to vector<256x128xf32>
    %28 = arith.addf %24, %27 : vector<256x128xf32>
    %29 = math.sin %28 : vector<256x128xf32>
    %c0_12 = arith.constant 0 : index
    %c0_13 = arith.constant 0 : index
    %c0_14 = arith.constant 0 : index
    %30 = vector.load %arg7[%c0_12, %c0_13, %c0_14] : memref<1x128x128xf32, #tpu.memory_space<vmem>>, vector<1x128x128xf32>
    %31 = vector.shape_cast %30 : vector<1x128x128xf32> to vector<128x128xf32>
    %cst_15 = arith.constant dense<0.000000e+00> : vector<256x128xf32>
    %32 = tpu.matmul %29, %31, %cst_15 {dimension_numbers = #tpu.dot_dimension_numbers<[1], [0], [0], [1], [0, 0, 1, 1], [], []>} : vector<256x128xf32>, vector<128x128xf32>, vector<256x128xf32> -> vector<256x128xf32>
    %c0_16 = arith.constant 0 : index
    %c0_17 = arith.constant 0 : index
    %c0_18 = arith.constant 0 : index
    %33 = vector.load %arg8[%c0_16, %c0_17, %c0_18] : memref<1x1x128xf32, #tpu.memory_space<vmem>>, vector<1x1x128xf32>
    %34 = vector.shape_cast %33 : vector<1x1x128xf32> to vector<1x128xf32>
    %35 = vector.broadcast %34 : vector<1x128xf32> to vector<256x128xf32>
    %36 = arith.addf %32, %35 : vector<256x128xf32>
    %c0_19 = arith.constant 0 : index
    %c0_20 = arith.constant 0 : index
    %c0_21 = arith.constant 0 : index
    %37 = vector.load %arg9[%c0_19, %c0_20, %c0_21] : memref<1x256x128xf32, #tpu.memory_space<vmem>>, vector<1x256x128xf32>
    %38 = vector.shape_cast %37 : vector<1x256x128xf32> to vector<256x128xf32>
    %39 = vector.shape_cast %36 : vector<256x128xf32> to vector<1x256x128xf32>
    tpu.vector_store %arg9[%c0_19, %c0_20, %c0_21], %39 {strides = array<i32>} : memref<1x256x128xf32, #tpu.memory_space<vmem>>, vector<1x256x128xf32>,
    return
  }
  func.func @transform_0(%arg0: i32, %arg1: i32) -> (i32, i32) {
    %c0_i32 = arith.constant 0 : i32
    %c0_i32_0 = arith.constant 0 : i32
    %c0_i32_1 = arith.constant 0 : i32
    return %c0_i32, %c0_i32_0 : i32, i32
  }
  func.func @transform_1(%arg0: i32, %arg1: i32) -> (i32, i32, i32) {
    %c0_i32 = arith.constant 0 : i32
    %c0_i32_0 = arith.constant 0 : i32
    %c0_i32_1 = arith.constant 0 : i32
    return %arg0, %c0_i32, %c0_i32_0 : i32, i32, i32
  }
  func.func @transform_2(%arg0: i32, %arg1: i32) -> (i32, i32, i32) {
    %c0_i32 = arith.constant 0 : i32
    %c0_i32_0 = arith.constant 0 : i32
    %c0_i32_1 = arith.constant 0 : i32
    return %arg0, %c0_i32, %c0_i32_0 : i32, i32, i32
  }
  func.func @transform_3(%arg0: i32, %arg1: i32) -> (i32, i32, i32) {
    %c0_i32 = arith.constant 0 : i32
    %c0_i32_0 = arith.constant 0 : i32
    %c0_i32_1 = arith.constant 0 : i32
    return %arg0, %c0_i32, %c0_i32_0 : i32, i32, i32
  }
  func.func @transform_4(%arg0: i32, %arg1: i32) -> (i32, i32, i32) {
    %c0_i32 = arith.constant 0 : i32
    %c0_i32_0 = arith.constant 0 : i32
    %c0_i32_1 = arith.constant 0 : i32
    return %arg0, %c0_i32, %c0_i32_0 : i32, i32, i32
  }
  func.func @transform_5(%arg0: i32, %arg1: i32) -> (i32, i32, i32) {
    %c0_i32 = arith.constant 0 : i32
    %c0_i32_0 = arith.constant 0 : i32
    %c0_i32_1 = arith.constant 0 : i32
    return %arg0, %c0_i32, %c0_i32_0 : i32, i32, i32
  }
  func.func @transform_6(%arg0: i32, %arg1: i32) -> (i32, i32, i32) {
    %c0_i32 = arith.constant 0 : i32
    %c0_i32_0 = arith.constant 0 : i32
    %c0_i32_1 = arith.constant 0 : i32
    return %arg0, %c0_i32, %c0_i32_0 : i32, i32, i32
  }
  func.func @transform_7(%arg0: i32, %arg1: i32) -> (i32, i32, i32) {
    %c0_i32 = arith.constant 0 : i32
    %c0_i32_0 = arith.constant 0 : i32
    return %arg0, %arg1, %c0_i32 : i32, i32, i32
  }
}

</mosaic_0001>

<llo_original>
// kernel: tpu_custom_call.1
$region0: #{tpu_custom_call.1}
  #allocation0 [shape = 'u32[]', space=smem, size = 0x4, offset = 0x4, fixed_abs, tag = 'smem constant byte address 0x4 - core index']
  #allocation1 [shape = 'u32[72,128]{1,0:T(1,128)}', space=vmem, size = 0x9000, scoped, tag = 'internal scratch']
  %s0 = inlined_call_operand.vmem [shape: f32[256,2], index: 0, kind: input, shape index: {}]
  %s1 = inlined_call_operand.vmem [shape: f32[1,2,128], index: 1, kind: input, shape index: {}]
  %s2 = inlined_call_operand.vmem [shape: f32[1,1,128], index: 2, kind: input, shape index: {}]
  %s3 = inlined_call_operand.vmem [shape: f32[1,128,128], index: 3, kind: input, shape index: {}]
  %s4 = inlined_call_operand.vmem [shape: f32[1,1,128], index: 4, kind: input, shape index: {}]
  %s5 = inlined_call_operand.vmem [shape: f32[1,128,128], index: 5, kind: input, shape index: {}]
  %s6 = inlined_call_operand.vmem [shape: f32[1,1,128], index: 6, kind: input, shape index: {}]
  %s7 = inlined_call_operand.hbm [shape: f32[1,256,128], index: 7, kind: output, shape index: {}]
  %s8 = sld [smem:[#allocation0]]
  $region38: #{tpu_custom_call.1} parent=0
    _
  %s10 = ssub.s32 1, %s8
  %s11 = scalar_select 0, %s10, %s8
  $region1: #{tpu_custom_call.1} parent=0
    #allocation2 [shape = 'u8[131072]{0}', space=vmem, size = 0x20000, scoped, tag = 'output window, operand 0, single buffered']
    #allocation3 [shape = 's32[1]{0}', space=sflag, size = 0x4, scoped, tag = 'scoped memory for tpu_custom_call.1']
    %12 = vsyncpa [#allocation3], 0
    // Predicated region
    $region2: #{tpu_custom_call.1} parent=1 // pred_check
      _
    $region3: #{tpu_custom_call.1} parent=1 // pred_check_branch
      %14 = sbr.rel (0) target = $region5
    $region4: #{tpu_custom_call.1} parent=1 // pred_region
      _
    $region5: #{tpu_custom_call.1} parent=1 // pred_fallthru
      _
    // Predicated region
    $region6: #{tpu_custom_call.1} parent=1 // pred_check
      _
    $region7: #{tpu_custom_call.1} parent=1 // pred_check_branch
      %16 = sbr.rel (0) target = $region9
    $region8: #{tpu_custom_call.1} parent=1 // pred_region
      _
    $region9: #{tpu_custom_call.1} parent=1 // pred_fallthru
      _
    // Predicated region
    $region10: #{tpu_custom_call.1} parent=1 // pred_check
      _
    $region11: #{tpu_custom_call.1} parent=1 // pred_check_branch
      %18 = sbr.rel (0) target = $region13
    $region12: #{tpu_custom_call.1} parent=1 // pred_region
      _
    $region13: #{tpu_custom_call.1} parent=1 // pred_fallthru
      _
    // Predicated region
    $region14: #{tpu_custom_call.1} parent=1 // pred_check
      _
    $region15: #{tpu_custom_call.1} parent=1 // pred_check_branch
      %20 = sbr.rel (0) target = $region17
    $region16: #{tpu_custom_call.1} parent=1 // pred_region
      _
    $region17: #{tpu_custom_call.1} parent=1 // pred_fallthru
      _
    // Predicated region
    $region18: #{tpu_custom_call.1} parent=1 // pred_check
      _
    $region19: #{tpu_custom_call.1} parent=1 // pred_check_branch
      %22 = sbr.rel (0) target = $region21
    $region20: #{tpu_custom_call.1} parent=1 // pred_region
      _
    $region21: #{tpu_custom_call.1} parent=1 // pred_fallthru
      _
    // Predicated region
    $region22: #{tpu_custom_call.1} parent=1 // pred_check
      _
    $region23: #{tpu_custom_call.1} parent=1 // pred_check_branch
      %24 = sbr.rel (0) target = $region25
    $region24: #{tpu_custom_call.1} parent=1 // pred_region
      _
    $region25: #{tpu_custom_call.1} parent=1 // pred_fallthru
      _
    // Predicated region
    $region26: #{tpu_custom_call.1} parent=1 // pred_check
      _
    $region27: #{tpu_custom_call.1} parent=1 // pred_check_branch
      %26 = sbr.rel (0) target = $region29
    $region28: #{tpu_custom_call.1} parent=1 // pred_region
      _
    $region29: #{tpu_custom_call.1} parent=1 // pred_fallthru
      _
    %s27 = smul.u32 0, 256
    %s28 = scalar_lea.vmem %s0, %s27
    %v29 = vld [vmem:[%s28] sm:$0xff]
    %v30 = vld [vmem:[%s28 + $0x8] sm:$0xff]
    %v31 = vld [vmem:[%s28 + $0x10] sm:$0xff]
    %v32 = vld [vmem:[%s28 + $0x18] sm:$0xff]
    %v33 = vld [vmem:[%s28 + $0x20] sm:$0xff]
    %v34 = vld [vmem:[%s28 + $0x28] sm:$0xff]
    %v35 = vld [vmem:[%s28 + $0x30] sm:$0xff]
    %v36 = vld [vmem:[%s28 + $0x38] sm:$0xff]
    %v37 = vld [vmem:[%s28 + $0x40] sm:$0xff]
    %v38 = vld [vmem:[%s28 + $0x48] sm:$0xff]
    %v39 = vld [vmem:[%s28 + $0x50] sm:$0xff]
    %v40 = vld [vmem:[%s28 + $0x58] sm:$0xff]
    %v41 = vld [vmem:[%s28 + $0x60] sm:$0xff]
    %v42 = vld [vmem:[%s28 + $0x68] sm:$0xff]
    %v43 = vld [vmem:[%s28 + $0x70] sm:$0xff]
    %v44 = vld [vmem:[%s28 + $0x78] sm:$0xff]
    %v45 = vld [vmem:[%s28 + $0x80] sm:$0xff]
    %v46 = vld [vmem:[%s28 + $0x88] sm:$0xff]
    %v47 = vld [vmem:[%s28 + $0x90] sm:$0xff]
    %v48 = vld [vmem:[%s28 + $0x98] sm:$0xff]
    %v49 = vld [vmem:[%s28 + $0xa0] sm:$0xff]
    %v50 = vld [vmem:[%s28 + $0xa8] sm:$0xff]
    %v51 = vld [vmem:[%s28 + $0xb0] sm:$0xff]
    %v52 = vld [vmem:[%s28 + $0xb8] sm:$0xff]
    %v53 = vld [vmem:[%s28 + $0xc0] sm:$0xff]
    %v54 = vld [vmem:[%s28 + $0xc8] sm:$0xff]
    %v55 = vld [vmem:[%s28 + $0xd0] sm:$0xff]
    %v56 = vld [vmem:[%s28 + $0xd8] sm:$0xff]
    %v57 = vld [vmem:[%s28 + $0xe0] sm:$0xff]
    %v58 = vld [vmem:[%s28 + $0xe8] sm:$0xff]
    %v59 = vld [vmem:[%s28 + $0xf0] sm:$0xff]
    %v60 = vld [vmem:[%s28 + $0xf8] sm:$0xff]
    %v61 = vld [vmem:[%s1] sm:$0x3]
    %63 = vset.pattern.permute.xlu0 0
    %64 = vperm.xlu0 %63, %v29
    %v65 = vpop.permute.xlu0 %64
    %68 = vset.pattern.permute.xlu0 0
    %69 = vperm.xlu0 %68, %v30
    %v70 = vpop.permute.xlu0 %69
    %73 = vset.pattern.permute.xlu0 0
    %74 = vperm.xlu0 %73, %v31
    %v75 = vpop.permute.xlu0 %74
    %78 = vset.pattern.permute.xlu0 0
    %79 = vperm.xlu0 %78, %v32
    %v80 = vpop.permute.xlu0 %79
    %83 = vset.pattern.permute.xlu0 0
    %84 = vperm.xlu0 %83, %v33
    %v85 = vpop.permute.xlu0 %84
    %88 = vset.pattern.permute.xlu0 0
    %89 = vperm.xlu0 %88, %v34
    %v90 = vpop.permute.xlu0 %89
    %93 = vset.pattern.permute.xlu0 0
    %94 = vperm.xlu0 %93, %v35
    %v95 = vpop.permute.xlu0 %94
    %98 = vset.pattern.permute.xlu0 0
    %99 = vperm.xlu0 %98, %v36
    %v100 = vpop.permute.xlu0 %99
    %103 = vset.pattern.permute.xlu0 0
    %104 = vperm.xlu0 %103, %v37
    %v105 = vpop.permute.xlu0 %104
    %108 = vset.pattern.permute.xlu0 0
    %109 = vperm.xlu0 %108, %v38
    %v110 = vpop.permute.xlu0 %109
    %113 = vset.pattern.permute.xlu0 0
    %114 = vperm.xlu0 %113, %v39
    %v115 = vpop.permute.xlu0 %114
    %118 = vset.pattern.permute.xlu0 0
    %119 = vperm.xlu0 %118, %v40
    %v120 = vpop.permute.xlu0 %119
    %123 = vset.pattern.permute.xlu0 0
    %124 = vperm.xlu0 %123, %v41
    %v125 = vpop.permute.xlu0 %124
    %128 = vset.pattern.permute.xlu0 0
    %129 = vperm.xlu0 %128, %v42
    %v130 = vpop.permute.xlu0 %129
    %133 = vset.pattern.permute.xlu0 0
    %134 = vperm.xlu0 %133, %v43
    %v135 = vpop.permute.xlu0 %134
    %138 = vset.pattern.permute.xlu0 0
    %139 = vperm.xlu0 %138, %v44
    %v140 = vpop.permute.xlu0 %139
    %143 = vset.pattern.permute.xlu0 0
    %144 = vperm.xlu0 %143, %v45
    %v145 = vpop.permute.xlu0 %144
    %148 = vset.pattern.permute.xlu0 0
    %149 = vperm.xlu0 %148, %v46
    %v150 = vpop.permute.xlu0 %149
    %153 = vset.pattern.permute.xlu0 0
    %154 = vperm.xlu0 %153, %v47
    %v155 = vpop.permute.xlu0 %154
    %158 = vset.pattern.permute.xlu0 0
    %159 = vperm.xlu0 %158, %v48
    %v160 = vpop.permute.xlu0 %159
    %163 = vset.pattern.permute.xlu0 0
    %164 = vperm.xlu0 %163, %v49
    %v165 = vpop.permute.xlu0 %164
    %168 = vset.pattern.permute.xlu0 0
    %169 = vperm.xlu0 %168, %v50
    %v170 = vpop.permute.xlu0 %169
    %173 = vset.pattern.permute.xlu0 0
    %174 = vperm.xlu0 %173, %v51
    %v175 = vpop.permute.xlu0 %174
    %178 = vset.pattern.permute.xlu0 0
    %179 = vperm.xlu0 %178, %v52
    %v180 = vpop.permute.xlu0 %179
    %183 = vset.pattern.permute.xlu0 0
    %184 = vperm.xlu0 %183, %v53
    %v185 = vpop.permute.xlu0 %184
    %188 = vset.pattern.permute.xlu0 0
    %189 = vperm.xlu0 %188, %v54
    %v190 = vpop.permute.xlu0 %189
    %193 = vset.pattern.permute.xlu0 0
    %194 = vperm.xlu0 %193, %v55
    %v195 = vpop.permute.xlu0 %194
    %198 = vset.pattern.permute.xlu0 0
    %199 = vperm.xlu0 %198, %v56
    %v200 = vpop.permute.xlu0 %199
    %203 = vset.pattern.permute.xlu0 0
    %204 = vperm.xlu0 %203, %v57
    %v205 = vpop.permute.xlu0 %204
    %208 = vset.pattern.permute.xlu0 0
    %209 = vperm.xlu0 %208, %v58
    %v210 = vpop.permute.xlu0 %209
    %213 = vset.pattern.permute.xlu0 0
    %214 = vperm.xlu0 %213, %v59
    %v215 = vpop.permute.xlu0 %214
    %218 = vset.pattern.permute.xlu0 0
    %219 = vperm.xlu0 %218, %v60
    %v220 = vpop.permute.xlu0 %219
    %v222 = vperm.slane %v61, 0
    %v223 = vmul.f32 %v65, %v222
    %v224 = vmul.f32 %v70, %v222
    %v225 = vmul.f32 %v75, %v222
    %v226 = vmul.f32 %v80, %v222
    %v227 = vmul.f32 %v85, %v222
    %v228 = vmul.f32 %v90, %v222
    %v229 = vmul.f32 %v95, %v222
    %v230 = vmul.f32 %v100, %v222
    %v231 = vmul.f32 %v105, %v222
    %v232 = vmul.f32 %v110, %v222
    %v233 = vmul.f32 %v115, %v222
    %v234 = vmul.f32 %v120, %v222
    %v235 = vmul.f32 %v125, %v222
    %v236 = vmul.f32 %v130, %v222
    %v237 = vmul.f32 %v135, %v222
    %v238 = vmul.f32 %v140, %v222
    %v239 = vmul.f32 %v145, %v222
    %v240 = vmul.f32 %v150, %v222
    %v241 = vmul.f32 %v155, %v222
    %v242 = vmul.f32 %v160, %v222
    %v243 = vmul.f32 %v165, %v222
    %v244 = vmul.f32 %v170, %v222
    %v245 = vmul.f32 %v175, %v222
    %v246 = vmul.f32 %v180, %v222
    %v247 = vmul.f32 %v185, %v222
    %v248 = vmul.f32 %v190, %v222
    %v249 = vmul.f32 %v195, %v222
    %v250 = vmul.f32 %v200, %v222
    %v251 = vmul.f32 %v205, %v222
    %v252 = vmul.f32 %v210, %v222
    %v253 = vmul.f32 %v215, %v222
    %v254 = vmul.f32 %v220, %v222
    %255 = vset.pattern.permute.xlu0 1
    %256 = vperm.xlu0 %255, %v29
    %v257 = vpop.permute.xlu0 %256
    %259 = vset.pattern.permute.xlu0 1
    %260 = vperm.xlu0 %259, %v30
    %v261 = vpop.permute.xlu0 %260
    %263 = vset.pattern.permute.xlu0 1
    %264 = vperm.xlu0 %263, %v31
    %v265 = vpop.permute.xlu0 %264
    %267 = vset.pattern.permute.xlu0 1
    %268 = vperm.xlu0 %267, %v32
    %v269 = vpop.permute.xlu0 %268
    %271 = vset.pattern.permute.xlu0 1
    %272 = vperm.xlu0 %271, %v33
    %v273 = vpop.permute.xlu0 %272
    %275 = vset.pattern.permute.xlu0 1
    %276 = vperm.xlu0 %275, %v34
    %v277 = vpop.permute.xlu0 %276
    %279 = vset.pattern.permute.xlu0 1
    %280 = vperm.xlu0 %279, %v35
    %v281 = vpop.permute.xlu0 %280
    %283 = vset.pattern.permute.xlu0 1
    %284 = vperm.xlu0 %283, %v36
    %v285 = vpop.permute.xlu0 %284
    %287 = vset.pattern.permute.xlu0 1
    %288 = vperm.xlu0 %287, %v37
    %v289 = vpop.permute.xlu0 %288
    %291 = vset.pattern.permute.xlu0 1
    %292 = vperm.xlu0 %291, %v38
    %v293 = vpop.permute.xlu0 %292
    %295 = vset.pattern.permute.xlu0 1
    %296 = vperm.xlu0 %295, %v39
    %v297 = vpop.permute.xlu0 %296
    %299 = vset.pattern.permute.xlu0 1
    %300 = vperm.xlu0 %299, %v40
    %v301 = vpop.permute.xlu0 %300
    %303 = vset.pattern.permute.xlu0 1
    %304 = vperm.xlu0 %303, %v41
    %v305 = vpop.permute.xlu0 %304
    %307 = vset.pattern.permute.xlu0 1
    %308 = vperm.xlu0 %307, %v42
    %v309 = vpop.permute.xlu0 %308
    %311 = vset.pattern.permute.xlu0 1
    %312 = vperm.xlu0 %311, %v43
    %v313 = vpop.permute.xlu0 %312
    %315 = vset.pattern.permute.xlu0 1
    %316 = vperm.xlu0 %315, %v44
    %v317 = vpop.permute.xlu0 %316
    %319 = vset.pattern.permute.xlu0 1
    %320 = vperm.xlu0 %319, %v45
    %v321 = vpop.permute.xlu0 %320
    %323 = vset.pattern.permute.xlu0 1
    %324 = vperm.xlu0 %323, %v46
    %v325 = vpop.permute.xlu0 %324
    %327 = vset.pattern.permute.xlu0 1
    %328 = vperm.xlu0 %327, %v47
    %v329 = vpop.permute.xlu0 %328
    %331 = vset.pattern.permute.xlu0 1
    %332 = vperm.xlu0 %331, %v48
    %v333 = vpop.permute.xlu0 %332
    %335 = vset.pattern.permute.xlu0 1
    %336 = vperm.xlu0 %335, %v49
    %v337 = vpop.permute.xlu0 %336
    %339 = vset.pattern.permute.xlu0 1
    %340 = vperm.xlu0 %339, %v50
    %v341 = vpop.permute.xlu0 %340
    %343 = vset.pattern.permute.xlu0 1
    %344 = vperm.xlu0 %343, %v51
    %v345 = vpop.permute.xlu0 %344
    %347 = vset.pattern.permute.xlu0 1
    %348 = vperm.xlu0 %347, %v52
    %v349 = vpop.permute.xlu0 %348
    %351 = vset.pattern.permute.xlu0 1
    %352 = vperm.xlu0 %351, %v53
    %v353 = vpop.permute.xlu0 %352
    %355 = vset.pattern.permute.xlu0 1
    %356 = vperm.xlu0 %355, %v54
    %v357 = vpop.permute.xlu0 %356
    %359 = vset.pattern.permute.xlu0 1
    %360 = vperm.xlu0 %359, %v55
    %v361 = vpop.permute.xlu0 %360
    %363 = vset.pattern.permute.xlu0 1
    %364 = vperm.xlu0 %363, %v56
    %v365 = vpop.permute.xlu0 %364
    %367 = vset.pattern.permute.xlu0 1
    %368 = vperm.xlu0 %367, %v57
    %v369 = vpop.permute.xlu0 %368
    %371 = vset.pattern.permute.xlu0 1
    %372 = vperm.xlu0 %371, %v58
    %v373 = vpop.permute.xlu0 %372
    %375 = vset.pattern.permute.xlu0 1
    %376 = vperm.xlu0 %375, %v59
    %v377 = vpop.permute.xlu0 %376
    %379 = vset.pattern.permute.xlu0 1
    %380 = vperm.xlu0 %379, %v60
    %v381 = vpop.permute.xlu0 %380
    %v383 = vperm.slane %v61, 1
    %v384 = vmul.f32 %v257, %v383
    %v385 = vmul.f32 %v261, %v383
    %v386 = vmul.f32 %v265, %v383
    %v387 = vmul.f32 %v269, %v383
    %v388 = vmul.f32 %v273, %v383
    %v389 = vmul.f32 %v277, %v383
    %v390 = vmul.f32 %v281, %v383
    %v391 = vmul.f32 %v285, %v383
    %v392 = vmul.f32 %v289, %v383
    %v393 = vmul.f32 %v293, %v383
    %v394 = vmul.f32 %v297, %v383
    %v395 = vmul.f32 %v301, %v383
    %v396 = vmul.f32 %v305, %v383
    %v397 = vmul.f32 %v309, %v383
    %v398 = vmul.f32 %v313, %v383
    %v399 = vmul.f32 %v317, %v383
    %v400 = vmul.f32 %v321, %v383
    %v401 = vmul.f32 %v325, %v383
    %v402 = vmul.f32 %v329, %v383
    %v403 = vmul.f32 %v333, %v383
    %v404 = vmul.f32 %v337, %v383
    %v405 = vmul.f32 %v341, %v383
    %v406 = vmul.f32 %v345, %v383
    %v407 = vmul.f32 %v349, %v383
    %v408 = vmul.f32 %v353, %v383
    %v409 = vmul.f32 %v357, %v383
    %v410 = vmul.f32 %v361, %v383
    %v411 = vmul.f32 %v365, %v383
    %v412 = vmul.f32 %v369, %v383
    %v413 = vmul.f32 %v373, %v383
    %v414 = vmul.f32 %v377, %v383
    %v415 = vmul.f32 %v381, %v383
    %v416 = vadd.f32 %v223, %v384
    %v417 = vadd.f32 %v224, %v385
    %v418 = vadd.f32 %v225, %v386
    %v419 = vadd.f32 %v226, %v387
    %v420 = vadd.f32 %v227, %v388
    %v421 = vadd.f32 %v228, %v389
    %v422 = vadd.f32 %v229, %v390
    %v423 = vadd.f32 %v230, %v391
    %v424 = vadd.f32 %v231, %v392
    %v425 = vadd.f32 %v232, %v393
    %v426 = vadd.f32 %v233, %v394
    %v427 = vadd.f32 %v234, %v395
    %v428 = vadd.f32 %v235, %v396
    %v429 = vadd.f32 %v236, %v397
    %v430 = vadd.f32 %v237, %v398
    %v431 = vadd.f32 %v238, %v399
    %v432 = vadd.f32 %v239, %v400
    %v433 = vadd.f32 %v240, %v401
    %v434 = vadd.f32 %v241, %v402
    %v435 = vadd.f32 %v242, %v403
    %v436 = vadd.f32 %v243, %v404
    %v437 = vadd.f32 %v244, %v405
    %v438 = vadd.f32 %v245, %v406
    %v439 = vadd.f32 %v246, %v407
    %v440 = vadd.f32 %v247, %v408
    %v441 = vadd.f32 %v248, %v409
    %v442 = vadd.f32 %v249, %v410
    %v443 = vadd.f32 %v250, %v411
    %v444 = vadd.f32 %v251, %v412
    %v445 = vadd.f32 %v252, %v413
    %v446 = vadd.f32 %v253, %v414
    %v447 = vadd.f32 %v254, %v415
    %v448 = vld [vmem:[%s2] sm:$0x1]
    %v450 = vperm.slane %v448, 0
    %v452 = vadd.f32 %v416, %v450
    %v453 = vadd.f32 %v417, %v450
    %v454 = vadd.f32 %v418, %v450
    %v455 = vadd.f32 %v419, %v450
    %v456 = vadd.f32 %v420, %v450
    %v457 = vadd.f32 %v421, %v450
    %v458 = vadd.f32 %v422, %v450
    %v459 = vadd.f32 %v423, %v450
    %v460 = vadd.f32 %v424, %v450
    %v461 = vadd.f32 %v425, %v450
    %v462 = vadd.f32 %v426, %v450
    %v463 = vadd.f32 %v427, %v450
    %v464 = vadd.f32 %v428, %v450
    %v465 = vadd.f32 %v429, %v450
    %v466 = vadd.f32 %v430, %v450
    %v467 = vadd.f32 %v431, %v450
    %v468 = vadd.f32 %v432, %v450
    %v469 = vadd.f32 %v433, %v450
    %v470 = vadd.f32 %v434, %v450
    %v471 = vadd.f32 %v435, %v450
    %v472 = vadd.f32 %v436, %v450
    %v473 = vadd.f32 %v437, %v450
    %v474 = vadd.f32 %v438, %v450
    %v475 = vadd.f32 %v439, %v450
    %v476 = vadd.f32 %v440, %v450
    %v477 = vadd.f32 %v441, %v450
    %v478 = vadd.f32 %v442, %v450
    %v479 = vadd.f32 %v443, %v450
    %v480 = vadd.f32 %v444, %v450
    %v481 = vadd.f32 %v445, %v450
    %v482 = vadd.f32 %v446, %v450
    %v483 = vadd.f32 %v447, %v450
    %v484 = vand.u32 2147483647, %v452
    %vm485 = vcmp.le.f32.partialorder %v484, 0.7853982
    %vm486 = vcmp.lt.s32.totalorder %v452, 0
    %v487 = vand.u32 %v452, 2139095040
    %v488 = vshrl.u32 %v487, 23
    %v489 = vsub.s32 %v488, 127
    %v490 = vand.u32 2147483647, %v452
    %v491 = vand.u32 %v490, 8388607
    %v492 = vor.u32 %v491, 8388608
    %v493 = vsub.s32 0, %v492
    %v494 = vadd.s32 %v489, 1
    %vm495 = vcmp.gt.s32.totalorder %v494, 0
    %v496 = vsel %vm495, %v494, 0
    %v497 = vshrl.u32 %v496, 5
    %v498 = vand.u32 %v496, 31
    %v499 = vsub.s32 32, %v498
    %v500 = vshrl.u32 683565275, %v499
    %v501 = vshll.u32 683565275, %v498
    %v502 = vshrl.u32 2475754826, %v499
    %v503 = vor.u32 %v501, %v502
    %v504 = vshll.u32 2475754826, %v498
    %v505 = vshrl.u32 2131351028, %v499
    %v506 = vor.u32 %v504, %v505
    %v507 = vshll.u32 2131351028, %v498
    %v508 = vshrl.u32 2102212464, %v499
    %v509 = vor.u32 %v507, %v508
    %v510 = vshll.u32 2102212464, %v498
    %v511 = vshrl.u32 920167782, %v499
    %v512 = vor.u32 %v510, %v511
    %v513 = vshll.u32 920167782, %v498
    %v514 = vshrl.u32 1326507024, %v499
    %v515 = vor.u32 %v513, %v514
    %vm516 = vcmp.lt.s32.totalorder %v497, 1
    %vm517 = vcmp.lt.s32.totalorder %v497, 2
    %vm518 = vcmp.lt.s32.totalorder %v497, 3
    %vm519 = vcmp.lt.s32.totalorder %v497, 4
    %v520 = vsel %vm516, %v500, %v503
    %v521 = vsel %vm519, %v509, 2102212464
    %v522 = vsel %vm518, %v506, %v521
    %v523 = vsel %vm517, %v520, %v522
    %v524 = vsel %vm516, %v503, %v506
    %v525 = vsel %vm519, %v512, 920167782
    %v526 = vsel %vm518, %v509, %v525
    %v527 = vsel %vm517, %v524, %v526
    %v528 = vsel %vm516, %v506, %v509
    %v529 = vsel %vm519, %v515, 1326507024
    %v530 = vsel %vm518, %v512, %v529
    %v531 = vsel %vm517, %v528, %v530
    %v532 = vshll.u32 %v492, 8
    %v533 = vand.u32 %v532, 65535
    %v534 = vshrl.u32 %v532, 16
    %v535 = vand.u32 %v531, 65535
    %v536 = vshrl.u32 %v531, 16
    %v537 = vmul.u32 %v533, %v535
    %v538 = vmul.u32 %v533, %v536
    %v539 = vmul.u32 %v534, %v535
    %v540 = vmul.u32 %v534, %v536
    %v541 = vshll.u32 %v538, 16
    %v542 = vshrl.u32 %v538, 16
    %v543 = vshll.u32 %v539, 16
    %v544 = vshrl.u32 %v539, 16
    %vm545 = vc.u32 %v537, %v541
    %v546 = vsel %vm545, 1, 0
    %v547 = vadd.s32 %v537, %v541
    %v548 = vadd.s32 %v540, %v546
    %vm549 = vc.u32 %v547, %v543
    %v550 = vsel %vm549, 1, 0
    %v551 = vadd.s32 %v547, %v543
    %v552 = vadd.s32 %v548, %v550
    %v553 = vadd.s32 %v552, %v542
    %v554 = vadd.s32 %v553, %v544
    %v555 = vand.u32 %v532, 65535
    %v556 = vshrl.u32 %v532, 16
    %v557 = vand.u32 %v527, 65535
    %v558 = vshrl.u32 %v527, 16
    %v559 = vmul.u32 %v555, %v557
    %v560 = vmul.u32 %v555, %v558
    %v561 = vmul.u32 %v556, %v557
    %v562 = vmul.u32 %v556, %v558
    %v563 = vshll.u32 %v560, 16
    %v564 = vshrl.u32 %v560, 16
    %v565 = vshll.u32 %v561, 16
    %v566 = vshrl.u32 %v561, 16
    %vm567 = vc.u32 %v559, %v563
    %v568 = vsel %vm567, 1, 0
    %v569 = vadd.s32 %v559, %v563
    %v570 = vadd.s32 %v562, %v568
    %vm571 = vc.u32 %v569, %v565
    %v572 = vsel %vm571, 1, 0
    %v573 = vadd.s32 %v569, %v565
    %v574 = vadd.s32 %v570, %v572
    %v575 = vadd.s32 %v574, %v564
    %v576 = vadd.s32 %v575, %v566
    %v577 = vmul.u32 %v532, %v523
    %v578 = vadd.s32 %v554, %v573
    %vm579 = vc.u32 %v554, %v573
    %v580 = vadd.s32 %v576, 1
    %v581 = vsel %vm579, %v580, %v576
    %v582 = vadd.s32 %v577, %v581
    %v583 = vadd.s32 %v582, 536870912
    %v584 = vshrl.u32 %v583, 30
    %v585 = vshll.u32 %v584, 30
    %v586 = vsub.s32 %v582, %v585
    %vm587 = vcmp.lt.s32.totalorder %v586, 0
    %v588 = vsub.s32 0, %v586
    %v589 = vsel %vm587, %v588, %v586
    %v590 = vclz %v589
    %v591 = vsub.s32 %v590, 2
    %vm592 = vcmp.gt.s32.totalorder 0, %v591
    %v593 = vsel %vm592, 0, %v591
    %v594 = vsub.s32 32, %v593
    %v595 = vshll.u32 %v586, %v593
    %v596 = vshrl.u32 %v578, %v594
    %v597 = vor.u32 %v595, %v596
    %v598 = vsub.s32 4294967266, %v593
    %v599 = vadd.s32 %v598, 127
    %v600 = vshll.u32 %v599, 23
    %v601 = vor.u32 4788187, %v600
    %v602 = vand.u32 2147483647, %v601
    %v604 = vcvt.s32.f32 %v597
    %v605 = vmul.f32 %v604, %v602
    %v606 = vxor.u32 %v605, 2147483648
    %v607 = vsel %vm486, %v606, %v605
    %v608 = vsub.s32 4, %v584
    %v609 = vsel %vm486, %v608, %v584
    %v610 = vsel %vm485, %v452, %v607
    %v611 = vsel %vm485, 0, %v609
    %v612 = vmul.f32 %v610, %v610
    %v613 = vmul.f32 %v612, -0.001358992
    %v614 = vadd.f32 %v613, 0.041655596
    %v615 = vmul.f32 %v612, %v614
    %v616 = vadd.f32 %v615, -0.4999988
    %v617 = vmul.f32 %v612, %v616
    %v618 = vadd.f32 1.0, %v617
    %v619 = vmul.f32 %v610, %v610
    %v620 = vmul.f32 %v619, -0.00019511016
    %v621 = vadd.f32 %v620, 0.008332121
    %v622 = vmul.f32 %v619, %v621
    %v623 = vadd.f32 %v622, -0.16666654
    %v624 = vmul.f32 %v619, %v623
    %v625 = vadd.f32 %v624, 1.0
    %v626 = vmul.f32 %v625, %v610
    %vm627 = vweird.f32 %v452
    %v628 = vadd.s32 %v611, 3
    %v629 = vand.u32 %v628, 3
    %vm630 = vcmp.lt.s32.totalorder %v629, 2
    %vm631 = vcmp.eq.s32.totalorder %v629, 0
    %v632 = vxor.u32 %v626, 2147483648
    %v633 = vsel %vm631, %v618, %v632
    %vm634 = vcmp.eq.s32.totalorder %v629, 2
    %v635 = vxor.u32 %v618, 2147483648
    %v636 = vsel %vm634, %v635, %v626
    %v637 = vsel %vm630, %v633, %v636
    %v638 = vsel %vm627, nan, %v637
    %v639 = vand.u32 2147483647, %v453
    %vm640 = vcmp.le.f32.partialorder %v639, 0.7853982
    %vm641 = vcmp.lt.s32.totalorder %v453, 0
    %v642 = vand.u32 %v453, 2139095040
    %v643 = vshrl.u32 %v642, 23
    %v644 = vsub.s32 %v643, 127
    %v645 = vand.u32 2147483647, %v453
    %v646 = vand.u32 %v645, 8388607
    %v647 = vor.u32 %v646, 8388608
    %v648 = vsub.s32 0, %v647
    %v649 = vadd.s32 %v644, 1
    %vm650 = vcmp.gt.s32.totalorder %v649, 0
    %v651 = vsel %vm650, %v649, 0
    %v652 = vshrl.u32 %v651, 5
    %v653 = vand.u32 %v651, 31
    %v654 = vsub.s32 32, %v653
    %v655 = vshrl.u32 683565275, %v654
    %v656 = vshll.u32 683565275, %v653
    %v657 = vshrl.u32 2475754826, %v654
    %v658 = vor.u32 %v656, %v657
    %v659 = vshll.u32 2475754826, %v653
    %v660 = vshrl.u32 2131351028, %v654
    %v661 = vor.u32 %v659, %v660
    %v662 = vshll.u32 2131351028, %v653
    %v663 = vshrl.u32 2102212464, %v654
    %v664 = vor.u32 %v662, %v663
    %v665 = vshll.u32 2102212464, %v653
    %v666 = vshrl.u32 920167782, %v654
    %v667 = vor.u32 %v665, %v666
    %v668 = vshll.u32 920167782, %v653
    %v669 = vshrl.u32 1326507024, %v654
    %v670 = vor.u32 %v668, %v669
    %vm671 = vcmp.lt.s32.totalorder %v652, 1
    %vm672 = vcmp.lt.s32.totalorder %v652, 2
    %vm673 = vcmp.lt.s32.totalorder %v652, 3
    %vm674 = vcmp.lt.s32.totalorder %v652, 4
    %v675 = vsel %vm671, %v655, %v658
    %v676 = vsel %vm674, %v664, 2102212464
    %v677 = vsel %vm673, %v661, %v676
    %v678 = vsel %vm672, %v675, %v677
    %v679 = vsel %vm671, %v658, %v661
    %v680 = vsel %vm674, %v667, 920167782
    %v681 = vsel %vm673, %v664, %v680
    %v682 = vsel %vm672, %v679, %v681
    %v683 = vsel %vm671, %v661, %v664
    %v684 = vsel %vm674, %v670, 1326507024
    %v685 = vsel %vm673, %v667, %v684
    %v686 = vsel %vm672, %v683, %v685
    %v687 = vshll.u32 %v647, 8
    %v688 = vand.u32 %v687, 65535
    %v689 = vshrl.u32 %v687, 16
    %v690 = vand.u32 %v686, 65535
    %v691 = vshrl.u32 %v686, 16
    %v692 = vmul.u32 %v688, %v690
    %v693 = vmul.u32 %v688, %v691
    %v694 = vmul.u32 %v689, %v690
    %v695 = vmul.u32 %v689, %v691
    %v696 = vshll.u32 %v693, 16
    %v697 = vshrl.u32 %v693, 16
    %v698 = vshll.u32 %v694, 16
    %v699 = vshrl.u32 %v694, 16
    %vm700 = vc.u32 %v692, %v696
    %v701 = vsel %vm700, 1, 0
    %v702 = vadd.s32 %v692, %v696
    %v703 = vadd.s32 %v695, %v701
    %vm704 = vc.u32 %v702, %v698
    %v705 = vsel %vm704, 1, 0
    %v706 = vadd.s32 %v702, %v698
    %v707 = vadd.s32 %v703, %v705
    %v708 = vadd.s32 %v707, %v697
    %v709 = vadd.s32 %v708, %v699
    %v710 = vand.u32 %v687, 65535
    %v711 = vshrl.u32 %v687, 16
    %v712 = vand.u32 %v682, 65535
    %v713 = vshrl.u32 %v682, 16
    %v714 = vmul.u32 %v710, %v712
    %v715 = vmul.u32 %v710, %v713
    %v716 = vmul.u32 %v711, %v712
    %v717 = vmul.u32 %v711, %v713
    %v718 = vshll.u32 %v715, 16
    %v719 = vshrl.u32 %v715, 16
    %v720 = vshll.u32 %v716, 16
    %v721 = vshrl.u32 %v716, 16
    %vm722 = vc.u32 %v714, %v718
    %v723 = vsel %vm722, 1, 0
    %v724 = vadd.s32 %v714, %v718
    %v725 = vadd.s32 %v717, %v723
    %vm726 = vc.u32 %v724, %v720
    %v727 = vsel %vm726, 1, 0
    %v728 = vadd.s32 %v724, %v720
    %v729 = vadd.s32 %v725, %v727
    %v730 = vadd.s32 %v729, %v719
    %v731 = vadd.s32 %v730, %v721
    %v732 = vmul.u32 %v687, %v678
    %v733 = vadd.s32 %v709, %v728
    %vm734 = vc.u32 %v709, %v728
    %v735 = vadd.s32 %v731, 1
    %v736 = vsel %vm734, %v735, %v731
    %v737 = vadd.s32 %v732, %v736
    %v738 = vadd.s32 %v737, 536870912
    %v739 = vshrl.u32 %v738, 30
    %v740 = vshll.u32 %v739, 30
    %v741 = vsub.s32 %v737, %v740
    %vm742 = vcmp.lt.s32.totalorder %v741, 0
    %v743 = vsub.s32 0, %v741
    %v744 = vsel %vm742, %v743, %v741
    %v745 = vclz %v744
    %v746 = vsub.s32 %v745, 2
    %vm747 = vcmp.gt.s32.totalorder 0, %v746
    %v748 = vsel %vm747, 0, %v746
    %v749 = vsub.s32 32, %v748
    %v750 = vshll.u32 %v741, %v748
    %v751 = vshrl.u32 %v733, %v749
    %v752 = vor.u32 %v750, %v751
    %v753 = vsub.s32 4294967266, %v748
    %v754 = vadd.s32 %v753, 127
    %v755 = vshll.u32 %v754, 23
    %v756 = vor.u32 4788187, %v755
    %v757 = vand.u32 2147483647, %v756
    %v759 = vcvt.s32.f32 %v752
    %v760 = vmul.f32 %v759, %v757
    %v761 = vxor.u32 %v760, 2147483648
    %v762 = vsel %vm641, %v761, %v760
    %v763 = vsub.s32 4, %v739
    %v764 = vsel %vm641, %v763, %v739
    %v765 = vsel %vm640, %v453, %v762
    %v766 = vsel %vm640, 0, %v764
    %v767 = vmul.f32 %v765, %v765
    %v768 = vmul.f32 %v767, -0.001358992
    %v769 = vadd.f32 %v768, 0.041655596
    %v770 = vmul.f32 %v767, %v769
    %v771 = vadd.f32 %v770, -0.4999988
    %v772 = vmul.f32 %v767, %v771
    %v773 = vadd.f32 1.0, %v772
    %v774 = vmul.f32 %v765, %v765
    %v775 = vmul.f32 %v774, -0.00019511016
    %v776 = vadd.f32 %v775, 0.008332121
    %v777 = vmul.f32 %v774, %v776
    %v778 = vadd.f32 %v777, -0.16666654
    %v779 = vmul.f32 %v774, %v778
    %v780 = vadd.f32 %v779, 1.0
    %v781 = vmul.f32 %v780, %v765
    %vm782 = vweird.f32 %v453
    %v783 = vadd.s32 %v766, 3
    %v784 = vand.u32 %v783, 3
    %vm785 = vcmp.lt.s32.totalorder %v784, 2
    %vm786 = vcmp.eq.s32.totalorder %v784, 0
    %v787 = vxor.u32 %v781, 2147483648
    %v788 = vsel %vm786, %v773, %v787
    %vm789 = vcmp.eq.s32.totalorder %v784, 2
    %v790 = vxor.u32 %v773, 2147483648
    %v791 = vsel %vm789, %v790, %v781
    %v792 = vsel %vm785, %v788, %v791
    %v793 = vsel %vm782, nan, %v792
    %v794 = vand.u32 2147483647, %v454
    %vm795 = vcmp.le.f32.partialorder %v794, 0.7853982
    %vm796 = vcmp.lt.s32.totalorder %v454, 0
    %v797 = vand.u32 %v454, 2139095040
    %v798 = vshrl.u32 %v797, 23
    %v799 = vsub.s32 %v798, 127
    %v800 = vand.u32 2147483647, %v454
    %v801 = vand.u32 %v800, 8388607
    %v802 = vor.u32 %v801, 8388608
    %v803 = vsub.s32 0, %v802
    %v804 = vadd.s32 %v799, 1
    %vm805 = vcmp.gt.s32.totalorder %v804, 0
    %v806 = vsel %vm805, %v804, 0
    %v807 = vshrl.u32 %v806, 5
    %v808 = vand.u32 %v806, 31
    %v809 = vsub.s32 32, %v808
    %v810 = vshrl.u32 683565275, %v809
    %v811 = vshll.u32 683565275, %v808
    %v812 = vshrl.u32 2475754826, %v809
    %v813 = vor.u32 %v811, %v812
    %v814 = vshll.u32 2475754826, %v808
    %v815 = vshrl.u32 2131351028, %v809
    %v816 = vor.u32 %v814, %v815
    %v817 = vshll.u32 2131351028, %v808
    %v818 = vshrl.u32 2102212464, %v809
    %v819 = vor.u32 %v817, %v818
    %v820 = vshll.u32 2102212464, %v808
    %v821 = vshrl.u32 920167782, %v809
    %v822 = vor.u32 %v820, %v821
    %v823 = vshll.u32 920167782, %v808
    %v824 = vshrl.u32 1326507024, %v809
    %v825 = vor.u32 %v823, %v824
    %vm826 = vcmp.lt.s32.totalorder %v807, 1
    %vm827 = vcmp.lt.s32.totalorder %v807, 2
    %vm828 = vcmp.lt.s32.totalorder %v807, 3
    %vm829 = vcmp.lt.s32.totalorder %v807, 4
    %v830 = vsel %vm826, %v810, %v813
    %v831 = vsel %vm829, %v819, 2102212464
    %v832 = vsel %vm828, %v816, %v831
    %v833 = vsel %vm827, %v830, %v832
    %v834 = vsel %vm826, %v813, %v816
    %v835 = vsel %vm829, %v822, 920167782
    %v836 = vsel %vm828, %v819, %v835
    %v837 = vsel %vm827, %v834, %v836
    %v838 = vsel %vm826, %v816, %v819
    %v839 = vsel %vm829, %v825, 1326507024
    %v840 = vsel %vm828, %v822, %v839
    %v841 = vsel %vm827, %v838, %v840
    %v842 = vshll.u32 %v802, 8
    %v843 = vand.u32 %v842, 65535
    %v844 = vshrl.u32 %v842, 16
    %v845 = vand.u32 %v841, 65535
    %v846 = vshrl.u32 %v841, 16
    %v847 = vmul.u32 %v843, %v845
    %v848 = vmul.u32 %v843, %v846
    %v849 = vmul.u32 %v844, %v845
    %v850 = vmul.u32 %v844, %v846
    %v851 = vshll.u32 %v848, 16
    %v852 = vshrl.u32 %v848, 16
    %v853 = vshll.u32 %v849, 16
    %v854 = vshrl.u32 %v849, 16
    %vm855 = vc.u32 %v847, %v851
    %v856 = vsel %vm855, 1, 0
    %v857 = vadd.s32 %v847, %v851
    %v858 = vadd.s32 %v850, %v856
    %vm859 = vc.u32 %v857, %v853
    %v860 = vsel %vm859, 1, 0
    %v861 = vadd.s32 %v857, %v853
    %v862 = vadd.s32 %v858, %v860
    %v863 = vadd.s32 %v862, %v852
    %v864 = vadd.s32 %v863, %v854
    %v865 = vand.u32 %v842, 65535
    %v866 = vshrl.u32 %v842, 16
    %v867 = vand.u32 %v837, 65535
    %v868 = vshrl.u32 %v837, 16
    %v869 = vmul.u32 %v865, %v867
    %v870 = vmul.u32 %v865, %v868
    %v871 = vmul.u32 %v866, %v867
    %v872 = vmul.u32 %v866, %v868
    %v873 = vshll.u32 %v870, 16
    %v874 = vshrl.u32 %v870, 16
    %v875 = vshll.u32 %v871, 16
    %v876 = vshrl.u32 %v871, 16
    %vm877 = vc.u32 %v869, %v873
    %v878 = vsel %vm877, 1, 0
    %v879 = vadd.s32 %v869, %v873
    %v880 = vadd.s32 %v872, %v878
    %vm881 = vc.u32 %v879, %v875
    %v882 = vsel %vm881, 1, 0
    %v883 = vadd.s32 %v879, %v875
    %v884 = vadd.s32 %v880, %v882
    %v885 = vadd.s32 %v884, %v874
    %v886 = vadd.s32 %v885, %v876
    %v887 = vmul.u32 %v842, %v833
    %v888 = vadd.s32 %v864, %v883
    %vm889 = vc.u32 %v864, %v883
    %v890 = vadd.s32 %v886, 1
    %v891 = vsel %vm889, %v890, %v886
    %v892 = vadd.s32 %v887, %v891
    %v893 = vadd.s32 %v892, 536870912
    %v894 = vshrl.u32 %v893, 30
    %v895 = vshll.u32 %v894, 30
    %v896 = vsub.s32 %v892, %v895
    %vm897 = vcmp.lt.s32.totalorder %v896, 0
    %v898 = vsub.s32 0, %v896
    %v899 = vsel %vm897, %v898, %v896
    %v900 = vclz %v899
    %v901 = vsub.s32 %v900, 2
    %vm902 = vcmp.gt.s32.totalorder 0, %v901
    %v903 = vsel %vm902, 0, %v901
    %v904 = vsub.s32 32, %v903
    %v905 = vshll.u32 %v896, %v903
    %v906 = vshrl.u32 %v888, %v904
    %v907 = vor.u32 %v905, %v906
    %v908 = vsub.s32 4294967266, %v903
    %v909 = vadd.s32 %v908, 127
    %v910 = vshll.u32 %v909, 23
    %v911 = vor.u32 4788187, %v910
    %v912 = vand.u32 2147483647, %v911
    %v914 = vcvt.s32.f32 %v907
    %v915 = vmul.f32 %v914, %v912
    %v916 = vxor.u32 %v915, 2147483648
    %v917 = vsel %vm796, %v916, %v915
    %v918 = vsub.s32 4, %v894
    %v919 = vsel %vm796, %v918, %v894
    %v920 = vsel %vm795, %v454, %v917
    %v921 = vsel %vm795, 0, %v919
    %v922 = vmul.f32 %v920, %v920
    %v923 = vmul.f32 %v922, -0.001358992
    %v924 = vadd.f32 %v923, 0.041655596
    %v925 = vmul.f32 %v922, %v924
    %v926 = vadd.f32 %v925, -0.4999988
    %v927 = vmul.f32 %v922, %v926
    %v928 = vadd.f32 1.0, %v927
    %v929 = vmul.f32 %v920, %v920
    %v930 = vmul.f32 %v929, -0.00019511016
    %v931 = vadd.f32 %v930, 0.008332121
    %v932 = vmul.f32 %v929, %v931
    %v933 = vadd.f32 %v932, -0.16666654
    %v934 = vmul.f32 %v929, %v933
    %v935 = vadd.f32 %v934, 1.0
    %v936 = vmul.f32 %v935, %v920
    %vm937 = vweird.f32 %v454
    %v938 = vadd.s32 %v921, 3
    %v939 = vand.u32 %v938, 3
    %vm940 = vcmp.lt.s32.totalorder %v939, 2
    %vm941 = vcmp.eq.s32.totalorder %v939, 0
    %v942 = vxor.u32 %v936, 2147483648
    %v943 = vsel %vm941, %v928, %v942
    %vm944 = vcmp.eq.s32.totalorder %v939, 2
    %v945 = vxor.u32 %v928, 2147483648
    %v946 = vsel %vm944, %v945, %v936
    %v947 = vsel %vm940, %v943, %v946
    %v948 = vsel %vm937, nan, %v947
    %v949 = vand.u32 2147483647, %v455
    %vm950 = vcmp.le.f32.partialorder %v949, 0.7853982
    %vm951 = vcmp.lt.s32.totalorder %v455, 0
    %v952 = vand.u32 %v455, 2139095040
    %v953 = vshrl.u32 %v952, 23
    %v954 = vsub.s32 %v953, 127
    %v955 = vand.u32 2147483647, %v455
    %v956 = vand.u32 %v955, 8388607
    %v957 = vor.u32 %v956, 8388608
    %v958 = vsub.s32 0, %v957
    %v959 = vadd.s32 %v954, 1
    %vm960 = vcmp.gt.s32.totalorder %v959, 0
    %v961 = vsel %vm960, %v959, 0
    %v962 = vshrl.u32 %v961, 5
    %v963 = vand.u32 %v961, 31
    %v964 = vsub.s32 32, %v963
    %v965 = vshrl.u32 683565275, %v964
    %v966 = vshll.u32 683565275, %v963
    %v967 = vshrl.u32 2475754826, %v964
    %v968 = vor.u32 %v966, %v967
    %v969 = vshll.u32 2475754826, %v963
    %v970 = vshrl.u32 2131351028, %v964
    %v971 = vor.u32 %v969, %v970
    %v972 = vshll.u32 2131351028, %v963
    %v973 = vshrl.u32 2102212464, %v964
    %v974 = vor.u32 %v972, %v973
    %v975 = vshll.u32 2102212464, %v963
    %v976 = vshrl.u32 920167782, %v964
    %v977 = vor.u32 %v975, %v976
    %v978 = vshll.u32 920167782, %v963
    %v979 = vshrl.u32 1326507024, %v964
    %v980 = vor.u32 %v978, %v979
    %vm981 = vcmp.lt.s32.totalorder %v962, 1
    %vm982 = vcmp.lt.s32.totalorder %v962, 2
    %vm983 = vcmp.lt.s32.totalorder %v962, 3
    %vm984 = vcmp.lt.s32.totalorder %v962, 4
    %v985 = vsel %vm981, %v965, %v968
    %v986 = vsel %vm984, %v974, 2102212464
    %v987 = vsel %vm983, %v971, %v986
    %v988 = vsel %vm982, %v985, %v987
    %v989 = vsel %vm981, %v968, %v971
    %v990 = vsel %vm984, %v977, 920167782
    %v991 = vsel %vm983, %v974, %v990
    %v992 = vsel %vm982, %v989, %v991
    %v993 = vsel %vm981, %v971, %v974
    %v994 = vsel %vm984, %v980, 1326507024
    %v995 = vsel %vm983, %v977, %v994
    %v996 = vsel %vm982, %v993, %v995
    %v997 = vshll.u32 %v957, 8
    %v998 = vand.u32 %v997, 65535
    %v999 = vshrl.u32 %v997, 16
    %v1000 = vand.u32 %v996, 65535
    %v1001 = vshrl.u32 %v996, 16
    %v1002 = vmul.u32 %v998, %v1000
    %v1003 = vmul.u32 %v998, %v1001
    %v1004 = vmul.u32 %v999, %v1000
    %v1005 = vmul.u32 %v999, %v1001
    %v1006 = vshll.u32 %v1003, 16
    %v1007 = vshrl.u32 %v1003, 16
    %v1008 = vshll.u32 %v1004, 16
    %v1009 = vshrl.u32 %v1004, 16
    %vm1010 = vc.u32 %v1002, %v1006
    %v1011 = vsel %vm1010, 1, 0
    %v1012 = vadd.s32 %v1002, %v1006
    %v1013 = vadd.s32 %v1005, %v1011
    %vm1014 = vc.u32 %v1012, %v1008
    %v1015 = vsel %vm1014, 1, 0
    %v1016 = vadd.s32 %v1012, %v1008
    %v1017 = vadd.s32 %v1013, %v1015
    %v1018 = vadd.s32 %v1017, %v1007
    %v1019 = vadd.s32 %v1018, %v1009
    %v1020 = vand.u32 %v997, 65535
    %v1021 = vshrl.u32 %v997, 16
    %v1022 = vand.u32 %v992, 65535
    %v1023 = vshrl.u32 %v992, 16
    %v1024 = vmul.u32 %v1020, %v1022
    %v1025 = vmul.u32 %v1020, %v1023
    %v1026 = vmul.u32 %v1021, %v1022
    %v1027 = vmul.u32 %v1021, %v1023
    %v1028 = vshll.u32 %v1025, 16
    %v1029 = vshrl.u32 %v1025, 16
    %v1030 = vshll.u32 %v1026, 16
    %v1031 = vshrl.u32 %v1026, 16
    %vm1032 = vc.u32 %v1024, %v1028
    %v1033 = vsel %vm1032, 1, 0
    %v1034 = vadd.s32 %v1024, %v1028
    %v1035 = vadd.s32 %v1027, %v1033
    %vm1036 = vc.u32 %v1034, %v1030
    %v1037 = vsel %vm1036, 1, 0
    %v1038 = vadd.s32 %v1034, %v1030
    %v1039 = vadd.s32 %v1035, %v1037
    %v1040 = vadd.s32 %v1039, %v1029
    %v1041 = vadd.s32 %v1040, %v1031
    %v1042 = vmul.u32 %v997, %v988
    %v1043 = vadd.s32 %v1019, %v1038
    %vm1044 = vc.u32 %v1019, %v1038
    %v1045 = vadd.s32 %v1041, 1
    %v1046 = vsel %vm1044, %v1045, %v1041
    %v1047 = vadd.s32 %v1042, %v1046
    %v1048 = vadd.s32 %v1047, 536870912
    %v1049 = vshrl.u32 %v1048, 30
    %v1050 = vshll.u32 %v1049, 30
    %v1051 = vsub.s32 %v1047, %v1050
    %vm1052 = vcmp.lt.s32.totalorder %v1051, 0
    %v1053 = vsub.s32 0, %v1051
    %v1054 = vsel %vm1052, %v1053, %v1051
    %v1055 = vclz %v1054
    %v1056 = vsub.s32 %v1055, 2
    %vm1057 = vcmp.gt.s32.totalorder 0, %v1056
    %v1058 = vsel %vm1057, 0, %v1056
    %v1059 = vsub.s32 32, %v1058
    %v1060 = vshll.u32 %v1051, %v1058
    %v1061 = vshrl.u32 %v1043, %v1059
    %v1062 = vor.u32 %v1060, %v1061
    %v1063 = vsub.s32 4294967266, %v1058
    %v1064 = vadd.s32 %v1063, 127
    %v1065 = vshll.u32 %v1064, 23
    %v1066 = vor.u32 4788187, %v1065
    %v1067 = vand.u32 2147483647, %v1066
    %v1069 = vcvt.s32.f32 %v1062
    %v1070 = vmul.f32 %v1069, %v1067
    %v1071 = vxor.u32 %v1070, 2147483648
    %v1072 = vsel %vm951, %v1071, %v1070
    %v1073 = vsub.s32 4, %v1049
    %v1074 = vsel %vm951, %v1073, %v1049
    %v1075 = vsel %vm950, %v455, %v1072
    %v1076 = vsel %vm950, 0, %v1074
    %v1077 = vmul.f32 %v1075, %v1075
    %v1078 = vmul.f32 %v1077, -0.001358992
    %v1079 = vadd.f32 %v1078, 0.041655596
    %v1080 = vmul.f32 %v1077, %v1079
    %v1081 = vadd.f32 %v1080, -0.4999988
    %v1082 = vmul.f32 %v1077, %v1081
    %v1083 = vadd.f32 1.0, %v1082
    %v1084 = vmul.f32 %v1075, %v1075
    %v1085 = vmul.f32 %v1084, -0.00019511016
    %v1086 = vadd.f32 %v1085, 0.008332121
    %v1087 = vmul.f32 %v1084, %v1086
    %v1088 = vadd.f32 %v1087, -0.16666654
    %v1089 = vmul.f32 %v1084, %v1088
    %v1090 = vadd.f32 %v1089, 1.0
    %v1091 = vmul.f32 %v1090, %v1075
    %vm1092 = vweird.f32 %v455
    %v1093 = vadd.s32 %v1076, 3
    %v1094 = vand.u32 %v1093, 3
    %vm1095 = vcmp.lt.s32.totalorder %v1094, 2
    %vm1096 = vcmp.eq.s32.totalorder %v1094, 0
    %v1097 = vxor.u32 %v1091, 2147483648
    %v1098 = vsel %vm1096, %v1083, %v1097
    %vm1099 = vcmp.eq.s32.totalorder %v1094, 2
    %v1100 = vxor.u32 %v1083, 2147483648
    %v1101 = vsel %vm1099, %v1100, %v1091
    %v1102 = vsel %vm1095, %v1098, %v1101
    %v1103 = vsel %vm1092, nan, %v1102
    %v1104 = vand.u32 2147483647, %v456
    %vm1105 = vcmp.le.f32.partialorder %v1104, 0.7853982
    %vm1106 = vcmp.lt.s32.totalorder %v456, 0
    %v1107 = vand.u32 %v456, 2139095040
    %v1108 = vshrl.u32 %v1107, 23
    %v1109 = vsub.s32 %v1108, 127
    %v1110 = vand.u32 2147483647, %v456
    %v1111 = vand.u32 %v1110, 8388607
    %v1112 = vor.u32 %v1111, 8388608
    %v1113 = vsub.s32 0, %v1112
    %v1114 = vadd.s32 %v1109, 1
    %vm1115 = vcmp.gt.s32.totalorder %v1114, 0
    %v1116 = vsel %vm1115, %v1114, 0
    %v1117 = vshrl.u32 %v1116, 5
    %v1118 = vand.u32 %v1116, 31
    %v1119 = vsub.s32 32, %v1118
    %v1120 = vshrl.u32 683565275, %v1119
    %v1121 = vshll.u32 683565275, %v1118
    %v1122 = vshrl.u32 2475754826, %v1119
    %v1123 = vor.u32 %v1121, %v1122
    %v1124 = vshll.u32 2475754826, %v1118
    %v1125 = vshrl.u32 2131351028, %v1119
    %v1126 = vor.u32 %v1124, %v1125
    %v1127 = vshll.u32 2131351028, %v1118
    %v1128 = vshrl.u32 2102212464, %v1119
    %v1129 = vor.u32 %v1127, %v1128
    %v1130 = vshll.u32 2102212464, %v1118
    %v1131 = vshrl.u32 920167782, %v1119
    %v1132 = vor.u32 %v1130, %v1131
    %v1133 = vshll.u32 920167782, %v1118
    %v1134 = vshrl.u32 1326507024, %v1119
    %v1135 = vor.u32 %v1133, %v1134
    %vm1136 = vcmp.lt.s32.totalorder %v1117, 1
    %vm1137 = vcmp.lt.s32.totalorder %v1117, 2
    %vm1138 = vcmp.lt.s32.totalorder %v1117, 3
    %vm1139 = vcmp.lt.s32.totalorder %v1117, 4
    %v1140 = vsel %vm1136, %v1120, %v1123
    %v1141 = vsel %vm1139, %v1129, 2102212464
    %v1142 = vsel %vm1138, %v1126, %v1141
    %v1143 = vsel %vm1137, %v1140, %v1142
    %v1144 = vsel %vm1136, %v1123, %v1126
    %v1145 = vsel %vm1139, %v1132, 920167782
    %v1146 = vsel %vm1138, %v1129, %v1145
    %v1147 = vsel %vm1137, %v1144, %v1146
    %v1148 = vsel %vm1136, %v1126, %v1129
    %v1149 = vsel %vm1139, %v1135, 1326507024
    %v1150 = vsel %vm1138, %v1132, %v1149
    %v1151 = vsel %vm1137, %v1148, %v1150
    %v1152 = vshll.u32 %v1112, 8
    %v1153 = vand.u32 %v1152, 65535
    %v1154 = vshrl.u32 %v1152, 16
    %v1155 = vand.u32 %v1151, 65535
    %v1156 = vshrl.u32 %v1151, 16
    %v1157 = vmul.u32 %v1153, %v1155
    %v1158 = vmul.u32 %v1153, %v1156
    %v1159 = vmul.u32 %v1154, %v1155
    %v1160 = vmul.u32 %v1154, %v1156
    %v1161 = vshll.u32 %v1158, 16
    %v1162 = vshrl.u32 %v1158, 16
    %v1163 = vshll.u32 %v1159, 16
    %v1164 = vshrl.u32 %v1159, 16
    %vm1165 = vc.u32 %v1157, %v1161
    %v1166 = vsel %vm1165, 1, 0
    %v1167 = vadd.s32 %v1157, %v1161
    %v1168 = vadd.s32 %v1160, %v1166
    %vm1169 = vc.u32 %v1167, %v1163
    %v1170 = vsel %vm1169, 1, 0
    %v1171 = vadd.s32 %v1167, %v1163
    %v1172 = vadd.s32 %v1168, %v1170
    %v1173 = vadd.s32 %v1172, %v1162
    %v1174 = vadd.s32 %v1173, %v1164
    %v1175 = vand.u32 %v1152, 65535
    %v1176 = vshrl.u32 %v1152, 16
    %v1177 = vand.u32 %v1147, 65535
    %v1178 = vshrl.u32 %v1147, 16
    %v1179 = vmul.u32 %v1175, %v1177
    %v1180 = vmul.u32 %v1175, %v1178
    %v1181 = vmul.u32 %v1176, %v1177
    %v1182 = vmul.u32 %v1176, %v1178
    %v1183 = vshll.u32 %v1180, 16
    %v1184 = vshrl.u32 %v1180, 16
    %v1185 = vshll.u32 %v1181, 16
    %v1186 = vshrl.u32 %v1181, 16
    %vm1187 = vc.u32 %v1179, %v1183
    %v1188 = vsel %vm1187, 1, 0
    %v1189 = vadd.s32 %v1179, %v1183
    %v1190 = vadd.s32 %v1182, %v1188
    %vm1191 = vc.u32 %v1189, %v1185
    %v1192 = vsel %vm1191, 1, 0
    %v1193 = vadd.s32 %v1189, %v1185
    %v1194 = vadd.s32 %v1190, %v1192
    %v1195 = vadd.s32 %v1194, %v1184
    %v1196 = vadd.s32 %v1195, %v1186
    %v1197 = vmul.u32 %v1152, %v1143
    %v1198 = vadd.s32 %v1174, %v1193
    %vm1199 = vc.u32 %v1174, %v1193
    %v1200 = vadd.s32 %v1196, 1
    %v1201 = vsel %vm1199, %v1200, %v1196
    %v1202 = vadd.s32 %v1197, %v1201
    %v1203 = vadd.s32 %v1202, 536870912
    %v1204 = vshrl.u32 %v1203, 30
    %v1205 = vshll.u32 %v1204, 30
    %v1206 = vsub.s32 %v1202, %v1205
    %vm1207 = vcmp.lt.s32.totalorder %v1206, 0
    %v1208 = vsub.s32 0, %v1206
    %v1209 = vsel %vm1207, %v1208, %v1206
    %v1210 = vclz %v1209
    %v1211 = vsub.s32 %v1210, 2
    %vm1212 = vcmp.gt.s32.totalorder 0, %v1211
    %v1213 = vsel %vm1212, 0, %v1211
    %v1214 = vsub.s32 32, %v1213
    %v1215 = vshll.u32 %v1206, %v1213
    %v1216 = vshrl.u32 %v1198, %v1214
    %v1217 = vor.u32 %v1215, %v1216
    %v1218 = vsub.s32 4294967266, %v1213
    %v1219 = vadd.s32 %v1218, 127
    %v1220 = vshll.u32 %v1219, 23
    %v1221 = vor.u32 4788187, %v1220
    %v1222 = vand.u32 2147483647, %v1221
    %v1224 = vcvt.s32.f32 %v1217
    %v1225 = vmul.f32 %v1224, %v1222
    %v1226 = vxor.u32 %v1225, 2147483648
    %v1227 = vsel %vm1106, %v1226, %v1225
    %v1228 = vsub.s32 4, %v1204
    %v1229 = vsel %vm1106, %v1228, %v1204
    %v1230 = vsel %vm1105, %v456, %v1227
    %v1231 = vsel %vm1105, 0, %v1229
    %v1232 = vmul.f32 %v1230, %v1230
    %v1233 = vmul.f32 %v1232, -0.001358992
    %v1234 = vadd.f32 %v1233, 0.041655596
    %v1235 = vmul.f32 %v1232, %v1234
    %v1236 = vadd.f32 %v1235, -0.4999988
    %v1237 = vmul.f32 %v1232, %v1236
    %v1238 = vadd.f32 1.0, %v1237
    %v1239 = vmul.f32 %v1230, %v1230
    %v1240 = vmul.f32 %v1239, -0.00019511016
    %v1241 = vadd.f32 %v1240, 0.008332121
    %v1242 = vmul.f32 %v1239, %v1241
    %v1243 = vadd.f32 %v1242, -0.16666654
    %v1244 = vmul.f32 %v1239, %v1243
    %v1245 = vadd.f32 %v1244, 1.0
    %v1246 = vmul.f32 %v1245, %v1230
    %vm1247 = vweird.f32 %v456
    %v1248 = vadd.s32 %v1231, 3
    %v1249 = vand.u32 %v1248, 3
    %vm1250 = vcmp.lt.s32.totalorder %v1249, 2
    %vm1251 = vcmp.eq.s32.totalorder %v1249, 0
    %v1252 = vxor.u32 %v1246, 2147483648
    %v1253 = vsel %vm1251, %v1238, %v1252
    %vm1254 = vcmp.eq.s32.totalorder %v1249, 2
    %v1255 = vxor.u32 %v1238, 2147483648
    %v1256 = vsel %vm1254, %v1255, %v1246
    %v1257 = vsel %vm1250, %v1253, %v1256
    %v1258 = vsel %vm1247, nan, %v1257
    %v1259 = vand.u32 2147483647, %v457
    %vm1260 = vcmp.le.f32.partialorder %v1259, 0.7853982
    %vm1261 = vcmp.lt.s32.totalorder %v457, 0
    %v1262 = vand.u32 %v457, 2139095040
    %v1263 = vshrl.u32 %v1262, 23
    %v1264 = vsub.s32 %v1263, 127
    %v1265 = vand.u32 2147483647, %v457
    %v1266 = vand.u32 %v1265, 8388607
    %v1267 = vor.u32 %v1266, 8388608
    %v1268 = vsub.s32 0, %v1267
    %v1269 = vadd.s32 %v1264, 1
    %vm1270 = vcmp.gt.s32.totalorder %v1269, 0
    %v1271 = vsel %vm1270, %v1269, 0
    %v1272 = vshrl.u32 %v1271, 5
    %v1273 = vand.u32 %v1271, 31
    %v1274 = vsub.s32 32, %v1273
    %v1275 = vshrl.u32 683565275, %v1274
    %v1276 = vshll.u32 683565275, %v1273
    %v1277 = vshrl.u32 2475754826, %v1274
    %v1278 = vor.u32 %v1276, %v1277
    %v1279 = vshll.u32 2475754826, %v1273
    %v1280 = vshrl.u32 2131351028, %v1274
    %v1281 = vor.u32 %v1279, %v1280
    %v1282 = vshll.u32 2131351028, %v1273
    %v1283 = vshrl.u32 2102212464, %v1274
    %v1284 = vor.u32 %v1282, %v1283
    %v1285 = vshll.u32 2102212464, %v1273
    %v1286 = vshrl.u32 920167782, %v1274
    %v1287 = vor.u32 %v1285, %v1286
    %v1288 = vshll.u32 920167782, %v1273
    %v1289 = vshrl.u32 1326507024, %v1274
    %v1290 = vor.u32 %v1288, %v1289
    %vm1291 = vcmp.lt.s32.totalorder %v1272, 1
    %vm1292 = vcmp.lt.s32.totalorder %v1272, 2
    %vm1293 = vcmp.lt.s32.totalorder %v1272, 3
    %vm1294 = vcmp.lt.s32.totalorder %v1272, 4
    %v1295 = vsel %vm1291, %v1275, %v1278
    %v1296 = vsel %vm1294, %v1284, 2102212464
    %v1297 = vsel %vm1293, %v1281, %v1296
    %v1298 = vsel %vm1292, %v1295, %v1297
    %v1299 = vsel %vm1291, %v1278, %v1281
    %v1300 = vsel %vm1294, %v1287, 920167782
    %v1301 = vsel %vm1293, %v1284, %v1300
    %v1302 = vsel %vm1292, %v1299, %v1301
    %v1303 = vsel %vm1291, %v1281, %v1284
    %v1304 = vsel %vm1294, %v1290, 1326507024
    %v1305 = vsel %vm1293, %v1287, %v1304
    %v1306 = vsel %vm1292, %v1303, %v1305
    %v1307 = vshll.u32 %v1267, 8
    %v1308 = vand.u32 %v1307, 65535
    %v1309 = vshrl.u32 %v1307, 16
    %v1310 = vand.u32 %v1306, 65535
    %v1311 = vshrl.u32 %v1306, 16
    %v1312 = vmul.u32 %v1308, %v1310
    %v1313 = vmul.u32 %v1308, %v1311
    %v1314 = vmul.u32 %v1309, %v1310
    %v1315 = vmul.u32 %v1309, %v1311
    %v1316 = vshll.u32 %v1313, 16
    %v1317 = vshrl.u32 %v1313, 16
    %v1318 = vshll.u32 %v1314, 16
    %v1319 = vshrl.u32 %v1314, 16
    %vm1320 = vc.u32 %v1312, %v1316
    %v1321 = vsel %vm1320, 1, 0
    %v1322 = vadd.s32 %v1312, %v1316
    %v1323 = vadd.s32 %v1315, %v1321
    %vm1324 = vc.u32 %v1322, %v1318
    %v1325 = vsel %vm1324, 1, 0
    %v1326 = vadd.s32 %v1322, %v1318
    %v1327 = vadd.s32 %v1323, %v1325
    %v1328 = vadd.s32 %v1327, %v1317
    %v1329 = vadd.s32 %v1328, %v1319
    %v1330 = vand.u32 %v1307, 65535
    %v1331 = vshrl.u32 %v1307, 16
    %v1332 = vand.u32 %v1302, 65535
    %v1333 = vshrl.u32 %v1302, 16
    %v1334 = vmul.u32 %v1330, %v1332
    %v1335 = vmul.u32 %v1330, %v1333
    %v1336 = vmul.u32 %v1331, %v1332
    %v1337 = vmul.u32 %v1331, %v1333
    %v1338 = vshll.u32 %v1335, 16
    %v1339 = vshrl.u32 %v1335, 16
    %v1340 = vshll.u32 %v1336, 16
    %v1341 = vshrl.u32 %v1336, 16
    %vm1342 = vc.u32 %v1334, %v1338
    %v1343 = vsel %vm1342, 1, 0
    %v1344 = vadd.s32 %v1334, %v1338
    %v1345 = vadd.s32 %v1337, %v1343
    %vm1346 = vc.u32 %v1344, %v1340
    %v1347 = vsel %vm1346, 1, 0
    %v1348 = vadd.s32 %v1344, %v1340
    %v1349 = vadd.s32 %v1345, %v1347
    %v1350 = vadd.s32 %v1349, %v1339
    %v1351 = vadd.s32 %v1350, %v1341
    %v1352 = vmul.u32 %v1307, %v1298
    %v1353 = vadd.s32 %v1329, %v1348
    %vm1354 = vc.u32 %v1329, %v1348
    %v1355 = vadd.s32 %v1351, 1
    %v1356 = vsel %vm1354, %v1355, %v1351
    %v1357 = vadd.s32 %v1352, %v1356
    %v1358 = vadd.s32 %v1357, 536870912
    %v1359 = vshrl.u32 %v1358, 30
    %v1360 = vshll.u32 %v1359, 30
    %v1361 = vsub.s32 %v1357, %v1360
    %vm1362 = vcmp.lt.s32.totalorder %v1361, 0
    %v1363 = vsub.s32 0, %v1361
    %v1364 = vsel %vm1362, %v1363, %v1361
    %v1365 = vclz %v1364
    %v1366 = vsub.s32 %v1365, 2
    %vm1367 = vcmp.gt.s32.totalorder 0, %v1366
    %v1368 = vsel %vm1367, 0, %v1366
    %v1369 = vsub.s32 32, %v1368
    %v1370 = vshll.u32 %v1361, %v1368
    %v1371 = vshrl.u32 %v1353, %v1369
    %v1372 = vor.u32 %v1370, %v1371
    %v1373 = vsub.s32 4294967266, %v1368
    %v1374 = vadd.s32 %v1373, 127
    %v1375 = vshll.u32 %v1374, 23
    %v1376 = vor.u32 4788187, %v1375
    %v1377 = vand.u32 2147483647, %v1376
    %v1379 = vcvt.s32.f32 %v1372
    %v1380 = vmul.f32 %v1379, %v1377
    %v1381 = vxor.u32 %v1380, 2147483648
    %v1382 = vsel %vm1261, %v1381, %v1380
    %v1383 = vsub.s32 4, %v1359
    %v1384 = vsel %vm1261, %v1383, %v1359
    %v1385 = vsel %vm1260, %v457, %v1382
    %v1386 = vsel %vm1260, 0, %v1384
    %v1387 = vmul.f32 %v1385, %v1385
    %v1388 = vmul.f32 %v1387, -0.001358992
    %v1389 = vadd.f32 %v1388, 0.041655596
    %v1390 = vmul.f32 %v1387, %v1389
    %v1391 = vadd.f32 %v1390, -0.4999988
    %v1392 = vmul.f32 %v1387, %v1391
    %v1393 = vadd.f32 1.0, %v1392
    %v1394 = vmul.f32 %v1385, %v1385
    %v1395 = vmul.f32 %v1394, -0.00019511016
    %v1396 = vadd.f32 %v1395, 0.008332121
    %v1397 = vmul.f32 %v1394, %v1396
    %v1398 = vadd.f32 %v1397, -0.16666654
    %v1399 = vmul.f32 %v1394, %v1398
    %v1400 = vadd.f32 %v1399, 1.0
    %v1401 = vmul.f32 %v1400, %v1385
    %vm1402 = vweird.f32 %v457
    %v1403 = vadd.s32 %v1386, 3
    %v1404 = vand.u32 %v1403, 3
    %vm1405 = vcmp.lt.s32.totalorder %v1404, 2
    %vm1406 = vcmp.eq.s32.totalorder %v1404, 0
    %v1407 = vxor.u32 %v1401, 2147483648
    %v1408 = vsel %vm1406, %v1393, %v1407
    %vm1409 = vcmp.eq.s32.totalorder %v1404, 2
    %v1410 = vxor.u32 %v1393, 2147483648
    %v1411 = vsel %vm1409, %v1410, %v1401
    %v1412 = vsel %vm1405, %v1408, %v1411
    %v1413 = vsel %vm1402, nan, %v1412
    %v1414 = vand.u32 2147483647, %v458
    %vm1415 = vcmp.le.f32.partialorder %v1414, 0.7853982
    %vm1416 = vcmp.lt.s32.totalorder %v458, 0
    %v1417 = vand.u32 %v458, 2139095040
    %v1418 = vshrl.u32 %v1417, 23
    %v1419 = vsub.s32 %v1418, 127
    %v1420 = vand.u32 2147483647, %v458
    %v1421 = vand.u32 %v1420, 8388607
    %v1422 = vor.u32 %v1421, 8388608
    %v1423 = vsub.s32 0, %v1422
    %v1424 = vadd.s32 %v1419, 1
    %vm1425 = vcmp.gt.s32.totalorder %v1424, 0
    %v1426 = vsel %vm1425, %v1424, 0
    %v1427 = vshrl.u32 %v1426, 5
    %v1428 = vand.u32 %v1426, 31
    %v1429 = vsub.s32 32, %v1428
    %v1430 = vshrl.u32 683565275, %v1429
    %v1431 = vshll.u32 683565275, %v1428
    %v1432 = vshrl.u32 2475754826, %v1429
    %v1433 = vor.u32 %v1431, %v1432
    %v1434 = vshll.u32 2475754826, %v1428
    %v1435 = vshrl.u32 2131351028, %v1429
    %v1436 = vor.u32 %v1434, %v1435
    %v1437 = vshll.u32 2131351028, %v1428
    %v1438 = vshrl.u32 2102212464, %v1429
    %v1439 = vor.u32 %v1437, %v1438
    %v1440 = vshll.u32 2102212464, %v1428
    %v1441 = vshrl.u32 920167782, %v1429
    %v1442 = vor.u32 %v1440, %v1441
    %v1443 = vshll.u32 920167782, %v1428
    %v1444 = vshrl.u32 1326507024, %v1429
    %v1445 = vor.u32 %v1443, %v1444
    %vm1446 = vcmp.lt.s32.totalorder %v1427, 1
    %vm1447 = vcmp.lt.s32.totalorder %v1427, 2
    %vm1448 = vcmp.lt.s32.totalorder %v1427, 3
    %vm1449 = vcmp.lt.s32.totalorder %v1427, 4
    %v1450 = vsel %vm1446, %v1430, %v1433
    %v1451 = vsel %vm1449, %v1439, 2102212464
    %v1452 = vsel %vm1448, %v1436, %v1451
    %v1453 = vsel %vm1447, %v1450, %v1452
    %v1454 = vsel %vm1446, %v1433, %v1436
    %v1455 = vsel %vm1449, %v1442, 920167782
    %v1456 = vsel %vm1448, %v1439, %v1455
    %v1457 = vsel %vm1447, %v1454, %v1456
    %v1458 = vsel %vm1446, %v1436, %v1439
    %v1459 = vsel %vm1449, %v1445, 1326507024
    %v1460 = vsel %vm1448, %v1442, %v1459
    %v1461 = vsel %vm1447, %v1458, %v1460
    %v1462 = vshll.u32 %v1422, 8
    %v1463 = vand.u32 %v1462, 65535
    %v1464 = vshrl.u32 %v1462, 16
    %v1465 = vand.u32 %v1461, 65535
    %v1466 = vshrl.u32 %v1461, 16
    %v1467 = vmul.u32 %v1463, %v1465
    %v1468 = vmul.u32 %v1463, %v1466
    %v1469 = vmul.u32 %v1464, %v1465
    %v1470 = vmul.u32 %v1464, %v1466
    %v1471 = vshll.u32 %v1468, 16
    %v1472 = vshrl.u32 %v1468, 16
    %v1473 = vshll.u32 %v1469, 16
    %v1474 = vshrl.u32 %v1469, 16
    %vm1475 = vc.u32 %v1467, %v1471
    %v1476 = vsel %vm1475, 1, 0
    %v1477 = vadd.s32 %v1467, %v1471
    %v1478 = vadd.s32 %v1470, %v1476
    %vm1479 = vc.u32 %v1477, %v1473
    %v1480 = vsel %vm1479, 1, 0
    %v1481 = vadd.s32 %v1477, %v1473
    %v1482 = vadd.s32 %v1478, %v1480
    %v1483 = vadd.s32 %v1482, %v1472
    %v1484 = vadd.s32 %v1483, %v1474
    %v1485 = vand.u32 %v1462, 65535
    %v1486 = vshrl.u32 %v1462, 16
    %v1487 = vand.u32 %v1457, 65535
    %v1488 = vshrl.u32 %v1457, 16
    %v1489 = vmul.u32 %v1485, %v1487
    %v1490 = vmul.u32 %v1485, %v1488
    %v1491 = vmul.u32 %v1486, %v1487
    %v1492 = vmul.u32 %v1486, %v1488
    %v1493 = vshll.u32 %v1490, 16
    %v1494 = vshrl.u32 %v1490, 16
    %v1495 = vshll.u32 %v1491, 16
    %v1496 = vshrl.u32 %v1491, 16
    %vm1497 = vc.u32 %v1489, %v1493
    %v1498 = vsel %vm1497, 1, 0
    %v1499 = vadd.s32 %v1489, %v1493
    %v1500 = vadd.s32 %v1492, %v1498
    %vm1501 = vc.u32 %v1499, %v1495
    %v1502 = vsel %vm1501, 1, 0
    %v1503 = vadd.s32 %v1499, %v1495
    %v1504 = vadd.s32 %v1500, %v1502
    %v1505 = vadd.s32 %v1504, %v1494
    %v1506 = vadd.s32 %v1505, %v1496
    %v1507 = vmul.u32 %v1462, %v1453
    %v1508 = vadd.s32 %v1484, %v1503
    %vm1509 = vc.u32 %v1484, %v1503
    %v1510 = vadd.s32 %v1506, 1
    %v1511 = vsel %vm1509, %v1510, %v1506
    %v1512 = vadd.s32 %v1507, %v1511
    %v1513 = vadd.s32 %v1512, 536870912
    %v1514 = vshrl.u32 %v1513, 30
    %v1515 = vshll.u32 %v1514, 30
    %v1516 = vsub.s32 %v1512, %v1515
    %vm1517 = vcmp.lt.s32.totalorder %v1516, 0
    %v1518 = vsub.s32 0, %v1516
    %v1519 = vsel %vm1517, %v1518, %v1516
    %v1520 = vclz %v1519
    %v1521 = vsub.s32 %v1520, 2
    %vm1522 = vcmp.gt.s32.totalorder 0, %v1521
    %v1523 = vsel %vm1522, 0, %v1521
    %v1524 = vsub.s32 32, %v1523
    %v1525 = vshll.u32 %v1516, %v1523
    %v1526 = vshrl.u32 %v1508, %v1524
    %v1527 = vor.u32 %v1525, %v1526
    %v1528 = vsub.s32 4294967266, %v1523
    %v1529 = vadd.s32 %v1528, 127
    %v1530 = vshll.u32 %v1529, 23
    %v1531 = vor.u32 4788187, %v1530
    %v1532 = vand.u32 2147483647, %v1531
    %v1534 = vcvt.s32.f32 %v1527
    %v1535 = vmul.f32 %v1534, %v1532
    %v1536 = vxor.u32 %v1535, 2147483648
    %v1537 = vsel %vm1416, %v1536, %v1535
    %v1538 = vsub.s32 4, %v1514
    %v1539 = vsel %vm1416, %v1538, %v1514
    %v1540 = vsel %vm1415, %v458, %v1537
    %v1541 = vsel %vm1415, 0, %v1539
    %v1542 = vmul.f32 %v1540, %v1540
    %v1543 = vmul.f32 %v1542, -0.001358992
    %v1544 = vadd.f32 %v1543, 0.041655596
    %v1545 = vmul.f32 %v1542, %v1544
    %v1546 = vadd.f32 %v1545, -0.4999988
    %v1547 = vmul.f32 %v1542, %v1546
    %v1548 = vadd.f32 1.0, %v1547
    %v1549 = vmul.f32 %v1540, %v1540
    %v1550 = vmul.f32 %v1549, -0.00019511016
    %v1551 = vadd.f32 %v1550, 0.008332121
    %v1552 = vmul.f32 %v1549, %v1551
    %v1553 = vadd.f32 %v1552, -0.16666654
    %v1554 = vmul.f32 %v1549, %v1553
    %v1555 = vadd.f32 %v1554, 1.0
    %v1556 = vmul.f32 %v1555, %v1540
    %vm1557 = vweird.f32 %v458
    %v1558 = vadd.s32 %v1541, 3
    %v1559 = vand.u32 %v1558, 3
    %vm1560 = vcmp.lt.s32.totalorder %v1559, 2
    %vm1561 = vcmp.eq.s32.totalorder %v1559, 0
    %v1562 = vxor.u32 %v1556, 2147483648
    %v1563 = vsel %vm1561, %v1548, %v1562
    %vm1564 = vcmp.eq.s32.totalorder %v1559, 2
    %v1565 = vxor.u32 %v1548, 2147483648
    %v1566 = vsel %vm1564, %v1565, %v1556
    %v1567 = vsel %vm1560, %v1563, %v1566
    %v1568 = vsel %vm1557, nan, %v1567
    %v1569 = vand.u32 2147483647, %v459
    %vm1570 = vcmp.le.f32.partialorder %v1569, 0.7853982
    %vm1571 = vcmp.lt.s32.totalorder %v459, 0
    %v1572 = vand.u32 %v459, 2139095040
    %v1573 = vshrl.u32 %v1572, 23
    %v1574 = vsub.s32 %v1573, 127
    %v1575 = vand.u32 2147483647, %v459
    %v1576 = vand.u32 %v1575, 8388607
    %v1577 = vor.u32 %v1576, 8388608
    %v1578 = vsub.s32 0, %v1577
    %v1579 = vadd.s32 %v1574, 1
    %vm1580 = vcmp.gt.s32.totalorder %v1579, 0
    %v1581 = vsel %vm1580, %v1579, 0
    %v1582 = vshrl.u32 %v1581, 5
    %v1583 = vand.u32 %v1581, 31
    %v1584 = vsub.s32 32, %v1583
    %v1585 = vshrl.u32 683565275, %v1584
    %v1586 = vshll.u32 683565275, %v1583
    %v1587 = vshrl.u32 2475754826, %v1584
    %v1588 = vor.u32 %v1586, %v1587
    %v1589 = vshll.u32 2475754826, %v1583
    %v1590 = vshrl.u32 2131351028, %v1584
    %v1591 = vor.u32 %v1589, %v1590
    %v1592 = vshll.u32 2131351028, %v1583
    %v1593 = vshrl.u32 2102212464, %v1584
    %v1594 = vor.u32 %v1592, %v1593
    %v1595 = vshll.u32 2102212464, %v1583
    %v1596 = vshrl.u32 920167782, %v1584
    %v1597 = vor.u32 %v1595, %v1596
    %v1598 = vshll.u32 920167782, %v1583
    %v1599 = vshrl.u32 1326507024, %v1584
    %v1600 = vor.u32 %v1598, %v1599
    %vm1601 = vcmp.lt.s32.totalorder %v1582, 1
    %vm1602 = vcmp.lt.s32.totalorder %v1582, 2
    %vm1603 = vcmp.lt.s32.totalorder %v1582, 3
    %vm1604 = vcmp.lt.s32.totalorder %v1582, 4
    %v1605 = vsel %vm1601, %v1585, %v1588
    %v1606 = vsel %vm1604, %v1594, 2102212464
    %v1607 = vsel %vm1603, %v1591, %v1606
    %v1608 = vsel %vm1602, %v1605, %v1607
    %v1609 = vsel %vm1601, %v1588, %v1591
    %v1610 = vsel %vm1604, %v1597, 920167782
    %v1611 = vsel %vm1603, %v1594, %v1610
    %v1612 = vsel %vm1602, %v1609, %v1611
    %v1613 = vsel %vm1601, %v1591, %v1594
    %v1614 = vsel %vm1604, %v1600, 1326507024
    %v1615 = vsel %vm1603, %v1597, %v1614
    %v1616 = vsel %vm1602, %v1613, %v1615
    %v1617 = vshll.u32 %v1577, 8
    %v1618 = vand.u32 %v1617, 65535
    %v1619 = vshrl.u32 %v1617, 16
    %v1620 = vand.u32 %v1616, 65535
    %v1621 = vshrl.u32 %v1616, 16
    %v1622 = vmul.u32 %v1618, %v1620
    %v1623 = vmul.u32 %v1618, %v1621
    %v1624 = vmul.u32 %v1619, %v1620
    %v1625 = vmul.u32 %v1619, %v1621
    %v1626 = vshll.u32 %v1623, 16
    %v1627 = vshrl.u32 %v1623, 16
    %v1628 = vshll.u32 %v1624, 16
    %v1629 = vshrl.u32 %v1624, 16
    %vm1630 = vc.u32 %v1622, %v1626
    %v1631 = vsel %vm1630, 1, 0
    %v1632 = vadd.s32 %v1622, %v1626
    %v1633 = vadd.s32 %v1625, %v1631
    %vm1634 = vc.u32 %v1632, %v1628
    %v1635 = vsel %vm1634, 1, 0
    %v1636 = vadd.s32 %v1632, %v1628
    %v1637 = vadd.s32 %v1633, %v1635
    %v1638 = vadd.s32 %v1637, %v1627
    %v1639 = vadd.s32 %v1638, %v1629
    %v1640 = vand.u32 %v1617, 65535
    %v1641 = vshrl.u32 %v1617, 16
    %v1642 = vand.u32 %v1612, 65535
    %v1643 = vshrl.u32 %v1612, 16
    %v1644 = vmul.u32 %v1640, %v1642
    %v1645 = vmul.u32 %v1640, %v1643
    %v1646 = vmul.u32 %v1641, %v1642
    %v1647 = vmul.u32 %v1641, %v1643
    %v1648 = vshll.u32 %v1645, 16
    %v1649 = vshrl.u32 %v1645, 16
    %v1650 = vshll.u32 %v1646, 16
    %v1651 = vshrl.u32 %v1646, 16
    %vm1652 = vc.u32 %v1644, %v1648
    %v1653 = vsel %vm1652, 1, 0
    %v1654 = vadd.s32 %v1644, %v1648
    %v1655 = vadd.s32 %v1647, %v1653
    %vm1656 = vc.u32 %v1654, %v1650
    %v1657 = vsel %vm1656, 1, 0
    %v1658 = vadd.s32 %v1654, %v1650
    %v1659 = vadd.s32 %v1655, %v1657
    %v1660 = vadd.s32 %v1659, %v1649
    %v1661 = vadd.s32 %v1660, %v1651
    %v1662 = vmul.u32 %v1617, %v1608
    %v1663 = vadd.s32 %v1639, %v1658
    %vm1664 = vc.u32 %v1639, %v1658
    %v1665 = vadd.s32 %v1661, 1
    %v1666 = vsel %vm1664, %v1665, %v1661
    %v1667 = vadd.s32 %v1662, %v1666
    %v1668 = vadd.s32 %v1667, 536870912
    %v1669 = vshrl.u32 %v1668, 30
    %v1670 = vshll.u32 %v1669, 30
    %v1671 = vsub.s32 %v1667, %v1670
    %vm1672 = vcmp.lt.s32.totalorder %v1671, 0
    %v1673 = vsub.s32 0, %v1671
    %v1674 = vsel %vm1672, %v1673, %v1671
    %v1675 = vclz %v1674
    %v1676 = vsub.s32 %v1675, 2
    %vm1677 = vcmp.gt.s32.totalorder 0, %v1676
    %v1678 = vsel %vm1677, 0, %v1676
    %v1679 = vsub.s32 32, %v1678
    %v1680 = vshll.u32 %v1671, %v1678
    %v1681 = vshrl.u32 %v1663, %v1679
    %v1682 = vor.u32 %v1680, %v1681
    %v1683 = vsub.s32 4294967266, %v1678
    %v1684 = vadd.s32 %v1683, 127
    %v1685 = vshll.u32 %v1684, 23
    %v1686 = vor.u32 4788187, %v1685
    %v1687 = vand.u32 2147483647, %v1686
    %v1689 = vcvt.s32.f32 %v1682
    %v1690 = vmul.f32 %v1689, %v1687
    %v1691 = vxor.u32 %v1690, 2147483648
    %v1692 = vsel %vm1571, %v1691, %v1690
    %v1693 = vsub.s32 4, %v1669
    %v1694 = vsel %vm1571, %v1693, %v1669
    %v1695 = vsel %vm1570, %v459, %v1692
    %v1696 = vsel %vm1570, 0, %v1694
    %v1697 = vmul.f32 %v1695, %v1695
    %v1698 = vmul.f32 %v1697, -0.001358992
    %v1699 = vadd.f32 %v1698, 0.041655596
    %v1700 = vmul.f32 %v1697, %v1699
    %v1701 = vadd.f32 %v1700, -0.4999988
    %v1702 = vmul.f32 %v1697, %v1701
    %v1703 = vadd.f32 1.0, %v1702
    %v1704 = vmul.f32 %v1695, %v1695
    %v1705 = vmul.f32 %v1704, -0.00019511016
    %v1706 = vadd.f32 %v1705, 0.008332121
    %v1707 = vmul.f32 %v1704, %v1706
    %v1708 = vadd.f32 %v1707, -0.16666654
    %v1709 = vmul.f32 %v1704, %v1708
    %v1710 = vadd.f32 %v1709, 1.0
    %v1711 = vmul.f32 %v1710, %v1695
    %vm1712 = vweird.f32 %v459
    %v1713 = vadd.s32 %v1696, 3
    %v1714 = vand.u32 %v1713, 3
    %vm1715 = vcmp.lt.s32.totalorder %v1714, 2
    %vm1716 = vcmp.eq.s32.totalorder %v1714, 0
    %v1717 = vxor.u32 %v1711, 2147483648
    %v1718 = vsel %vm1716, %v1703, %v1717
    %vm1719 = vcmp.eq.s32.totalorder %v1714, 2
    %v1720 = vxor.u32 %v1703, 2147483648
    %v1721 = vsel %vm1719, %v1720, %v1711
    %v1722 = vsel %vm1715, %v1718, %v1721
    %v1723 = vsel %vm1712, nan, %v1722
    %v1724 = vand.u32 2147483647, %v460
    %vm1725 = vcmp.le.f32.partialorder %v1724, 0.7853982
    %vm1726 = vcmp.lt.s32.totalorder %v460, 0
    %v1727 = vand.u32 %v460, 2139095040
    %v1728 = vshrl.u32 %v1727, 23
    %v1729 = vsub.s32 %v1728, 127
    %v1730 = vand.u32 2147483647, %v460
    %v1731 = vand.u32 %v1730, 8388607
    %v1732 = vor.u32 %v1731, 8388608
    %v1733 = vsub.s32 0, %v1732
    %v1734 = vadd.s32 %v1729, 1
    %vm1735 = vcmp.gt.s32.totalorder %v1734, 0
    %v1736 = vsel %vm1735, %v1734, 0
    %v1737 = vshrl.u32 %v1736, 5
    %v1738 = vand.u32 %v1736, 31
    %v1739 = vsub.s32 32, %v1738
    %v1740 = vshrl.u32 683565275, %v1739
    %v1741 = vshll.u32 683565275, %v1738
    %v1742 = vshrl.u32 2475754826, %v1739
    %v1743 = vor.u32 %v1741, %v1742
    %v1744 = vshll.u32 2475754826, %v1738
    %v1745 = vshrl.u32 2131351028, %v1739
    %v1746 = vor.u32 %v1744, %v1745
    %v1747 = vshll.u32 2131351028, %v1738
    %v1748 = vshrl.u32 2102212464, %v1739
    %v1749 = vor.u32 %v1747, %v1748
    %v1750 = vshll.u32 2102212464, %v1738
    %v1751 = vshrl.u32 920167782, %v1739
    %v1752 = vor.u32 %v1750, %v1751
    %v1753 = vshll.u32 920167782, %v1738
    %v1754 = vshrl.u32 1326507024, %v1739
    %v1755 = vor.u32 %v1753, %v1754
    %vm1756 = vcmp.lt.s32.totalorder %v1737, 1
    %vm1757 = vcmp.lt.s32.totalorder %v1737, 2
    %vm1758 = vcmp.lt.s32.totalorder %v1737, 3
    %vm1759 = vcmp.lt.s32.totalorder %v1737, 4
    %v1760 = vsel %vm1756, %v1740, %v1743
    %v1761 = vsel %vm1759, %v1749, 2102212464
    %v1762 = vsel %vm1758, %v1746, %v1761
    %v1763 = vsel %vm1757, %v1760, %v1762
    %v1764 = vsel %vm1756, %v1743, %v1746
    %v1765 = vsel %vm1759, %v1752, 920167782
    %v1766 = vsel %vm1758, %v1749, %v1765
    %v1767 = vsel %vm1757, %v1764, %v1766
    %v1768 = vsel %vm1756, %v1746, %v1749
    %v1769 = vsel %vm1759, %v1755, 1326507024
    %v1770 = vsel %vm1758, %v1752, %v1769
    %v1771 = vsel %vm1757, %v1768, %v1770
    %v1772 = vshll.u32 %v1732, 8
    %v1773 = vand.u32 %v1772, 65535
    %v1774 = vshrl.u32 %v1772, 16
    %v1775 = vand.u32 %v1771, 65535
    %v1776 = vshrl.u32 %v1771, 16
    %v1777 = vmul.u32 %v1773, %v1775
    %v1778 = vmul.u32 %v1773, %v1776
    %v1779 = vmul.u32 %v1774, %v1775
    %v1780 = vmul.u32 %v1774, %v1776
    %v1781 = vshll.u32 %v1778, 16
    %v1782 = vshrl.u32 %v1778, 16
    %v1783 = vshll.u32 %v1779, 16
    %v1784 = vshrl.u32 %v1779, 16
    %vm1785 = vc.u32 %v1777, %v1781
    %v1786 = vsel %vm1785, 1, 0
    %v1787 = vadd.s32 %v1777, %v1781
    %v1788 = vadd.s32 %v1780, %v1786
    %vm1789 = vc.u32 %v1787, %v1783
    %v1790 = vsel %vm1789, 1, 0
    %v1791 = vadd.s32 %v1787, %v1783
    %v1792 = vadd.s32 %v1788, %v1790
    %v1793 = vadd.s32 %v1792, %v1782
    %v1794 = vadd.s32 %v1793, %v1784
    %v1795 = vand.u32 %v1772, 65535
    %v1796 = vshrl.u32 %v1772, 16
    %v1797 = vand.u32 %v1767, 65535
    %v1798 = vshrl.u32 %v1767, 16
    %v1799 = vmul.u32 %v1795, %v1797
    %v1800 = vmul.u32 %v1795, %v1798
    %v1801 = vmul.u32 %v1796, %v1797
    %v1802 = vmul.u32 %v1796, %v1798
    %v1803 = vshll.u32 %v1800, 16
    %v1804 = vshrl.u32 %v1800, 16
    %v1805 = vshll.u32 %v1801, 16
    %v1806 = vshrl.u32 %v1801, 16
    %vm1807 = vc.u32 %v1799, %v1803
    %v1808 = vsel %vm1807, 1, 0
    %v1809 = vadd.s32 %v1799, %v1803
    %v1810 = vadd.s32 %v1802, %v1808
    %vm1811 = vc.u32 %v1809, %v1805
    %v1812 = vsel %vm1811, 1, 0
    %v1813 = vadd.s32 %v1809, %v1805
    %v1814 = vadd.s32 %v1810, %v1812
    %v1815 = vadd.s32 %v1814, %v1804
    %v1816 = vadd.s32 %v1815, %v1806
    %v1817 = vmul.u32 %v1772, %v1763
    %v1818 = vadd.s32 %v1794, %v1813
    %vm1819 = vc.u32 %v1794, %v1813
    %v1820 = vadd.s32 %v1816, 1
    %v1821 = vsel %vm1819, %v1820, %v1816
    %v1822 = vadd.s32 %v1817, %v1821
    %v1823 = vadd.s32 %v1822, 536870912
    %v1824 = vshrl.u32 %v1823, 30
    %v1825 = vshll.u32 %v1824, 30
    %v1826 = vsub.s32 %v1822, %v1825
    %vm1827 = vcmp.lt.s32.totalorder %v1826, 0
    %v1828 = vsub.s32 0, %v1826
    %v1829 = vsel %vm1827, %v1828, %v1826
    %v1830 = vclz %v1829
    %v1831 = vsub.s32 %v1830, 2
    %vm1832 = vcmp.gt.s32.totalorder 0, %v1831
    %v1833 = vsel %vm1832, 0, %v1831
    %v1834 = vsub.s32 32, %v1833
    %v1835 = vshll.u32 %v1826, %v1833
    %v1836 = vshrl.u32 %v1818, %v1834
    %v1837 = vor.u32 %v1835, %v1836
    %v1838 = vsub.s32 4294967266, %v1833
    %v1839 = vadd.s32 %v1838, 127
    %v1840 = vshll.u32 %v1839, 23
    %v1841 = vor.u32 4788187, %v1840
    %v1842 = vand.u32 2147483647, %v1841
    %v1844 = vcvt.s32.f32 %v1837
    %v1845 = vmul.f32 %v1844, %v1842
    %v1846 = vxor.u32 %v1845, 2147483648
    %v1847 = vsel %vm1726, %v1846, %v1845
    %v1848 = vsub.s32 4, %v1824
    %v1849 = vsel %vm1726, %v1848, %v1824
    %v1850 = vsel %vm1725, %v460, %v1847
    %v1851 = vsel %vm1725, 0, %v1849
    %v1852 = vmul.f32 %v1850, %v1850
    %v1853 = vmul.f32 %v1852, -0.001358992
    %v1854 = vadd.f32 %v1853, 0.041655596
    %v1855 = vmul.f32 %v1852, %v1854
    %v1856 = vadd.f32 %v1855, -0.4999988
    %v1857 = vmul.f32 %v1852, %v1856
    %v1858 = vadd.f32 1.0, %v1857
    %v1859 = vmul.f32 %v1850, %v1850
    %v1860 = vmul.f32 %v1859, -0.00019511016
    %v1861 = vadd.f32 %v1860, 0.008332121
    %v1862 = vmul.f32 %v1859, %v1861
    %v1863 = vadd.f32 %v1862, -0.16666654
    %v1864 = vmul.f32 %v1859, %v1863
    %v1865 = vadd.f32 %v1864, 1.0
    %v1866 = vmul.f32 %v1865, %v1850
    %vm1867 = vweird.f32 %v460
    %v1868 = vadd.s32 %v1851, 3
    %v1869 = vand.u32 %v1868, 3
    %vm1870 = vcmp.lt.s32.totalorder %v1869, 2
    %vm1871 = vcmp.eq.s32.totalorder %v1869, 0
    %v1872 = vxor.u32 %v1866, 2147483648
    %v1873 = vsel %vm1871, %v1858, %v1872
    %vm1874 = vcmp.eq.s32.totalorder %v1869, 2
    %v1875 = vxor.u32 %v1858, 2147483648
    %v1876 = vsel %vm1874, %v1875, %v1866
    %v1877 = vsel %vm1870, %v1873, %v1876
    %v1878 = vsel %vm1867, nan, %v1877
    %v1879 = vand.u32 2147483647, %v461
    %vm1880 = vcmp.le.f32.partialorder %v1879, 0.7853982
    %vm1881 = vcmp.lt.s32.totalorder %v461, 0
    %v1882 = vand.u32 %v461, 2139095040
    %v1883 = vshrl.u32 %v1882, 23
    %v1884 = vsub.s32 %v1883, 127
    %v1885 = vand.u32 2147483647, %v461
    %v1886 = vand.u32 %v1885, 8388607
    %v1887 = vor.u32 %v1886, 8388608
    %v1888 = vsub.s32 0, %v1887
    %v1889 = vadd.s32 %v1884, 1
    %vm1890 = vcmp.gt.s32.totalorder %v1889, 0
    %v1891 = vsel %vm1890, %v1889, 0
    %v1892 = vshrl.u32 %v1891, 5
    %v1893 = vand.u32 %v1891, 31
    %v1894 = vsub.s32 32, %v1893
    %v1895 = vshrl.u32 683565275, %v1894
    %v1896 = vshll.u32 683565275, %v1893
    %v1897 = vshrl.u32 2475754826, %v1894
    %v1898 = vor.u32 %v1896, %v1897
    %v1899 = vshll.u32 2475754826, %v1893
    %v1900 = vshrl.u32 2131351028, %v1894
    %v1901 = vor.u32 %v1899, %v1900
    %v1902 = vshll.u32 2131351028, %v1893
    %v1903 = vshrl.u32 2102212464, %v1894
    %v1904 = vor.u32 %v1902, %v1903
    %v1905 = vshll.u32 2102212464, %v1893
    %v1906 = vshrl.u32 920167782, %v1894
    %v1907 = vor.u32 %v1905, %v1906
    %v1908 = vshll.u32 920167782, %v1893
    %v1909 = vshrl.u32 1326507024, %v1894
    %v1910 = vor.u32 %v1908, %v1909
    %vm1911 = vcmp.lt.s32.totalorder %v1892, 1
    %vm1912 = vcmp.lt.s32.totalorder %v1892, 2
    %vm1913 = vcmp.lt.s32.totalorder %v1892, 3
    %vm1914 = vcmp.lt.s32.totalorder %v1892, 4
    %v1915 = vsel %vm1911, %v1895, %v1898
    %v1916 = vsel %vm1914, %v1904, 2102212464
    %v1917 = vsel %vm1913, %v1901, %v1916
    %v1918 = vsel %vm1912, %v1915, %v1917
    %v1919 = vsel %vm1911, %v1898, %v1901
    %v1920 = vsel %vm1914, %v1907, 920167782
    %v1921 = vsel %vm1913, %v1904, %v1920
    %v1922 = vsel %vm1912, %v1919, %v1921
    %v1923 = vsel %vm1911, %v1901, %v1904
    %v1924 = vsel %vm1914, %v1910, 1326507024
    %v1925 = vsel %vm1913, %v1907, %v1924
    %v1926 = vsel %vm1912, %v1923, %v1925
    %v1927 = vshll.u32 %v1887, 8
    %v1928 = vand.u32 %v1927, 65535
    %v1929 = vshrl.u32 %v1927, 16
    %v1930 = vand.u32 %v1926, 65535
    %v1931 = vshrl.u32 %v1926, 16
    %v1932 = vmul.u32 %v1928, %v1930
    %v1933 = vmul.u32 %v1928, %v1931
    %v1934 = vmul.u32 %v1929, %v1930
    %v1935 = vmul.u32 %v1929, %v1931
    %v1936 = vshll.u32 %v1933, 16
    %v1937 = vshrl.u32 %v1933, 16
    %v1938 = vshll.u32 %v1934, 16
    %v1939 = vshrl.u32 %v1934, 16
    %vm1940 = vc.u32 %v1932, %v1936
    %v1941 = vsel %vm1940, 1, 0
    %v1942 = vadd.s32 %v1932, %v1936
    %v1943 = vadd.s32 %v1935, %v1941
    %vm1944 = vc.u32 %v1942, %v1938
    %v1945 = vsel %vm1944, 1, 0
    %v1946 = vadd.s32 %v1942, %v1938
    %v1947 = vadd.s32 %v1943, %v1945
    %v1948 = vadd.s32 %v1947, %v1937
    %v1949 = vadd.s32 %v1948, %v1939
    %v1950 = vand.u32 %v1927, 65535
    %v1951 = vshrl.u32 %v1927, 16
    %v1952 = vand.u32 %v1922, 65535
    %v1953 = vshrl.u32 %v1922, 16
    %v1954 = vmul.u32 %v1950, %v1952
    %v1955 = vmul.u32 %v1950, %v1953
    %v1956 = vmul.u32 %v1951, %v1952
    %v1957 = vmul.u32 %v1951, %v1953
    %v1958 = vshll.u32 %v1955, 16
    %v1959 = vshrl.u32 %v1955, 16
    %v1960 = vshll.u32 %v1956, 16
    %v1961 = vshrl.u32 %v1956, 16
    %vm1962 = vc.u32 %v1954, %v1958
    %v1963 = vsel %vm1962, 1, 0
    %v1964 = vadd.s32 %v1954, %v1958
    %v1965 = vadd.s32 %v1957, %v1963
    %vm1966 = vc.u32 %v1964, %v1960
    %v1967 = vsel %vm1966, 1, 0
    %v1968 = vadd.s32 %v1964, %v1960
    %v1969 = vadd.s32 %v1965, %v1967
    %v1970 = vadd.s32 %v1969, %v1959
    %v1971 = vadd.s32 %v1970, %v1961
    %v1972 = vmul.u32 %v1927, %v1918
    %v1973 = vadd.s32 %v1949, %v1968
    %vm1974 = vc.u32 %v1949, %v1968
    %v1975 = vadd.s32 %v1971, 1
    %v1976 = vsel %vm1974, %v1975, %v1971
    %v1977 = vadd.s32 %v1972, %v1976
    %v1978 = vadd.s32 %v1977, 536870912
    %v1979 = vshrl.u32 %v1978, 30
    %v1980 = vshll.u32 %v1979, 30
    %v1981 = vsub.s32 %v1977, %v1980
    %vm1982 = vcmp.lt.s32.totalorder %v1981, 0
    %v1983 = vsub.s32 0, %v1981
    %v1984 = vsel %vm1982, %v1983, %v1981
    %v1985 = vclz %v1984
    %v1986 = vsub.s32 %v1985, 2
    %vm1987 = vcmp.gt.s32.totalorder 0, %v1986
    %v1988 = vsel %vm1987, 0, %v1986
    %v1989 = vsub.s32 32, %v1988
    %v1990 = vshll.u32 %v1981, %v1988
    %v1991 = vshrl.u32 %v1973, %v1989
    %v1992 = vor.u32 %v1990, %v1991
    %v1993 = vsub.s32 4294967266, %v1988
    %v1994 = vadd.s32 %v1993, 127
    %v1995 = vshll.u32 %v1994, 23
    %v1996 = vor.u32 4788187, %v1995
    %v1997 = vand.u32 2147483647, %v1996
    %v1999 = vcvt.s32.f32 %v1992
    %v2000 = vmul.f32 %v1999, %v1997
    %v2001 = vxor.u32 %v2000, 2147483648
    %v2002 = vsel %vm1881, %v2001, %v2000
    %v2003 = vsub.s32 4, %v1979
    %v2004 = vsel %vm1881, %v2003, %v1979
    %v2005 = vsel %vm1880, %v461, %v2002
    %v2006 = vsel %vm1880, 0, %v2004
    %v2007 = vmul.f32 %v2005, %v2005
    %v2008 = vmul.f32 %v2007, -0.001358992
    %v2009 = vadd.f32 %v2008, 0.041655596
    %v2010 = vmul.f32 %v2007, %v2009
    %v2011 = vadd.f32 %v2010, -0.4999988
    %v2012 = vmul.f32 %v2007, %v2011
    %v2013 = vadd.f32 1.0, %v2012
    %v2014 = vmul.f32 %v2005, %v2005
    %v2015 = vmul.f32 %v2014, -0.00019511016
    %v2016 = vadd.f32 %v2015, 0.008332121
    %v2017 = vmul.f32 %v2014, %v2016
    %v2018 = vadd.f32 %v2017, -0.16666654
    %v2019 = vmul.f32 %v2014, %v2018
    %v2020 = vadd.f32 %v2019, 1.0
    %v2021 = vmul.f32 %v2020, %v2005
    %vm2022 = vweird.f32 %v461
    %v2023 = vadd.s32 %v2006, 3
    %v2024 = vand.u32 %v2023, 3
    %vm2025 = vcmp.lt.s32.totalorder %v2024, 2
    %vm2026 = vcmp.eq.s32.totalorder %v2024, 0
    %v2027 = vxor.u32 %v2021, 2147483648
    %v2028 = vsel %vm2026, %v2013, %v2027
    %vm2029 = vcmp.eq.s32.totalorder %v2024, 2
    %v2030 = vxor.u32 %v2013, 2147483648
    %v2031 = vsel %vm2029, %v2030, %v2021
    %v2032 = vsel %vm2025, %v2028, %v2031
    %v2033 = vsel %vm2022, nan, %v2032
    %v2034 = vand.u32 2147483647, %v462
    %vm2035 = vcmp.le.f32.partialorder %v2034, 0.7853982
    %vm2036 = vcmp.lt.s32.totalorder %v462, 0
    %v2037 = vand.u32 %v462, 2139095040
    %v2038 = vshrl.u32 %v2037, 23
    %v2039 = vsub.s32 %v2038, 127
    %v2040 = vand.u32 2147483647, %v462
    %v2041 = vand.u32 %v2040, 8388607
    %v2042 = vor.u32 %v2041, 8388608
    %v2043 = vsub.s32 0, %v2042
    %v2044 = vadd.s32 %v2039, 1
    %vm2045 = vcmp.gt.s32.totalorder %v2044, 0
    %v2046 = vsel %vm2045, %v2044, 0
    %v2047 = vshrl.u32 %v2046, 5
    %v2048 = vand.u32 %v2046, 31
    %v2049 = vsub.s32 32, %v2048
    %v2050 = vshrl.u32 683565275, %v2049
    %v2051 = vshll.u32 683565275, %v2048
    %v2052 = vshrl.u32 2475754826, %v2049
    %v2053 = vor.u32 %v2051, %v2052
    %v2054 = vshll.u32 2475754826, %v2048
    %v2055 = vshrl.u32 2131351028, %v2049
    %v2056 = vor.u32 %v2054, %v2055
    %v2057 = vshll.u32 2131351028, %v2048
    %v2058 = vshrl.u32 2102212464, %v2049
    %v2059 = vor.u32 %v2057, %v2058
    %v2060 = vshll.u32 2102212464, %v2048
    %v2061 = vshrl.u32 920167782, %v2049
    %v2062 = vor.u32 %v2060, %v2061
    %v2063 = vshll.u32 920167782, %v2048
    %v2064 = vshrl.u32 1326507024, %v2049
    %v2065 = vor.u32 %v2063, %v2064
    %vm2066 = vcmp.lt.s32.totalorder %v2047, 1
    %vm2067 = vcmp.lt.s32.totalorder %v2047, 2
    %vm2068 = vcmp.lt.s32.totalorder %v2047, 3
    %vm2069 = vcmp.lt.s32.totalorder %v2047, 4
    %v2070 = vsel %vm2066, %v2050, %v2053
    %v2071 = vsel %vm2069, %v2059, 2102212464
    %v2072 = vsel %vm2068, %v2056, %v2071
    %v2073 = vsel %vm2067, %v2070, %v2072
    %v2074 = vsel %vm2066, %v2053, %v2056
    %v2075 = vsel %vm2069, %v2062, 920167782
    %v2076 = vsel %vm2068, %v2059, %v2075
    %v2077 = vsel %vm2067, %v2074, %v2076
    %v2078 = vsel %vm2066, %v2056, %v2059
    %v2079 = vsel %vm2069, %v2065, 1326507024
    %v2080 = vsel %vm2068, %v2062, %v2079
    %v2081 = vsel %vm2067, %v2078, %v2080
    %v2082 = vshll.u32 %v2042, 8
    %v2083 = vand.u32 %v2082, 65535
    %v2084 = vshrl.u32 %v2082, 16
    %v2085 = vand.u32 %v2081, 65535
    %v2086 = vshrl.u32 %v2081, 16
    %v2087 = vmul.u32 %v2083, %v2085
    %v2088 = vmul.u32 %v2083, %v2086
    %v2089 = vmul.u32 %v2084, %v2085
    %v2090 = vmul.u32 %v2084, %v2086
    %v2091 = vshll.u32 %v2088, 16
    %v2092 = vshrl.u32 %v2088, 16
    %v2093 = vshll.u32 %v2089, 16
    %v2094 = vshrl.u32 %v2089, 16
    %vm2095 = vc.u32 %v2087, %v2091
    %v2096 = vsel %vm2095, 1, 0
    %v2097 = vadd.s32 %v2087, %v2091
    %v2098 = vadd.s32 %v2090, %v2096
    %vm2099 = vc.u32 %v2097, %v2093
    %v2100 = vsel %vm2099, 1, 0
    %v2101 = vadd.s32 %v2097, %v2093
    %v2102 = vadd.s32 %v2098, %v2100
    %v2103 = vadd.s32 %v2102, %v2092
    %v2104 = vadd.s32 %v2103, %v2094
    %v2105 = vand.u32 %v2082, 65535
    %v2106 = vshrl.u32 %v2082, 16
    %v2107 = vand.u32 %v2077, 65535
    %v2108 = vshrl.u32 %v2077, 16
    %v2109 = vmul.u32 %v2105, %v2107
    %v2110 = vmul.u32 %v2105, %v2108
    %v2111 = vmul.u32 %v2106, %v2107
    %v2112 = vmul.u32 %v2106, %v2108
    %v2113 = vshll.u32 %v2110, 16
    %v2114 = vshrl.u32 %v2110, 16
    %v2115 = vshll.u32 %v2111, 16
    %v2116 = vshrl.u32 %v2111, 16
    %vm2117 = vc.u32 %v2109, %v2113
    %v2118 = vsel %vm2117, 1, 0
    %v2119 = vadd.s32 %v2109, %v2113
    %v2120 = vadd.s32 %v2112, %v2118
    %vm2121 = vc.u32 %v2119, %v2115
    %v2122 = vsel %vm2121, 1, 0
    %v2123 = vadd.s32 %v2119, %v2115
    %v2124 = vadd.s32 %v2120, %v2122
    %v2125 = vadd.s32 %v2124, %v2114
    %v2126 = vadd.s32 %v2125, %v2116
    %v2127 = vmul.u32 %v2082, %v2073
    %v2128 = vadd.s32 %v2104, %v2123
    %vm2129 = vc.u32 %v2104, %v2123
    %v2130 = vadd.s32 %v2126, 1
    %v2131 = vsel %vm2129, %v2130, %v2126
    %v2132 = vadd.s32 %v2127, %v2131
    %v2133 = vadd.s32 %v2132, 536870912
    %v2134 = vshrl.u32 %v2133, 30
    %v2135 = vshll.u32 %v2134, 30
    %v2136 = vsub.s32 %v2132, %v2135
    %vm2137 = vcmp.lt.s32.totalorder %v2136, 0
    %v2138 = vsub.s32 0, %v2136
    %v2139 = vsel %vm2137, %v2138, %v2136
    %v2140 = vclz %v2139
    %v2141 = vsub.s32 %v2140, 2
    %vm2142 = vcmp.gt.s32.totalorder 0, %v2141
    %v2143 = vsel %vm2142, 0, %v2141
    %v2144 = vsub.s32 32, %v2143
    %v2145 = vshll.u32 %v2136, %v2143
    %v2146 = vshrl.u32 %v2128, %v2144
    %v2147 = vor.u32 %v2145, %v2146
    %v2148 = vsub.s32 4294967266, %v2143
    %v2149 = vadd.s32 %v2148, 127
    %v2150 = vshll.u32 %v2149, 23
    %v2151 = vor.u32 4788187, %v2150
    %v2152 = vand.u32 2147483647, %v2151
    %v2154 = vcvt.s32.f32 %v2147
    %v2155 = vmul.f32 %v2154, %v2152
    %v2156 = vxor.u32 %v2155, 2147483648
    %v2157 = vsel %vm2036, %v2156, %v2155
    %v2158 = vsub.s32 4, %v2134
    %v2159 = vsel %vm2036, %v2158, %v2134
    %v2160 = vsel %vm2035, %v462, %v2157
    %v2161 = vsel %vm2035, 0, %v2159
    %v2162 = vmul.f32 %v2160, %v2160
    %v2163 = vmul.f32 %v2162, -0.001358992
    %v2164 = vadd.f32 %v2163, 0.041655596
    %v2165 = vmul.f32 %v2162, %v2164
    %v2166 = vadd.f32 %v2165, -0.4999988
    %v2167 = vmul.f32 %v2162, %v2166
    %v2168 = vadd.f32 1.0, %v2167
    %v2169 = vmul.f32 %v2160, %v2160
    %v2170 = vmul.f32 %v2169, -0.00019511016
    %v2171 = vadd.f32 %v2170, 0.008332121
    %v2172 = vmul.f32 %v2169, %v2171
    %v2173 = vadd.f32 %v2172, -0.16666654
    %v2174 = vmul.f32 %v2169, %v2173
    %v2175 = vadd.f32 %v2174, 1.0
    %v2176 = vmul.f32 %v2175, %v2160
    %vm2177 = vweird.f32 %v462
    %v2178 = vadd.s32 %v2161, 3
    %v2179 = vand.u32 %v2178, 3
    %vm2180 = vcmp.lt.s32.totalorder %v2179, 2
    %vm2181 = vcmp.eq.s32.totalorder %v2179, 0
    %v2182 = vxor.u32 %v2176, 2147483648
    %v2183 = vsel %vm2181, %v2168, %v2182
    %vm2184 = vcmp.eq.s32.totalorder %v2179, 2
    %v2185 = vxor.u32 %v2168, 2147483648
    %v2186 = vsel %vm2184, %v2185, %v2176
    %v2187 = vsel %vm2180, %v2183, %v2186
    %v2188 = vsel %vm2177, nan, %v2187
    %v2189 = vand.u32 2147483647, %v463
    %vm2190 = vcmp.le.f32.partialorder %v2189, 0.7853982
    %vm2191 = vcmp.lt.s32.totalorder %v463, 0
    %v2192 = vand.u32 %v463, 2139095040
    %v2193 = vshrl.u32 %v2192, 23
    %v2194 = vsub.s32 %v2193, 127
    %v2195 = vand.u32 2147483647, %v463
    %v2196 = vand.u32 %v2195, 8388607
    %v2197 = vor.u32 %v2196, 8388608
    %v2198 = vsub.s32 0, %v2197
    %v2199 = vadd.s32 %v2194, 1
    %vm2200 = vcmp.gt.s32.totalorder %v2199, 0
    %v2201 = vsel %vm2200, %v2199, 0
    %v2202 = vshrl.u32 %v2201, 5
    %v2203 = vand.u32 %v2201, 31
    %v2204 = vsub.s32 32, %v2203
    %v2205 = vshrl.u32 683565275, %v2204
    %v2206 = vshll.u32 683565275, %v2203
    %v2207 = vshrl.u32 2475754826, %v2204
    %v2208 = vor.u32 %v2206, %v2207
    %v2209 = vshll.u32 2475754826, %v2203
    %v2210 = vshrl.u32 2131351028, %v2204
    %v2211 = vor.u32 %v2209, %v2210
    %v2212 = vshll.u32 2131351028, %v2203
    %v2213 = vshrl.u32 2102212464, %v2204
    %v2214 = vor.u32 %v2212, %v2213
    %v2215 = vshll.u32 2102212464, %v2203
    %v2216 = vshrl.u32 920167782, %v2204
    %v2217 = vor.u32 %v2215, %v2216
    %v2218 = vshll.u32 920167782, %v2203
    %v2219 = vshrl.u32 1326507024, %v2204
    %v2220 = vor.u32 %v2218, %v2219
    %vm2221 = vcmp.lt.s32.totalorder %v2202, 1
    %vm2222 = vcmp.lt.s32.totalorder %v2202, 2
    %vm2223 = vcmp.lt.s32.totalorder %v2202, 3
    %vm2224 = vcmp.lt.s32.totalorder %v2202, 4
    %v2225 = vsel %vm2221, %v2205, %v2208
    %v2226 = vsel %vm2224, %v2214, 2102212464
    %v2227 = vsel %vm2223, %v2211, %v2226
    %v2228 = vsel %vm2222, %v2225, %v2227
    %v2229 = vsel %vm2221, %v2208, %v2211
    %v2230 = vsel %vm2224, %v2217, 920167782
    %v2231 = vsel %vm2223, %v2214, %v2230
    %v2232 = vsel %vm2222, %v2229, %v2231
    %v2233 = vsel %vm2221, %v2211, %v2214
    %v2234 = vsel %vm2224, %v2220, 1326507024
    %v2235 = vsel %vm2223, %v2217, %v2234
    %v2236 = vsel %vm2222, %v2233, %v2235
    %v2237 = vshll.u32 %v2197, 8
    %v2238 = vand.u32 %v2237, 65535
    %v2239 = vshrl.u32 %v2237, 16
    %v2240 = vand.u32 %v2236, 65535
    %v2241 = vshrl.u32 %v2236, 16
    %v2242 = vmul.u32 %v2238, %v2240
    %v2243 = vmul.u32 %v2238, %v2241
    %v2244 = vmul.u32 %v2239, %v2240
    %v2245 = vmul.u32 %v2239, %v2241
    %v2246 = vshll.u32 %v2243, 16
    %v2247 = vshrl.u32 %v2243, 16
    %v2248 = vshll.u32 %v2244, 16
    %v2249 = vshrl.u32 %v2244, 16
    %vm2250 = vc.u32 %v2242, %v2246
    %v2251 = vsel %vm2250, 1, 0
    %v2252 = vadd.s32 %v2242, %v2246
    %v2253 = vadd.s32 %v2245, %v2251
    %vm2254 = vc.u32 %v2252, %v2248
    %v2255 = vsel %vm2254, 1, 0
    %v2256 = vadd.s32 %v2252, %v2248
    %v2257 = vadd.s32 %v2253, %v2255
    %v2258 = vadd.s32 %v2257, %v2247
    %v2259 = vadd.s32 %v2258, %v2249
    %v2260 = vand.u32 %v2237, 65535
    %v2261 = vshrl.u32 %v2237, 16
    %v2262 = vand.u32 %v2232, 65535
    %v2263 = vshrl.u32 %v2232, 16
    %v2264 = vmul.u32 %v2260, %v2262
    %v2265 = vmul.u32 %v2260, %v2263
    %v2266 = vmul.u32 %v2261, %v2262
    %v2267 = vmul.u32 %v2261, %v2263
    %v2268 = vshll.u32 %v2265, 16
    %v2269 = vshrl.u32 %v2265, 16
    %v2270 = vshll.u32 %v2266, 16
    %v2271 = vshrl.u32 %v2266, 16
    %vm2272 = vc.u32 %v2264, %v2268
    %v2273 = vsel %vm2272, 1, 0
    %v2274 = vadd.s32 %v2264, %v2268
    %v2275 = vadd.s32 %v2267, %v2273
    %vm2276 = vc.u32 %v2274, %v2270
    %v2277 = vsel %vm2276, 1, 0
    %v2278 = vadd.s32 %v2274, %v2270
    %v2279 = vadd.s32 %v2275, %v2277
    %v2280 = vadd.s32 %v2279, %v2269
    %v2281 = vadd.s32 %v2280, %v2271
    %v2282 = vmul.u32 %v2237, %v2228
    %v2283 = vadd.s32 %v2259, %v2278
    %vm2284 = vc.u32 %v2259, %v2278
    %v2285 = vadd.s32 %v2281, 1
    %v2286 = vsel %vm2284, %v2285, %v2281
    %v2287 = vadd.s32 %v2282, %v2286
    %v2288 = vadd.s32 %v2287, 536870912
    %v2289 = vshrl.u32 %v2288, 30
    %v2290 = vshll.u32 %v2289, 30
    %v2291 = vsub.s32 %v2287, %v2290
    %vm2292 = vcmp.lt.s32.totalorder %v2291, 0
    %v2293 = vsub.s32 0, %v2291
    %v2294 = vsel %vm2292, %v2293, %v2291
    %v2295 = vclz %v2294
    %v2296 = vsub.s32 %v2295, 2
    %vm2297 = vcmp.gt.s32.totalorder 0, %v2296
    %v2298 = vsel %vm2297, 0, %v2296
    %v2299 = vsub.s32 32, %v2298
    %v2300 = vshll.u32 %v2291, %v2298
    %v2301 = vshrl.u32 %v2283, %v2299
    %v2302 = vor.u32 %v2300, %v2301
    %v2303 = vsub.s32 4294967266, %v2298
    %v2304 = vadd.s32 %v2303, 127
    %v2305 = vshll.u32 %v2304, 23
    %v2306 = vor.u32 4788187, %v2305
    %v2307 = vand.u32 2147483647, %v2306
    %v2309 = vcvt.s32.f32 %v2302
    %v2310 = vmul.f32 %v2309, %v2307
    %v2311 = vxor.u32 %v2310, 2147483648
    %v2312 = vsel %vm2191, %v2311, %v2310
    %v2313 = vsub.s32 4, %v2289
    %v2314 = vsel %vm2191, %v2313, %v2289
    %v2315 = vsel %vm2190, %v463, %v2312
    %v2316 = vsel %vm2190, 0, %v2314
    %v2317 = vmul.f32 %v2315, %v2315
    %v2318 = vmul.f32 %v2317, -0.001358992
    %v2319 = vadd.f32 %v2318, 0.041655596
    %v2320 = vmul.f32 %v2317, %v2319
    %v2321 = vadd.f32 %v2320, -0.4999988
    %v2322 = vmul.f32 %v2317, %v2321
    %v2323 = vadd.f32 1.0, %v2322
    %v2324 = vmul.f32 %v2315, %v2315
    %v2325 = vmul.f32 %v2324, -0.00019511016
    %v2326 = vadd.f32 %v2325, 0.008332121
    %v2327 = vmul.f32 %v2324, %v2326
    %v2328 = vadd.f32 %v2327, -0.16666654
    %v2329 = vmul.f32 %v2324, %v2328
    %v2330 = vadd.f32 %v2329, 1.0
    %v2331 = vmul.f32 %v2330, %v2315
    %vm2332 = vweird.f32 %v463
    %v2333 = vadd.s32 %v2316, 3
    %v2334 = vand.u32 %v2333, 3
    %vm2335 = vcmp.lt.s32.totalorder %v2334, 2
    %vm2336 = vcmp.eq.s32.totalorder %v2334, 0
    %v2337 = vxor.u32 %v2331, 2147483648
    %v2338 = vsel %vm2336, %v2323, %v2337
    %vm2339 = vcmp.eq.s32.totalorder %v2334, 2
    %v2340 = vxor.u32 %v2323, 2147483648
    %v2341 = vsel %vm2339, %v2340, %v2331
    %v2342 = vsel %vm2335, %v2338, %v2341
    %v2343 = vsel %vm2332, nan, %v2342
    %v2344 = vand.u32 2147483647, %v464
    %vm2345 = vcmp.le.f32.partialorder %v2344, 0.7853982
    %vm2346 = vcmp.lt.s32.totalorder %v464, 0
    %v2347 = vand.u32 %v464, 2139095040
    %v2348 = vshrl.u32 %v2347, 23
    %v2349 = vsub.s32 %v2348, 127
    %v2350 = vand.u32 2147483647, %v464
    %v2351 = vand.u32 %v2350, 8388607
    %v2352 = vor.u32 %v2351, 8388608
    %v2353 = vsub.s32 0, %v2352
    %v2354 = vadd.s32 %v2349, 1
    %vm2355 = vcmp.gt.s32.totalorder %v2354, 0
    %v2356 = vsel %vm2355, %v2354, 0
    %v2357 = vshrl.u32 %v2356, 5
    %v2358 = vand.u32 %v2356, 31
    %v2359 = vsub.s32 32, %v2358
    %v2360 = vshrl.u32 683565275, %v2359
    %v2361 = vshll.u32 683565275, %v2358
    %v2362 = vshrl.u32 2475754826, %v2359
    %v2363 = vor.u32 %v2361, %v2362
    %v2364 = vshll.u32 2475754826, %v2358
    %v2365 = vshrl.u32 2131351028, %v2359
    %v2366 = vor.u32 %v2364, %v2365
    %v2367 = vshll.u32 2131351028, %v2358
    %v2368 = vshrl.u32 2102212464, %v2359
    %v2369 = vor.u32 %v2367, %v2368
    %v2370 = vshll.u32 2102212464, %v2358
    %v2371 = vshrl.u32 920167782, %v2359
    %v2372 = vor.u32 %v2370, %v2371
    %v2373 = vshll.u32 920167782, %v2358
    %v2374 = vshrl.u32 1326507024, %v2359
    %v2375 = vor.u32 %v2373, %v2374
    %vm2376 = vcmp.lt.s32.totalorder %v2357, 1
    %vm2377 = vcmp.lt.s32.totalorder %v2357, 2
    %vm2378 = vcmp.lt.s32.totalorder %v2357, 3
    %vm2379 = vcmp.lt.s32.totalorder %v2357, 4
    %v2380 = vsel %vm2376, %v2360, %v2363
    %v2381 = vsel %vm2379, %v2369, 2102212464
    %v2382 = vsel %vm2378, %v2366, %v2381
    %v2383 = vsel %vm2377, %v2380, %v2382
    %v2384 = vsel %vm2376, %v2363, %v2366
    %v2385 = vsel %vm2379, %v2372, 920167782
    %v2386 = vsel %vm2378, %v2369, %v2385
    %v2387 = vsel %vm2377, %v2384, %v2386
    %v2388 = vsel %vm2376, %v2366, %v2369
    %v2389 = vsel %vm2379, %v2375, 1326507024
    %v2390 = vsel %vm2378, %v2372, %v2389
    %v2391 = vsel %vm2377, %v2388, %v2390
    %v2392 = vshll.u32 %v2352, 8
    %v2393 = vand.u32 %v2392, 65535
    %v2394 = vshrl.u32 %v2392, 16
    %v2395 = vand.u32 %v2391, 65535
    %v2396 = vshrl.u32 %v2391, 16
    %v2397 = vmul.u32 %v2393, %v2395
    %v2398 = vmul.u32 %v2393, %v2396
    %v2399 = vmul.u32 %v2394, %v2395
    %v2400 = vmul.u32 %v2394, %v2396
    %v2401 = vshll.u32 %v2398, 16
    %v2402 = vshrl.u32 %v2398, 16
    %v2403 = vshll.u32 %v2399, 16
    %v2404 = vshrl.u32 %v2399, 16
    %vm2405 = vc.u32 %v2397, %v2401
    %v2406 = vsel %vm2405, 1, 0
    %v2407 = vadd.s32 %v2397, %v2401
    %v2408 = vadd.s32 %v2400, %v2406
    %vm2409 = vc.u32 %v2407, %v2403
    %v2410 = vsel %vm2409, 1, 0
    %v2411 = vadd.s32 %v2407, %v2403
    %v2412 = vadd.s32 %v2408, %v2410
    %v2413 = vadd.s32 %v2412, %v2402
    %v2414 = vadd.s32 %v2413, %v2404
    %v2415 = vand.u32 %v2392, 65535
    %v2416 = vshrl.u32 %v2392, 16
    %v2417 = vand.u32 %v2387, 65535
    %v2418 = vshrl.u32 %v2387, 16
    %v2419 = vmul.u32 %v2415, %v2417
    %v2420 = vmul.u32 %v2415, %v2418
    %v2421 = vmul.u32 %v2416, %v2417
    %v2422 = vmul.u32 %v2416, %v2418
    %v2423 = vshll.u32 %v2420, 16
    %v2424 = vshrl.u32 %v2420, 16
    %v2425 = vshll.u32 %v2421, 16
    %v2426 = vshrl.u32 %v2421, 16
    %vm2427 = vc.u32 %v2419, %v2423
    %v2428 = vsel %vm2427, 1, 0
    %v2429 = vadd.s32 %v2419, %v2423
    %v2430 = vadd.s32 %v2422, %v2428
    %vm2431 = vc.u32 %v2429, %v2425
    %v2432 = vsel %vm2431, 1, 0
    %v2433 = vadd.s32 %v2429, %v2425
    %v2434 = vadd.s32 %v2430, %v2432
    %v2435 = vadd.s32 %v2434, %v2424
    %v2436 = vadd.s32 %v2435, %v2426
    %v2437 = vmul.u32 %v2392, %v2383
    %v2438 = vadd.s32 %v2414, %v2433
    %vm2439 = vc.u32 %v2414, %v2433
    %v2440 = vadd.s32 %v2436, 1
    %v2441 = vsel %vm2439, %v2440, %v2436
    %v2442 = vadd.s32 %v2437, %v2441
    %v2443 = vadd.s32 %v2442, 536870912
    %v2444 = vshrl.u32 %v2443, 30
    %v2445 = vshll.u32 %v2444, 30
    %v2446 = vsub.s32 %v2442, %v2445
    %vm2447 = vcmp.lt.s32.totalorder %v2446, 0
    %v2448 = vsub.s32 0, %v2446
    %v2449 = vsel %vm2447, %v2448, %v2446
    %v2450 = vclz %v2449
    %v2451 = vsub.s32 %v2450, 2
    %vm2452 = vcmp.gt.s32.totalorder 0, %v2451
    %v2453 = vsel %vm2452, 0, %v2451
    %v2454 = vsub.s32 32, %v2453
    %v2455 = vshll.u32 %v2446, %v2453
    %v2456 = vshrl.u32 %v2438, %v2454
    %v2457 = vor.u32 %v2455, %v2456
    %v2458 = vsub.s32 4294967266, %v2453
    %v2459 = vadd.s32 %v2458, 127
    %v2460 = vshll.u32 %v2459, 23
    %v2461 = vor.u32 4788187, %v2460
    %v2462 = vand.u32 2147483647, %v2461
    %v2464 = vcvt.s32.f32 %v2457
    %v2465 = vmul.f32 %v2464, %v2462
    %v2466 = vxor.u32 %v2465, 2147483648
    %v2467 = vsel %vm2346, %v2466, %v2465
    %v2468 = vsub.s32 4, %v2444
    %v2469 = vsel %vm2346, %v2468, %v2444
    %v2470 = vsel %vm2345, %v464, %v2467
    %v2471 = vsel %vm2345, 0, %v2469
    %v2472 = vmul.f32 %v2470, %v2470
    %v2473 = vmul.f32 %v2472, -0.001358992
    %v2474 = vadd.f32 %v2473, 0.041655596
    %v2475 = vmul.f32 %v2472, %v2474
    %v2476 = vadd.f32 %v2475, -0.4999988
    %v2477 = vmul.f32 %v2472, %v2476
    %v2478 = vadd.f32 1.0, %v2477
    %v2479 = vmul.f32 %v2470, %v2470
    %v2480 = vmul.f32 %v2479, -0.00019511016
    %v2481 = vadd.f32 %v2480, 0.008332121
    %v2482 = vmul.f32 %v2479, %v2481
    %v2483 = vadd.f32 %v2482, -0.16666654
    %v2484 = vmul.f32 %v2479, %v2483
    %v2485 = vadd.f32 %v2484, 1.0
    %v2486 = vmul.f32 %v2485, %v2470
    %vm2487 = vweird.f32 %v464
    %v2488 = vadd.s32 %v2471, 3
    %v2489 = vand.u32 %v2488, 3
    %vm2490 = vcmp.lt.s32.totalorder %v2489, 2
    %vm2491 = vcmp.eq.s32.totalorder %v2489, 0
    %v2492 = vxor.u32 %v2486, 2147483648
    %v2493 = vsel %vm2491, %v2478, %v2492
    %vm2494 = vcmp.eq.s32.totalorder %v2489, 2
    %v2495 = vxor.u32 %v2478, 2147483648
    %v2496 = vsel %vm2494, %v2495, %v2486
    %v2497 = vsel %vm2490, %v2493, %v2496
    %v2498 = vsel %vm2487, nan, %v2497
    %v2499 = vand.u32 2147483647, %v465
    %vm2500 = vcmp.le.f32.partialorder %v2499, 0.7853982
    %vm2501 = vcmp.lt.s32.totalorder %v465, 0
    %v2502 = vand.u32 %v465, 2139095040
    %v2503 = vshrl.u32 %v2502, 23
    %v2504 = vsub.s32 %v2503, 127
    %v2505 = vand.u32 2147483647, %v465
    %v2506 = vand.u32 %v2505, 8388607
    %v2507 = vor.u32 %v2506, 8388608
    %v2508 = vsub.s32 0, %v2507
    %v2509 = vadd.s32 %v2504, 1
    %vm2510 = vcmp.gt.s32.totalorder %v2509, 0
    %v2511 = vsel %vm2510, %v2509, 0
    %v2512 = vshrl.u32 %v2511, 5
    %v2513 = vand.u32 %v2511, 31
    %v2514 = vsub.s32 32, %v2513
    %v2515 = vshrl.u32 683565275, %v2514
    %v2516 = vshll.u32 683565275, %v2513
    %v2517 = vshrl.u32 2475754826, %v2514
    %v2518 = vor.u32 %v2516, %v2517
    %v2519 = vshll.u32 2475754826, %v2513
    %v2520 = vshrl.u32 2131351028, %v2514
    %v2521 = vor.u32 %v2519, %v2520
    %v2522 = vshll.u32 2131351028, %v2513
    %v2523 = vshrl.u32 2102212464, %v2514
    %v2524 = vor.u32 %v2522, %v2523
    %v2525 = vshll.u32 2102212464, %v2513
    %v2526 = vshrl.u32 920167782, %v2514
    %v2527 = vor.u32 %v2525, %v2526
    %v2528 = vshll.u32 920167782, %v2513
    %v2529 = vshrl.u32 1326507024, %v2514
    %v2530 = vor.u32 %v2528, %v2529
    %vm2531 = vcmp.lt.s32.totalorder %v2512, 1
    %vm2532 = vcmp.lt.s32.totalorder %v2512, 2
    %vm2533 = vcmp.lt.s32.totalorder %v2512, 3
    %vm2534 = vcmp.lt.s32.totalorder %v2512, 4
    %v2535 = vsel %vm2531, %v2515, %v2518
    %v2536 = vsel %vm2534, %v2524, 2102212464
    %v2537 = vsel %vm2533, %v2521, %v2536
    %v2538 = vsel %vm2532, %v2535, %v2537
    %v2539 = vsel %vm2531, %v2518, %v2521
    %v2540 = vsel %vm2534, %v2527, 920167782
    %v2541 = vsel %vm2533, %v2524, %v2540
    %v2542 = vsel %vm2532, %v2539, %v2541
    %v2543 = vsel %vm2531, %v2521, %v2524
    %v2544 = vsel %vm2534, %v2530, 1326507024
    %v2545 = vsel %vm2533, %v2527, %v2544
    %v2546 = vsel %vm2532, %v2543, %v2545
    %v2547 = vshll.u32 %v2507, 8
    %v2548 = vand.u32 %v2547, 65535
    %v2549 = vshrl.u32 %v2547, 16
    %v2550 = vand.u32 %v2546, 65535
    %v2551 = vshrl.u32 %v2546, 16
    %v2552 = vmul.u32 %v2548, %v2550
    %v2553 = vmul.u32 %v2548, %v2551
    %v2554 = vmul.u32 %v2549, %v2550
    %v2555 = vmul.u32 %v2549, %v2551
    %v2556 = vshll.u32 %v2553, 16
    %v2557 = vshrl.u32 %v2553, 16
    %v2558 = vshll.u32 %v2554, 16
    %v2559 = vshrl.u32 %v2554, 16
    %vm2560 = vc.u32 %v2552, %v2556
    %v2561 = vsel %vm2560, 1, 0
    %v2562 = vadd.s32 %v2552, %v2556
    %v2563 = vadd.s32 %v2555, %v2561
    %vm2564 = vc.u32 %v2562, %v2558
    %v2565 = vsel %vm2564, 1, 0
    %v2566 = vadd.s32 %v2562, %v2558
    %v2567 = vadd.s32 %v2563, %v2565
    %v2568 = vadd.s32 %v2567, %v2557
    %v2569 = vadd.s32 %v2568, %v2559
    %v2570 = vand.u32 %v2547, 65535
    %v2571 = vshrl.u32 %v2547, 16
    %v2572 = vand.u32 %v2542, 65535
    %v2573 = vshrl.u32 %v2542, 16
    %v2574 = vmul.u32 %v2570, %v2572
    %v2575 = vmul.u32 %v2570, %v2573
    %v2576 = vmul.u32 %v2571, %v2572
    %v2577 = vmul.u32 %v2571, %v2573
    %v2578 = vshll.u32 %v2575, 16
    %v2579 = vshrl.u32 %v2575, 16
    %v2580 = vshll.u32 %v2576, 16
    %v2581 = vshrl.u32 %v2576, 16
    %vm2582 = vc.u32 %v2574, %v2578
    %v2583 = vsel %vm2582, 1, 0
    %v2584 = vadd.s32 %v2574, %v2578
    %v2585 = vadd.s32 %v2577, %v2583
    %vm2586 = vc.u32 %v2584, %v2580
    %v2587 = vsel %vm2586, 1, 0
    %v2588 = vadd.s32 %v2584, %v2580
    %v2589 = vadd.s32 %v2585, %v2587
    %v2590 = vadd.s32 %v2589, %v2579
    %v2591 = vadd.s32 %v2590, %v2581
    %v2592 = vmul.u32 %v2547, %v2538
    %v2593 = vadd.s32 %v2569, %v2588
    %vm2594 = vc.u32 %v2569, %v2588
    %v2595 = vadd.s32 %v2591, 1
    %v2596 = vsel %vm2594, %v2595, %v2591
    %v2597 = vadd.s32 %v2592, %v2596
    %v2598 = vadd.s32 %v2597, 536870912
    %v2599 = vshrl.u32 %v2598, 30
    %v2600 = vshll.u32 %v2599, 30
    %v2601 = vsub.s32 %v2597, %v2600
    %vm2602 = vcmp.lt.s32.totalorder %v2601, 0
    %v2603 = vsub.s32 0, %v2601
    %v2604 = vsel %vm2602, %v2603, %v2601
    %v2605 = vclz %v2604
    %v2606 = vsub.s32 %v2605, 2
    %vm2607 = vcmp.gt.s32.totalorder 0, %v2606
    %v2608 = vsel %vm2607, 0, %v2606
    %v2609 = vsub.s32 32, %v2608
    %v2610 = vshll.u32 %v2601, %v2608
    %v2611 = vshrl.u32 %v2593, %v2609
    %v2612 = vor.u32 %v2610, %v2611
    %v2613 = vsub.s32 4294967266, %v2608
    %v2614 = vadd.s32 %v2613, 127
    %v2615 = vshll.u32 %v2614, 23
    %v2616 = vor.u32 4788187, %v2615
    %v2617 = vand.u32 2147483647, %v2616
    %v2619 = vcvt.s32.f32 %v2612
    %v2620 = vmul.f32 %v2619, %v2617
    %v2621 = vxor.u32 %v2620, 2147483648
    %v2622 = vsel %vm2501, %v2621, %v2620
    %v2623 = vsub.s32 4, %v2599
    %v2624 = vsel %vm2501, %v2623, %v2599
    %v2625 = vsel %vm2500, %v465, %v2622
    %v2626 = vsel %vm2500, 0, %v2624
    %v2627 = vmul.f32 %v2625, %v2625
    %v2628 = vmul.f32 %v2627, -0.001358992
    %v2629 = vadd.f32 %v2628, 0.041655596
    %v2630 = vmul.f32 %v2627, %v2629
    %v2631 = vadd.f32 %v2630, -0.4999988
    %v2632 = vmul.f32 %v2627, %v2631
    %v2633 = vadd.f32 1.0, %v2632
    %v2634 = vmul.f32 %v2625, %v2625
    %v2635 = vmul.f32 %v2634, -0.00019511016
    %v2636 = vadd.f32 %v2635, 0.008332121
    %v2637 = vmul.f32 %v2634, %v2636
    %v2638 = vadd.f32 %v2637, -0.16666654
    %v2639 = vmul.f32 %v2634, %v2638
    %v2640 = vadd.f32 %v2639, 1.0
    %v2641 = vmul.f32 %v2640, %v2625
    %vm2642 = vweird.f32 %v465
    %v2643 = vadd.s32 %v2626, 3
    %v2644 = vand.u32 %v2643, 3
    %vm2645 = vcmp.lt.s32.totalorder %v2644, 2
    %vm2646 = vcmp.eq.s32.totalorder %v2644, 0
    %v2647 = vxor.u32 %v2641, 2147483648
    %v2648 = vsel %vm2646, %v2633, %v2647
    %vm2649 = vcmp.eq.s32.totalorder %v2644, 2
    %v2650 = vxor.u32 %v2633, 2147483648
    %v2651 = vsel %vm2649, %v2650, %v2641
    %v2652 = vsel %vm2645, %v2648, %v2651
    %v2653 = vsel %vm2642, nan, %v2652
    %v2654 = vand.u32 2147483647, %v466
    %vm2655 = vcmp.le.f32.partialorder %v2654, 0.7853982
    %vm2656 = vcmp.lt.s32.totalorder %v466, 0
    %v2657 = vand.u32 %v466, 2139095040
    %v2658 = vshrl.u32 %v2657, 23
    %v2659 = vsub.s32 %v2658, 127
    %v2660 = vand.u32 2147483647, %v466
    %v2661 = vand.u32 %v2660, 8388607
    %v2662 = vor.u32 %v2661, 8388608
    %v2663 = vsub.s32 0, %v2662
    %v2664 = vadd.s32 %v2659, 1
    %vm2665 = vcmp.gt.s32.totalorder %v2664, 0
    %v2666 = vsel %vm2665, %v2664, 0
    %v2667 = vshrl.u32 %v2666, 5
    %v2668 = vand.u32 %v2666, 31
    %v2669 = vsub.s32 32, %v2668
    %v2670 = vshrl.u32 683565275, %v2669
    %v2671 = vshll.u32 683565275, %v2668
    %v2672 = vshrl.u32 2475754826, %v2669
    %v2673 = vor.u32 %v2671, %v2672
    %v2674 = vshll.u32 2475754826, %v2668
    %v2675 = vshrl.u32 2131351028, %v2669
    %v2676 = vor.u32 %v2674, %v2675
    %v2677 = vshll.u32 2131351028, %v2668
    %v2678 = vshrl.u32 2102212464, %v2669
    %v2679 = vor.u32 %v2677, %v2678
    %v2680 = vshll.u32 2102212464, %v2668
    %v2681 = vshrl.u32 920167782, %v2669
    %v2682 = vor.u32 %v2680, %v2681
    %v2683 = vshll.u32 920167782, %v2668
    %v2684 = vshrl.u32 1326507024, %v2669
    %v2685 = vor.u32 %v2683, %v2684
    %vm2686 = vcmp.lt.s32.totalorder %v2667, 1
    %vm2687 = vcmp.lt.s32.totalorder %v2667, 2
    %vm2688 = vcmp.lt.s32.totalorder %v2667, 3
    %vm2689 = vcmp.lt.s32.totalorder %v2667, 4
    %v2690 = vsel %vm2686, %v2670, %v2673
    %v2691 = vsel %vm2689, %v2679, 2102212464
    %v2692 = vsel %vm2688, %v2676, %v2691
    %v2693 = vsel %vm2687, %v2690, %v2692
    %v2694 = vsel %vm2686, %v2673, %v2676
    %v2695 = vsel %vm2689, %v2682, 920167782
    %v2696 = vsel %vm2688, %v2679, %v2695
    %v2697 = vsel %vm2687, %v2694, %v2696
    %v2698 = vsel %vm2686, %v2676, %v2679
    %v2699 = vsel %vm2689, %v2685, 1326507024
    %v2700 = vsel %vm2688, %v2682, %v2699
    %v2701 = vsel %vm2687, %v2698, %v2700
    %v2702 = vshll.u32 %v2662, 8
    %v2703 = vand.u32 %v2702, 65535
    %v2704 = vshrl.u32 %v2702, 16
    %v2705 = vand.u32 %v2701, 65535
    %v2706 = vshrl.u32 %v2701, 16
    %v2707 = vmul.u32 %v2703, %v2705
    %v2708 = vmul.u32 %v2703, %v2706
    %v2709 = vmul.u32 %v2704, %v2705
    %v2710 = vmul.u32 %v2704, %v2706
    %v2711 = vshll.u32 %v2708, 16
    %v2712 = vshrl.u32 %v2708, 16
    %v2713 = vshll.u32 %v2709, 16
    %v2714 = vshrl.u32 %v2709, 16
    %vm2715 = vc.u32 %v2707, %v2711
    %v2716 = vsel %vm2715, 1, 0
    %v2717 = vadd.s32 %v2707, %v2711
    %v2718 = vadd.s32 %v2710, %v2716
    %vm2719 = vc.u32 %v2717, %v2713
    %v2720 = vsel %vm2719, 1, 0
    %v2721 = vadd.s32 %v2717, %v2713
    %v2722 = vadd.s32 %v2718, %v2720
    %v2723 = vadd.s32 %v2722, %v2712
    %v2724 = vadd.s32 %v2723, %v2714
    %v2725 = vand.u32 %v2702, 65535
    %v2726 = vshrl.u32 %v2702, 16
    %v2727 = vand.u32 %v2697, 65535
    %v2728 = vshrl.u32 %v2697, 16
    %v2729 = vmul.u32 %v2725, %v2727
    %v2730 = vmul.u32 %v2725, %v2728
    %v2731 = vmul.u32 %v2726, %v2727
    %v2732 = vmul.u32 %v2726, %v2728
    %v2733 = vshll.u32 %v2730, 16
    %v2734 = vshrl.u32 %v2730, 16
    %v2735 = vshll.u32 %v2731, 16
    %v2736 = vshrl.u32 %v2731, 16
    %vm2737 = vc.u32 %v2729, %v2733
    %v2738 = vsel %vm2737, 1, 0
    %v2739 = vadd.s32 %v2729, %v2733
    %v2740 = vadd.s32 %v2732, %v2738
    %vm2741 = vc.u32 %v2739, %v2735
    %v2742 = vsel %vm2741, 1, 0
    %v2743 = vadd.s32 %v2739, %v2735
    %v2744 = vadd.s32 %v2740, %v2742
    %v2745 = vadd.s32 %v2744, %v2734
    %v2746 = vadd.s32 %v2745, %v2736
    %v2747 = vmul.u32 %v2702, %v2693
    %v2748 = vadd.s32 %v2724, %v2743
    %vm2749 = vc.u32 %v2724, %v2743
    %v2750 = vadd.s32 %v2746, 1
    %v2751 = vsel %vm2749, %v2750, %v2746
    %v2752 = vadd.s32 %v2747, %v2751
    %v2753 = vadd.s32 %v2752, 536870912
    %v2754 = vshrl.u32 %v2753, 30
    %v2755 = vshll.u32 %v2754, 30
    %v2756 = vsub.s32 %v2752, %v2755
    %vm2757 = vcmp.lt.s32.totalorder %v2756, 0
    %v2758 = vsub.s32 0, %v2756
    %v2759 = vsel %vm2757, %v2758, %v2756
    %v2760 = vclz %v2759
    %v2761 = vsub.s32 %v2760, 2
    %vm2762 = vcmp.gt.s32.totalorder 0, %v2761
    %v2763 = vsel %vm2762, 0, %v2761
    %v2764 = vsub.s32 32, %v2763
    %v2765 = vshll.u32 %v2756, %v2763
    %v2766 = vshrl.u32 %v2748, %v2764
    %v2767 = vor.u32 %v2765, %v2766
    %v2768 = vsub.s32 4294967266, %v2763
    %v2769 = vadd.s32 %v2768, 127
    %v2770 = vshll.u32 %v2769, 23
    %v2771 = vor.u32 4788187, %v2770
    %v2772 = vand.u32 2147483647, %v2771
    %v2774 = vcvt.s32.f32 %v2767
    %v2775 = vmul.f32 %v2774, %v2772
    %v2776 = vxor.u32 %v2775, 2147483648
    %v2777 = vsel %vm2656, %v2776, %v2775
    %v2778 = vsub.s32 4, %v2754
    %v2779 = vsel %vm2656, %v2778, %v2754
    %v2780 = vsel %vm2655, %v466, %v2777
    %v2781 = vsel %vm2655, 0, %v2779
    %v2782 = vmul.f32 %v2780, %v2780
    %v2783 = vmul.f32 %v2782, -0.001358992
    %v2784 = vadd.f32 %v2783, 0.041655596
    %v2785 = vmul.f32 %v2782, %v2784
    %v2786 = vadd.f32 %v2785, -0.4999988
    %v2787 = vmul.f32 %v2782, %v2786
    %v2788 = vadd.f32 1.0, %v2787
    %v2789 = vmul.f32 %v2780, %v2780
    %v2790 = vmul.f32 %v2789, -0.00019511016
    %v2791 = vadd.f32 %v2790, 0.008332121
    %v2792 = vmul.f32 %v2789, %v2791
    %v2793 = vadd.f32 %v2792, -0.16666654
    %v2794 = vmul.f32 %v2789, %v2793
    %v2795 = vadd.f32 %v2794, 1.0
    %v2796 = vmul.f32 %v2795, %v2780
    %vm2797 = vweird.f32 %v466
    %v2798 = vadd.s32 %v2781, 3
    %v2799 = vand.u32 %v2798, 3
    %vm2800 = vcmp.lt.s32.totalorder %v2799, 2
    %vm2801 = vcmp.eq.s32.totalorder %v2799, 0
    %v2802 = vxor.u32 %v2796, 2147483648
    %v2803 = vsel %vm2801, %v2788, %v2802
    %vm2804 = vcmp.eq.s32.totalorder %v2799, 2
    %v2805 = vxor.u32 %v2788, 2147483648
    %v2806 = vsel %vm2804, %v2805, %v2796
    %v2807 = vsel %vm2800, %v2803, %v2806
    %v2808 = vsel %vm2797, nan, %v2807
    %v2809 = vand.u32 2147483647, %v467
    %vm2810 = vcmp.le.f32.partialorder %v2809, 0.7853982
    %vm2811 = vcmp.lt.s32.totalorder %v467, 0
    %v2812 = vand.u32 %v467, 2139095040
    %v2813 = vshrl.u32 %v2812, 23
    %v2814 = vsub.s32 %v2813, 127
    %v2815 = vand.u32 2147483647, %v467
    %v2816 = vand.u32 %v2815, 8388607
    %v2817 = vor.u32 %v2816, 8388608
    %v2818 = vsub.s32 0, %v2817
    %v2819 = vadd.s32 %v2814, 1
    %vm2820 = vcmp.gt.s32.totalorder %v2819, 0
    %v2821 = vsel %vm2820, %v2819, 0
    %v2822 = vshrl.u32 %v2821, 5
    %v2823 = vand.u32 %v2821, 31
    %v2824 = vsub.s32 32, %v2823
    %v2825 = vshrl.u32 683565275, %v2824
    %v2826 = vshll.u32 683565275, %v2823
    %v2827 = vshrl.u32 2475754826, %v2824
    %v2828 = vor.u32 %v2826, %v2827
    %v2829 = vshll.u32 2475754826, %v2823
    %v2830 = vshrl.u32 2131351028, %v2824
    %v2831 = vor.u32 %v2829, %v2830
    %v2832 = vshll.u32 2131351028, %v2823
    %v2833 = vshrl.u32 2102212464, %v2824
    %v2834 = vor.u32 %v2832, %v2833
    %v2835 = vshll.u32 2102212464, %v2823
    %v2836 = vshrl.u32 920167782, %v2824
    %v2837 = vor.u32 %v2835, %v2836
    %v2838 = vshll.u32 920167782, %v2823
    %v2839 = vshrl.u32 1326507024, %v2824
    %v2840 = vor.u32 %v2838, %v2839
    %vm2841 = vcmp.lt.s32.totalorder %v2822, 1
    %vm2842 = vcmp.lt.s32.totalorder %v2822, 2
    %vm2843 = vcmp.lt.s32.totalorder %v2822, 3
    %vm2844 = vcmp.lt.s32.totalorder %v2822, 4
    %v2845 = vsel %vm2841, %v2825, %v2828
    %v2846 = vsel %vm2844, %v2834, 2102212464
    %v2847 = vsel %vm2843, %v2831, %v2846
    %v2848 = vsel %vm2842, %v2845, %v2847
    %v2849 = vsel %vm2841, %v2828, %v2831
    %v2850 = vsel %vm2844, %v2837, 920167782
    %v2851 = vsel %vm2843, %v2834, %v2850
    %v2852 = vsel %vm2842, %v2849, %v2851
    %v2853 = vsel %vm2841, %v2831, %v2834
    %v2854 = vsel %vm2844, %v2840, 1326507024
    %v2855 = vsel %vm2843, %v2837, %v2854
    %v2856 = vsel %vm2842, %v2853, %v2855
    %v2857 = vshll.u32 %v2817, 8
    %v2858 = vand.u32 %v2857, 65535
    %v2859 = vshrl.u32 %v2857, 16
    %v2860 = vand.u32 %v2856, 65535
    %v2861 = vshrl.u32 %v2856, 16
    %v2862 = vmul.u32 %v2858, %v2860
    %v2863 = vmul.u32 %v2858, %v2861
    %v2864 = vmul.u32 %v2859, %v2860
    %v2865 = vmul.u32 %v2859, %v2861
    %v2866 = vshll.u32 %v2863, 16
    %v2867 = vshrl.u32 %v2863, 16
    %v2868 = vshll.u32 %v2864, 16
    %v2869 = vshrl.u32 %v2864, 16
    %vm2870 = vc.u32 %v2862, %v2866
    %v2871 = vsel %vm2870, 1, 0
    %v2872 = vadd.s32 %v2862, %v2866
    %v2873 = vadd.s32 %v2865, %v2871
    %vm2874 = vc.u32 %v2872, %v2868
    %v2875 = vsel %vm2874, 1, 0
    %v2876 = vadd.s32 %v2872, %v2868
    %v2877 = vadd.s32 %v2873, %v2875
    %v2878 = vadd.s32 %v2877, %v2867
    %v2879 = vadd.s32 %v2878, %v2869
    %v2880 = vand.u32 %v2857, 65535
    %v2881 = vshrl.u32 %v2857, 16
    %v2882 = vand.u32 %v2852, 65535
    %v2883 = vshrl.u32 %v2852, 16
    %v2884 = vmul.u32 %v2880, %v2882
    %v2885 = vmul.u32 %v2880, %v2883
    %v2886 = vmul.u32 %v2881, %v2882
    %v2887 = vmul.u32 %v2881, %v2883
    %v2888 = vshll.u32 %v2885, 16
    %v2889 = vshrl.u32 %v2885, 16
    %v2890 = vshll.u32 %v2886, 16
    %v2891 = vshrl.u32 %v2886, 16
    %vm2892 = vc.u32 %v2884, %v2888
    %v2893 = vsel %vm2892, 1, 0
    %v2894 = vadd.s32 %v2884, %v2888
    %v2895 = vadd.s32 %v2887, %v2893
    %vm2896 = vc.u32 %v2894, %v2890
    %v2897 = vsel %vm2896, 1, 0
    %v2898 = vadd.s32 %v2894, %v2890
    %v2899 = vadd.s32 %v2895, %v2897
    %v2900 = vadd.s32 %v2899, %v2889
    %v2901 = vadd.s32 %v2900, %v2891
    %v2902 = vmul.u32 %v2857, %v2848
    %v2903 = vadd.s32 %v2879, %v2898
    %vm2904 = vc.u32 %v2879, %v2898
    %v2905 = vadd.s32 %v2901, 1
    %v2906 = vsel %vm2904, %v2905, %v2901
    %v2907 = vadd.s32 %v2902, %v2906
    %v2908 = vadd.s32 %v2907, 536870912
    %v2909 = vshrl.u32 %v2908, 30
    %v2910 = vshll.u32 %v2909, 30
    %v2911 = vsub.s32 %v2907, %v2910
    %vm2912 = vcmp.lt.s32.totalorder %v2911, 0
    %v2913 = vsub.s32 0, %v2911
    %v2914 = vsel %vm2912, %v2913, %v2911
    %v2915 = vclz %v2914
    %v2916 = vsub.s32 %v2915, 2
    %vm2917 = vcmp.gt.s32.totalorder 0, %v2916
    %v2918 = vsel %vm2917, 0, %v2916
    %v2919 = vsub.s32 32, %v2918
    %v2920 = vshll.u32 %v2911, %v2918
    %v2921 = vshrl.u32 %v2903, %v2919
    %v2922 = vor.u32 %v2920, %v2921
    %v2923 = vsub.s32 4294967266, %v2918
    %v2924 = vadd.s32 %v2923, 127
    %v2925 = vshll.u32 %v2924, 23
    %v2926 = vor.u32 4788187, %v2925
    %v2927 = vand.u32 2147483647, %v2926
    %v2929 = vcvt.s32.f32 %v2922
    %v2930 = vmul.f32 %v2929, %v2927
    %v2931 = vxor.u32 %v2930, 2147483648
    %v2932 = vsel %vm2811, %v2931, %v2930
    %v2933 = vsub.s32 4, %v2909
    %v2934 = vsel %vm2811, %v2933, %v2909
    %v2935 = vsel %vm2810, %v467, %v2932
    %v2936 = vsel %vm2810, 0, %v2934
    %v2937 = vmul.f32 %v2935, %v2935
    %v2938 = vmul.f32 %v2937, -0.001358992
    %v2939 = vadd.f32 %v2938, 0.041655596
    %v2940 = vmul.f32 %v2937, %v2939
    %v2941 = vadd.f32 %v2940, -0.4999988
    %v2942 = vmul.f32 %v2937, %v2941
    %v2943 = vadd.f32 1.0, %v2942
    %v2944 = vmul.f32 %v2935, %v2935
    %v2945 = vmul.f32 %v2944, -0.00019511016
    %v2946 = vadd.f32 %v2945, 0.008332121
    %v2947 = vmul.f32 %v2944, %v2946
    %v2948 = vadd.f32 %v2947, -0.16666654
    %v2949 = vmul.f32 %v2944, %v2948
    %v2950 = vadd.f32 %v2949, 1.0
    %v2951 = vmul.f32 %v2950, %v2935
    %vm2952 = vweird.f32 %v467
    %v2953 = vadd.s32 %v2936, 3
    %v2954 = vand.u32 %v2953, 3
    %vm2955 = vcmp.lt.s32.totalorder %v2954, 2
    %vm2956 = vcmp.eq.s32.totalorder %v2954, 0
    %v2957 = vxor.u32 %v2951, 2147483648
    %v2958 = vsel %vm2956, %v2943, %v2957
    %vm2959 = vcmp.eq.s32.totalorder %v2954, 2
    %v2960 = vxor.u32 %v2943, 2147483648
    %v2961 = vsel %vm2959, %v2960, %v2951
    %v2962 = vsel %vm2955, %v2958, %v2961
    %v2963 = vsel %vm2952, nan, %v2962
    %v2964 = vand.u32 2147483647, %v468
    %vm2965 = vcmp.le.f32.partialorder %v2964, 0.7853982
    %vm2966 = vcmp.lt.s32.totalorder %v468, 0
    %v2967 = vand.u32 %v468, 2139095040
    %v2968 = vshrl.u32 %v2967, 23
    %v2969 = vsub.s32 %v2968, 127
    %v2970 = vand.u32 2147483647, %v468
    %v2971 = vand.u32 %v2970, 8388607
    %v2972 = vor.u32 %v2971, 8388608
    %v2973 = vsub.s32 0, %v2972
    %v2974 = vadd.s32 %v2969, 1
    %vm2975 = vcmp.gt.s32.totalorder %v2974, 0
    %v2976 = vsel %vm2975, %v2974, 0
    %v2977 = vshrl.u32 %v2976, 5
    %v2978 = vand.u32 %v2976, 31
    %v2979 = vsub.s32 32, %v2978
    %v2980 = vshrl.u32 683565275, %v2979
    %v2981 = vshll.u32 683565275, %v2978
    %v2982 = vshrl.u32 2475754826, %v2979
    %v2983 = vor.u32 %v2981, %v2982
    %v2984 = vshll.u32 2475754826, %v2978
    %v2985 = vshrl.u32 2131351028, %v2979
    %v2986 = vor.u32 %v2984, %v2985
    %v2987 = vshll.u32 2131351028, %v2978
    %v2988 = vshrl.u32 2102212464, %v2979
    %v2989 = vor.u32 %v2987, %v2988
    %v2990 = vshll.u32 2102212464, %v2978
    %v2991 = vshrl.u32 920167782, %v2979
    %v2992 = vor.u32 %v2990, %v2991
    %v2993 = vshll.u32 920167782, %v2978
    %v2994 = vshrl.u32 1326507024, %v2979
    %v2995 = vor.u32 %v2993, %v2994
    %vm2996 = vcmp.lt.s32.totalorder %v2977, 1
    %vm2997 = vcmp.lt.s32.totalorder %v2977, 2
    %vm2998 = vcmp.lt.s32.totalorder %v2977, 3
    %vm2999 = vcmp.lt.s32.totalorder %v2977, 4
    %v3000 = vsel %vm2996, %v2980, %v2983
    %v3001 = vsel %vm2999, %v2989, 2102212464
    %v3002 = vsel %vm2998, %v2986, %v3001
    %v3003 = vsel %vm2997, %v3000, %v3002
    %v3004 = vsel %vm2996, %v2983, %v2986
    %v3005 = vsel %vm2999, %v2992, 920167782
    %v3006 = vsel %vm2998, %v2989, %v3005
    %v3007 = vsel %vm2997, %v3004, %v3006
    %v3008 = vsel %vm2996, %v2986, %v2989
    %v3009 = vsel %vm2999, %v2995, 1326507024
    %v3010 = vsel %vm2998, %v2992, %v3009
    %v3011 = vsel %vm2997, %v3008, %v3010
    %v3012 = vshll.u32 %v2972, 8
    %v3013 = vand.u32 %v3012, 65535
    %v3014 = vshrl.u32 %v3012, 16
    %v3015 = vand.u32 %v3011, 65535
    %v3016 = vshrl.u32 %v3011, 16
    %v3017 = vmul.u32 %v3013, %v3015
    %v3018 = vmul.u32 %v3013, %v3016
    %v3019 = vmul.u32 %v3014, %v3015
    %v3020 = vmul.u32 %v3014, %v3016
    %v3021 = vshll.u32 %v3018, 16
    %v3022 = vshrl.u32 %v3018, 16
    %v3023 = vshll.u32 %v3019, 16
    %v3024 = vshrl.u32 %v3019, 16
    %vm3025 = vc.u32 %v3017, %v3021
    %v3026 = vsel %vm3025, 1, 0
    %v3027 = vadd.s32 %v3017, %v3021
    %v3028 = vadd.s32 %v3020, %v3026
    %vm3029 = vc.u32 %v3027, %v3023
    %v3030 = vsel %vm3029, 1, 0
    %v3031 = vadd.s32 %v3027, %v3023
    %v3032 = vadd.s32 %v3028, %v3030
    %v3033 = vadd.s32 %v3032, %v3022
    %v3034 = vadd.s32 %v3033, %v3024
    %v3035 = vand.u32 %v3012, 65535
    %v3036 = vshrl.u32 %v3012, 16
    %v3037 = vand.u32 %v3007, 65535
    %v3038 = vshrl.u32 %v3007, 16
    %v3039 = vmul.u32 %v3035, %v3037
    %v3040 = vmul.u32 %v3035, %v3038
    %v3041 = vmul.u32 %v3036, %v3037
    %v3042 = vmul.u32 %v3036, %v3038
    %v3043 = vshll.u32 %v3040, 16
    %v3044 = vshrl.u32 %v3040, 16
    %v3045 = vshll.u32 %v3041, 16
    %v3046 = vshrl.u32 %v3041, 16
    %vm3047 = vc.u32 %v3039, %v3043
    %v3048 = vsel %vm3047, 1, 0
    %v3049 = vadd.s32 %v3039, %v3043
    %v3050 = vadd.s32 %v3042, %v3048
    %vm3051 = vc.u32 %v3049, %v3045
    %v3052 = vsel %vm3051, 1, 0
    %v3053 = vadd.s32 %v3049, %v3045
    %v3054 = vadd.s32 %v3050, %v3052
    %v3055 = vadd.s32 %v3054, %v3044
    %v3056 = vadd.s32 %v3055, %v3046
    %v3057 = vmul.u32 %v3012, %v3003
    %v3058 = vadd.s32 %v3034, %v3053
    %vm3059 = vc.u32 %v3034, %v3053
    %v3060 = vadd.s32 %v3056, 1
    %v3061 = vsel %vm3059, %v3060, %v3056
    %v3062 = vadd.s32 %v3057, %v3061
    %v3063 = vadd.s32 %v3062, 536870912
    %v3064 = vshrl.u32 %v3063, 30
    %v3065 = vshll.u32 %v3064, 30
    %v3066 = vsub.s32 %v3062, %v3065
    %vm3067 = vcmp.lt.s32.totalorder %v3066, 0
    %v3068 = vsub.s32 0, %v3066
    %v3069 = vsel %vm3067, %v3068, %v3066
    %v3070 = vclz %v3069
    %v3071 = vsub.s32 %v3070, 2
    %vm3072 = vcmp.gt.s32.totalorder 0, %v3071
    %v3073 = vsel %vm3072, 0, %v3071
    %v3074 = vsub.s32 32, %v3073
    %v3075 = vshll.u32 %v3066, %v3073
    %v3076 = vshrl.u32 %v3058, %v3074
    %v3077 = vor.u32 %v3075, %v3076
    %v3078 = vsub.s32 4294967266, %v3073
    %v3079 = vadd.s32 %v3078, 127
    %v3080 = vshll.u32 %v3079, 23
    %v3081 = vor.u32 4788187, %v3080
    %v3082 = vand.u32 2147483647, %v3081
    %v3084 = vcvt.s32.f32 %v3077
    %v3085 = vmul.f32 %v3084, %v3082
    %v3086 = vxor.u32 %v3085, 2147483648
    %v3087 = vsel %vm2966, %v3086, %v3085
    %v3088 = vsub.s32 4, %v3064
    %v3089 = vsel %vm2966, %v3088, %v3064
    %v3090 = vsel %vm2965, %v468, %v3087
    %v3091 = vsel %vm2965, 0, %v3089
    %v3092 = vmul.f32 %v3090, %v3090
    %v3093 = vmul.f32 %v3092, -0.001358992
    %v3094 = vadd.f32 %v3093, 0.041655596
    %v3095 = vmul.f32 %v3092, %v3094
    %v3096 = vadd.f32 %v3095, -0.4999988
    %v3097 = vmul.f32 %v3092, %v3096
    %v3098 = vadd.f32 1.0, %v3097
    %v3099 = vmul.f32 %v3090, %v3090
    %v3100 = vmul.f32 %v3099, -0.00019511016
    %v3101 = vadd.f32 %v3100, 0.008332121
    %v3102 = vmul.f32 %v3099, %v3101
    %v3103 = vadd.f32 %v3102, -0.16666654
    %v3104 = vmul.f32 %v3099, %v3103
    %v3105 = vadd.f32 %v3104, 1.0
    %v3106 = vmul.f32 %v3105, %v3090
    %vm3107 = vweird.f32 %v468
    %v3108 = vadd.s32 %v3091, 3
    %v3109 = vand.u32 %v3108, 3
    %vm3110 = vcmp.lt.s32.totalorder %v3109, 2
    %vm3111 = vcmp.eq.s32.totalorder %v3109, 0
    %v3112 = vxor.u32 %v3106, 2147483648
    %v3113 = vsel %vm3111, %v3098, %v3112
    %vm3114 = vcmp.eq.s32.totalorder %v3109, 2
    %v3115 = vxor.u32 %v3098, 2147483648
    %v3116 = vsel %vm3114, %v3115, %v3106
    %v3117 = vsel %vm3110, %v3113, %v3116
    %v3118 = vsel %vm3107, nan, %v3117
    %v3119 = vand.u32 2147483647, %v469
    %vm3120 = vcmp.le.f32.partialorder %v3119, 0.7853982
    %vm3121 = vcmp.lt.s32.totalorder %v469, 0
    %v3122 = vand.u32 %v469, 2139095040
    %v3123 = vshrl.u32 %v3122, 23
    %v3124 = vsub.s32 %v3123, 127
    %v3125 = vand.u32 2147483647, %v469
    %v3126 = vand.u32 %v3125, 8388607
    %v3127 = vor.u32 %v3126, 8388608
    %v3128 = vsub.s32 0, %v3127
    %v3129 = vadd.s32 %v3124, 1
    %vm3130 = vcmp.gt.s32.totalorder %v3129, 0
    %v3131 = vsel %vm3130, %v3129, 0
    %v3132 = vshrl.u32 %v3131, 5
    %v3133 = vand.u32 %v3131, 31
    %v3134 = vsub.s32 32, %v3133
    %v3135 = vshrl.u32 683565275, %v3134
    %v3136 = vshll.u32 683565275, %v3133
    %v3137 = vshrl.u32 2475754826, %v3134
    %v3138 = vor.u32 %v3136, %v3137
    %v3139 = vshll.u32 2475754826, %v3133
    %v3140 = vshrl.u32 2131351028, %v3134
    %v3141 = vor.u32 %v3139, %v3140
    %v3142 = vshll.u32 2131351028, %v3133
    %v3143 = vshrl.u32 2102212464, %v3134
    %v3144 = vor.u32 %v3142, %v3143
    %v3145 = vshll.u32 2102212464, %v3133
    %v3146 = vshrl.u32 920167782, %v3134
    %v3147 = vor.u32 %v3145, %v3146
    %v3148 = vshll.u32 920167782, %v3133
    %v3149 = vshrl.u32 1326507024, %v3134
    %v3150 = vor.u32 %v3148, %v3149
    %vm3151 = vcmp.lt.s32.totalorder %v3132, 1
    %vm3152 = vcmp.lt.s32.totalorder %v3132, 2
    %vm3153 = vcmp.lt.s32.totalorder %v3132, 3
    %vm3154 = vcmp.lt.s32.totalorder %v3132, 4
    %v3155 = vsel %vm3151, %v3135, %v3138
    %v3156 = vsel %vm3154, %v3144, 2102212464
    %v3157 = vsel %vm3153, %v3141, %v3156
    %v3158 = vsel %vm3152, %v3155, %v3157
    %v3159 = vsel %vm3151, %v3138, %v3141
    %v3160 = vsel %vm3154, %v3147, 920167782
    %v3161 = vsel %vm3153, %v3144, %v3160
    %v3162 = vsel %vm3152, %v3159, %v3161
    %v3163 = vsel %vm3151, %v3141, %v3144
    %v3164 = vsel %vm3154, %v3150, 1326507024
    %v3165 = vsel %vm3153, %v3147, %v3164
    %v3166 = vsel %vm3152, %v3163, %v3165
    %v3167 = vshll.u32 %v3127, 8
    %v3168 = vand.u32 %v3167, 65535
    %v3169 = vshrl.u32 %v3167, 16
    %v3170 = vand.u32 %v3166, 65535
    %v3171 = vshrl.u32 %v3166, 16
    %v3172 = vmul.u32 %v3168, %v3170
    %v3173 = vmul.u32 %v3168, %v3171
    %v3174 = vmul.u32 %v3169, %v3170
    %v3175 = vmul.u32 %v3169, %v3171
    %v3176 = vshll.u32 %v3173, 16
    %v3177 = vshrl.u32 %v3173, 16
    %v3178 = vshll.u32 %v3174, 16
    %v3179 = vshrl.u32 %v3174, 16
    %vm3180 = vc.u32 %v3172, %v3176
    %v3181 = vsel %vm3180, 1, 0
    %v3182 = vadd.s32 %v3172, %v3176
    %v3183 = vadd.s32 %v3175, %v3181
    %vm3184 = vc.u32 %v3182, %v3178
    %v3185 = vsel %vm3184, 1, 0
    %v3186 = vadd.s32 %v3182, %v3178
    %v3187 = vadd.s32 %v3183, %v3185
    %v3188 = vadd.s32 %v3187, %v3177
    %v3189 = vadd.s32 %v3188, %v3179
    %v3190 = vand.u32 %v3167, 65535
    %v3191 = vshrl.u32 %v3167, 16
    %v3192 = vand.u32 %v3162, 65535
    %v3193 = vshrl.u32 %v3162, 16
    %v3194 = vmul.u32 %v3190, %v3192
    %v3195 = vmul.u32 %v3190, %v3193
    %v3196 = vmul.u32 %v3191, %v3192
    %v3197 = vmul.u32 %v3191, %v3193
    %v3198 = vshll.u32 %v3195, 16
    %v3199 = vshrl.u32 %v3195, 16
    %v3200 = vshll.u32 %v3196, 16
    %v3201 = vshrl.u32 %v3196, 16
    %vm3202 = vc.u32 %v3194, %v3198
    %v3203 = vsel %vm3202, 1, 0
    %v3204 = vadd.s32 %v3194, %v3198
    %v3205 = vadd.s32 %v3197, %v3203
    %vm3206 = vc.u32 %v3204, %v3200
    %v3207 = vsel %vm3206, 1, 0
    %v3208 = vadd.s32 %v3204, %v3200
    %v3209 = vadd.s32 %v3205, %v3207
    %v3210 = vadd.s32 %v3209, %v3199
    %v3211 = vadd.s32 %v3210, %v3201
    %v3212 = vmul.u32 %v3167, %v3158
    %v3213 = vadd.s32 %v3189, %v3208
    %vm3214 = vc.u32 %v3189, %v3208
    %v3215 = vadd.s32 %v3211, 1
    %v3216 = vsel %vm3214, %v3215, %v3211
    %v3217 = vadd.s32 %v3212, %v3216
    %v3218 = vadd.s32 %v3217, 536870912
    %v3219 = vshrl.u32 %v3218, 30
    %v3220 = vshll.u32 %v3219, 30
    %v3221 = vsub.s32 %v3217, %v3220
    %vm3222 = vcmp.lt.s32.totalorder %v3221, 0
    %v3223 = vsub.s32 0, %v3221
    %v3224 = vsel %vm3222, %v3223, %v3221
    %v3225 = vclz %v3224
    %v3226 = vsub.s32 %v3225, 2
    %vm3227 = vcmp.gt.s32.totalorder 0, %v3226
    %v3228 = vsel %vm3227, 0, %v3226
    %v3229 = vsub.s32 32, %v3228
    %v3230 = vshll.u32 %v3221, %v3228
    %v3231 = vshrl.u32 %v3213, %v3229
    %v3232 = vor.u32 %v3230, %v3231
    %v3233 = vsub.s32 4294967266, %v3228
    %v3234 = vadd.s32 %v3233, 127
    %v3235 = vshll.u32 %v3234, 23
    %v3236 = vor.u32 4788187, %v3235
    %v3237 = vand.u32 2147483647, %v3236
    %v3239 = vcvt.s32.f32 %v3232
    %v3240 = vmul.f32 %v3239, %v3237
    %v3241 = vxor.u32 %v3240, 2147483648
    %v3242 = vsel %vm3121, %v3241, %v3240
    %v3243 = vsub.s32 4, %v3219
    %v3244 = vsel %vm3121, %v3243, %v3219
    %v3245 = vsel %vm3120, %v469, %v3242
    %v3246 = vsel %vm3120, 0, %v3244
    %v3247 = vmul.f32 %v3245, %v3245
    %v3248 = vmul.f32 %v3247, -0.001358992
    %v3249 = vadd.f32 %v3248, 0.041655596
    %v3250 = vmul.f32 %v3247, %v3249
    %v3251 = vadd.f32 %v3250, -0.4999988
    %v3252 = vmul.f32 %v3247, %v3251
    %v3253 = vadd.f32 1.0, %v3252
    %v3254 = vmul.f32 %v3245, %v3245
    %v3255 = vmul.f32 %v3254, -0.00019511016
    %v3256 = vadd.f32 %v3255, 0.008332121
    %v3257 = vmul.f32 %v3254, %v3256
    %v3258 = vadd.f32 %v3257, -0.16666654
    %v3259 = vmul.f32 %v3254, %v3258
    %v3260 = vadd.f32 %v3259, 1.0
    %v3261 = vmul.f32 %v3260, %v3245
    %vm3262 = vweird.f32 %v469
    %v3263 = vadd.s32 %v3246, 3
    %v3264 = vand.u32 %v3263, 3
    %vm3265 = vcmp.lt.s32.totalorder %v3264, 2
    %vm3266 = vcmp.eq.s32.totalorder %v3264, 0
    %v3267 = vxor.u32 %v3261, 2147483648
    %v3268 = vsel %vm3266, %v3253, %v3267
    %vm3269 = vcmp.eq.s32.totalorder %v3264, 2
    %v3270 = vxor.u32 %v3253, 2147483648
    %v3271 = vsel %vm3269, %v3270, %v3261
    %v3272 = vsel %vm3265, %v3268, %v3271
    %v3273 = vsel %vm3262, nan, %v3272
    %v3274 = vand.u32 2147483647, %v470
    %vm3275 = vcmp.le.f32.partialorder %v3274, 0.7853982
    %vm3276 = vcmp.lt.s32.totalorder %v470, 0
    %v3277 = vand.u32 %v470, 2139095040
    %v3278 = vshrl.u32 %v3277, 23
    %v3279 = vsub.s32 %v3278, 127
    %v3280 = vand.u32 2147483647, %v470
    %v3281 = vand.u32 %v3280, 8388607
    %v3282 = vor.u32 %v3281, 8388608
    %v3283 = vsub.s32 0, %v3282
    %v3284 = vadd.s32 %v3279, 1
    %vm3285 = vcmp.gt.s32.totalorder %v3284, 0
    %v3286 = vsel %vm3285, %v3284, 0
    %v3287 = vshrl.u32 %v3286, 5
    %v3288 = vand.u32 %v3286, 31
    %v3289 = vsub.s32 32, %v3288
    %v3290 = vshrl.u32 683565275, %v3289
    %v3291 = vshll.u32 683565275, %v3288
    %v3292 = vshrl.u32 2475754826, %v3289
    %v3293 = vor.u32 %v3291, %v3292
    %v3294 = vshll.u32 2475754826, %v3288
    %v3295 = vshrl.u32 2131351028, %v3289
    %v3296 = vor.u32 %v3294, %v3295
    %v3297 = vshll.u32 2131351028, %v3288
    %v3298 = vshrl.u32 2102212464, %v3289
    %v3299 = vor.u32 %v3297, %v3298
    %v3300 = vshll.u32 2102212464, %v3288
    %v3301 = vshrl.u32 920167782, %v3289
    %v3302 = vor.u32 %v3300, %v3301
    %v3303 = vshll.u32 920167782, %v3288
    %v3304 = vshrl.u32 1326507024, %v3289
    %v3305 = vor.u32 %v3303, %v3304
    %vm3306 = vcmp.lt.s32.totalorder %v3287, 1
    %vm3307 = vcmp.lt.s32.totalorder %v3287, 2
    %vm3308 = vcmp.lt.s32.totalorder %v3287, 3
    %vm3309 = vcmp.lt.s32.totalorder %v3287, 4
    %v3310 = vsel %vm3306, %v3290, %v3293
    %v3311 = vsel %vm3309, %v3299, 2102212464
    %v3312 = vsel %vm3308, %v3296, %v3311
    %v3313 = vsel %vm3307, %v3310, %v3312
    %v3314 = vsel %vm3306, %v3293, %v3296
    %v3315 = vsel %vm3309, %v3302, 920167782
    %v3316 = vsel %vm3308, %v3299, %v3315
    %v3317 = vsel %vm3307, %v3314, %v3316
    %v3318 = vsel %vm3306, %v3296, %v3299
    %v3319 = vsel %vm3309, %v3305, 1326507024
    %v3320 = vsel %vm3308, %v3302, %v3319
    %v3321 = vsel %vm3307, %v3318, %v3320
    %v3322 = vshll.u32 %v3282, 8
    %v3323 = vand.u32 %v3322, 65535
    %v3324 = vshrl.u32 %v3322, 16
    %v3325 = vand.u32 %v3321, 65535
    %v3326 = vshrl.u32 %v3321, 16
    %v3327 = vmul.u32 %v3323, %v3325
    %v3328 = vmul.u32 %v3323, %v3326
    %v3329 = vmul.u32 %v3324, %v3325
    %v3330 = vmul.u32 %v3324, %v3326
    %v3331 = vshll.u32 %v3328, 16
    %v3332 = vshrl.u32 %v3328, 16
    %v3333 = vshll.u32 %v3329, 16
    %v3334 = vshrl.u32 %v3329, 16
    %vm3335 = vc.u32 %v3327, %v3331
    %v3336 = vsel %vm3335, 1, 0
    %v3337 = vadd.s32 %v3327, %v3331
    %v3338 = vadd.s32 %v3330, %v3336
    %vm3339 = vc.u32 %v3337, %v3333
    %v3340 = vsel %vm3339, 1, 0
    %v3341 = vadd.s32 %v3337, %v3333
    %v3342 = vadd.s32 %v3338, %v3340
    %v3343 = vadd.s32 %v3342, %v3332
    %v3344 = vadd.s32 %v3343, %v3334
    %v3345 = vand.u32 %v3322, 65535
    %v3346 = vshrl.u32 %v3322, 16
    %v3347 = vand.u32 %v3317, 65535
    %v3348 = vshrl.u32 %v3317, 16
    %v3349 = vmul.u32 %v3345, %v3347
    %v3350 = vmul.u32 %v3345, %v3348
    %v3351 = vmul.u32 %v3346, %v3347
    %v3352 = vmul.u32 %v3346, %v3348
    %v3353 = vshll.u32 %v3350, 16
    %v3354 = vshrl.u32 %v3350, 16
    %v3355 = vshll.u32 %v3351, 16
    %v3356 = vshrl.u32 %v3351, 16
    %vm3357 = vc.u32 %v3349, %v3353
    %v3358 = vsel %vm3357, 1, 0
    %v3359 = vadd.s32 %v3349, %v3353
    %v3360 = vadd.s32 %v3352, %v3358
    %vm3361 = vc.u32 %v3359, %v3355
    %v3362 = vsel %vm3361, 1, 0
    %v3363 = vadd.s32 %v3359, %v3355
    %v3364 = vadd.s32 %v3360, %v3362
    %v3365 = vadd.s32 %v3364, %v3354
    %v3366 = vadd.s32 %v3365, %v3356
    %v3367 = vmul.u32 %v3322, %v3313
    %v3368 = vadd.s32 %v3344, %v3363
    %vm3369 = vc.u32 %v3344, %v3363
    %v3370 = vadd.s32 %v3366, 1
    %v3371 = vsel %vm3369, %v3370, %v3366
    %v3372 = vadd.s32 %v3367, %v3371
    %v3373 = vadd.s32 %v3372, 536870912
    %v3374 = vshrl.u32 %v3373, 30
    %v3375 = vshll.u32 %v3374, 30
    %v3376 = vsub.s32 %v3372, %v3375
    %vm3377 = vcmp.lt.s32.totalorder %v3376, 0
    %v3378 = vsub.s32 0, %v3376
    %v3379 = vsel %vm3377, %v3378, %v3376
    %v3380 = vclz %v3379
    %v3381 = vsub.s32 %v3380, 2
    %vm3382 = vcmp.gt.s32.totalorder 0, %v3381
    %v3383 = vsel %vm3382, 0, %v3381
    %v3384 = vsub.s32 32, %v3383
    %v3385 = vshll.u32 %v3376, %v3383
    %v3386 = vshrl.u32 %v3368, %v3384
    %v3387 = vor.u32 %v3385, %v3386
    %v3388 = vsub.s32 4294967266, %v3383
    %v3389 = vadd.s32 %v3388, 127
    %v3390 = vshll.u32 %v3389, 23
    %v3391 = vor.u32 4788187, %v3390
    %v3392 = vand.u32 2147483647, %v3391
    %v3394 = vcvt.s32.f32 %v3387
    %v3395 = vmul.f32 %v3394, %v3392
    %v3396 = vxor.u32 %v3395, 2147483648
    %v3397 = vsel %vm3276, %v3396, %v3395
    %v3398 = vsub.s32 4, %v3374
    %v3399 = vsel %vm3276, %v3398, %v3374
    %v3400 = vsel %vm3275, %v470, %v3397
    %v3401 = vsel %vm3275, 0, %v3399
    %v3402 = vmul.f32 %v3400, %v3400
    %v3403 = vmul.f32 %v3402, -0.001358992
    %v3404 = vadd.f32 %v3403, 0.041655596
    %v3405 = vmul.f32 %v3402, %v3404
    %v3406 = vadd.f32 %v3405, -0.4999988
    %v3407 = vmul.f32 %v3402, %v3406
    %v3408 = vadd.f32 1.0, %v3407
    %v3409 = vmul.f32 %v3400, %v3400
    %v3410 = vmul.f32 %v3409, -0.00019511016
    %v3411 = vadd.f32 %v3410, 0.008332121
    %v3412 = vmul.f32 %v3409, %v3411
    %v3413 = vadd.f32 %v3412, -0.16666654
    %v3414 = vmul.f32 %v3409, %v3413
    %v3415 = vadd.f32 %v3414, 1.0
    %v3416 = vmul.f32 %v3415, %v3400
    %vm3417 = vweird.f32 %v470
    %v3418 = vadd.s32 %v3401, 3
    %v3419 = vand.u32 %v3418, 3
    %vm3420 = vcmp.lt.s32.totalorder %v3419, 2
    %vm3421 = vcmp.eq.s32.totalorder %v3419, 0
    %v3422 = vxor.u32 %v3416, 2147483648
    %v3423 = vsel %vm3421, %v3408, %v3422
    %vm3424 = vcmp.eq.s32.totalorder %v3419, 2
    %v3425 = vxor.u32 %v3408, 2147483648
    %v3426 = vsel %vm3424, %v3425, %v3416
    %v3427 = vsel %vm3420, %v3423, %v3426
    %v3428 = vsel %vm3417, nan, %v3427
    %v3429 = vand.u32 2147483647, %v471
    %vm3430 = vcmp.le.f32.partialorder %v3429, 0.7853982
    %vm3431 = vcmp.lt.s32.totalorder %v471, 0
    %v3432 = vand.u32 %v471, 2139095040
    %v3433 = vshrl.u32 %v3432, 23
    %v3434 = vsub.s32 %v3433, 127
    %v3435 = vand.u32 2147483647, %v471
    %v3436 = vand.u32 %v3435, 8388607
    %v3437 = vor.u32 %v3436, 8388608
    %v3438 = vsub.s32 0, %v3437
    %v3439 = vadd.s32 %v3434, 1
    %vm3440 = vcmp.gt.s32.totalorder %v3439, 0
    %v3441 = vsel %vm3440, %v3439, 0
    %v3442 = vshrl.u32 %v3441, 5
    %v3443 = vand.u32 %v3441, 31
    %v3444 = vsub.s32 32, %v3443
    %v3445 = vshrl.u32 683565275, %v3444
    %v3446 = vshll.u32 683565275, %v3443
    %v3447 = vshrl.u32 2475754826, %v3444
    %v3448 = vor.u32 %v3446, %v3447
    %v3449 = vshll.u32 2475754826, %v3443
    %v3450 = vshrl.u32 2131351028, %v3444
    %v3451 = vor.u32 %v3449, %v3450
    %v3452 = vshll.u32 2131351028, %v3443
    %v3453 = vshrl.u32 2102212464, %v3444
    %v3454 = vor.u32 %v3452, %v3453
    %v3455 = vshll.u32 2102212464, %v3443
    %v3456 = vshrl.u32 920167782, %v3444
    %v3457 = vor.u32 %v3455, %v3456
    %v3458 = vshll.u32 920167782, %v3443
    %v3459 = vshrl.u32 1326507024, %v3444
    %v3460 = vor.u32 %v3458, %v3459
    %vm3461 = vcmp.lt.s32.totalorder %v3442, 1
    %vm3462 = vcmp.lt.s32.totalorder %v3442, 2
    %vm3463 = vcmp.lt.s32.totalorder %v3442, 3
    %vm3464 = vcmp.lt.s32.totalorder %v3442, 4
    %v3465 = vsel %vm3461, %v3445, %v3448
    %v3466 = vsel %vm3464, %v3454, 2102212464
    %v3467 = vsel %vm3463, %v3451, %v3466
    %v3468 = vsel %vm3462, %v3465, %v3467
    %v3469 = vsel %vm3461, %v3448, %v3451
    %v3470 = vsel %vm3464, %v3457, 920167782
    %v3471 = vsel %vm3463, %v3454, %v3470
    %v3472 = vsel %vm3462, %v3469, %v3471
    %v3473 = vsel %vm3461, %v3451, %v3454
    %v3474 = vsel %vm3464, %v3460, 1326507024
    %v3475 = vsel %vm3463, %v3457, %v3474
    %v3476 = vsel %vm3462, %v3473, %v3475
    %v3477 = vshll.u32 %v3437, 8
    %v3478 = vand.u32 %v3477, 65535
    %v3479 = vshrl.u32 %v3477, 16
    %v3480 = vand.u32 %v3476, 65535
    %v3481 = vshrl.u32 %v3476, 16
    %v3482 = vmul.u32 %v3478, %v3480
    %v3483 = vmul.u32 %v3478, %v3481
    %v3484 = vmul.u32 %v3479, %v3480
    %v3485 = vmul.u32 %v3479, %v3481
    %v3486 = vshll.u32 %v3483, 16
    %v3487 = vshrl.u32 %v3483, 16
    %v3488 = vshll.u32 %v3484, 16
    %v3489 = vshrl.u32 %v3484, 16
    %vm3490 = vc.u32 %v3482, %v3486
    %v3491 = vsel %vm3490, 1, 0
    %v3492 = vadd.s32 %v3482, %v3486
    %v3493 = vadd.s32 %v3485, %v3491
    %vm3494 = vc.u32 %v3492, %v3488
    %v3495 = vsel %vm3494, 1, 0
    %v3496 = vadd.s32 %v3492, %v3488
    %v3497 = vadd.s32 %v3493, %v3495
    %v3498 = vadd.s32 %v3497, %v3487
    %v3499 = vadd.s32 %v3498, %v3489
    %v3500 = vand.u32 %v3477, 65535
    %v3501 = vshrl.u32 %v3477, 16
    %v3502 = vand.u32 %v3472, 65535
    %v3503 = vshrl.u32 %v3472, 16
    %v3504 = vmul.u32 %v3500, %v3502
    %v3505 = vmul.u32 %v3500, %v3503
    %v3506 = vmul.u32 %v3501, %v3502
    %v3507 = vmul.u32 %v3501, %v3503
    %v3508 = vshll.u32 %v3505, 16
    %v3509 = vshrl.u32 %v3505, 16
    %v3510 = vshll.u32 %v3506, 16
    %v3511 = vshrl.u32 %v3506, 16
    %vm3512 = vc.u32 %v3504, %v3508
    %v3513 = vsel %vm3512, 1, 0
    %v3514 = vadd.s32 %v3504, %v3508
    %v3515 = vadd.s32 %v3507, %v3513
    %vm3516 = vc.u32 %v3514, %v3510
    %v3517 = vsel %vm3516, 1, 0
    %v3518 = vadd.s32 %v3514, %v3510
    %v3519 = vadd.s32 %v3515, %v3517
    %v3520 = vadd.s32 %v3519, %v3509
    %v3521 = vadd.s32 %v3520, %v3511
    %v3522 = vmul.u32 %v3477, %v3468
    %v3523 = vadd.s32 %v3499, %v3518
    %vm3524 = vc.u32 %v3499, %v3518
    %v3525 = vadd.s32 %v3521, 1
    %v3526 = vsel %vm3524, %v3525, %v3521
    %v3527 = vadd.s32 %v3522, %v3526
    %v3528 = vadd.s32 %v3527, 536870912
    %v3529 = vshrl.u32 %v3528, 30
    %v3530 = vshll.u32 %v3529, 30
    %v3531 = vsub.s32 %v3527, %v3530
    %vm3532 = vcmp.lt.s32.totalorder %v3531, 0
    %v3533 = vsub.s32 0, %v3531
    %v3534 = vsel %vm3532, %v3533, %v3531
    %v3535 = vclz %v3534
    %v3536 = vsub.s32 %v3535, 2
    %vm3537 = vcmp.gt.s32.totalorder 0, %v3536
    %v3538 = vsel %vm3537, 0, %v3536
    %v3539 = vsub.s32 32, %v3538
    %v3540 = vshll.u32 %v3531, %v3538
    %v3541 = vshrl.u32 %v3523, %v3539
    %v3542 = vor.u32 %v3540, %v3541
    %v3543 = vsub.s32 4294967266, %v3538
    %v3544 = vadd.s32 %v3543, 127
    %v3545 = vshll.u32 %v3544, 23
    %v3546 = vor.u32 4788187, %v3545
    %v3547 = vand.u32 2147483647, %v3546
    %v3549 = vcvt.s32.f32 %v3542
    %v3550 = vmul.f32 %v3549, %v3547
    %v3551 = vxor.u32 %v3550, 2147483648
    %v3552 = vsel %vm3431, %v3551, %v3550
    %v3553 = vsub.s32 4, %v3529
    %v3554 = vsel %vm3431, %v3553, %v3529
    %v3555 = vsel %vm3430, %v471, %v3552
    %v3556 = vsel %vm3430, 0, %v3554
    %v3557 = vmul.f32 %v3555, %v3555
    %v3558 = vmul.f32 %v3557, -0.001358992
    %v3559 = vadd.f32 %v3558, 0.041655596
    %v3560 = vmul.f32 %v3557, %v3559
    %v3561 = vadd.f32 %v3560, -0.4999988
    %v3562 = vmul.f32 %v3557, %v3561
    %v3563 = vadd.f32 1.0, %v3562
    %v3564 = vmul.f32 %v3555, %v3555
    %v3565 = vmul.f32 %v3564, -0.00019511016
    %v3566 = vadd.f32 %v3565, 0.008332121
    %v3567 = vmul.f32 %v3564, %v3566
    %v3568 = vadd.f32 %v3567, -0.16666654
    %v3569 = vmul.f32 %v3564, %v3568
    %v3570 = vadd.f32 %v3569, 1.0
    %v3571 = vmul.f32 %v3570, %v3555
    %vm3572 = vweird.f32 %v471
    %v3573 = vadd.s32 %v3556, 3
    %v3574 = vand.u32 %v3573, 3
    %vm3575 = vcmp.lt.s32.totalorder %v3574, 2
    %vm3576 = vcmp.eq.s32.totalorder %v3574, 0
    %v3577 = vxor.u32 %v3571, 2147483648
    %v3578 = vsel %vm3576, %v3563, %v3577
    %vm3579 = vcmp.eq.s32.totalorder %v3574, 2
    %v3580 = vxor.u32 %v3563, 2147483648
    %v3581 = vsel %vm3579, %v3580, %v3571
    %v3582 = vsel %vm3575, %v3578, %v3581
    %v3583 = vsel %vm3572, nan, %v3582
    %v3584 = vand.u32 2147483647, %v472
    %vm3585 = vcmp.le.f32.partialorder %v3584, 0.7853982
    %vm3586 = vcmp.lt.s32.totalorder %v472, 0
    %v3587 = vand.u32 %v472, 2139095040
    %v3588 = vshrl.u32 %v3587, 23
    %v3589 = vsub.s32 %v3588, 127
    %v3590 = vand.u32 2147483647, %v472
    %v3591 = vand.u32 %v3590, 8388607
    %v3592 = vor.u32 %v3591, 8388608
    %v3593 = vsub.s32 0, %v3592
    %v3594 = vadd.s32 %v3589, 1
    %vm3595 = vcmp.gt.s32.totalorder %v3594, 0
    %v3596 = vsel %vm3595, %v3594, 0
    %v3597 = vshrl.u32 %v3596, 5
    %v3598 = vand.u32 %v3596, 31
    %v3599 = vsub.s32 32, %v3598
    %v3600 = vshrl.u32 683565275, %v3599
    %v3601 = vshll.u32 683565275, %v3598
    %v3602 = vshrl.u32 2475754826, %v3599
    %v3603 = vor.u32 %v3601, %v3602
    %v3604 = vshll.u32 2475754826, %v3598
    %v3605 = vshrl.u32 2131351028, %v3599
    %v3606 = vor.u32 %v3604, %v3605
    %v3607 = vshll.u32 2131351028, %v3598
    %v3608 = vshrl.u32 2102212464, %v3599
    %v3609 = vor.u32 %v3607, %v3608
    %v3610 = vshll.u32 2102212464, %v3598
    %v3611 = vshrl.u32 920167782, %v3599
    %v3612 = vor.u32 %v3610, %v3611
    %v3613 = vshll.u32 920167782, %v3598
    %v3614 = vshrl.u32 1326507024, %v3599
    %v3615 = vor.u32 %v3613, %v3614
    %vm3616 = vcmp.lt.s32.totalorder %v3597, 1
    %vm3617 = vcmp.lt.s32.totalorder %v3597, 2
    %vm3618 = vcmp.lt.s32.totalorder %v3597, 3
    %vm3619 = vcmp.lt.s32.totalorder %v3597, 4
    %v3620 = vsel %vm3616, %v3600, %v3603
    %v3621 = vsel %vm3619, %v3609, 2102212464
    %v3622 = vsel %vm3618, %v3606, %v3621
    %v3623 = vsel %vm3617, %v3620, %v3622
    %v3624 = vsel %vm3616, %v3603, %v3606
    %v3625 = vsel %vm3619, %v3612, 920167782
    %v3626 = vsel %vm3618, %v3609, %v3625
    %v3627 = vsel %vm3617, %v3624, %v3626
    %v3628 = vsel %vm3616, %v3606, %v3609
    %v3629 = vsel %vm3619, %v3615, 1326507024
    %v3630 = vsel %vm3618, %v3612, %v3629
    %v3631 = vsel %vm3617, %v3628, %v3630
    %v3632 = vshll.u32 %v3592, 8
    %v3633 = vand.u32 %v3632, 65535
    %v3634 = vshrl.u32 %v3632, 16
    %v3635 = vand.u32 %v3631, 65535
    %v3636 = vshrl.u32 %v3631, 16
    %v3637 = vmul.u32 %v3633, %v3635
    %v3638 = vmul.u32 %v3633, %v3636
    %v3639 = vmul.u32 %v3634, %v3635
    %v3640 = vmul.u32 %v3634, %v3636
    %v3641 = vshll.u32 %v3638, 16
    %v3642 = vshrl.u32 %v3638, 16
    %v3643 = vshll.u32 %v3639, 16
    %v3644 = vshrl.u32 %v3639, 16
    %vm3645 = vc.u32 %v3637, %v3641
    %v3646 = vsel %vm3645, 1, 0
    %v3647 = vadd.s32 %v3637, %v3641
    %v3648 = vadd.s32 %v3640, %v3646
    %vm3649 = vc.u32 %v3647, %v3643
    %v3650 = vsel %vm3649, 1, 0
    %v3651 = vadd.s32 %v3647, %v3643
    %v3652 = vadd.s32 %v3648, %v3650
    %v3653 = vadd.s32 %v3652, %v3642
    %v3654 = vadd.s32 %v3653, %v3644
    %v3655 = vand.u32 %v3632, 65535
    %v3656 = vshrl.u32 %v3632, 16
    %v3657 = vand.u32 %v3627, 65535
    %v3658 = vshrl.u32 %v3627, 16
    %v3659 = vmul.u32 %v3655, %v3657
    %v3660 = vmul.u32 %v3655, %v3658
    %v3661 = vmul.u32 %v3656, %v3657
    %v3662 = vmul.u32 %v3656, %v3658
    %v3663 = vshll.u32 %v3660, 16
    %v3664 = vshrl.u32 %v3660, 16
    %v3665 = vshll.u32 %v3661, 16
    %v3666 = vshrl.u32 %v3661, 16
    %vm3667 = vc.u32 %v3659, %v3663
    %v3668 = vsel %vm3667, 1, 0
    %v3669 = vadd.s32 %v3659, %v3663
    %v3670 = vadd.s32 %v3662, %v3668
    %vm3671 = vc.u32 %v3669, %v3665
    %v3672 = vsel %vm3671, 1, 0
    %v3673 = vadd.s32 %v3669, %v3665
    %v3674 = vadd.s32 %v3670, %v3672
    %v3675 = vadd.s32 %v3674, %v3664
    %v3676 = vadd.s32 %v3675, %v3666
    %v3677 = vmul.u32 %v3632, %v3623
    %v3678 = vadd.s32 %v3654, %v3673
    %vm3679 = vc.u32 %v3654, %v3673
    %v3680 = vadd.s32 %v3676, 1
    %v3681 = vsel %vm3679, %v3680, %v3676
    %v3682 = vadd.s32 %v3677, %v3681
    %v3683 = vadd.s32 %v3682, 536870912
    %v3684 = vshrl.u32 %v3683, 30
    %v3685 = vshll.u32 %v3684, 30
    %v3686 = vsub.s32 %v3682, %v3685
    %vm3687 = vcmp.lt.s32.totalorder %v3686, 0
    %v3688 = vsub.s32 0, %v3686
    %v3689 = vsel %vm3687, %v3688, %v3686
    %v3690 = vclz %v3689
    %v3691 = vsub.s32 %v3690, 2
    %vm3692 = vcmp.gt.s32.totalorder 0, %v3691
    %v3693 = vsel %vm3692, 0, %v3691
    %v3694 = vsub.s32 32, %v3693
    %v3695 = vshll.u32 %v3686, %v3693
    %v3696 = vshrl.u32 %v3678, %v3694
    %v3697 = vor.u32 %v3695, %v3696
    %v3698 = vsub.s32 4294967266, %v3693
    %v3699 = vadd.s32 %v3698, 127
    %v3700 = vshll.u32 %v3699, 23
    %v3701 = vor.u32 4788187, %v3700
    %v3702 = vand.u32 2147483647, %v3701
    %v3704 = vcvt.s32.f32 %v3697
    %v3705 = vmul.f32 %v3704, %v3702
    %v3706 = vxor.u32 %v3705, 2147483648
    %v3707 = vsel %vm3586, %v3706, %v3705
    %v3708 = vsub.s32 4, %v3684
    %v3709 = vsel %vm3586, %v3708, %v3684
    %v3710 = vsel %vm3585, %v472, %v3707
    %v3711 = vsel %vm3585, 0, %v3709
    %v3712 = vmul.f32 %v3710, %v3710
    %v3713 = vmul.f32 %v3712, -0.001358992
    %v3714 = vadd.f32 %v3713, 0.041655596
    %v3715 = vmul.f32 %v3712, %v3714
    %v3716 = vadd.f32 %v3715, -0.4999988
    %v3717 = vmul.f32 %v3712, %v3716
    %v3718 = vadd.f32 1.0, %v3717
    %v3719 = vmul.f32 %v3710, %v3710
    %v3720 = vmul.f32 %v3719, -0.00019511016
    %v3721 = vadd.f32 %v3720, 0.008332121
    %v3722 = vmul.f32 %v3719, %v3721
    %v3723 = vadd.f32 %v3722, -0.16666654
    %v3724 = vmul.f32 %v3719, %v3723
    %v3725 = vadd.f32 %v3724, 1.0
    %v3726 = vmul.f32 %v3725, %v3710
    %vm3727 = vweird.f32 %v472
    %v3728 = vadd.s32 %v3711, 3
    %v3729 = vand.u32 %v3728, 3
    %vm3730 = vcmp.lt.s32.totalorder %v3729, 2
    %vm3731 = vcmp.eq.s32.totalorder %v3729, 0
    %v3732 = vxor.u32 %v3726, 2147483648
    %v3733 = vsel %vm3731, %v3718, %v3732
    %vm3734 = vcmp.eq.s32.totalorder %v3729, 2
    %v3735 = vxor.u32 %v3718, 2147483648
    %v3736 = vsel %vm3734, %v3735, %v3726
    %v3737 = vsel %vm3730, %v3733, %v3736
    %v3738 = vsel %vm3727, nan, %v3737
    %v3739 = vand.u32 2147483647, %v473
    %vm3740 = vcmp.le.f32.partialorder %v3739, 0.7853982
    %vm3741 = vcmp.lt.s32.totalorder %v473, 0
    %v3742 = vand.u32 %v473, 2139095040
    %v3743 = vshrl.u32 %v3742, 23
    %v3744 = vsub.s32 %v3743, 127
    %v3745 = vand.u32 2147483647, %v473
    %v3746 = vand.u32 %v3745, 8388607
    %v3747 = vor.u32 %v3746, 8388608
    %v3748 = vsub.s32 0, %v3747
    %v3749 = vadd.s32 %v3744, 1
    %vm3750 = vcmp.gt.s32.totalorder %v3749, 0
    %v3751 = vsel %vm3750, %v3749, 0
    %v3752 = vshrl.u32 %v3751, 5
    %v3753 = vand.u32 %v3751, 31
    %v3754 = vsub.s32 32, %v3753
    %v3755 = vshrl.u32 683565275, %v3754
    %v3756 = vshll.u32 683565275, %v3753
    %v3757 = vshrl.u32 2475754826, %v3754
    %v3758 = vor.u32 %v3756, %v3757
    %v3759 = vshll.u32 2475754826, %v3753
    %v3760 = vshrl.u32 2131351028, %v3754
    %v3761 = vor.u32 %v3759, %v3760
    %v3762 = vshll.u32 2131351028, %v3753
    %v3763 = vshrl.u32 2102212464, %v3754
    %v3764 = vor.u32 %v3762, %v3763
    %v3765 = vshll.u32 2102212464, %v3753
    %v3766 = vshrl.u32 920167782, %v3754
    %v3767 = vor.u32 %v3765, %v3766
    %v3768 = vshll.u32 920167782, %v3753
    %v3769 = vshrl.u32 1326507024, %v3754
    %v3770 = vor.u32 %v3768, %v3769
    %vm3771 = vcmp.lt.s32.totalorder %v3752, 1
    %vm3772 = vcmp.lt.s32.totalorder %v3752, 2
    %vm3773 = vcmp.lt.s32.totalorder %v3752, 3
    %vm3774 = vcmp.lt.s32.totalorder %v3752, 4
    %v3775 = vsel %vm3771, %v3755, %v3758
    %v3776 = vsel %vm3774, %v3764, 2102212464
    %v3777 = vsel %vm3773, %v3761, %v3776
    %v3778 = vsel %vm3772, %v3775, %v3777
    %v3779 = vsel %vm3771, %v3758, %v3761
    %v3780 = vsel %vm3774, %v3767, 920167782
    %v3781 = vsel %vm3773, %v3764, %v3780
    %v3782 = vsel %vm3772, %v3779, %v3781
    %v3783 = vsel %vm3771, %v3761, %v3764
    %v3784 = vsel %vm3774, %v3770, 1326507024
    %v3785 = vsel %vm3773, %v3767, %v3784
    %v3786 = vsel %vm3772, %v3783, %v3785
    %v3787 = vshll.u32 %v3747, 8
    %v3788 = vand.u32 %v3787, 65535
    %v3789 = vshrl.u32 %v3787, 16
    %v3790 = vand.u32 %v3786, 65535
    %v3791 = vshrl.u32 %v3786, 16
    %v3792 = vmul.u32 %v3788, %v3790
    %v3793 = vmul.u32 %v3788, %v3791
    %v3794 = vmul.u32 %v3789, %v3790
    %v3795 = vmul.u32 %v3789, %v3791
    %v3796 = vshll.u32 %v3793, 16
    %v3797 = vshrl.u32 %v3793, 16
    %v3798 = vshll.u32 %v3794, 16
    %v3799 = vshrl.u32 %v3794, 16
    %vm3800 = vc.u32 %v3792, %v3796
    %v3801 = vsel %vm3800, 1, 0
    %v3802 = vadd.s32 %v3792, %v3796
    %v3803 = vadd.s32 %v3795, %v3801
    %vm3804 = vc.u32 %v3802, %v3798
    %v3805 = vsel %vm3804, 1, 0
    %v3806 = vadd.s32 %v3802, %v3798
    %v3807 = vadd.s32 %v3803, %v3805
    %v3808 = vadd.s32 %v3807, %v3797
    %v3809 = vadd.s32 %v3808, %v3799
    %v3810 = vand.u32 %v3787, 65535
    %v3811 = vshrl.u32 %v3787, 16
    %v3812 = vand.u32 %v3782, 65535
    %v3813 = vshrl.u32 %v3782, 16
    %v3814 = vmul.u32 %v3810, %v3812
    %v3815 = vmul.u32 %v3810, %v3813
    %v3816 = vmul.u32 %v3811, %v3812
    %v3817 = vmul.u32 %v3811, %v3813
    %v3818 = vshll.u32 %v3815, 16
    %v3819 = vshrl.u32 %v3815, 16
    %v3820 = vshll.u32 %v3816, 16
    %v3821 = vshrl.u32 %v3816, 16
    %vm3822 = vc.u32 %v3814, %v3818
    %v3823 = vsel %vm3822, 1, 0
    %v3824 = vadd.s32 %v3814, %v3818
    %v3825 = vadd.s32 %v3817, %v3823
    %vm3826 = vc.u32 %v3824, %v3820
    %v3827 = vsel %vm3826, 1, 0
    %v3828 = vadd.s32 %v3824, %v3820
    %v3829 = vadd.s32 %v3825, %v3827
    %v3830 = vadd.s32 %v3829, %v3819
    %v3831 = vadd.s32 %v3830, %v3821
    %v3832 = vmul.u32 %v3787, %v3778
    %v3833 = vadd.s32 %v3809, %v3828
    %vm3834 = vc.u32 %v3809, %v3828
    %v3835 = vadd.s32 %v3831, 1
    %v3836 = vsel %vm3834, %v3835, %v3831
    %v3837 = vadd.s32 %v3832, %v3836
    %v3838 = vadd.s32 %v3837, 536870912
    %v3839 = vshrl.u32 %v3838, 30
    %v3840 = vshll.u32 %v3839, 30
    %v3841 = vsub.s32 %v3837, %v3840
    %vm3842 = vcmp.lt.s32.totalorder %v3841, 0
    %v3843 = vsub.s32 0, %v3841
    %v3844 = vsel %vm3842, %v3843, %v3841
    %v3845 = vclz %v3844
    %v3846 = vsub.s32 %v3845, 2
    %vm3847 = vcmp.gt.s32.totalorder 0, %v3846
    %v3848 = vsel %vm3847, 0, %v3846
    %v3849 = vsub.s32 32, %v3848
    %v3850 = vshll.u32 %v3841, %v3848
    %v3851 = vshrl.u32 %v3833, %v3849
    %v3852 = vor.u32 %v3850, %v3851
    %v3853 = vsub.s32 4294967266, %v3848
    %v3854 = vadd.s32 %v3853, 127
    %v3855 = vshll.u32 %v3854, 23
    %v3856 = vor.u32 4788187, %v3855
    %v3857 = vand.u32 2147483647, %v3856
    %v3859 = vcvt.s32.f32 %v3852
    %v3860 = vmul.f32 %v3859, %v3857
    %v3861 = vxor.u32 %v3860, 2147483648
    %v3862 = vsel %vm3741, %v3861, %v3860
    %v3863 = vsub.s32 4, %v3839
    %v3864 = vsel %vm3741, %v3863, %v3839
    %v3865 = vsel %vm3740, %v473, %v3862
    %v3866 = vsel %vm3740, 0, %v3864
    %v3867 = vmul.f32 %v3865, %v3865
    %v3868 = vmul.f32 %v3867, -0.001358992
    %v3869 = vadd.f32 %v3868, 0.041655596
    %v3870 = vmul.f32 %v3867, %v3869
    %v3871 = vadd.f32 %v3870, -0.4999988
    %v3872 = vmul.f32 %v3867, %v3871
    %v3873 = vadd.f32 1.0, %v3872
    %v3874 = vmul.f32 %v3865, %v3865
    %v3875 = vmul.f32 %v3874, -0.00019511016
    %v3876 = vadd.f32 %v3875, 0.008332121
    %v3877 = vmul.f32 %v3874, %v3876
    %v3878 = vadd.f32 %v3877, -0.16666654
    %v3879 = vmul.f32 %v3874, %v3878
    %v3880 = vadd.f32 %v3879, 1.0
    %v3881 = vmul.f32 %v3880, %v3865
    %vm3882 = vweird.f32 %v473
    %v3883 = vadd.s32 %v3866, 3
    %v3884 = vand.u32 %v3883, 3
    %vm3885 = vcmp.lt.s32.totalorder %v3884, 2
    %vm3886 = vcmp.eq.s32.totalorder %v3884, 0
    %v3887 = vxor.u32 %v3881, 2147483648
    %v3888 = vsel %vm3886, %v3873, %v3887
    %vm3889 = vcmp.eq.s32.totalorder %v3884, 2
    %v3890 = vxor.u32 %v3873, 2147483648
    %v3891 = vsel %vm3889, %v3890, %v3881
    %v3892 = vsel %vm3885, %v3888, %v3891
    %v3893 = vsel %vm3882, nan, %v3892
    %v3894 = vand.u32 2147483647, %v474
    %vm3895 = vcmp.le.f32.partialorder %v3894, 0.7853982
    %vm3896 = vcmp.lt.s32.totalorder %v474, 0
    %v3897 = vand.u32 %v474, 2139095040
    %v3898 = vshrl.u32 %v3897, 23
    %v3899 = vsub.s32 %v3898, 127
    %v3900 = vand.u32 2147483647, %v474
    %v3901 = vand.u32 %v3900, 8388607
    %v3902 = vor.u32 %v3901, 8388608
    %v3903 = vsub.s32 0, %v3902
    %v3904 = vadd.s32 %v3899, 1
    %vm3905 = vcmp.gt.s32.totalorder %v3904, 0
    %v3906 = vsel %vm3905, %v3904, 0
    %v3907 = vshrl.u32 %v3906, 5
    %v3908 = vand.u32 %v3906, 31
    %v3909 = vsub.s32 32, %v3908
    %v3910 = vshrl.u32 683565275, %v3909
    %v3911 = vshll.u32 683565275, %v3908
    %v3912 = vshrl.u32 2475754826, %v3909
    %v3913 = vor.u32 %v3911, %v3912
    %v3914 = vshll.u32 2475754826, %v3908
    %v3915 = vshrl.u32 2131351028, %v3909
    %v3916 = vor.u32 %v3914, %v3915
    %v3917 = vshll.u32 2131351028, %v3908
    %v3918 = vshrl.u32 2102212464, %v3909
    %v3919 = vor.u32 %v3917, %v3918
    %v3920 = vshll.u32 2102212464, %v3908
    %v3921 = vshrl.u32 920167782, %v3909
    %v3922 = vor.u32 %v3920, %v3921
    %v3923 = vshll.u32 920167782, %v3908
    %v3924 = vshrl.u32 1326507024, %v3909
    %v3925 = vor.u32 %v3923, %v3924
    %vm3926 = vcmp.lt.s32.totalorder %v3907, 1
    %vm3927 = vcmp.lt.s32.totalorder %v3907, 2
    %vm3928 = vcmp.lt.s32.totalorder %v3907, 3
    %vm3929 = vcmp.lt.s32.totalorder %v3907, 4
    %v3930 = vsel %vm3926, %v3910, %v3913
    %v3931 = vsel %vm3929, %v3919, 2102212464
    %v3932 = vsel %vm3928, %v3916, %v3931
    %v3933 = vsel %vm3927, %v3930, %v3932
    %v3934 = vsel %vm3926, %v3913, %v3916
    %v3935 = vsel %vm3929, %v3922, 920167782
    %v3936 = vsel %vm3928, %v3919, %v3935
    %v3937 = vsel %vm3927, %v3934, %v3936
    %v3938 = vsel %vm3926, %v3916, %v3919
    %v3939 = vsel %vm3929, %v3925, 1326507024
    %v3940 = vsel %vm3928, %v3922, %v3939
    %v3941 = vsel %vm3927, %v3938, %v3940
    %v3942 = vshll.u32 %v3902, 8
    %v3943 = vand.u32 %v3942, 65535
    %v3944 = vshrl.u32 %v3942, 16
    %v3945 = vand.u32 %v3941, 65535
    %v3946 = vshrl.u32 %v3941, 16
    %v3947 = vmul.u32 %v3943, %v3945
    %v3948 = vmul.u32 %v3943, %v3946
    %v3949 = vmul.u32 %v3944, %v3945
    %v3950 = vmul.u32 %v3944, %v3946
    %v3951 = vshll.u32 %v3948, 16
    %v3952 = vshrl.u32 %v3948, 16
    %v3953 = vshll.u32 %v3949, 16
    %v3954 = vshrl.u32 %v3949, 16
    %vm3955 = vc.u32 %v3947, %v3951
    %v3956 = vsel %vm3955, 1, 0
    %v3957 = vadd.s32 %v3947, %v3951
    %v3958 = vadd.s32 %v3950, %v3956
    %vm3959 = vc.u32 %v3957, %v3953
    %v3960 = vsel %vm3959, 1, 0
    %v3961 = vadd.s32 %v3957, %v3953
    %v3962 = vadd.s32 %v3958, %v3960
    %v3963 = vadd.s32 %v3962, %v3952
    %v3964 = vadd.s32 %v3963, %v3954
    %v3965 = vand.u32 %v3942, 65535
    %v3966 = vshrl.u32 %v3942, 16
    %v3967 = vand.u32 %v3937, 65535
    %v3968 = vshrl.u32 %v3937, 16
    %v3969 = vmul.u32 %v3965, %v3967
    %v3970 = vmul.u32 %v3965, %v3968
    %v3971 = vmul.u32 %v3966, %v3967
    %v3972 = vmul.u32 %v3966, %v3968
    %v3973 = vshll.u32 %v3970, 16
    %v3974 = vshrl.u32 %v3970, 16
    %v3975 = vshll.u32 %v3971, 16
    %v3976 = vshrl.u32 %v3971, 16
    %vm3977 = vc.u32 %v3969, %v3973
    %v3978 = vsel %vm3977, 1, 0
    %v3979 = vadd.s32 %v3969, %v3973
    %v3980 = vadd.s32 %v3972, %v3978
    %vm3981 = vc.u32 %v3979, %v3975
    %v3982 = vsel %vm3981, 1, 0
    %v3983 = vadd.s32 %v3979, %v3975
    %v3984 = vadd.s32 %v3980, %v3982
    %v3985 = vadd.s32 %v3984, %v3974
    %v3986 = vadd.s32 %v3985, %v3976
    %v3987 = vmul.u32 %v3942, %v3933
    %v3988 = vadd.s32 %v3964, %v3983
    %vm3989 = vc.u32 %v3964, %v3983
    %v3990 = vadd.s32 %v3986, 1
    %v3991 = vsel %vm3989, %v3990, %v3986
    %v3992 = vadd.s32 %v3987, %v3991
    %v3993 = vadd.s32 %v3992, 536870912
    %v3994 = vshrl.u32 %v3993, 30
    %v3995 = vshll.u32 %v3994, 30
    %v3996 = vsub.s32 %v3992, %v3995
    %vm3997 = vcmp.lt.s32.totalorder %v3996, 0
    %v3998 = vsub.s32 0, %v3996
    %v3999 = vsel %vm3997, %v3998, %v3996
    %v4000 = vclz %v3999
    %v4001 = vsub.s32 %v4000, 2
    %vm4002 = vcmp.gt.s32.totalorder 0, %v4001
    %v4003 = vsel %vm4002, 0, %v4001
    %v4004 = vsub.s32 32, %v4003
    %v4005 = vshll.u32 %v3996, %v4003
    %v4006 = vshrl.u32 %v3988, %v4004
    %v4007 = vor.u32 %v4005, %v4006
    %v4008 = vsub.s32 4294967266, %v4003
    %v4009 = vadd.s32 %v4008, 127
    %v4010 = vshll.u32 %v4009, 23
    %v4011 = vor.u32 4788187, %v4010
    %v4012 = vand.u32 2147483647, %v4011
    %v4014 = vcvt.s32.f32 %v4007
    %v4015 = vmul.f32 %v4014, %v4012
    %v4016 = vxor.u32 %v4015, 2147483648
    %v4017 = vsel %vm3896, %v4016, %v4015
    %v4018 = vsub.s32 4, %v3994
    %v4019 = vsel %vm3896, %v4018, %v3994
    %v4020 = vsel %vm3895, %v474, %v4017
    %v4021 = vsel %vm3895, 0, %v4019
    %v4022 = vmul.f32 %v4020, %v4020
    %v4023 = vmul.f32 %v4022, -0.001358992
    %v4024 = vadd.f32 %v4023, 0.041655596
    %v4025 = vmul.f32 %v4022, %v4024
    %v4026 = vadd.f32 %v4025, -0.4999988
    %v4027 = vmul.f32 %v4022, %v4026
    %v4028 = vadd.f32 1.0, %v4027
    %v4029 = vmul.f32 %v4020, %v4020
    %v4030 = vmul.f32 %v4029, -0.00019511016
    %v4031 = vadd.f32 %v4030, 0.008332121
    %v4032 = vmul.f32 %v4029, %v4031
    %v4033 = vadd.f32 %v4032, -0.16666654
    %v4034 = vmul.f32 %v4029, %v4033
    %v4035 = vadd.f32 %v4034, 1.0
    %v4036 = vmul.f32 %v4035, %v4020
    %vm4037 = vweird.f32 %v474
    %v4038 = vadd.s32 %v4021, 3
    %v4039 = vand.u32 %v4038, 3
    %vm4040 = vcmp.lt.s32.totalorder %v4039, 2
    %vm4041 = vcmp.eq.s32.totalorder %v4039, 0
    %v4042 = vxor.u32 %v4036, 2147483648
    %v4043 = vsel %vm4041, %v4028, %v4042
    %vm4044 = vcmp.eq.s32.totalorder %v4039, 2
    %v4045 = vxor.u32 %v4028, 2147483648
    %v4046 = vsel %vm4044, %v4045, %v4036
    %v4047 = vsel %vm4040, %v4043, %v4046
    %v4048 = vsel %vm4037, nan, %v4047
    %v4049 = vand.u32 2147483647, %v475
    %vm4050 = vcmp.le.f32.partialorder %v4049, 0.7853982
    %vm4051 = vcmp.lt.s32.totalorder %v475, 0
    %v4052 = vand.u32 %v475, 2139095040
    %v4053 = vshrl.u32 %v4052, 23
    %v4054 = vsub.s32 %v4053, 127
    %v4055 = vand.u32 2147483647, %v475
    %v4056 = vand.u32 %v4055, 8388607
    %v4057 = vor.u32 %v4056, 8388608
    %v4058 = vsub.s32 0, %v4057
    %v4059 = vadd.s32 %v4054, 1
    %vm4060 = vcmp.gt.s32.totalorder %v4059, 0
    %v4061 = vsel %vm4060, %v4059, 0
    %v4062 = vshrl.u32 %v4061, 5
    %v4063 = vand.u32 %v4061, 31
    %v4064 = vsub.s32 32, %v4063
    %v4065 = vshrl.u32 683565275, %v4064
    %v4066 = vshll.u32 683565275, %v4063
    %v4067 = vshrl.u32 2475754826, %v4064
    %v4068 = vor.u32 %v4066, %v4067
    %v4069 = vshll.u32 2475754826, %v4063
    %v4070 = vshrl.u32 2131351028, %v4064
    %v4071 = vor.u32 %v4069, %v4070
    %v4072 = vshll.u32 2131351028, %v4063
    %v4073 = vshrl.u32 2102212464, %v4064
    %v4074 = vor.u32 %v4072, %v4073
    %v4075 = vshll.u32 2102212464, %v4063
    %v4076 = vshrl.u32 920167782, %v4064
    %v4077 = vor.u32 %v4075, %v4076
    %v4078 = vshll.u32 920167782, %v4063
    %v4079 = vshrl.u32 1326507024, %v4064
    %v4080 = vor.u32 %v4078, %v4079
    %vm4081 = vcmp.lt.s32.totalorder %v4062, 1
    %vm4082 = vcmp.lt.s32.totalorder %v4062, 2
    %vm4083 = vcmp.lt.s32.totalorder %v4062, 3
    %vm4084 = vcmp.lt.s32.totalorder %v4062, 4
    %v4085 = vsel %vm4081, %v4065, %v4068
    %v4086 = vsel %vm4084, %v4074, 2102212464
    %v4087 = vsel %vm4083, %v4071, %v4086
    %v4088 = vsel %vm4082, %v4085, %v4087
    %v4089 = vsel %vm4081, %v4068, %v4071
    %v4090 = vsel %vm4084, %v4077, 920167782
    %v4091 = vsel %vm4083, %v4074, %v4090
    %v4092 = vsel %vm4082, %v4089, %v4091
    %v4093 = vsel %vm4081, %v4071, %v4074
    %v4094 = vsel %vm4084, %v4080, 1326507024
    %v4095 = vsel %vm4083, %v4077, %v4094
    %v4096 = vsel %vm4082, %v4093, %v4095
    %v4097 = vshll.u32 %v4057, 8
    %v4098 = vand.u32 %v4097, 65535
    %v4099 = vshrl.u32 %v4097, 16
    %v4100 = vand.u32 %v4096, 65535
    %v4101 = vshrl.u32 %v4096, 16
    %v4102 = vmul.u32 %v4098, %v4100
    %v4103 = vmul.u32 %v4098, %v4101
    %v4104 = vmul.u32 %v4099, %v4100
    %v4105 = vmul.u32 %v4099, %v4101
    %v4106 = vshll.u32 %v4103, 16
    %v4107 = vshrl.u32 %v4103, 16
    %v4108 = vshll.u32 %v4104, 16
    %v4109 = vshrl.u32 %v4104, 16
    %vm4110 = vc.u32 %v4102, %v4106
    %v4111 = vsel %vm4110, 1, 0
    %v4112 = vadd.s32 %v4102, %v4106
    %v4113 = vadd.s32 %v4105, %v4111
    %vm4114 = vc.u32 %v4112, %v4108
    %v4115 = vsel %vm4114, 1, 0
    %v4116 = vadd.s32 %v4112, %v4108
    %v4117 = vadd.s32 %v4113, %v4115
    %v4118 = vadd.s32 %v4117, %v4107
    %v4119 = vadd.s32 %v4118, %v4109
    %v4120 = vand.u32 %v4097, 65535
    %v4121 = vshrl.u32 %v4097, 16
    %v4122 = vand.u32 %v4092, 65535
    %v4123 = vshrl.u32 %v4092, 16
    %v4124 = vmul.u32 %v4120, %v4122
    %v4125 = vmul.u32 %v4120, %v4123
    %v4126 = vmul.u32 %v4121, %v4122
    %v4127 = vmul.u32 %v4121, %v4123
    %v4128 = vshll.u32 %v4125, 16
    %v4129 = vshrl.u32 %v4125, 16
    %v4130 = vshll.u32 %v4126, 16
    %v4131 = vshrl.u32 %v4126, 16
    %vm4132 = vc.u32 %v4124, %v4128
    %v4133 = vsel %vm4132, 1, 0
    %v4134 = vadd.s32 %v4124, %v4128
    %v4135 = vadd.s32 %v4127, %v4133
    %vm4136 = vc.u32 %v4134, %v4130
    %v4137 = vsel %vm4136, 1, 0
    %v4138 = vadd.s32 %v4134, %v4130
    %v4139 = vadd.s32 %v4135, %v4137
    %v4140 = vadd.s32 %v4139, %v4129
    %v4141 = vadd.s32 %v4140, %v4131
    %v4142 = vmul.u32 %v4097, %v4088
    %v4143 = vadd.s32 %v4119, %v4138
    %vm4144 = vc.u32 %v4119, %v4138
    %v4145 = vadd.s32 %v4141, 1
    %v4146 = vsel %vm4144, %v4145, %v4141
    %v4147 = vadd.s32 %v4142, %v4146
    %v4148 = vadd.s32 %v4147, 536870912
    %v4149 = vshrl.u32 %v4148, 30
    %v4150 = vshll.u32 %v4149, 30
    %v4151 = vsub.s32 %v4147, %v4150
    %vm4152 = vcmp.lt.s32.totalorder %v4151, 0
    %v4153 = vsub.s32 0, %v4151
    %v4154 = vsel %vm4152, %v4153, %v4151
    %v4155 = vclz %v4154
    %v4156 = vsub.s32 %v4155, 2
    %vm4157 = vcmp.gt.s32.totalorder 0, %v4156
    %v4158 = vsel %vm4157, 0, %v4156
    %v4159 = vsub.s32 32, %v4158
    %v4160 = vshll.u32 %v4151, %v4158
    %v4161 = vshrl.u32 %v4143, %v4159
    %v4162 = vor.u32 %v4160, %v4161
    %v4163 = vsub.s32 4294967266, %v4158
    %v4164 = vadd.s32 %v4163, 127
    %v4165 = vshll.u32 %v4164, 23
    %v4166 = vor.u32 4788187, %v4165
    %v4167 = vand.u32 2147483647, %v4166
    %v4169 = vcvt.s32.f32 %v4162
    %v4170 = vmul.f32 %v4169, %v4167
    %v4171 = vxor.u32 %v4170, 2147483648
    %v4172 = vsel %vm4051, %v4171, %v4170
    %v4173 = vsub.s32 4, %v4149
    %v4174 = vsel %vm4051, %v4173, %v4149
    %v4175 = vsel %vm4050, %v475, %v4172
    %v4176 = vsel %vm4050, 0, %v4174
    %v4177 = vmul.f32 %v4175, %v4175
    %v4178 = vmul.f32 %v4177, -0.001358992
    %v4179 = vadd.f32 %v4178, 0.041655596
    %v4180 = vmul.f32 %v4177, %v4179
    %v4181 = vadd.f32 %v4180, -0.4999988
    %v4182 = vmul.f32 %v4177, %v4181
    %v4183 = vadd.f32 1.0, %v4182
    %v4184 = vmul.f32 %v4175, %v4175
    %v4185 = vmul.f32 %v4184, -0.00019511016
    %v4186 = vadd.f32 %v4185, 0.008332121
    %v4187 = vmul.f32 %v4184, %v4186
    %v4188 = vadd.f32 %v4187, -0.16666654
    %v4189 = vmul.f32 %v4184, %v4188
    %v4190 = vadd.f32 %v4189, 1.0
    %v4191 = vmul.f32 %v4190, %v4175
    %vm4192 = vweird.f32 %v475
    %v4193 = vadd.s32 %v4176, 3
    %v4194 = vand.u32 %v4193, 3
    %vm4195 = vcmp.lt.s32.totalorder %v4194, 2
    %vm4196 = vcmp.eq.s32.totalorder %v4194, 0
    %v4197 = vxor.u32 %v4191, 2147483648
    %v4198 = vsel %vm4196, %v4183, %v4197
    %vm4199 = vcmp.eq.s32.totalorder %v4194, 2
    %v4200 = vxor.u32 %v4183, 2147483648
    %v4201 = vsel %vm4199, %v4200, %v4191
    %v4202 = vsel %vm4195, %v4198, %v4201
    %v4203 = vsel %vm4192, nan, %v4202
    %v4204 = vand.u32 2147483647, %v476
    %vm4205 = vcmp.le.f32.partialorder %v4204, 0.7853982
    %vm4206 = vcmp.lt.s32.totalorder %v476, 0
    %v4207 = vand.u32 %v476, 2139095040
    %v4208 = vshrl.u32 %v4207, 23
    %v4209 = vsub.s32 %v4208, 127
    %v4210 = vand.u32 2147483647, %v476
    %v4211 = vand.u32 %v4210, 8388607
    %v4212 = vor.u32 %v4211, 8388608
    %v4213 = vsub.s32 0, %v4212
    %v4214 = vadd.s32 %v4209, 1
    %vm4215 = vcmp.gt.s32.totalorder %v4214, 0
    %v4216 = vsel %vm4215, %v4214, 0
    %v4217 = vshrl.u32 %v4216, 5
    %v4218 = vand.u32 %v4216, 31
    %v4219 = vsub.s32 32, %v4218
    %v4220 = vshrl.u32 683565275, %v4219
    %v4221 = vshll.u32 683565275, %v4218
    %v4222 = vshrl.u32 2475754826, %v4219
    %v4223 = vor.u32 %v4221, %v4222
    %v4224 = vshll.u32 2475754826, %v4218
    %v4225 = vshrl.u32 2131351028, %v4219
    %v4226 = vor.u32 %v4224, %v4225
    %v4227 = vshll.u32 2131351028, %v4218
    %v4228 = vshrl.u32 2102212464, %v4219
    %v4229 = vor.u32 %v4227, %v4228
    %v4230 = vshll.u32 2102212464, %v4218
    %v4231 = vshrl.u32 920167782, %v4219
    %v4232 = vor.u32 %v4230, %v4231
    %v4233 = vshll.u32 920167782, %v4218
    %v4234 = vshrl.u32 1326507024, %v4219
    %v4235 = vor.u32 %v4233, %v4234
    %vm4236 = vcmp.lt.s32.totalorder %v4217, 1
    %vm4237 = vcmp.lt.s32.totalorder %v4217, 2
    %vm4238 = vcmp.lt.s32.totalorder %v4217, 3
    %vm4239 = vcmp.lt.s32.totalorder %v4217, 4
    %v4240 = vsel %vm4236, %v4220, %v4223
    %v4241 = vsel %vm4239, %v4229, 2102212464
    %v4242 = vsel %vm4238, %v4226, %v4241
    %v4243 = vsel %vm4237, %v4240, %v4242
    %v4244 = vsel %vm4236, %v4223, %v4226
    %v4245 = vsel %vm4239, %v4232, 920167782
    %v4246 = vsel %vm4238, %v4229, %v4245
    %v4247 = vsel %vm4237, %v4244, %v4246
    %v4248 = vsel %vm4236, %v4226, %v4229
    %v4249 = vsel %vm4239, %v4235, 1326507024
    %v4250 = vsel %vm4238, %v4232, %v4249
    %v4251 = vsel %vm4237, %v4248, %v4250
    %v4252 = vshll.u32 %v4212, 8
    %v4253 = vand.u32 %v4252, 65535
    %v4254 = vshrl.u32 %v4252, 16
    %v4255 = vand.u32 %v4251, 65535
    %v4256 = vshrl.u32 %v4251, 16
    %v4257 = vmul.u32 %v4253, %v4255
    %v4258 = vmul.u32 %v4253, %v4256
    %v4259 = vmul.u32 %v4254, %v4255
    %v4260 = vmul.u32 %v4254, %v4256
    %v4261 = vshll.u32 %v4258, 16
    %v4262 = vshrl.u32 %v4258, 16
    %v4263 = vshll.u32 %v4259, 16
    %v4264 = vshrl.u32 %v4259, 16
    %vm4265 = vc.u32 %v4257, %v4261
    %v4266 = vsel %vm4265, 1, 0
    %v4267 = vadd.s32 %v4257, %v4261
    %v4268 = vadd.s32 %v4260, %v4266
    %vm4269 = vc.u32 %v4267, %v4263
    %v4270 = vsel %vm4269, 1, 0
    %v4271 = vadd.s32 %v4267, %v4263
    %v4272 = vadd.s32 %v4268, %v4270
    %v4273 = vadd.s32 %v4272, %v4262
    %v4274 = vadd.s32 %v4273, %v4264
    %v4275 = vand.u32 %v4252, 65535
    %v4276 = vshrl.u32 %v4252, 16
    %v4277 = vand.u32 %v4247, 65535
    %v4278 = vshrl.u32 %v4247, 16
    %v4279 = vmul.u32 %v4275, %v4277
    %v4280 = vmul.u32 %v4275, %v4278
    %v4281 = vmul.u32 %v4276, %v4277
    %v4282 = vmul.u32 %v4276, %v4278
    %v4283 = vshll.u32 %v4280, 16
    %v4284 = vshrl.u32 %v4280, 16
    %v4285 = vshll.u32 %v4281, 16
    %v4286 = vshrl.u32 %v4281, 16
    %vm4287 = vc.u32 %v4279, %v4283
    %v4288 = vsel %vm4287, 1, 0
    %v4289 = vadd.s32 %v4279, %v4283
    %v4290 = vadd.s32 %v4282, %v4288
    %vm4291 = vc.u32 %v4289, %v4285
    %v4292 = vsel %vm4291, 1, 0
    %v4293 = vadd.s32 %v4289, %v4285
    %v4294 = vadd.s32 %v4290, %v4292
    %v4295 = vadd.s32 %v4294, %v4284
    %v4296 = vadd.s32 %v4295, %v4286
    %v4297 = vmul.u32 %v4252, %v4243
    %v4298 = vadd.s32 %v4274, %v4293
    %vm4299 = vc.u32 %v4274, %v4293
    %v4300 = vadd.s32 %v4296, 1
    %v4301 = vsel %vm4299, %v4300, %v4296
    %v4302 = vadd.s32 %v4297, %v4301
    %v4303 = vadd.s32 %v4302, 536870912
    %v4304 = vshrl.u32 %v4303, 30
    %v4305 = vshll.u32 %v4304, 30
    %v4306 = vsub.s32 %v4302, %v4305
    %vm4307 = vcmp.lt.s32.totalorder %v4306, 0
    %v4308 = vsub.s32 0, %v4306
    %v4309 = vsel %vm4307, %v4308, %v4306
    %v4310 = vclz %v4309
    %v4311 = vsub.s32 %v4310, 2
    %vm4312 = vcmp.gt.s32.totalorder 0, %v4311
    %v4313 = vsel %vm4312, 0, %v4311
    %v4314 = vsub.s32 32, %v4313
    %v4315 = vshll.u32 %v4306, %v4313
    %v4316 = vshrl.u32 %v4298, %v4314
    %v4317 = vor.u32 %v4315, %v4316
    %v4318 = vsub.s32 4294967266, %v4313
    %v4319 = vadd.s32 %v4318, 127
    %v4320 = vshll.u32 %v4319, 23
    %v4321 = vor.u32 4788187, %v4320
    %v4322 = vand.u32 2147483647, %v4321
    %v4324 = vcvt.s32.f32 %v4317
    %v4325 = vmul.f32 %v4324, %v4322
    %v4326 = vxor.u32 %v4325, 2147483648
    %v4327 = vsel %vm4206, %v4326, %v4325
    %v4328 = vsub.s32 4, %v4304
    %v4329 = vsel %vm4206, %v4328, %v4304
    %v4330 = vsel %vm4205, %v476, %v4327
    %v4331 = vsel %vm4205, 0, %v4329
    %v4332 = vmul.f32 %v4330, %v4330
    %v4333 = vmul.f32 %v4332, -0.001358992
    %v4334 = vadd.f32 %v4333, 0.041655596
    %v4335 = vmul.f32 %v4332, %v4334
    %v4336 = vadd.f32 %v4335, -0.4999988
    %v4337 = vmul.f32 %v4332, %v4336
    %v4338 = vadd.f32 1.0, %v4337
    %v4339 = vmul.f32 %v4330, %v4330
    %v4340 = vmul.f32 %v4339, -0.00019511016
    %v4341 = vadd.f32 %v4340, 0.008332121
    %v4342 = vmul.f32 %v4339, %v4341
    %v4343 = vadd.f32 %v4342, -0.16666654
    %v4344 = vmul.f32 %v4339, %v4343
    %v4345 = vadd.f32 %v4344, 1.0
    %v4346 = vmul.f32 %v4345, %v4330
    %vm4347 = vweird.f32 %v476
    %v4348 = vadd.s32 %v4331, 3
    %v4349 = vand.u32 %v4348, 3
    %vm4350 = vcmp.lt.s32.totalorder %v4349, 2
    %vm4351 = vcmp.eq.s32.totalorder %v4349, 0
    %v4352 = vxor.u32 %v4346, 2147483648
    %v4353 = vsel %vm4351, %v4338, %v4352
    %vm4354 = vcmp.eq.s32.totalorder %v4349, 2
    %v4355 = vxor.u32 %v4338, 2147483648
    %v4356 = vsel %vm4354, %v4355, %v4346
    %v4357 = vsel %vm4350, %v4353, %v4356
    %v4358 = vsel %vm4347, nan, %v4357
    %v4359 = vand.u32 2147483647, %v477
    %vm4360 = vcmp.le.f32.partialorder %v4359, 0.7853982
    %vm4361 = vcmp.lt.s32.totalorder %v477, 0
    %v4362 = vand.u32 %v477, 2139095040
    %v4363 = vshrl.u32 %v4362, 23
    %v4364 = vsub.s32 %v4363, 127
    %v4365 = vand.u32 2147483647, %v477
    %v4366 = vand.u32 %v4365, 8388607
    %v4367 = vor.u32 %v4366, 8388608
    %v4368 = vsub.s32 0, %v4367
    %v4369 = vadd.s32 %v4364, 1
    %vm4370 = vcmp.gt.s32.totalorder %v4369, 0
    %v4371 = vsel %vm4370, %v4369, 0
    %v4372 = vshrl.u32 %v4371, 5
    %v4373 = vand.u32 %v4371, 31
    %v4374 = vsub.s32 32, %v4373
    %v4375 = vshrl.u32 683565275, %v4374
    %v4376 = vshll.u32 683565275, %v4373
    %v4377 = vshrl.u32 2475754826, %v4374
    %v4378 = vor.u32 %v4376, %v4377
    %v4379 = vshll.u32 2475754826, %v4373
    %v4380 = vshrl.u32 2131351028, %v4374
    %v4381 = vor.u32 %v4379, %v4380
    %v4382 = vshll.u32 2131351028, %v4373
    %v4383 = vshrl.u32 2102212464, %v4374
    %v4384 = vor.u32 %v4382, %v4383
    %v4385 = vshll.u32 2102212464, %v4373
    %v4386 = vshrl.u32 920167782, %v4374
    %v4387 = vor.u32 %v4385, %v4386
    %v4388 = vshll.u32 920167782, %v4373
    %v4389 = vshrl.u32 1326507024, %v4374
    %v4390 = vor.u32 %v4388, %v4389
    %vm4391 = vcmp.lt.s32.totalorder %v4372, 1
    %vm4392 = vcmp.lt.s32.totalorder %v4372, 2
    %vm4393 = vcmp.lt.s32.totalorder %v4372, 3
    %vm4394 = vcmp.lt.s32.totalorder %v4372, 4
    %v4395 = vsel %vm4391, %v4375, %v4378
    %v4396 = vsel %vm4394, %v4384, 2102212464
    %v4397 = vsel %vm4393, %v4381, %v4396
    %v4398 = vsel %vm4392, %v4395, %v4397
    %v4399 = vsel %vm4391, %v4378, %v4381
    %v4400 = vsel %vm4394, %v4387, 920167782
    %v4401 = vsel %vm4393, %v4384, %v4400
    %v4402 = vsel %vm4392, %v4399, %v4401
    %v4403 = vsel %vm4391, %v4381, %v4384
    %v4404 = vsel %vm4394, %v4390, 1326507024
    %v4405 = vsel %vm4393, %v4387, %v4404
    %v4406 = vsel %vm4392, %v4403, %v4405
    %v4407 = vshll.u32 %v4367, 8
    %v4408 = vand.u32 %v4407, 65535
    %v4409 = vshrl.u32 %v4407, 16
    %v4410 = vand.u32 %v4406, 65535
    %v4411 = vshrl.u32 %v4406, 16
    %v4412 = vmul.u32 %v4408, %v4410
    %v4413 = vmul.u32 %v4408, %v4411
    %v4414 = vmul.u32 %v4409, %v4410
    %v4415 = vmul.u32 %v4409, %v4411
    %v4416 = vshll.u32 %v4413, 16
    %v4417 = vshrl.u32 %v4413, 16
    %v4418 = vshll.u32 %v4414, 16
    %v4419 = vshrl.u32 %v4414, 16
    %vm4420 = vc.u32 %v4412, %v4416
    %v4421 = vsel %vm4420, 1, 0
    %v4422 = vadd.s32 %v4412, %v4416
    %v4423 = vadd.s32 %v4415, %v4421
    %vm4424 = vc.u32 %v4422, %v4418
    %v4425 = vsel %vm4424, 1, 0
    %v4426 = vadd.s32 %v4422, %v4418
    %v4427 = vadd.s32 %v4423, %v4425
    %v4428 = vadd.s32 %v4427, %v4417
    %v4429 = vadd.s32 %v4428, %v4419
    %v4430 = vand.u32 %v4407, 65535
    %v4431 = vshrl.u32 %v4407, 16
    %v4432 = vand.u32 %v4402, 65535
    %v4433 = vshrl.u32 %v4402, 16
    %v4434 = vmul.u32 %v4430, %v4432
    %v4435 = vmul.u32 %v4430, %v4433
    %v4436 = vmul.u32 %v4431, %v4432
    %v4437 = vmul.u32 %v4431, %v4433
    %v4438 = vshll.u32 %v4435, 16
    %v4439 = vshrl.u32 %v4435, 16
    %v4440 = vshll.u32 %v4436, 16
    %v4441 = vshrl.u32 %v4436, 16
    %vm4442 = vc.u32 %v4434, %v4438
    %v4443 = vsel %vm4442, 1, 0
    %v4444 = vadd.s32 %v4434, %v4438
    %v4445 = vadd.s32 %v4437, %v4443
    %vm4446 = vc.u32 %v4444, %v4440
    %v4447 = vsel %vm4446, 1, 0
    %v4448 = vadd.s32 %v4444, %v4440
    %v4449 = vadd.s32 %v4445, %v4447
    %v4450 = vadd.s32 %v4449, %v4439
    %v4451 = vadd.s32 %v4450, %v4441
    %v4452 = vmul.u32 %v4407, %v4398
    %v4453 = vadd.s32 %v4429, %v4448
    %vm4454 = vc.u32 %v4429, %v4448
    %v4455 = vadd.s32 %v4451, 1
    %v4456 = vsel %vm4454, %v4455, %v4451
    %v4457 = vadd.s32 %v4452, %v4456
    %v4458 = vadd.s32 %v4457, 536870912
    %v4459 = vshrl.u32 %v4458, 30
    %v4460 = vshll.u32 %v4459, 30
    %v4461 = vsub.s32 %v4457, %v4460
    %vm4462 = vcmp.lt.s32.totalorder %v4461, 0
    %v4463 = vsub.s32 0, %v4461
    %v4464 = vsel %vm4462, %v4463, %v4461
    %v4465 = vclz %v4464
    %v4466 = vsub.s32 %v4465, 2
    %vm4467 = vcmp.gt.s32.totalorder 0, %v4466
    %v4468 = vsel %vm4467, 0, %v4466
    %v4469 = vsub.s32 32, %v4468
    %v4470 = vshll.u32 %v4461, %v4468
    %v4471 = vshrl.u32 %v4453, %v4469
    %v4472 = vor.u32 %v4470, %v4471
    %v4473 = vsub.s32 4294967266, %v4468
    %v4474 = vadd.s32 %v4473, 127
    %v4475 = vshll.u32 %v4474, 23
    %v4476 = vor.u32 4788187, %v4475
    %v4477 = vand.u32 2147483647, %v4476
    %v4479 = vcvt.s32.f32 %v4472
    %v4480 = vmul.f32 %v4479, %v4477
    %v4481 = vxor.u32 %v4480, 2147483648
    %v4482 = vsel %vm4361, %v4481, %v4480
    %v4483 = vsub.s32 4, %v4459
    %v4484 = vsel %vm4361, %v4483, %v4459
    %v4485 = vsel %vm4360, %v477, %v4482
    %v4486 = vsel %vm4360, 0, %v4484
    %v4487 = vmul.f32 %v4485, %v4485
    %v4488 = vmul.f32 %v4487, -0.001358992
    %v4489 = vadd.f32 %v4488, 0.041655596
    %v4490 = vmul.f32 %v4487, %v4489
    %v4491 = vadd.f32 %v4490, -0.4999988
    %v4492 = vmul.f32 %v4487, %v4491
    %v4493 = vadd.f32 1.0, %v4492
    %v4494 = vmul.f32 %v4485, %v4485
    %v4495 = vmul.f32 %v4494, -0.00019511016
    %v4496 = vadd.f32 %v4495, 0.008332121
    %v4497 = vmul.f32 %v4494, %v4496
    %v4498 = vadd.f32 %v4497, -0.16666654
    %v4499 = vmul.f32 %v4494, %v4498
    %v4500 = vadd.f32 %v4499, 1.0
    %v4501 = vmul.f32 %v4500, %v4485
    %vm4502 = vweird.f32 %v477
    %v4503 = vadd.s32 %v4486, 3
    %v4504 = vand.u32 %v4503, 3
    %vm4505 = vcmp.lt.s32.totalorder %v4504, 2
    %vm4506 = vcmp.eq.s32.totalorder %v4504, 0
    %v4507 = vxor.u32 %v4501, 2147483648
    %v4508 = vsel %vm4506, %v4493, %v4507
    %vm4509 = vcmp.eq.s32.totalorder %v4504, 2
    %v4510 = vxor.u32 %v4493, 2147483648
    %v4511 = vsel %vm4509, %v4510, %v4501
    %v4512 = vsel %vm4505, %v4508, %v4511
    %v4513 = vsel %vm4502, nan, %v4512
    %v4514 = vand.u32 2147483647, %v478
    %vm4515 = vcmp.le.f32.partialorder %v4514, 0.7853982
    %vm4516 = vcmp.lt.s32.totalorder %v478, 0
    %v4517 = vand.u32 %v478, 2139095040
    %v4518 = vshrl.u32 %v4517, 23
    %v4519 = vsub.s32 %v4518, 127
    %v4520 = vand.u32 2147483647, %v478
    %v4521 = vand.u32 %v4520, 8388607
    %v4522 = vor.u32 %v4521, 8388608
    %v4523 = vsub.s32 0, %v4522
    %v4524 = vadd.s32 %v4519, 1
    %vm4525 = vcmp.gt.s32.totalorder %v4524, 0
    %v4526 = vsel %vm4525, %v4524, 0
    %v4527 = vshrl.u32 %v4526, 5
    %v4528 = vand.u32 %v4526, 31
    %v4529 = vsub.s32 32, %v4528
    %v4530 = vshrl.u32 683565275, %v4529
    %v4531 = vshll.u32 683565275, %v4528
    %v4532 = vshrl.u32 2475754826, %v4529
    %v4533 = vor.u32 %v4531, %v4532
    %v4534 = vshll.u32 2475754826, %v4528
    %v4535 = vshrl.u32 2131351028, %v4529
    %v4536 = vor.u32 %v4534, %v4535
    %v4537 = vshll.u32 2131351028, %v4528
    %v4538 = vshrl.u32 2102212464, %v4529
    %v4539 = vor.u32 %v4537, %v4538
    %v4540 = vshll.u32 2102212464, %v4528
    %v4541 = vshrl.u32 920167782, %v4529
    %v4542 = vor.u32 %v4540, %v4541
    %v4543 = vshll.u32 920167782, %v4528
    %v4544 = vshrl.u32 1326507024, %v4529
    %v4545 = vor.u32 %v4543, %v4544
    %vm4546 = vcmp.lt.s32.totalorder %v4527, 1
    %vm4547 = vcmp.lt.s32.totalorder %v4527, 2
    %vm4548 = vcmp.lt.s32.totalorder %v4527, 3
    %vm4549 = vcmp.lt.s32.totalorder %v4527, 4
    %v4550 = vsel %vm4546, %v4530, %v4533
    %v4551 = vsel %vm4549, %v4539, 2102212464
    %v4552 = vsel %vm4548, %v4536, %v4551
    %v4553 = vsel %vm4547, %v4550, %v4552
    %v4554 = vsel %vm4546, %v4533, %v4536
    %v4555 = vsel %vm4549, %v4542, 920167782
    %v4556 = vsel %vm4548, %v4539, %v4555
    %v4557 = vsel %vm4547, %v4554, %v4556
    %v4558 = vsel %vm4546, %v4536, %v4539
    %v4559 = vsel %vm4549, %v4545, 1326507024
    %v4560 = vsel %vm4548, %v4542, %v4559
    %v4561 = vsel %vm4547, %v4558, %v4560
    %v4562 = vshll.u32 %v4522, 8
    %v4563 = vand.u32 %v4562, 65535
    %v4564 = vshrl.u32 %v4562, 16
    %v4565 = vand.u32 %v4561, 65535
    %v4566 = vshrl.u32 %v4561, 16
    %v4567 = vmul.u32 %v4563, %v4565
    %v4568 = vmul.u32 %v4563, %v4566
    %v4569 = vmul.u32 %v4564, %v4565
    %v4570 = vmul.u32 %v4564, %v4566
    %v4571 = vshll.u32 %v4568, 16
    %v4572 = vshrl.u32 %v4568, 16
    %v4573 = vshll.u32 %v4569, 16
    %v4574 = vshrl.u32 %v4569, 16
    %vm4575 = vc.u32 %v4567, %v4571
    %v4576 = vsel %vm4575, 1, 0
    %v4577 = vadd.s32 %v4567, %v4571
    %v4578 = vadd.s32 %v4570, %v4576
    %vm4579 = vc.u32 %v4577, %v4573
    %v4580 = vsel %vm4579, 1, 0
    %v4581 = vadd.s32 %v4577, %v4573
    %v4582 = vadd.s32 %v4578, %v4580
    %v4583 = vadd.s32 %v4582, %v4572
    %v4584 = vadd.s32 %v4583, %v4574
    %v4585 = vand.u32 %v4562, 65535
    %v4586 = vshrl.u32 %v4562, 16
    %v4587 = vand.u32 %v4557, 65535
    %v4588 = vshrl.u32 %v4557, 16
    %v4589 = vmul.u32 %v4585, %v4587
    %v4590 = vmul.u32 %v4585, %v4588
    %v4591 = vmul.u32 %v4586, %v4587
    %v4592 = vmul.u32 %v4586, %v4588
    %v4593 = vshll.u32 %v4590, 16
    %v4594 = vshrl.u32 %v4590, 16
    %v4595 = vshll.u32 %v4591, 16
    %v4596 = vshrl.u32 %v4591, 16
    %vm4597 = vc.u32 %v4589, %v4593
    %v4598 = vsel %vm4597, 1, 0
    %v4599 = vadd.s32 %v4589, %v4593
    %v4600 = vadd.s32 %v4592, %v4598
    %vm4601 = vc.u32 %v4599, %v4595
    %v4602 = vsel %vm4601, 1, 0
    %v4603 = vadd.s32 %v4599, %v4595
    %v4604 = vadd.s32 %v4600, %v4602
    %v4605 = vadd.s32 %v4604, %v4594
    %v4606 = vadd.s32 %v4605, %v4596
    %v4607 = vmul.u32 %v4562, %v4553
    %v4608 = vadd.s32 %v4584, %v4603
    %vm4609 = vc.u32 %v4584, %v4603
    %v4610 = vadd.s32 %v4606, 1
    %v4611 = vsel %vm4609, %v4610, %v4606
    %v4612 = vadd.s32 %v4607, %v4611
    %v4613 = vadd.s32 %v4612, 536870912
    %v4614 = vshrl.u32 %v4613, 30
    %v4615 = vshll.u32 %v4614, 30
    %v4616 = vsub.s32 %v4612, %v4615
    %vm4617 = vcmp.lt.s32.totalorder %v4616, 0
    %v4618 = vsub.s32 0, %v4616
    %v4619 = vsel %vm4617, %v4618, %v4616
    %v4620 = vclz %v4619
    %v4621 = vsub.s32 %v4620, 2
    %vm4622 = vcmp.gt.s32.totalorder 0, %v4621
    %v4623 = vsel %vm4622, 0, %v4621
    %v4624 = vsub.s32 32, %v4623
    %v4625 = vshll.u32 %v4616, %v4623
    %v4626 = vshrl.u32 %v4608, %v4624
    %v4627 = vor.u32 %v4625, %v4626
    %v4628 = vsub.s32 4294967266, %v4623
    %v4629 = vadd.s32 %v4628, 127
    %v4630 = vshll.u32 %v4629, 23
    %v4631 = vor.u32 4788187, %v4630
    %v4632 = vand.u32 2147483647, %v4631
    %v4634 = vcvt.s32.f32 %v4627
    %v4635 = vmul.f32 %v4634, %v4632
    %v4636 = vxor.u32 %v4635, 2147483648
    %v4637 = vsel %vm4516, %v4636, %v4635
    %v4638 = vsub.s32 4, %v4614
    %v4639 = vsel %vm4516, %v4638, %v4614
    %v4640 = vsel %vm4515, %v478, %v4637
    %v4641 = vsel %vm4515, 0, %v4639
    %v4642 = vmul.f32 %v4640, %v4640
    %v4643 = vmul.f32 %v4642, -0.001358992
    %v4644 = vadd.f32 %v4643, 0.041655596
    %v4645 = vmul.f32 %v4642, %v4644
    %v4646 = vadd.f32 %v4645, -0.4999988
    %v4647 = vmul.f32 %v4642, %v4646
    %v4648 = vadd.f32 1.0, %v4647
    %v4649 = vmul.f32 %v4640, %v4640
    %v4650 = vmul.f32 %v4649, -0.00019511016
    %v4651 = vadd.f32 %v4650, 0.008332121
    %v4652 = vmul.f32 %v4649, %v4651
    %v4653 = vadd.f32 %v4652, -0.16666654
    %v4654 = vmul.f32 %v4649, %v4653
    %v4655 = vadd.f32 %v4654, 1.0
    %v4656 = vmul.f32 %v4655, %v4640
    %vm4657 = vweird.f32 %v478
    %v4658 = vadd.s32 %v4641, 3
    %v4659 = vand.u32 %v4658, 3
    %vm4660 = vcmp.lt.s32.totalorder %v4659, 2
    %vm4661 = vcmp.eq.s32.totalorder %v4659, 0
    %v4662 = vxor.u32 %v4656, 2147483648
    %v4663 = vsel %vm4661, %v4648, %v4662
    %vm4664 = vcmp.eq.s32.totalorder %v4659, 2
    %v4665 = vxor.u32 %v4648, 2147483648
    %v4666 = vsel %vm4664, %v4665, %v4656
    %v4667 = vsel %vm4660, %v4663, %v4666
    %v4668 = vsel %vm4657, nan, %v4667
    %v4669 = vand.u32 2147483647, %v479
    %vm4670 = vcmp.le.f32.partialorder %v4669, 0.7853982
    %vm4671 = vcmp.lt.s32.totalorder %v479, 0
    %v4672 = vand.u32 %v479, 2139095040
    %v4673 = vshrl.u32 %v4672, 23
    %v4674 = vsub.s32 %v4673, 127
    %v4675 = vand.u32 2147483647, %v479
    %v4676 = vand.u32 %v4675, 8388607
    %v4677 = vor.u32 %v4676, 8388608
    %v4678 = vsub.s32 0, %v4677
    %v4679 = vadd.s32 %v4674, 1
    %vm4680 = vcmp.gt.s32.totalorder %v4679, 0
    %v4681 = vsel %vm4680, %v4679, 0
    %v4682 = vshrl.u32 %v4681, 5
    %v4683 = vand.u32 %v4681, 31
    %v4684 = vsub.s32 32, %v4683
    %v4685 = vshrl.u32 683565275, %v4684
    %v4686 = vshll.u32 683565275, %v4683
    %v4687 = vshrl.u32 2475754826, %v4684
    %v4688 = vor.u32 %v4686, %v4687
    %v4689 = vshll.u32 2475754826, %v4683
    %v4690 = vshrl.u32 2131351028, %v4684
    %v4691 = vor.u32 %v4689, %v4690
    %v4692 = vshll.u32 2131351028, %v4683
    %v4693 = vshrl.u32 2102212464, %v4684
    %v4694 = vor.u32 %v4692, %v4693
    %v4695 = vshll.u32 2102212464, %v4683
    %v4696 = vshrl.u32 920167782, %v4684
    %v4697 = vor.u32 %v4695, %v4696
    %v4698 = vshll.u32 920167782, %v4683
    %v4699 = vshrl.u32 1326507024, %v4684
    %v4700 = vor.u32 %v4698, %v4699
    %vm4701 = vcmp.lt.s32.totalorder %v4682, 1
    %vm4702 = vcmp.lt.s32.totalorder %v4682, 2
    %vm4703 = vcmp.lt.s32.totalorder %v4682, 3
    %vm4704 = vcmp.lt.s32.totalorder %v4682, 4
    %v4705 = vsel %vm4701, %v4685, %v4688
    %v4706 = vsel %vm4704, %v4694, 2102212464
    %v4707 = vsel %vm4703, %v4691, %v4706
    %v4708 = vsel %vm4702, %v4705, %v4707
    %v4709 = vsel %vm4701, %v4688, %v4691
    %v4710 = vsel %vm4704, %v4697, 920167782
    %v4711 = vsel %vm4703, %v4694, %v4710
    %v4712 = vsel %vm4702, %v4709, %v4711
    %v4713 = vsel %vm4701, %v4691, %v4694
    %v4714 = vsel %vm4704, %v4700, 1326507024
    %v4715 = vsel %vm4703, %v4697, %v4714
    %v4716 = vsel %vm4702, %v4713, %v4715
    %v4717 = vshll.u32 %v4677, 8
    %v4718 = vand.u32 %v4717, 65535
    %v4719 = vshrl.u32 %v4717, 16
    %v4720 = vand.u32 %v4716, 65535
    %v4721 = vshrl.u32 %v4716, 16
    %v4722 = vmul.u32 %v4718, %v4720
    %v4723 = vmul.u32 %v4718, %v4721
    %v4724 = vmul.u32 %v4719, %v4720
    %v4725 = vmul.u32 %v4719, %v4721
    %v4726 = vshll.u32 %v4723, 16
    %v4727 = vshrl.u32 %v4723, 16
    %v4728 = vshll.u32 %v4724, 16
    %v4729 = vshrl.u32 %v4724, 16
    %vm4730 = vc.u32 %v4722, %v4726
    %v4731 = vsel %vm4730, 1, 0
    %v4732 = vadd.s32 %v4722, %v4726
    %v4733 = vadd.s32 %v4725, %v4731
    %vm4734 = vc.u32 %v4732, %v4728
    %v4735 = vsel %vm4734, 1, 0
    %v4736 = vadd.s32 %v4732, %v4728
    %v4737 = vadd.s32 %v4733, %v4735
    %v4738 = vadd.s32 %v4737, %v4727
    %v4739 = vadd.s32 %v4738, %v4729
    %v4740 = vand.u32 %v4717, 65535
    %v4741 = vshrl.u32 %v4717, 16
    %v4742 = vand.u32 %v4712, 65535
    %v4743 = vshrl.u32 %v4712, 16
    %v4744 = vmul.u32 %v4740, %v4742
    %v4745 = vmul.u32 %v4740, %v4743
    %v4746 = vmul.u32 %v4741, %v4742
    %v4747 = vmul.u32 %v4741, %v4743
    %v4748 = vshll.u32 %v4745, 16
    %v4749 = vshrl.u32 %v4745, 16
    %v4750 = vshll.u32 %v4746, 16
    %v4751 = vshrl.u32 %v4746, 16
    %vm4752 = vc.u32 %v4744, %v4748
    %v4753 = vsel %vm4752, 1, 0
    %v4754 = vadd.s32 %v4744, %v4748
    %v4755 = vadd.s32 %v4747, %v4753
    %vm4756 = vc.u32 %v4754, %v4750
    %v4757 = vsel %vm4756, 1, 0
    %v4758 = vadd.s32 %v4754, %v4750
    %v4759 = vadd.s32 %v4755, %v4757
    %v4760 = vadd.s32 %v4759, %v4749
    %v4761 = vadd.s32 %v4760, %v4751
    %v4762 = vmul.u32 %v4717, %v4708
    %v4763 = vadd.s32 %v4739, %v4758
    %vm4764 = vc.u32 %v4739, %v4758
    %v4765 = vadd.s32 %v4761, 1
    %v4766 = vsel %vm4764, %v4765, %v4761
    %v4767 = vadd.s32 %v4762, %v4766
    %v4768 = vadd.s32 %v4767, 536870912
    %v4769 = vshrl.u32 %v4768, 30
    %v4770 = vshll.u32 %v4769, 30
    %v4771 = vsub.s32 %v4767, %v4770
    %vm4772 = vcmp.lt.s32.totalorder %v4771, 0
    %v4773 = vsub.s32 0, %v4771
    %v4774 = vsel %vm4772, %v4773, %v4771
    %v4775 = vclz %v4774
    %v4776 = vsub.s32 %v4775, 2
    %vm4777 = vcmp.gt.s32.totalorder 0, %v4776
    %v4778 = vsel %vm4777, 0, %v4776
    %v4779 = vsub.s32 32, %v4778
    %v4780 = vshll.u32 %v4771, %v4778
    %v4781 = vshrl.u32 %v4763, %v4779
    %v4782 = vor.u32 %v4780, %v4781
    %v4783 = vsub.s32 4294967266, %v4778
    %v4784 = vadd.s32 %v4783, 127
    %v4785 = vshll.u32 %v4784, 23
    %v4786 = vor.u32 4788187, %v4785
    %v4787 = vand.u32 2147483647, %v4786
    %v4789 = vcvt.s32.f32 %v4782
    %v4790 = vmul.f32 %v4789, %v4787
    %v4791 = vxor.u32 %v4790, 2147483648
    %v4792 = vsel %vm4671, %v4791, %v4790
    %v4793 = vsub.s32 4, %v4769
    %v4794 = vsel %vm4671, %v4793, %v4769
    %v4795 = vsel %vm4670, %v479, %v4792
    %v4796 = vsel %vm4670, 0, %v4794
    %v4797 = vmul.f32 %v4795, %v4795
    %v4798 = vmul.f32 %v4797, -0.001358992
    %v4799 = vadd.f32 %v4798, 0.041655596
    %v4800 = vmul.f32 %v4797, %v4799
    %v4801 = vadd.f32 %v4800, -0.4999988
    %v4802 = vmul.f32 %v4797, %v4801
    %v4803 = vadd.f32 1.0, %v4802
    %v4804 = vmul.f32 %v4795, %v4795
    %v4805 = vmul.f32 %v4804, -0.00019511016
    %v4806 = vadd.f32 %v4805, 0.008332121
    %v4807 = vmul.f32 %v4804, %v4806
    %v4808 = vadd.f32 %v4807, -0.16666654
    %v4809 = vmul.f32 %v4804, %v4808
    %v4810 = vadd.f32 %v4809, 1.0
    %v4811 = vmul.f32 %v4810, %v4795
    %vm4812 = vweird.f32 %v479
    %v4813 = vadd.s32 %v4796, 3
    %v4814 = vand.u32 %v4813, 3
    %vm4815 = vcmp.lt.s32.totalorder %v4814, 2
    %vm4816 = vcmp.eq.s32.totalorder %v4814, 0
    %v4817 = vxor.u32 %v4811, 2147483648
    %v4818 = vsel %vm4816, %v4803, %v4817
    %vm4819 = vcmp.eq.s32.totalorder %v4814, 2
    %v4820 = vxor.u32 %v4803, 2147483648
    %v4821 = vsel %vm4819, %v4820, %v4811
    %v4822 = vsel %vm4815, %v4818, %v4821
    %v4823 = vsel %vm4812, nan, %v4822
    %v4824 = vand.u32 2147483647, %v480
    %vm4825 = vcmp.le.f32.partialorder %v4824, 0.7853982
    %vm4826 = vcmp.lt.s32.totalorder %v480, 0
    %v4827 = vand.u32 %v480, 2139095040
    %v4828 = vshrl.u32 %v4827, 23
    %v4829 = vsub.s32 %v4828, 127
    %v4830 = vand.u32 2147483647, %v480
    %v4831 = vand.u32 %v4830, 8388607
    %v4832 = vor.u32 %v4831, 8388608
    %v4833 = vsub.s32 0, %v4832
    %v4834 = vadd.s32 %v4829, 1
    %vm4835 = vcmp.gt.s32.totalorder %v4834, 0
    %v4836 = vsel %vm4835, %v4834, 0
    %v4837 = vshrl.u32 %v4836, 5
    %v4838 = vand.u32 %v4836, 31
    %v4839 = vsub.s32 32, %v4838
    %v4840 = vshrl.u32 683565275, %v4839
    %v4841 = vshll.u32 683565275, %v4838
    %v4842 = vshrl.u32 2475754826, %v4839
    %v4843 = vor.u32 %v4841, %v4842
    %v4844 = vshll.u32 2475754826, %v4838
    %v4845 = vshrl.u32 2131351028, %v4839
    %v4846 = vor.u32 %v4844, %v4845
    %v4847 = vshll.u32 2131351028, %v4838
    %v4848 = vshrl.u32 2102212464, %v4839
    %v4849 = vor.u32 %v4847, %v4848
    %v4850 = vshll.u32 2102212464, %v4838
    %v4851 = vshrl.u32 920167782, %v4839
    %v4852 = vor.u32 %v4850, %v4851
    %v4853 = vshll.u32 920167782, %v4838
    %v4854 = vshrl.u32 1326507024, %v4839
    %v4855 = vor.u32 %v4853, %v4854
    %vm4856 = vcmp.lt.s32.totalorder %v4837, 1
    %vm4857 = vcmp.lt.s32.totalorder %v4837, 2
    %vm4858 = vcmp.lt.s32.totalorder %v4837, 3
    %vm4859 = vcmp.lt.s32.totalorder %v4837, 4
    %v4860 = vsel %vm4856, %v4840, %v4843
    %v4861 = vsel %vm4859, %v4849, 2102212464
    %v4862 = vsel %vm4858, %v4846, %v4861
    %v4863 = vsel %vm4857, %v4860, %v4862
    %v4864 = vsel %vm4856, %v4843, %v4846
    %v4865 = vsel %vm4859, %v4852, 920167782
    %v4866 = vsel %vm4858, %v4849, %v4865
    %v4867 = vsel %vm4857, %v4864, %v4866
    %v4868 = vsel %vm4856, %v4846, %v4849
    %v4869 = vsel %vm4859, %v4855, 1326507024
    %v4870 = vsel %vm4858, %v4852, %v4869
    %v4871 = vsel %vm4857, %v4868, %v4870
    %v4872 = vshll.u32 %v4832, 8
    %v4873 = vand.u32 %v4872, 65535
    %v4874 = vshrl.u32 %v4872, 16
    %v4875 = vand.u32 %v4871, 65535
    %v4876 = vshrl.u32 %v4871, 16
    %v4877 = vmul.u32 %v4873, %v4875
    %v4878 = vmul.u32 %v4873, %v4876
    %v4879 = vmul.u32 %v4874, %v4875
    %v4880 = vmul.u32 %v4874, %v4876
    %v4881 = vshll.u32 %v4878, 16
    %v4882 = vshrl.u32 %v4878, 16
    %v4883 = vshll.u32 %v4879, 16
    %v4884 = vshrl.u32 %v4879, 16
    %vm4885 = vc.u32 %v4877, %v4881
    %v4886 = vsel %vm4885, 1, 0
    %v4887 = vadd.s32 %v4877, %v4881
    %v4888 = vadd.s32 %v4880, %v4886
    %vm4889 = vc.u32 %v4887, %v4883
    %v4890 = vsel %vm4889, 1, 0
    %v4891 = vadd.s32 %v4887, %v4883
    %v4892 = vadd.s32 %v4888, %v4890
    %v4893 = vadd.s32 %v4892, %v4882
    %v4894 = vadd.s32 %v4893, %v4884
    %v4895 = vand.u32 %v4872, 65535
    %v4896 = vshrl.u32 %v4872, 16
    %v4897 = vand.u32 %v4867, 65535
    %v4898 = vshrl.u32 %v4867, 16
    %v4899 = vmul.u32 %v4895, %v4897
    %v4900 = vmul.u32 %v4895, %v4898
    %v4901 = vmul.u32 %v4896, %v4897
    %v4902 = vmul.u32 %v4896, %v4898
    %v4903 = vshll.u32 %v4900, 16
    %v4904 = vshrl.u32 %v4900, 16
    %v4905 = vshll.u32 %v4901, 16
    %v4906 = vshrl.u32 %v4901, 16
    %vm4907 = vc.u32 %v4899, %v4903
    %v4908 = vsel %vm4907, 1, 0
    %v4909 = vadd.s32 %v4899, %v4903
    %v4910 = vadd.s32 %v4902, %v4908
    %vm4911 = vc.u32 %v4909, %v4905
    %v4912 = vsel %vm4911, 1, 0
    %v4913 = vadd.s32 %v4909, %v4905
    %v4914 = vadd.s32 %v4910, %v4912
    %v4915 = vadd.s32 %v4914, %v4904
    %v4916 = vadd.s32 %v4915, %v4906
    %v4917 = vmul.u32 %v4872, %v4863
    %v4918 = vadd.s32 %v4894, %v4913
    %vm4919 = vc.u32 %v4894, %v4913
    %v4920 = vadd.s32 %v4916, 1
    %v4921 = vsel %vm4919, %v4920, %v4916
    %v4922 = vadd.s32 %v4917, %v4921
    %v4923 = vadd.s32 %v4922, 536870912
    %v4924 = vshrl.u32 %v4923, 30
    %v4925 = vshll.u32 %v4924, 30
    %v4926 = vsub.s32 %v4922, %v4925
    %vm4927 = vcmp.lt.s32.totalorder %v4926, 0
    %v4928 = vsub.s32 0, %v4926
    %v4929 = vsel %vm4927, %v4928, %v4926
    %v4930 = vclz %v4929
    %v4931 = vsub.s32 %v4930, 2
    %vm4932 = vcmp.gt.s32.totalorder 0, %v4931
    %v4933 = vsel %vm4932, 0, %v4931
    %v4934 = vsub.s32 32, %v4933
    %v4935 = vshll.u32 %v4926, %v4933
    %v4936 = vshrl.u32 %v4918, %v4934
    %v4937 = vor.u32 %v4935, %v4936
    %v4938 = vsub.s32 4294967266, %v4933
    %v4939 = vadd.s32 %v4938, 127
    %v4940 = vshll.u32 %v4939, 23
    %v4941 = vor.u32 4788187, %v4940
    %v4942 = vand.u32 2147483647, %v4941
    %v4944 = vcvt.s32.f32 %v4937
    %v4945 = vmul.f32 %v4944, %v4942
    %v4946 = vxor.u32 %v4945, 2147483648
    %v4947 = vsel %vm4826, %v4946, %v4945
    %v4948 = vsub.s32 4, %v4924
    %v4949 = vsel %vm4826, %v4948, %v4924
    %v4950 = vsel %vm4825, %v480, %v4947
    %v4951 = vsel %vm4825, 0, %v4949
    %v4952 = vmul.f32 %v4950, %v4950
    %v4953 = vmul.f32 %v4952, -0.001358992
    %v4954 = vadd.f32 %v4953, 0.041655596
    %v4955 = vmul.f32 %v4952, %v4954
    %v4956 = vadd.f32 %v4955, -0.4999988
    %v4957 = vmul.f32 %v4952, %v4956
    %v4958 = vadd.f32 1.0, %v4957
    %v4959 = vmul.f32 %v4950, %v4950
    %v4960 = vmul.f32 %v4959, -0.00019511016
    %v4961 = vadd.f32 %v4960, 0.008332121
    %v4962 = vmul.f32 %v4959, %v4961
    %v4963 = vadd.f32 %v4962, -0.16666654
    %v4964 = vmul.f32 %v4959, %v4963
    %v4965 = vadd.f32 %v4964, 1.0
    %v4966 = vmul.f32 %v4965, %v4950
    %vm4967 = vweird.f32 %v480
    %v4968 = vadd.s32 %v4951, 3
    %v4969 = vand.u32 %v4968, 3
    %vm4970 = vcmp.lt.s32.totalorder %v4969, 2
    %vm4971 = vcmp.eq.s32.totalorder %v4969, 0
    %v4972 = vxor.u32 %v4966, 2147483648
    %v4973 = vsel %vm4971, %v4958, %v4972
    %vm4974 = vcmp.eq.s32.totalorder %v4969, 2
    %v4975 = vxor.u32 %v4958, 2147483648
    %v4976 = vsel %vm4974, %v4975, %v4966
    %v4977 = vsel %vm4970, %v4973, %v4976
    %v4978 = vsel %vm4967, nan, %v4977
    %v4979 = vand.u32 2147483647, %v481
    %vm4980 = vcmp.le.f32.partialorder %v4979, 0.7853982
    %vm4981 = vcmp.lt.s32.totalorder %v481, 0
    %v4982 = vand.u32 %v481, 2139095040
    %v4983 = vshrl.u32 %v4982, 23
    %v4984 = vsub.s32 %v4983, 127
    %v4985 = vand.u32 2147483647, %v481
    %v4986 = vand.u32 %v4985, 8388607
    %v4987 = vor.u32 %v4986, 8388608
    %v4988 = vsub.s32 0, %v4987
    %v4989 = vadd.s32 %v4984, 1
    %vm4990 = vcmp.gt.s32.totalorder %v4989, 0
    %v4991 = vsel %vm4990, %v4989, 0
    %v4992 = vshrl.u32 %v4991, 5
    %v4993 = vand.u32 %v4991, 31
    %v4994 = vsub.s32 32, %v4993
    %v4995 = vshrl.u32 683565275, %v4994
    %v4996 = vshll.u32 683565275, %v4993
    %v4997 = vshrl.u32 2475754826, %v4994
    %v4998 = vor.u32 %v4996, %v4997
    %v4999 = vshll.u32 2475754826, %v4993
    %v5000 = vshrl.u32 2131351028, %v4994
    %v5001 = vor.u32 %v4999, %v5000
    %v5002 = vshll.u32 2131351028, %v4993
    %v5003 = vshrl.u32 2102212464, %v4994
    %v5004 = vor.u32 %v5002, %v5003
    %v5005 = vshll.u32 2102212464, %v4993
    %v5006 = vshrl.u32 920167782, %v4994
    %v5007 = vor.u32 %v5005, %v5006
    %v5008 = vshll.u32 920167782, %v4993
    %v5009 = vshrl.u32 1326507024, %v4994
    %v5010 = vor.u32 %v5008, %v5009
    %vm5011 = vcmp.lt.s32.totalorder %v4992, 1
    %vm5012 = vcmp.lt.s32.totalorder %v4992, 2
    %vm5013 = vcmp.lt.s32.totalorder %v4992, 3
    %vm5014 = vcmp.lt.s32.totalorder %v4992, 4
    %v5015 = vsel %vm5011, %v4995, %v4998
    %v5016 = vsel %vm5014, %v5004, 2102212464
    %v5017 = vsel %vm5013, %v5001, %v5016
    %v5018 = vsel %vm5012, %v5015, %v5017
    %v5019 = vsel %vm5011, %v4998, %v5001
    %v5020 = vsel %vm5014, %v5007, 920167782
    %v5021 = vsel %vm5013, %v5004, %v5020
    %v5022 = vsel %vm5012, %v5019, %v5021
    %v5023 = vsel %vm5011, %v5001, %v5004
    %v5024 = vsel %vm5014, %v5010, 1326507024
    %v5025 = vsel %vm5013, %v5007, %v5024
    %v5026 = vsel %vm5012, %v5023, %v5025
    %v5027 = vshll.u32 %v4987, 8
    %v5028 = vand.u32 %v5027, 65535
    %v5029 = vshrl.u32 %v5027, 16
    %v5030 = vand.u32 %v5026, 65535
    %v5031 = vshrl.u32 %v5026, 16
    %v5032 = vmul.u32 %v5028, %v5030
    %v5033 = vmul.u32 %v5028, %v5031
    %v5034 = vmul.u32 %v5029, %v5030
    %v5035 = vmul.u32 %v5029, %v5031
    %v5036 = vshll.u32 %v5033, 16
    %v5037 = vshrl.u32 %v5033, 16
    %v5038 = vshll.u32 %v5034, 16
    %v5039 = vshrl.u32 %v5034, 16
    %vm5040 = vc.u32 %v5032, %v5036
    %v5041 = vsel %vm5040, 1, 0
    %v5042 = vadd.s32 %v5032, %v5036
    %v5043 = vadd.s32 %v5035, %v5041
    %vm5044 = vc.u32 %v5042, %v5038
    %v5045 = vsel %vm5044, 1, 0
    %v5046 = vadd.s32 %v5042, %v5038
    %v5047 = vadd.s32 %v5043, %v5045
    %v5048 = vadd.s32 %v5047, %v5037
    %v5049 = vadd.s32 %v5048, %v5039
    %v5050 = vand.u32 %v5027, 65535
    %v5051 = vshrl.u32 %v5027, 16
    %v5052 = vand.u32 %v5022, 65535
    %v5053 = vshrl.u32 %v5022, 16
    %v5054 = vmul.u32 %v5050, %v5052
    %v5055 = vmul.u32 %v5050, %v5053
    %v5056 = vmul.u32 %v5051, %v5052
    %v5057 = vmul.u32 %v5051, %v5053
    %v5058 = vshll.u32 %v5055, 16
    %v5059 = vshrl.u32 %v5055, 16
    %v5060 = vshll.u32 %v5056, 16
    %v5061 = vshrl.u32 %v5056, 16
    %vm5062 = vc.u32 %v5054, %v5058
    %v5063 = vsel %vm5062, 1, 0
    %v5064 = vadd.s32 %v5054, %v5058
    %v5065 = vadd.s32 %v5057, %v5063
    %vm5066 = vc.u32 %v5064, %v5060
    %v5067 = vsel %vm5066, 1, 0
    %v5068 = vadd.s32 %v5064, %v5060
    %v5069 = vadd.s32 %v5065, %v5067
    %v5070 = vadd.s32 %v5069, %v5059
    %v5071 = vadd.s32 %v5070, %v5061
    %v5072 = vmul.u32 %v5027, %v5018
    %v5073 = vadd.s32 %v5049, %v5068
    %vm5074 = vc.u32 %v5049, %v5068
    %v5075 = vadd.s32 %v5071, 1
    %v5076 = vsel %vm5074, %v5075, %v5071
    %v5077 = vadd.s32 %v5072, %v5076
    %v5078 = vadd.s32 %v5077, 536870912
    %v5079 = vshrl.u32 %v5078, 30
    %v5080 = vshll.u32 %v5079, 30
    %v5081 = vsub.s32 %v5077, %v5080
    %vm5082 = vcmp.lt.s32.totalorder %v5081, 0
    %v5083 = vsub.s32 0, %v5081
    %v5084 = vsel %vm5082, %v5083, %v5081
    %v5085 = vclz %v5084
    %v5086 = vsub.s32 %v5085, 2
    %vm5087 = vcmp.gt.s32.totalorder 0, %v5086
    %v5088 = vsel %vm5087, 0, %v5086
    %v5089 = vsub.s32 32, %v5088
    %v5090 = vshll.u32 %v5081, %v5088
    %v5091 = vshrl.u32 %v5073, %v5089
    %v5092 = vor.u32 %v5090, %v5091
    %v5093 = vsub.s32 4294967266, %v5088
    %v5094 = vadd.s32 %v5093, 127
    %v5095 = vshll.u32 %v5094, 23
    %v5096 = vor.u32 4788187, %v5095
    %v5097 = vand.u32 2147483647, %v5096
    %v5099 = vcvt.s32.f32 %v5092
    %v5100 = vmul.f32 %v5099, %v5097
    %v5101 = vxor.u32 %v5100, 2147483648
    %v5102 = vsel %vm4981, %v5101, %v5100
    %v5103 = vsub.s32 4, %v5079
    %v5104 = vsel %vm4981, %v5103, %v5079
    %v5105 = vsel %vm4980, %v481, %v5102
    %v5106 = vsel %vm4980, 0, %v5104
    %v5107 = vmul.f32 %v5105, %v5105
    %v5108 = vmul.f32 %v5107, -0.001358992
    %v5109 = vadd.f32 %v5108, 0.041655596
    %v5110 = vmul.f32 %v5107, %v5109
    %v5111 = vadd.f32 %v5110, -0.4999988
    %v5112 = vmul.f32 %v5107, %v5111
    %v5113 = vadd.f32 1.0, %v5112
    %v5114 = vmul.f32 %v5105, %v5105
    %v5115 = vmul.f32 %v5114, -0.00019511016
    %v5116 = vadd.f32 %v5115, 0.008332121
    %v5117 = vmul.f32 %v5114, %v5116
    %v5118 = vadd.f32 %v5117, -0.16666654
    %v5119 = vmul.f32 %v5114, %v5118
    %v5120 = vadd.f32 %v5119, 1.0
    %v5121 = vmul.f32 %v5120, %v5105
    %vm5122 = vweird.f32 %v481
    %v5123 = vadd.s32 %v5106, 3
    %v5124 = vand.u32 %v5123, 3
    %vm5125 = vcmp.lt.s32.totalorder %v5124, 2
    %vm5126 = vcmp.eq.s32.totalorder %v5124, 0
    %v5127 = vxor.u32 %v5121, 2147483648
    %v5128 = vsel %vm5126, %v5113, %v5127
    %vm5129 = vcmp.eq.s32.totalorder %v5124, 2
    %v5130 = vxor.u32 %v5113, 2147483648
    %v5131 = vsel %vm5129, %v5130, %v5121
    %v5132 = vsel %vm5125, %v5128, %v5131
    %v5133 = vsel %vm5122, nan, %v5132
    %v5134 = vand.u32 2147483647, %v482
    %vm5135 = vcmp.le.f32.partialorder %v5134, 0.7853982
    %vm5136 = vcmp.lt.s32.totalorder %v482, 0
    %v5137 = vand.u32 %v482, 2139095040
    %v5138 = vshrl.u32 %v5137, 23
    %v5139 = vsub.s32 %v5138, 127
    %v5140 = vand.u32 2147483647, %v482
    %v5141 = vand.u32 %v5140, 8388607
    %v5142 = vor.u32 %v5141, 8388608
    %v5143 = vsub.s32 0, %v5142
    %v5144 = vadd.s32 %v5139, 1
    %vm5145 = vcmp.gt.s32.totalorder %v5144, 0
    %v5146 = vsel %vm5145, %v5144, 0
    %v5147 = vshrl.u32 %v5146, 5
    %v5148 = vand.u32 %v5146, 31
    %v5149 = vsub.s32 32, %v5148
    %v5150 = vshrl.u32 683565275, %v5149
    %v5151 = vshll.u32 683565275, %v5148
    %v5152 = vshrl.u32 2475754826, %v5149
    %v5153 = vor.u32 %v5151, %v5152
    %v5154 = vshll.u32 2475754826, %v5148
    %v5155 = vshrl.u32 2131351028, %v5149
    %v5156 = vor.u32 %v5154, %v5155
    %v5157 = vshll.u32 2131351028, %v5148
    %v5158 = vshrl.u32 2102212464, %v5149
    %v5159 = vor.u32 %v5157, %v5158
    %v5160 = vshll.u32 2102212464, %v5148
    %v5161 = vshrl.u32 920167782, %v5149
    %v5162 = vor.u32 %v5160, %v5161
    %v5163 = vshll.u32 920167782, %v5148
    %v5164 = vshrl.u32 1326507024, %v5149
    %v5165 = vor.u32 %v5163, %v5164
    %vm5166 = vcmp.lt.s32.totalorder %v5147, 1
    %vm5167 = vcmp.lt.s32.totalorder %v5147, 2
    %vm5168 = vcmp.lt.s32.totalorder %v5147, 3
    %vm5169 = vcmp.lt.s32.totalorder %v5147, 4
    %v5170 = vsel %vm5166, %v5150, %v5153
    %v5171 = vsel %vm5169, %v5159, 2102212464
    %v5172 = vsel %vm5168, %v5156, %v5171
    %v5173 = vsel %vm5167, %v5170, %v5172
    %v5174 = vsel %vm5166, %v5153, %v5156
    %v5175 = vsel %vm5169, %v5162, 920167782
    %v5176 = vsel %vm5168, %v5159, %v5175
    %v5177 = vsel %vm5167, %v5174, %v5176
    %v5178 = vsel %vm5166, %v5156, %v5159
    %v5179 = vsel %vm5169, %v5165, 1326507024
    %v5180 = vsel %vm5168, %v5162, %v5179
    %v5181 = vsel %vm5167, %v5178, %v5180
    %v5182 = vshll.u32 %v5142, 8
    %v5183 = vand.u32 %v5182, 65535
    %v5184 = vshrl.u32 %v5182, 16
    %v5185 = vand.u32 %v5181, 65535
    %v5186 = vshrl.u32 %v5181, 16
    %v5187 = vmul.u32 %v5183, %v5185
    %v5188 = vmul.u32 %v5183, %v5186
    %v5189 = vmul.u32 %v5184, %v5185
    %v5190 = vmul.u32 %v5184, %v5186
    %v5191 = vshll.u32 %v5188, 16
    %v5192 = vshrl.u32 %v5188, 16
    %v5193 = vshll.u32 %v5189, 16
    %v5194 = vshrl.u32 %v5189, 16
    %vm5195 = vc.u32 %v5187, %v5191
    %v5196 = vsel %vm5195, 1, 0
    %v5197 = vadd.s32 %v5187, %v5191
    %v5198 = vadd.s32 %v5190, %v5196
    %vm5199 = vc.u32 %v5197, %v5193
    %v5200 = vsel %vm5199, 1, 0
    %v5201 = vadd.s32 %v5197, %v5193
    %v5202 = vadd.s32 %v5198, %v5200
    %v5203 = vadd.s32 %v5202, %v5192
    %v5204 = vadd.s32 %v5203, %v5194
    %v5205 = vand.u32 %v5182, 65535
    %v5206 = vshrl.u32 %v5182, 16
    %v5207 = vand.u32 %v5177, 65535
    %v5208 = vshrl.u32 %v5177, 16
    %v5209 = vmul.u32 %v5205, %v5207
    %v5210 = vmul.u32 %v5205, %v5208
    %v5211 = vmul.u32 %v5206, %v5207
    %v5212 = vmul.u32 %v5206, %v5208
    %v5213 = vshll.u32 %v5210, 16
    %v5214 = vshrl.u32 %v5210, 16
    %v5215 = vshll.u32 %v5211, 16
    %v5216 = vshrl.u32 %v5211, 16
    %vm5217 = vc.u32 %v5209, %v5213
    %v5218 = vsel %vm5217, 1, 0
    %v5219 = vadd.s32 %v5209, %v5213
    %v5220 = vadd.s32 %v5212, %v5218
    %vm5221 = vc.u32 %v5219, %v5215
    %v5222 = vsel %vm5221, 1, 0
    %v5223 = vadd.s32 %v5219, %v5215
    %v5224 = vadd.s32 %v5220, %v5222
    %v5225 = vadd.s32 %v5224, %v5214
    %v5226 = vadd.s32 %v5225, %v5216
    %v5227 = vmul.u32 %v5182, %v5173
    %v5228 = vadd.s32 %v5204, %v5223
    %vm5229 = vc.u32 %v5204, %v5223
    %v5230 = vadd.s32 %v5226, 1
    %v5231 = vsel %vm5229, %v5230, %v5226
    %v5232 = vadd.s32 %v5227, %v5231
    %v5233 = vadd.s32 %v5232, 536870912
    %v5234 = vshrl.u32 %v5233, 30
    %v5235 = vshll.u32 %v5234, 30
    %v5236 = vsub.s32 %v5232, %v5235
    %vm5237 = vcmp.lt.s32.totalorder %v5236, 0
    %v5238 = vsub.s32 0, %v5236
    %v5239 = vsel %vm5237, %v5238, %v5236
    %v5240 = vclz %v5239
    %v5241 = vsub.s32 %v5240, 2
    %vm5242 = vcmp.gt.s32.totalorder 0, %v5241
    %v5243 = vsel %vm5242, 0, %v5241
    %v5244 = vsub.s32 32, %v5243
    %v5245 = vshll.u32 %v5236, %v5243
    %v5246 = vshrl.u32 %v5228, %v5244
    %v5247 = vor.u32 %v5245, %v5246
    %v5248 = vsub.s32 4294967266, %v5243
    %v5249 = vadd.s32 %v5248, 127
    %v5250 = vshll.u32 %v5249, 23
    %v5251 = vor.u32 4788187, %v5250
    %v5252 = vand.u32 2147483647, %v5251
    %v5254 = vcvt.s32.f32 %v5247
    %v5255 = vmul.f32 %v5254, %v5252
    %v5256 = vxor.u32 %v5255, 2147483648
    %v5257 = vsel %vm5136, %v5256, %v5255
    %v5258 = vsub.s32 4, %v5234
    %v5259 = vsel %vm5136, %v5258, %v5234
    %v5260 = vsel %vm5135, %v482, %v5257
    %v5261 = vsel %vm5135, 0, %v5259
    %v5262 = vmul.f32 %v5260, %v5260
    %v5263 = vmul.f32 %v5262, -0.001358992
    %v5264 = vadd.f32 %v5263, 0.041655596
    %v5265 = vmul.f32 %v5262, %v5264
    %v5266 = vadd.f32 %v5265, -0.4999988
    %v5267 = vmul.f32 %v5262, %v5266
    %v5268 = vadd.f32 1.0, %v5267
    %v5269 = vmul.f32 %v5260, %v5260
    %v5270 = vmul.f32 %v5269, -0.00019511016
    %v5271 = vadd.f32 %v5270, 0.008332121
    %v5272 = vmul.f32 %v5269, %v5271
    %v5273 = vadd.f32 %v5272, -0.16666654
    %v5274 = vmul.f32 %v5269, %v5273
    %v5275 = vadd.f32 %v5274, 1.0
    %v5276 = vmul.f32 %v5275, %v5260
    %vm5277 = vweird.f32 %v482
    %v5278 = vadd.s32 %v5261, 3
    %v5279 = vand.u32 %v5278, 3
    %vm5280 = vcmp.lt.s32.totalorder %v5279, 2
    %vm5281 = vcmp.eq.s32.totalorder %v5279, 0
    %v5282 = vxor.u32 %v5276, 2147483648
    %v5283 = vsel %vm5281, %v5268, %v5282
    %vm5284 = vcmp.eq.s32.totalorder %v5279, 2
    %v5285 = vxor.u32 %v5268, 2147483648
    %v5286 = vsel %vm5284, %v5285, %v5276
    %v5287 = vsel %vm5280, %v5283, %v5286
    %v5288 = vsel %vm5277, nan, %v5287
    %v5289 = vand.u32 2147483647, %v483
    %vm5290 = vcmp.le.f32.partialorder %v5289, 0.7853982
    %vm5291 = vcmp.lt.s32.totalorder %v483, 0
    %v5292 = vand.u32 %v483, 2139095040
    %v5293 = vshrl.u32 %v5292, 23
    %v5294 = vsub.s32 %v5293, 127
    %v5295 = vand.u32 2147483647, %v483
    %v5296 = vand.u32 %v5295, 8388607
    %v5297 = vor.u32 %v5296, 8388608
    %v5298 = vsub.s32 0, %v5297
    %v5299 = vadd.s32 %v5294, 1
    %vm5300 = vcmp.gt.s32.totalorder %v5299, 0
    %v5301 = vsel %vm5300, %v5299, 0
    %v5302 = vshrl.u32 %v5301, 5
    %v5303 = vand.u32 %v5301, 31
    %v5304 = vsub.s32 32, %v5303
    %v5305 = vshrl.u32 683565275, %v5304
    %v5306 = vshll.u32 683565275, %v5303
    %v5307 = vshrl.u32 2475754826, %v5304
    %v5308 = vor.u32 %v5306, %v5307
    %v5309 = vshll.u32 2475754826, %v5303
    %v5310 = vshrl.u32 2131351028, %v5304
    %v5311 = vor.u32 %v5309, %v5310
    %v5312 = vshll.u32 2131351028, %v5303
    %v5313 = vshrl.u32 2102212464, %v5304
    %v5314 = vor.u32 %v5312, %v5313
    %v5315 = vshll.u32 2102212464, %v5303
    %v5316 = vshrl.u32 920167782, %v5304
    %v5317 = vor.u32 %v5315, %v5316
    %v5318 = vshll.u32 920167782, %v5303
    %v5319 = vshrl.u32 1326507024, %v5304
    %v5320 = vor.u32 %v5318, %v5319
    %vm5321 = vcmp.lt.s32.totalorder %v5302, 1
    %vm5322 = vcmp.lt.s32.totalorder %v5302, 2
    %vm5323 = vcmp.lt.s32.totalorder %v5302, 3
    %vm5324 = vcmp.lt.s32.totalorder %v5302, 4
    %v5325 = vsel %vm5321, %v5305, %v5308
    %v5326 = vsel %vm5324, %v5314, 2102212464
    %v5327 = vsel %vm5323, %v5311, %v5326
    %v5328 = vsel %vm5322, %v5325, %v5327
    %v5329 = vsel %vm5321, %v5308, %v5311
    %v5330 = vsel %vm5324, %v5317, 920167782
    %v5331 = vsel %vm5323, %v5314, %v5330
    %v5332 = vsel %vm5322, %v5329, %v5331
    %v5333 = vsel %vm5321, %v5311, %v5314
    %v5334 = vsel %vm5324, %v5320, 1326507024
    %v5335 = vsel %vm5323, %v5317, %v5334
    %v5336 = vsel %vm5322, %v5333, %v5335
    %v5337 = vshll.u32 %v5297, 8
    %v5338 = vand.u32 %v5337, 65535
    %v5339 = vshrl.u32 %v5337, 16
    %v5340 = vand.u32 %v5336, 65535
    %v5341 = vshrl.u32 %v5336, 16
    %v5342 = vmul.u32 %v5338, %v5340
    %v5343 = vmul.u32 %v5338, %v5341
    %v5344 = vmul.u32 %v5339, %v5340
    %v5345 = vmul.u32 %v5339, %v5341
    %v5346 = vshll.u32 %v5343, 16
    %v5347 = vshrl.u32 %v5343, 16
    %v5348 = vshll.u32 %v5344, 16
    %v5349 = vshrl.u32 %v5344, 16
    %vm5350 = vc.u32 %v5342, %v5346
    %v5351 = vsel %vm5350, 1, 0
    %v5352 = vadd.s32 %v5342, %v5346
    %v5353 = vadd.s32 %v5345, %v5351
    %vm5354 = vc.u32 %v5352, %v5348
    %v5355 = vsel %vm5354, 1, 0
    %v5356 = vadd.s32 %v5352, %v5348
    %v5357 = vadd.s32 %v5353, %v5355
    %v5358 = vadd.s32 %v5357, %v5347
    %v5359 = vadd.s32 %v5358, %v5349
    %v5360 = vand.u32 %v5337, 65535
    %v5361 = vshrl.u32 %v5337, 16
    %v5362 = vand.u32 %v5332, 65535
    %v5363 = vshrl.u32 %v5332, 16
    %v5364 = vmul.u32 %v5360, %v5362
    %v5365 = vmul.u32 %v5360, %v5363
    %v5366 = vmul.u32 %v5361, %v5362
    %v5367 = vmul.u32 %v5361, %v5363
    %v5368 = vshll.u32 %v5365, 16
    %v5369 = vshrl.u32 %v5365, 16
    %v5370 = vshll.u32 %v5366, 16
    %v5371 = vshrl.u32 %v5366, 16
    %vm5372 = vc.u32 %v5364, %v5368
    %v5373 = vsel %vm5372, 1, 0
    %v5374 = vadd.s32 %v5364, %v5368
    %v5375 = vadd.s32 %v5367, %v5373
    %vm5376 = vc.u32 %v5374, %v5370
    %v5377 = vsel %vm5376, 1, 0
    %v5378 = vadd.s32 %v5374, %v5370
    %v5379 = vadd.s32 %v5375, %v5377
    %v5380 = vadd.s32 %v5379, %v5369
    %v5381 = vadd.s32 %v5380, %v5371
    %v5382 = vmul.u32 %v5337, %v5328
    %v5383 = vadd.s32 %v5359, %v5378
    %vm5384 = vc.u32 %v5359, %v5378
    %v5385 = vadd.s32 %v5381, 1
    %v5386 = vsel %vm5384, %v5385, %v5381
    %v5387 = vadd.s32 %v5382, %v5386
    %v5388 = vadd.s32 %v5387, 536870912
    %v5389 = vshrl.u32 %v5388, 30
    %v5390 = vshll.u32 %v5389, 30
    %v5391 = vsub.s32 %v5387, %v5390
    %vm5392 = vcmp.lt.s32.totalorder %v5391, 0
    %v5393 = vsub.s32 0, %v5391
    %v5394 = vsel %vm5392, %v5393, %v5391
    %v5395 = vclz %v5394
    %v5396 = vsub.s32 %v5395, 2
    %vm5397 = vcmp.gt.s32.totalorder 0, %v5396
    %v5398 = vsel %vm5397, 0, %v5396
    %v5399 = vsub.s32 32, %v5398
    %v5400 = vshll.u32 %v5391, %v5398
    %v5401 = vshrl.u32 %v5383, %v5399
    %v5402 = vor.u32 %v5400, %v5401
    %v5403 = vsub.s32 4294967266, %v5398
    %v5404 = vadd.s32 %v5403, 127
    %v5405 = vshll.u32 %v5404, 23
    %v5406 = vor.u32 4788187, %v5405
    %v5407 = vand.u32 2147483647, %v5406
    %v5409 = vcvt.s32.f32 %v5402
    %v5410 = vmul.f32 %v5409, %v5407
    %v5411 = vxor.u32 %v5410, 2147483648
    %v5412 = vsel %vm5291, %v5411, %v5410
    %v5413 = vsub.s32 4, %v5389
    %v5414 = vsel %vm5291, %v5413, %v5389
    %v5415 = vsel %vm5290, %v483, %v5412
    %v5416 = vsel %vm5290, 0, %v5414
    %v5417 = vmul.f32 %v5415, %v5415
    %v5418 = vmul.f32 %v5417, -0.001358992
    %v5419 = vadd.f32 %v5418, 0.041655596
    %v5420 = vmul.f32 %v5417, %v5419
    %v5421 = vadd.f32 %v5420, -0.4999988
    %v5422 = vmul.f32 %v5417, %v5421
    %v5423 = vadd.f32 1.0, %v5422
    %v5424 = vmul.f32 %v5415, %v5415
    %v5425 = vmul.f32 %v5424, -0.00019511016
    %v5426 = vadd.f32 %v5425, 0.008332121
    %v5427 = vmul.f32 %v5424, %v5426
    %v5428 = vadd.f32 %v5427, -0.16666654
    %v5429 = vmul.f32 %v5424, %v5428
    %v5430 = vadd.f32 %v5429, 1.0
    %v5431 = vmul.f32 %v5430, %v5415
    %vm5432 = vweird.f32 %v483
    %v5433 = vadd.s32 %v5416, 3
    %v5434 = vand.u32 %v5433, 3
    %vm5435 = vcmp.lt.s32.totalorder %v5434, 2
    %vm5436 = vcmp.eq.s32.totalorder %v5434, 0
    %v5437 = vxor.u32 %v5431, 2147483648
    %v5438 = vsel %vm5436, %v5423, %v5437
    %vm5439 = vcmp.eq.s32.totalorder %v5434, 2
    %v5440 = vxor.u32 %v5423, 2147483648
    %v5441 = vsel %vm5439, %v5440, %v5431
    %v5442 = vsel %vm5435, %v5438, %v5441
    %v5443 = vsel %vm5432, nan, %v5442
    %v5444 = vld [vmem:[%s3] sm:$0xff]
    %v5445 = vld [vmem:[%s3 + $0x8] sm:$0xff]
    %v5446 = vld [vmem:[%s3 + $0x10] sm:$0xff]
    %v5447 = vld [vmem:[%s3 + $0x18] sm:$0xff]
    %v5448 = vld [vmem:[%s3 + $0x20] sm:$0xff]
    %v5449 = vld [vmem:[%s3 + $0x28] sm:$0xff]
    %v5450 = vld [vmem:[%s3 + $0x30] sm:$0xff]
    %v5451 = vld [vmem:[%s3 + $0x38] sm:$0xff]
    %v5452 = vld [vmem:[%s3 + $0x40] sm:$0xff]
    %v5453 = vld [vmem:[%s3 + $0x48] sm:$0xff]
    %v5454 = vld [vmem:[%s3 + $0x50] sm:$0xff]
    %v5455 = vld [vmem:[%s3 + $0x58] sm:$0xff]
    %v5456 = vld [vmem:[%s3 + $0x60] sm:$0xff]
    %v5457 = vld [vmem:[%s3 + $0x68] sm:$0xff]
    %v5458 = vld [vmem:[%s3 + $0x70] sm:$0xff]
    %v5459 = vld [vmem:[%s3 + $0x78] sm:$0xff]
    %v5460 = vld [vmem:[%s4] sm:$0x1]
    %v5462 = vperm.slane %v5460, 0
    %5464 = vmatpush.msra.mxu0 %v5459
    %5465 = vmatpush.msra.mxu0 %v5458
    %5466 = vmatpush.msra.mxu0 %v5457
    %5467 = vmatpush.msra.mxu0 %v5456
    %5468 = vmatpush.msra.mxu0 %v5455
    %5469 = vmatpush.msra.mxu0 %v5454
    %5470 = vmatpush.msra.mxu0 %v5453
    %5471 = vmatpush.msra.mxu0 %v5452
    %5472 = vmatpush.msra.mxu0 %v5451
    %5473 = vmatpush.msra.mxu0 %v5450
    %5474 = vmatpush.msra.mxu0 %v5449
    %5475 = vmatpush.msra.mxu0 %v5448
    %5476 = vmatpush.msra.mxu0 %v5447
    %5477 = vmatpush.msra.mxu0 %v5446
    %5478 = vmatpush.msra.mxu0 %v5445
    %5479 = vmatpush.msra.mxu0 %v5444
    %5480 = vmatmul.f32.gmra.mxu0 %v638
    %v5481 = vpop.f32.mrf.mxu0
    %v5482 = vadd.f32 %v5462, %v5481
    %5483 = vmatmul.f32.gmra.mxu0 %v793
    %v5484 = vpop.f32.mrf.mxu0
    %v5485 = vadd.f32 %v5462, %v5484
    %5486 = vmatmul.f32.gmra.mxu0 %v948
    %v5487 = vpop.f32.mrf.mxu0
    %v5488 = vadd.f32 %v5462, %v5487
    %5489 = vmatmul.f32.gmra.mxu0 %v1103
    %v5490 = vpop.f32.mrf.mxu0
    %v5491 = vadd.f32 %v5462, %v5490
    %5492 = vmatmul.f32.gmra.mxu0 %v1258
    %v5493 = vpop.f32.mrf.mxu0
    %v5494 = vadd.f32 %v5462, %v5493
    %5495 = vmatmul.f32.gmra.mxu0 %v1413
    %v5496 = vpop.f32.mrf.mxu0
    %v5497 = vadd.f32 %v5462, %v5496
    %5498 = vmatmul.f32.gmra.mxu0 %v1568
    %v5499 = vpop.f32.mrf.mxu0
    %v5500 = vadd.f32 %v5462, %v5499
    %5501 = vmatmul.f32.gmra.mxu0 %v1723
    %v5502 = vpop.f32.mrf.mxu0
    %v5503 = vadd.f32 %v5462, %v5502
    %5504 = vmatmul.f32.gmra.mxu0 %v1878
    %v5505 = vpop.f32.mrf.mxu0
    %v5506 = vadd.f32 %v5462, %v5505
    %5507 = vmatmul.f32.gmra.mxu0 %v2033
    %v5508 = vpop.f32.mrf.mxu0
    %v5509 = vadd.f32 %v5462, %v5508
    %5510 = vmatmul.f32.gmra.mxu0 %v2188
    %v5511 = vpop.f32.mrf.mxu0
    %v5512 = vadd.f32 %v5462, %v5511
    %5513 = vmatmul.f32.gmra.mxu0 %v2343
    %v5514 = vpop.f32.mrf.mxu0
    %v5515 = vadd.f32 %v5462, %v5514
    %5516 = vmatmul.f32.gmra.mxu0 %v2498
    %v5517 = vpop.f32.mrf.mxu0
    %v5518 = vadd.f32 %v5462, %v5517
    %5519 = vmatmul.f32.gmra.mxu0 %v2653
    %v5520 = vpop.f32.mrf.mxu0
    %v5521 = vadd.f32 %v5462, %v5520
    %5522 = vmatmul.f32.gmra.mxu0 %v2808
    %v5523 = vpop.f32.mrf.mxu0
    %v5524 = vadd.f32 %v5462, %v5523
    %5525 = vmatmul.f32.gmra.mxu0 %v2963
    %v5526 = vpop.f32.mrf.mxu0
    %v5527 = vadd.f32 %v5462, %v5526
    %5528 = vmatmul.f32.gmra.mxu0 %v3118
    %v5529 = vpop.f32.mrf.mxu0
    %v5530 = vadd.f32 %v5462, %v5529
    %5531 = vmatmul.f32.gmra.mxu0 %v3273
    %v5532 = vpop.f32.mrf.mxu0
    %v5533 = vadd.f32 %v5462, %v5532
    %5534 = vmatmul.f32.gmra.mxu0 %v3428
    %v5535 = vpop.f32.mrf.mxu0
    %v5536 = vadd.f32 %v5462, %v5535
    %5537 = vmatmul.f32.gmra.mxu0 %v3583
    %v5538 = vpop.f32.mrf.mxu0
    %v5539 = vadd.f32 %v5462, %v5538
    %5540 = vmatmul.f32.gmra.mxu0 %v3738
    %v5541 = vpop.f32.mrf.mxu0
    %v5542 = vadd.f32 %v5462, %v5541
    %5543 = vmatmul.f32.gmra.mxu0 %v3893
    %v5544 = vpop.f32.mrf.mxu0
    %v5545 = vadd.f32 %v5462, %v5544
    %5546 = vmatmul.f32.gmra.mxu0 %v4048
    %v5547 = vpop.f32.mrf.mxu0
    %v5548 = vadd.f32 %v5462, %v5547
    %5549 = vmatmul.f32.gmra.mxu0 %v4203
    %v5550 = vpop.f32.mrf.mxu0
    %v5551 = vadd.f32 %v5462, %v5550
    %5552 = vmatmul.f32.gmra.mxu0 %v4358
    %v5553 = vpop.f32.mrf.mxu0
    %v5554 = vadd.f32 %v5462, %v5553
    %5555 = vmatmul.f32.gmra.mxu0 %v4513
    %v5556 = vpop.f32.mrf.mxu0
    %v5557 = vadd.f32 %v5462, %v5556
    %5558 = vmatmul.f32.gmra.mxu0 %v4668
    %v5559 = vpop.f32.mrf.mxu0
    %v5560 = vadd.f32 %v5462, %v5559
    %5561 = vmatmul.f32.gmra.mxu0 %v4823
    %v5562 = vpop.f32.mrf.mxu0
    %v5563 = vadd.f32 %v5462, %v5562
    %5564 = vmatmul.f32.gmra.mxu0 %v4978
    %v5565 = vpop.f32.mrf.mxu0
    %v5566 = vadd.f32 %v5462, %v5565
    %5567 = vmatmul.f32.gmra.mxu0 %v5133
    %v5568 = vpop.f32.mrf.mxu0
    %v5569 = vadd.f32 %v5462, %v5568
    %5570 = vmatmul.f32.gmra.mxu0 %v5288
    %v5571 = vpop.f32.mrf.mxu0
    %v5572 = vadd.f32 %v5462, %v5571
    %5573 = vmatmul.f32.gmra.mxu0 %v5443
    %v5574 = vpop.f32.mrf.mxu0
    %v5575 = vadd.f32 %v5462, %v5574
    %5576 = vdwg.mxu0
    %v5577 = vand.u32 2147483647, %v5482
    %vm5578 = vcmp.le.f32.partialorder %v5577, 0.7853982
    %vm5579 = vcmp.lt.s32.totalorder %v5482, 0
    %v5580 = vand.u32 %v5482, 2139095040
    %v5581 = vshrl.u32 %v5580, 23
    %v5582 = vsub.s32 %v5581, 127
    %v5583 = vand.u32 2147483647, %v5482
    %v5584 = vand.u32 %v5583, 8388607
    %v5585 = vor.u32 %v5584, 8388608
    %v5586 = vsub.s32 0, %v5585
    %v5587 = vadd.s32 %v5582, 1
    %vm5588 = vcmp.gt.s32.totalorder %v5587, 0
    %v5589 = vsel %vm5588, %v5587, 0
    %v5590 = vshrl.u32 %v5589, 5
    %v5591 = vand.u32 %v5589, 31
    %v5592 = vsub.s32 32, %v5591
    %v5593 = vshrl.u32 683565275, %v5592
    %v5594 = vshll.u32 683565275, %v5591
    %v5595 = vshrl.u32 2475754826, %v5592
    %v5596 = vor.u32 %v5594, %v5595
    %v5597 = vshll.u32 2475754826, %v5591
    %v5598 = vshrl.u32 2131351028, %v5592
    %v5599 = vor.u32 %v5597, %v5598
    %v5600 = vshll.u32 2131351028, %v5591
    %v5601 = vshrl.u32 2102212464, %v5592
    %v5602 = vor.u32 %v5600, %v5601
    %v5603 = vshll.u32 2102212464, %v5591
    %v5604 = vshrl.u32 920167782, %v5592
    %v5605 = vor.u32 %v5603, %v5604
    %v5606 = vshll.u32 920167782, %v5591
    %v5607 = vshrl.u32 1326507024, %v5592
    %v5608 = vor.u32 %v5606, %v5607
    %vm5609 = vcmp.lt.s32.totalorder %v5590, 1
    %vm5610 = vcmp.lt.s32.totalorder %v5590, 2
    %vm5611 = vcmp.lt.s32.totalorder %v5590, 3
    %vm5612 = vcmp.lt.s32.totalorder %v5590, 4
    %v5613 = vsel %vm5609, %v5593, %v5596
    %v5614 = vsel %vm5612, %v5602, 2102212464
    %v5615 = vsel %vm5611, %v5599, %v5614
    %v5616 = vsel %vm5610, %v5613, %v5615
    %v5617 = vsel %vm5609, %v5596, %v5599
    %v5618 = vsel %vm5612, %v5605, 920167782
    %v5619 = vsel %vm5611, %v5602, %v5618
    %v5620 = vsel %vm5610, %v5617, %v5619
    %v5621 = vsel %vm5609, %v5599, %v5602
    %v5622 = vsel %vm5612, %v5608, 1326507024
    %v5623 = vsel %vm5611, %v5605, %v5622
    %v5624 = vsel %vm5610, %v5621, %v5623
    %v5625 = vshll.u32 %v5585, 8
    %v5626 = vand.u32 %v5625, 65535
    %v5627 = vshrl.u32 %v5625, 16
    %v5628 = vand.u32 %v5624, 65535
    %v5629 = vshrl.u32 %v5624, 16
    %v5630 = vmul.u32 %v5626, %v5628
    %v5631 = vmul.u32 %v5626, %v5629
    %v5632 = vmul.u32 %v5627, %v5628
    %v5633 = vmul.u32 %v5627, %v5629
    %v5634 = vshll.u32 %v5631, 16
    %v5635 = vshrl.u32 %v5631, 16
    %v5636 = vshll.u32 %v5632, 16
    %v5637 = vshrl.u32 %v5632, 16
    %vm5638 = vc.u32 %v5630, %v5634
    %v5639 = vsel %vm5638, 1, 0
    %v5640 = vadd.s32 %v5630, %v5634
    %v5641 = vadd.s32 %v5633, %v5639
    %vm5642 = vc.u32 %v5640, %v5636
    %v5643 = vsel %vm5642, 1, 0
    %v5644 = vadd.s32 %v5640, %v5636
    %v5645 = vadd.s32 %v5641, %v5643
    %v5646 = vadd.s32 %v5645, %v5635
    %v5647 = vadd.s32 %v5646, %v5637
    %v5648 = vand.u32 %v5625, 65535
    %v5649 = vshrl.u32 %v5625, 16
    %v5650 = vand.u32 %v5620, 65535
    %v5651 = vshrl.u32 %v5620, 16
    %v5652 = vmul.u32 %v5648, %v5650
    %v5653 = vmul.u32 %v5648, %v5651
    %v5654 = vmul.u32 %v5649, %v5650
    %v5655 = vmul.u32 %v5649, %v5651
    %v5656 = vshll.u32 %v5653, 16
    %v5657 = vshrl.u32 %v5653, 16
    %v5658 = vshll.u32 %v5654, 16
    %v5659 = vshrl.u32 %v5654, 16
    %vm5660 = vc.u32 %v5652, %v5656
    %v5661 = vsel %vm5660, 1, 0
    %v5662 = vadd.s32 %v5652, %v5656
    %v5663 = vadd.s32 %v5655, %v5661
    %vm5664 = vc.u32 %v5662, %v5658
    %v5665 = vsel %vm5664, 1, 0
    %v5666 = vadd.s32 %v5662, %v5658
    %v5667 = vadd.s32 %v5663, %v5665
    %v5668 = vadd.s32 %v5667, %v5657
    %v5669 = vadd.s32 %v5668, %v5659
    %v5670 = vmul.u32 %v5625, %v5616
    %v5671 = vadd.s32 %v5647, %v5666
    %vm5672 = vc.u32 %v5647, %v5666
    %v5673 = vadd.s32 %v5669, 1
    %v5674 = vsel %vm5672, %v5673, %v5669
    %v5675 = vadd.s32 %v5670, %v5674
    %v5676 = vadd.s32 %v5675, 536870912
    %v5677 = vshrl.u32 %v5676, 30
    %v5678 = vshll.u32 %v5677, 30
    %v5679 = vsub.s32 %v5675, %v5678
    %vm5680 = vcmp.lt.s32.totalorder %v5679, 0
    %v5681 = vsub.s32 0, %v5679
    %v5682 = vsel %vm5680, %v5681, %v5679
    %v5683 = vclz %v5682
    %v5684 = vsub.s32 %v5683, 2
    %vm5685 = vcmp.gt.s32.totalorder 0, %v5684
    %v5686 = vsel %vm5685, 0, %v5684
    %v5687 = vsub.s32 32, %v5686
    %v5688 = vshll.u32 %v5679, %v5686
    %v5689 = vshrl.u32 %v5671, %v5687
    %v5690 = vor.u32 %v5688, %v5689
    %v5691 = vsub.s32 4294967266, %v5686
    %v5692 = vadd.s32 %v5691, 127
    %v5693 = vshll.u32 %v5692, 23
    %v5694 = vor.u32 4788187, %v5693
    %v5695 = vand.u32 2147483647, %v5694
    %v5697 = vcvt.s32.f32 %v5690
    %v5698 = vmul.f32 %v5697, %v5695
    %v5699 = vxor.u32 %v5698, 2147483648
    %v5700 = vsel %vm5579, %v5699, %v5698
    %v5701 = vsub.s32 4, %v5677
    %v5702 = vsel %vm5579, %v5701, %v5677
    %v5703 = vsel %vm5578, %v5482, %v5700
    %v5704 = vsel %vm5578, 0, %v5702
    %v5705 = vmul.f32 %v5703, %v5703
    %v5706 = vmul.f32 %v5705, -0.001358992
    %v5707 = vadd.f32 %v5706, 0.041655596
    %v5708 = vmul.f32 %v5705, %v5707
    %v5709 = vadd.f32 %v5708, -0.4999988
    %v5710 = vmul.f32 %v5705, %v5709
    %v5711 = vadd.f32 1.0, %v5710
    %v5712 = vmul.f32 %v5703, %v5703
    %v5713 = vmul.f32 %v5712, -0.00019511016
    %v5714 = vadd.f32 %v5713, 0.008332121
    %v5715 = vmul.f32 %v5712, %v5714
    %v5716 = vadd.f32 %v5715, -0.16666654
    %v5717 = vmul.f32 %v5712, %v5716
    %v5718 = vadd.f32 %v5717, 1.0
    %v5719 = vmul.f32 %v5718, %v5703
    %vm5720 = vweird.f32 %v5482
    %v5721 = vadd.s32 %v5704, 3
    %v5722 = vand.u32 %v5721, 3
    %vm5723 = vcmp.lt.s32.totalorder %v5722, 2
    %vm5724 = vcmp.eq.s32.totalorder %v5722, 0
    %v5725 = vxor.u32 %v5719, 2147483648
    %v5726 = vsel %vm5724, %v5711, %v5725
    %vm5727 = vcmp.eq.s32.totalorder %v5722, 2
    %v5728 = vxor.u32 %v5711, 2147483648
    %v5729 = vsel %vm5727, %v5728, %v5719
    %v5730 = vsel %vm5723, %v5726, %v5729
    %v5731 = vsel %vm5720, nan, %v5730
    %v5732 = vand.u32 2147483647, %v5485
    %vm5733 = vcmp.le.f32.partialorder %v5732, 0.7853982
    %vm5734 = vcmp.lt.s32.totalorder %v5485, 0
    %v5735 = vand.u32 %v5485, 2139095040
    %v5736 = vshrl.u32 %v5735, 23
    %v5737 = vsub.s32 %v5736, 127
    %v5738 = vand.u32 2147483647, %v5485
    %v5739 = vand.u32 %v5738, 8388607
    %v5740 = vor.u32 %v5739, 8388608
    %v5741 = vsub.s32 0, %v5740
    %v5742 = vadd.s32 %v5737, 1
    %vm5743 = vcmp.gt.s32.totalorder %v5742, 0
    %v5744 = vsel %vm5743, %v5742, 0
    %v5745 = vshrl.u32 %v5744, 5
    %v5746 = vand.u32 %v5744, 31
    %v5747 = vsub.s32 32, %v5746
    %v5748 = vshrl.u32 683565275, %v5747
    %v5749 = vshll.u32 683565275, %v5746
    %v5750 = vshrl.u32 2475754826, %v5747
    %v5751 = vor.u32 %v5749, %v5750
    %v5752 = vshll.u32 2475754826, %v5746
    %v5753 = vshrl.u32 2131351028, %v5747
    %v5754 = vor.u32 %v5752, %v5753
    %v5755 = vshll.u32 2131351028, %v5746
    %v5756 = vshrl.u32 2102212464, %v5747
    %v5757 = vor.u32 %v5755, %v5756
    %v5758 = vshll.u32 2102212464, %v5746
    %v5759 = vshrl.u32 920167782, %v5747
    %v5760 = vor.u32 %v5758, %v5759
    %v5761 = vshll.u32 920167782, %v5746
    %v5762 = vshrl.u32 1326507024, %v5747
    %v5763 = vor.u32 %v5761, %v5762
    %vm5764 = vcmp.lt.s32.totalorder %v5745, 1
    %vm5765 = vcmp.lt.s32.totalorder %v5745, 2
    %vm5766 = vcmp.lt.s32.totalorder %v5745, 3
    %vm5767 = vcmp.lt.s32.totalorder %v5745, 4
    %v5768 = vsel %vm5764, %v5748, %v5751
    %v5769 = vsel %vm5767, %v5757, 2102212464
    %v5770 = vsel %vm5766, %v5754, %v5769
    %v5771 = vsel %vm5765, %v5768, %v5770
    %v5772 = vsel %vm5764, %v5751, %v5754
    %v5773 = vsel %vm5767, %v5760, 920167782
    %v5774 = vsel %vm5766, %v5757, %v5773
    %v5775 = vsel %vm5765, %v5772, %v5774
    %v5776 = vsel %vm5764, %v5754, %v5757
    %v5777 = vsel %vm5767, %v5763, 1326507024
    %v5778 = vsel %vm5766, %v5760, %v5777
    %v5779 = vsel %vm5765, %v5776, %v5778
    %v5780 = vshll.u32 %v5740, 8
    %v5781 = vand.u32 %v5780, 65535
    %v5782 = vshrl.u32 %v5780, 16
    %v5783 = vand.u32 %v5779, 65535
    %v5784 = vshrl.u32 %v5779, 16
    %v5785 = vmul.u32 %v5781, %v5783
    %v5786 = vmul.u32 %v5781, %v5784
    %v5787 = vmul.u32 %v5782, %v5783
    %v5788 = vmul.u32 %v5782, %v5784
    %v5789 = vshll.u32 %v5786, 16
    %v5790 = vshrl.u32 %v5786, 16
    %v5791 = vshll.u32 %v5787, 16
    %v5792 = vshrl.u32 %v5787, 16
    %vm5793 = vc.u32 %v5785, %v5789
    %v5794 = vsel %vm5793, 1, 0
    %v5795 = vadd.s32 %v5785, %v5789
    %v5796 = vadd.s32 %v5788, %v5794
    %vm5797 = vc.u32 %v5795, %v5791
    %v5798 = vsel %vm5797, 1, 0
    %v5799 = vadd.s32 %v5795, %v5791
    %v5800 = vadd.s32 %v5796, %v5798
    %v5801 = vadd.s32 %v5800, %v5790
    %v5802 = vadd.s32 %v5801, %v5792
    %v5803 = vand.u32 %v5780, 65535
    %v5804 = vshrl.u32 %v5780, 16
    %v5805 = vand.u32 %v5775, 65535
    %v5806 = vshrl.u32 %v5775, 16
    %v5807 = vmul.u32 %v5803, %v5805
    %v5808 = vmul.u32 %v5803, %v5806
    %v5809 = vmul.u32 %v5804, %v5805
    %v5810 = vmul.u32 %v5804, %v5806
    %v5811 = vshll.u32 %v5808, 16
    %v5812 = vshrl.u32 %v5808, 16
    %v5813 = vshll.u32 %v5809, 16
    %v5814 = vshrl.u32 %v5809, 16
    %vm5815 = vc.u32 %v5807, %v5811
    %v5816 = vsel %vm5815, 1, 0
    %v5817 = vadd.s32 %v5807, %v5811
    %v5818 = vadd.s32 %v5810, %v5816
    %vm5819 = vc.u32 %v5817, %v5813
    %v5820 = vsel %vm5819, 1, 0
    %v5821 = vadd.s32 %v5817, %v5813
    %v5822 = vadd.s32 %v5818, %v5820
    %v5823 = vadd.s32 %v5822, %v5812
    %v5824 = vadd.s32 %v5823, %v5814
    %v5825 = vmul.u32 %v5780, %v5771
    %v5826 = vadd.s32 %v5802, %v5821
    %vm5827 = vc.u32 %v5802, %v5821
    %v5828 = vadd.s32 %v5824, 1
    %v5829 = vsel %vm5827, %v5828, %v5824
    %v5830 = vadd.s32 %v5825, %v5829
    %v5831 = vadd.s32 %v5830, 536870912
    %v5832 = vshrl.u32 %v5831, 30
    %v5833 = vshll.u32 %v5832, 30
    %v5834 = vsub.s32 %v5830, %v5833
    %vm5835 = vcmp.lt.s32.totalorder %v5834, 0
    %v5836 = vsub.s32 0, %v5834
    %v5837 = vsel %vm5835, %v5836, %v5834
    %v5838 = vclz %v5837
    %v5839 = vsub.s32 %v5838, 2
    %vm5840 = vcmp.gt.s32.totalorder 0, %v5839
    %v5841 = vsel %vm5840, 0, %v5839
    %v5842 = vsub.s32 32, %v5841
    %v5843 = vshll.u32 %v5834, %v5841
    %v5844 = vshrl.u32 %v5826, %v5842
    %v5845 = vor.u32 %v5843, %v5844
    %v5846 = vsub.s32 4294967266, %v5841
    %v5847 = vadd.s32 %v5846, 127
    %v5848 = vshll.u32 %v5847, 23
    %v5849 = vor.u32 4788187, %v5848
    %v5850 = vand.u32 2147483647, %v5849
    %v5852 = vcvt.s32.f32 %v5845
    %v5853 = vmul.f32 %v5852, %v5850
    %v5854 = vxor.u32 %v5853, 2147483648
    %v5855 = vsel %vm5734, %v5854, %v5853
    %v5856 = vsub.s32 4, %v5832
    %v5857 = vsel %vm5734, %v5856, %v5832
    %v5858 = vsel %vm5733, %v5485, %v5855
    %v5859 = vsel %vm5733, 0, %v5857
    %v5860 = vmul.f32 %v5858, %v5858
    %v5861 = vmul.f32 %v5860, -0.001358992
    %v5862 = vadd.f32 %v5861, 0.041655596
    %v5863 = vmul.f32 %v5860, %v5862
    %v5864 = vadd.f32 %v5863, -0.4999988
    %v5865 = vmul.f32 %v5860, %v5864
    %v5866 = vadd.f32 1.0, %v5865
    %v5867 = vmul.f32 %v5858, %v5858
    %v5868 = vmul.f32 %v5867, -0.00019511016
    %v5869 = vadd.f32 %v5868, 0.008332121
    %v5870 = vmul.f32 %v5867, %v5869
    %v5871 = vadd.f32 %v5870, -0.16666654
    %v5872 = vmul.f32 %v5867, %v5871
    %v5873 = vadd.f32 %v5872, 1.0
    %v5874 = vmul.f32 %v5873, %v5858
    %vm5875 = vweird.f32 %v5485
    %v5876 = vadd.s32 %v5859, 3
    %v5877 = vand.u32 %v5876, 3
    %vm5878 = vcmp.lt.s32.totalorder %v5877, 2
    %vm5879 = vcmp.eq.s32.totalorder %v5877, 0
    %v5880 = vxor.u32 %v5874, 2147483648
    %v5881 = vsel %vm5879, %v5866, %v5880
    %vm5882 = vcmp.eq.s32.totalorder %v5877, 2
    %v5883 = vxor.u32 %v5866, 2147483648
    %v5884 = vsel %vm5882, %v5883, %v5874
    %v5885 = vsel %vm5878, %v5881, %v5884
    %v5886 = vsel %vm5875, nan, %v5885
    %v5887 = vand.u32 2147483647, %v5488
    %vm5888 = vcmp.le.f32.partialorder %v5887, 0.7853982
    %vm5889 = vcmp.lt.s32.totalorder %v5488, 0
    %v5890 = vand.u32 %v5488, 2139095040
    %v5891 = vshrl.u32 %v5890, 23
    %v5892 = vsub.s32 %v5891, 127
    %v5893 = vand.u32 2147483647, %v5488
    %v5894 = vand.u32 %v5893, 8388607
    %v5895 = vor.u32 %v5894, 8388608
    %v5896 = vsub.s32 0, %v5895
    %v5897 = vadd.s32 %v5892, 1
    %vm5898 = vcmp.gt.s32.totalorder %v5897, 0
    %v5899 = vsel %vm5898, %v5897, 0
    %v5900 = vshrl.u32 %v5899, 5
    %v5901 = vand.u32 %v5899, 31
    %v5902 = vsub.s32 32, %v5901
    %v5903 = vshrl.u32 683565275, %v5902
    %v5904 = vshll.u32 683565275, %v5901
    %v5905 = vshrl.u32 2475754826, %v5902
    %v5906 = vor.u32 %v5904, %v5905
    %v5907 = vshll.u32 2475754826, %v5901
    %v5908 = vshrl.u32 2131351028, %v5902
    %v5909 = vor.u32 %v5907, %v5908
    %v5910 = vshll.u32 2131351028, %v5901
    %v5911 = vshrl.u32 2102212464, %v5902
    %v5912 = vor.u32 %v5910, %v5911
    %v5913 = vshll.u32 2102212464, %v5901
    %v5914 = vshrl.u32 920167782, %v5902
    %v5915 = vor.u32 %v5913, %v5914
    %v5916 = vshll.u32 920167782, %v5901
    %v5917 = vshrl.u32 1326507024, %v5902
    %v5918 = vor.u32 %v5916, %v5917
    %vm5919 = vcmp.lt.s32.totalorder %v5900, 1
    %vm5920 = vcmp.lt.s32.totalorder %v5900, 2
    %vm5921 = vcmp.lt.s32.totalorder %v5900, 3
    %vm5922 = vcmp.lt.s32.totalorder %v5900, 4
    %v5923 = vsel %vm5919, %v5903, %v5906
    %v5924 = vsel %vm5922, %v5912, 2102212464
    %v5925 = vsel %vm5921, %v5909, %v5924
    %v5926 = vsel %vm5920, %v5923, %v5925
    %v5927 = vsel %vm5919, %v5906, %v5909
    %v5928 = vsel %vm5922, %v5915, 920167782
    %v5929 = vsel %vm5921, %v5912, %v5928
    %v5930 = vsel %vm5920, %v5927, %v5929
    %v5931 = vsel %vm5919, %v5909, %v5912
    %v5932 = vsel %vm5922, %v5918, 1326507024
    %v5933 = vsel %vm5921, %v5915, %v5932
    %v5934 = vsel %vm5920, %v5931, %v5933
    %v5935 = vshll.u32 %v5895, 8
    %v5936 = vand.u32 %v5935, 65535
    %v5937 = vshrl.u32 %v5935, 16
    %v5938 = vand.u32 %v5934, 65535
    %v5939 = vshrl.u32 %v5934, 16
    %v5940 = vmul.u32 %v5936, %v5938
    %v5941 = vmul.u32 %v5936, %v5939
    %v5942 = vmul.u32 %v5937, %v5938
    %v5943 = vmul.u32 %v5937, %v5939
    %v5944 = vshll.u32 %v5941, 16
    %v5945 = vshrl.u32 %v5941, 16
    %v5946 = vshll.u32 %v5942, 16
    %v5947 = vshrl.u32 %v5942, 16
    %vm5948 = vc.u32 %v5940, %v5944
    %v5949 = vsel %vm5948, 1, 0
    %v5950 = vadd.s32 %v5940, %v5944
    %v5951 = vadd.s32 %v5943, %v5949
    %vm5952 = vc.u32 %v5950, %v5946
    %v5953 = vsel %vm5952, 1, 0
    %v5954 = vadd.s32 %v5950, %v5946
    %v5955 = vadd.s32 %v5951, %v5953
    %v5956 = vadd.s32 %v5955, %v5945
    %v5957 = vadd.s32 %v5956, %v5947
    %v5958 = vand.u32 %v5935, 65535
    %v5959 = vshrl.u32 %v5935, 16
    %v5960 = vand.u32 %v5930, 65535
    %v5961 = vshrl.u32 %v5930, 16
    %v5962 = vmul.u32 %v5958, %v5960
    %v5963 = vmul.u32 %v5958, %v5961
    %v5964 = vmul.u32 %v5959, %v5960
    %v5965 = vmul.u32 %v5959, %v5961
    %v5966 = vshll.u32 %v5963, 16
    %v5967 = vshrl.u32 %v5963, 16
    %v5968 = vshll.u32 %v5964, 16
    %v5969 = vshrl.u32 %v5964, 16
    %vm5970 = vc.u32 %v5962, %v5966
    %v5971 = vsel %vm5970, 1, 0
    %v5972 = vadd.s32 %v5962, %v5966
    %v5973 = vadd.s32 %v5965, %v5971
    %vm5974 = vc.u32 %v5972, %v5968
    %v5975 = vsel %vm5974, 1, 0
    %v5976 = vadd.s32 %v5972, %v5968
    %v5977 = vadd.s32 %v5973, %v5975
    %v5978 = vadd.s32 %v5977, %v5967
    %v5979 = vadd.s32 %v5978, %v5969
    %v5980 = vmul.u32 %v5935, %v5926
    %v5981 = vadd.s32 %v5957, %v5976
    %vm5982 = vc.u32 %v5957, %v5976
    %v5983 = vadd.s32 %v5979, 1
    %v5984 = vsel %vm5982, %v5983, %v5979
    %v5985 = vadd.s32 %v5980, %v5984
    %v5986 = vadd.s32 %v5985, 536870912
    %v5987 = vshrl.u32 %v5986, 30
    %v5988 = vshll.u32 %v5987, 30
    %v5989 = vsub.s32 %v5985, %v5988
    %vm5990 = vcmp.lt.s32.totalorder %v5989, 0
    %v5991 = vsub.s32 0, %v5989
    %v5992 = vsel %vm5990, %v5991, %v5989
    %v5993 = vclz %v5992
    %v5994 = vsub.s32 %v5993, 2
    %vm5995 = vcmp.gt.s32.totalorder 0, %v5994
    %v5996 = vsel %vm5995, 0, %v5994
    %v5997 = vsub.s32 32, %v5996
    %v5998 = vshll.u32 %v5989, %v5996
    %v5999 = vshrl.u32 %v5981, %v5997
    %v6000 = vor.u32 %v5998, %v5999
    %v6001 = vsub.s32 4294967266, %v5996
    %v6002 = vadd.s32 %v6001, 127
    %v6003 = vshll.u32 %v6002, 23
    %v6004 = vor.u32 4788187, %v6003
    %v6005 = vand.u32 2147483647, %v6004
    %v6007 = vcvt.s32.f32 %v6000
    %v6008 = vmul.f32 %v6007, %v6005
    %v6009 = vxor.u32 %v6008, 2147483648
    %v6010 = vsel %vm5889, %v6009, %v6008
    %v6011 = vsub.s32 4, %v5987
    %v6012 = vsel %vm5889, %v6011, %v5987
    %v6013 = vsel %vm5888, %v5488, %v6010
    %v6014 = vsel %vm5888, 0, %v6012
    %v6015 = vmul.f32 %v6013, %v6013
    %v6016 = vmul.f32 %v6015, -0.001358992
    %v6017 = vadd.f32 %v6016, 0.041655596
    %v6018 = vmul.f32 %v6015, %v6017
    %v6019 = vadd.f32 %v6018, -0.4999988
    %v6020 = vmul.f32 %v6015, %v6019
    %v6021 = vadd.f32 1.0, %v6020
    %v6022 = vmul.f32 %v6013, %v6013
    %v6023 = vmul.f32 %v6022, -0.00019511016
    %v6024 = vadd.f32 %v6023, 0.008332121
    %v6025 = vmul.f32 %v6022, %v6024
    %v6026 = vadd.f32 %v6025, -0.16666654
    %v6027 = vmul.f32 %v6022, %v6026
    %v6028 = vadd.f32 %v6027, 1.0
    %v6029 = vmul.f32 %v6028, %v6013
    %vm6030 = vweird.f32 %v5488
    %v6031 = vadd.s32 %v6014, 3
    %v6032 = vand.u32 %v6031, 3
    %vm6033 = vcmp.lt.s32.totalorder %v6032, 2
    %vm6034 = vcmp.eq.s32.totalorder %v6032, 0
    %v6035 = vxor.u32 %v6029, 2147483648
    %v6036 = vsel %vm6034, %v6021, %v6035
    %vm6037 = vcmp.eq.s32.totalorder %v6032, 2
    %v6038 = vxor.u32 %v6021, 2147483648
    %v6039 = vsel %vm6037, %v6038, %v6029
    %v6040 = vsel %vm6033, %v6036, %v6039
    %v6041 = vsel %vm6030, nan, %v6040
    %v6042 = vand.u32 2147483647, %v5491
    %vm6043 = vcmp.le.f32.partialorder %v6042, 0.7853982
    %vm6044 = vcmp.lt.s32.totalorder %v5491, 0
    %v6045 = vand.u32 %v5491, 2139095040
    %v6046 = vshrl.u32 %v6045, 23
    %v6047 = vsub.s32 %v6046, 127
    %v6048 = vand.u32 2147483647, %v5491
    %v6049 = vand.u32 %v6048, 8388607
    %v6050 = vor.u32 %v6049, 8388608
    %v6051 = vsub.s32 0, %v6050
    %v6052 = vadd.s32 %v6047, 1
    %vm6053 = vcmp.gt.s32.totalorder %v6052, 0
    %v6054 = vsel %vm6053, %v6052, 0
    %v6055 = vshrl.u32 %v6054, 5
    %v6056 = vand.u32 %v6054, 31
    %v6057 = vsub.s32 32, %v6056
    %v6058 = vshrl.u32 683565275, %v6057
    %v6059 = vshll.u32 683565275, %v6056
    %v6060 = vshrl.u32 2475754826, %v6057
    %v6061 = vor.u32 %v6059, %v6060
    %v6062 = vshll.u32 2475754826, %v6056
    %v6063 = vshrl.u32 2131351028, %v6057
    %v6064 = vor.u32 %v6062, %v6063
    %v6065 = vshll.u32 2131351028, %v6056
    %v6066 = vshrl.u32 2102212464, %v6057
    %v6067 = vor.u32 %v6065, %v6066
    %v6068 = vshll.u32 2102212464, %v6056
    %v6069 = vshrl.u32 920167782, %v6057
    %v6070 = vor.u32 %v6068, %v6069
    %v6071 = vshll.u32 920167782, %v6056
    %v6072 = vshrl.u32 1326507024, %v6057
    %v6073 = vor.u32 %v6071, %v6072
    %vm6074 = vcmp.lt.s32.totalorder %v6055, 1
    %vm6075 = vcmp.lt.s32.totalorder %v6055, 2
    %vm6076 = vcmp.lt.s32.totalorder %v6055, 3
    %vm6077 = vcmp.lt.s32.totalorder %v6055, 4
    %v6078 = vsel %vm6074, %v6058, %v6061
    %v6079 = vsel %vm6077, %v6067, 2102212464
    %v6080 = vsel %vm6076, %v6064, %v6079
    %v6081 = vsel %vm6075, %v6078, %v6080
    %v6082 = vsel %vm6074, %v6061, %v6064
    %v6083 = vsel %vm6077, %v6070, 920167782
    %v6084 = vsel %vm6076, %v6067, %v6083
    %v6085 = vsel %vm6075, %v6082, %v6084
    %v6086 = vsel %vm6074, %v6064, %v6067
    %v6087 = vsel %vm6077, %v6073, 1326507024
    %v6088 = vsel %vm6076, %v6070, %v6087
    %v6089 = vsel %vm6075, %v6086, %v6088
    %v6090 = vshll.u32 %v6050, 8
    %v6091 = vand.u32 %v6090, 65535
    %v6092 = vshrl.u32 %v6090, 16
    %v6093 = vand.u32 %v6089, 65535
    %v6094 = vshrl.u32 %v6089, 16
    %v6095 = vmul.u32 %v6091, %v6093
    %v6096 = vmul.u32 %v6091, %v6094
    %v6097 = vmul.u32 %v6092, %v6093
    %v6098 = vmul.u32 %v6092, %v6094
    %v6099 = vshll.u32 %v6096, 16
    %v6100 = vshrl.u32 %v6096, 16
    %v6101 = vshll.u32 %v6097, 16
    %v6102 = vshrl.u32 %v6097, 16
    %vm6103 = vc.u32 %v6095, %v6099
    %v6104 = vsel %vm6103, 1, 0
    %v6105 = vadd.s32 %v6095, %v6099
    %v6106 = vadd.s32 %v6098, %v6104
    %vm6107 = vc.u32 %v6105, %v6101
    %v6108 = vsel %vm6107, 1, 0
    %v6109 = vadd.s32 %v6105, %v6101
    %v6110 = vadd.s32 %v6106, %v6108
    %v6111 = vadd.s32 %v6110, %v6100
    %v6112 = vadd.s32 %v6111, %v6102
    %v6113 = vand.u32 %v6090, 65535
    %v6114 = vshrl.u32 %v6090, 16
    %v6115 = vand.u32 %v6085, 65535
    %v6116 = vshrl.u32 %v6085, 16
    %v6117 = vmul.u32 %v6113, %v6115
    %v6118 = vmul.u32 %v6113, %v6116
    %v6119 = vmul.u32 %v6114, %v6115
    %v6120 = vmul.u32 %v6114, %v6116
    %v6121 = vshll.u32 %v6118, 16
    %v6122 = vshrl.u32 %v6118, 16
    %v6123 = vshll.u32 %v6119, 16
    %v6124 = vshrl.u32 %v6119, 16
    %vm6125 = vc.u32 %v6117, %v6121
    %v6126 = vsel %vm6125, 1, 0
    %v6127 = vadd.s32 %v6117, %v6121
    %v6128 = vadd.s32 %v6120, %v6126
    %vm6129 = vc.u32 %v6127, %v6123
    %v6130 = vsel %vm6129, 1, 0
    %v6131 = vadd.s32 %v6127, %v6123
    %v6132 = vadd.s32 %v6128, %v6130
    %v6133 = vadd.s32 %v6132, %v6122
    %v6134 = vadd.s32 %v6133, %v6124
    %v6135 = vmul.u32 %v6090, %v6081
    %v6136 = vadd.s32 %v6112, %v6131
    %vm6137 = vc.u32 %v6112, %v6131
    %v6138 = vadd.s32 %v6134, 1
    %v6139 = vsel %vm6137, %v6138, %v6134
    %v6140 = vadd.s32 %v6135, %v6139
    %v6141 = vadd.s32 %v6140, 536870912
    %v6142 = vshrl.u32 %v6141, 30
    %v6143 = vshll.u32 %v6142, 30
    %v6144 = vsub.s32 %v6140, %v6143
    %vm6145 = vcmp.lt.s32.totalorder %v6144, 0
    %v6146 = vsub.s32 0, %v6144
    %v6147 = vsel %vm6145, %v6146, %v6144
    %v6148 = vclz %v6147
    %v6149 = vsub.s32 %v6148, 2
    %vm6150 = vcmp.gt.s32.totalorder 0, %v6149
    %v6151 = vsel %vm6150, 0, %v6149
    %v6152 = vsub.s32 32, %v6151
    %v6153 = vshll.u32 %v6144, %v6151
    %v6154 = vshrl.u32 %v6136, %v6152
    %v6155 = vor.u32 %v6153, %v6154
    %v6156 = vsub.s32 4294967266, %v6151
    %v6157 = vadd.s32 %v6156, 127
    %v6158 = vshll.u32 %v6157, 23
    %v6159 = vor.u32 4788187, %v6158
    %v6160 = vand.u32 2147483647, %v6159
    %v6162 = vcvt.s32.f32 %v6155
    %v6163 = vmul.f32 %v6162, %v6160
    %v6164 = vxor.u32 %v6163, 2147483648
    %v6165 = vsel %vm6044, %v6164, %v6163
    %v6166 = vsub.s32 4, %v6142
    %v6167 = vsel %vm6044, %v6166, %v6142
    %v6168 = vsel %vm6043, %v5491, %v6165
    %v6169 = vsel %vm6043, 0, %v6167
    %v6170 = vmul.f32 %v6168, %v6168
    %v6171 = vmul.f32 %v6170, -0.001358992
    %v6172 = vadd.f32 %v6171, 0.041655596
    %v6173 = vmul.f32 %v6170, %v6172
    %v6174 = vadd.f32 %v6173, -0.4999988
    %v6175 = vmul.f32 %v6170, %v6174
    %v6176 = vadd.f32 1.0, %v6175
    %v6177 = vmul.f32 %v6168, %v6168
    %v6178 = vmul.f32 %v6177, -0.00019511016
    %v6179 = vadd.f32 %v6178, 0.008332121
    %v6180 = vmul.f32 %v6177, %v6179
    %v6181 = vadd.f32 %v6180, -0.16666654
    %v6182 = vmul.f32 %v6177, %v6181
    %v6183 = vadd.f32 %v6182, 1.0
    %v6184 = vmul.f32 %v6183, %v6168
    %vm6185 = vweird.f32 %v5491
    %v6186 = vadd.s32 %v6169, 3
    %v6187 = vand.u32 %v6186, 3
    %vm6188 = vcmp.lt.s32.totalorder %v6187, 2
    %vm6189 = vcmp.eq.s32.totalorder %v6187, 0
    %v6190 = vxor.u32 %v6184, 2147483648
    %v6191 = vsel %vm6189, %v6176, %v6190
    %vm6192 = vcmp.eq.s32.totalorder %v6187, 2
    %v6193 = vxor.u32 %v6176, 2147483648
    %v6194 = vsel %vm6192, %v6193, %v6184
    %v6195 = vsel %vm6188, %v6191, %v6194
    %v6196 = vsel %vm6185, nan, %v6195
    %v6197 = vand.u32 2147483647, %v5494
    %vm6198 = vcmp.le.f32.partialorder %v6197, 0.7853982
    %vm6199 = vcmp.lt.s32.totalorder %v5494, 0
    %v6200 = vand.u32 %v5494, 2139095040
    %v6201 = vshrl.u32 %v6200, 23
    %v6202 = vsub.s32 %v6201, 127
    %v6203 = vand.u32 2147483647, %v5494
    %v6204 = vand.u32 %v6203, 8388607
    %v6205 = vor.u32 %v6204, 8388608
    %v6206 = vsub.s32 0, %v6205
    %v6207 = vadd.s32 %v6202, 1
    %vm6208 = vcmp.gt.s32.totalorder %v6207, 0
    %v6209 = vsel %vm6208, %v6207, 0
    %v6210 = vshrl.u32 %v6209, 5
    %v6211 = vand.u32 %v6209, 31
    %v6212 = vsub.s32 32, %v6211
    %v6213 = vshrl.u32 683565275, %v6212
    %v6214 = vshll.u32 683565275, %v6211
    %v6215 = vshrl.u32 2475754826, %v6212
    %v6216 = vor.u32 %v6214, %v6215
    %v6217 = vshll.u32 2475754826, %v6211
    %v6218 = vshrl.u32 2131351028, %v6212
    %v6219 = vor.u32 %v6217, %v6218
    %v6220 = vshll.u32 2131351028, %v6211
    %v6221 = vshrl.u32 2102212464, %v6212
    %v6222 = vor.u32 %v6220, %v6221
    %v6223 = vshll.u32 2102212464, %v6211
    %v6224 = vshrl.u32 920167782, %v6212
    %v6225 = vor.u32 %v6223, %v6224
    %v6226 = vshll.u32 920167782, %v6211
    %v6227 = vshrl.u32 1326507024, %v6212
    %v6228 = vor.u32 %v6226, %v6227
    %vm6229 = vcmp.lt.s32.totalorder %v6210, 1
    %vm6230 = vcmp.lt.s32.totalorder %v6210, 2
    %vm6231 = vcmp.lt.s32.totalorder %v6210, 3
    %vm6232 = vcmp.lt.s32.totalorder %v6210, 4
    %v6233 = vsel %vm6229, %v6213, %v6216
    %v6234 = vsel %vm6232, %v6222, 2102212464
    %v6235 = vsel %vm6231, %v6219, %v6234
    %v6236 = vsel %vm6230, %v6233, %v6235
    %v6237 = vsel %vm6229, %v6216, %v6219
    %v6238 = vsel %vm6232, %v6225, 920167782
    %v6239 = vsel %vm6231, %v6222, %v6238
    %v6240 = vsel %vm6230, %v6237, %v6239
    %v6241 = vsel %vm6229, %v6219, %v6222
    %v6242 = vsel %vm6232, %v6228, 1326507024
    %v6243 = vsel %vm6231, %v6225, %v6242
    %v6244 = vsel %vm6230, %v6241, %v6243
    %v6245 = vshll.u32 %v6205, 8
    %v6246 = vand.u32 %v6245, 65535
    %v6247 = vshrl.u32 %v6245, 16
    %v6248 = vand.u32 %v6244, 65535
    %v6249 = vshrl.u32 %v6244, 16
    %v6250 = vmul.u32 %v6246, %v6248
    %v6251 = vmul.u32 %v6246, %v6249
    %v6252 = vmul.u32 %v6247, %v6248
    %v6253 = vmul.u32 %v6247, %v6249
    %v6254 = vshll.u32 %v6251, 16
    %v6255 = vshrl.u32 %v6251, 16
    %v6256 = vshll.u32 %v6252, 16
    %v6257 = vshrl.u32 %v6252, 16
    %vm6258 = vc.u32 %v6250, %v6254
    %v6259 = vsel %vm6258, 1, 0
    %v6260 = vadd.s32 %v6250, %v6254
    %v6261 = vadd.s32 %v6253, %v6259
    %vm6262 = vc.u32 %v6260, %v6256
    %v6263 = vsel %vm6262, 1, 0
    %v6264 = vadd.s32 %v6260, %v6256
    %v6265 = vadd.s32 %v6261, %v6263
    %v6266 = vadd.s32 %v6265, %v6255
    %v6267 = vadd.s32 %v6266, %v6257
    %v6268 = vand.u32 %v6245, 65535
    %v6269 = vshrl.u32 %v6245, 16
    %v6270 = vand.u32 %v6240, 65535
    %v6271 = vshrl.u32 %v6240, 16
    %v6272 = vmul.u32 %v6268, %v6270
    %v6273 = vmul.u32 %v6268, %v6271
    %v6274 = vmul.u32 %v6269, %v6270
    %v6275 = vmul.u32 %v6269, %v6271
    %v6276 = vshll.u32 %v6273, 16
    %v6277 = vshrl.u32 %v6273, 16
    %v6278 = vshll.u32 %v6274, 16
    %v6279 = vshrl.u32 %v6274, 16
    %vm6280 = vc.u32 %v6272, %v6276
    %v6281 = vsel %vm6280, 1, 0
    %v6282 = vadd.s32 %v6272, %v6276
    %v6283 = vadd.s32 %v6275, %v6281
    %vm6284 = vc.u32 %v6282, %v6278
    %v6285 = vsel %vm6284, 1, 0
    %v6286 = vadd.s32 %v6282, %v6278
    %v6287 = vadd.s32 %v6283, %v6285
    %v6288 = vadd.s32 %v6287, %v6277
    %v6289 = vadd.s32 %v6288, %v6279
    %v6290 = vmul.u32 %v6245, %v6236
    %v6291 = vadd.s32 %v6267, %v6286
    %vm6292 = vc.u32 %v6267, %v6286
    %v6293 = vadd.s32 %v6289, 1
    %v6294 = vsel %vm6292, %v6293, %v6289
    %v6295 = vadd.s32 %v6290, %v6294
    %v6296 = vadd.s32 %v6295, 536870912
    %v6297 = vshrl.u32 %v6296, 30
    %v6298 = vshll.u32 %v6297, 30
    %v6299 = vsub.s32 %v6295, %v6298
    %vm6300 = vcmp.lt.s32.totalorder %v6299, 0
    %v6301 = vsub.s32 0, %v6299
    %v6302 = vsel %vm6300, %v6301, %v6299
    %v6303 = vclz %v6302
    %v6304 = vsub.s32 %v6303, 2
    %vm6305 = vcmp.gt.s32.totalorder 0, %v6304
    %v6306 = vsel %vm6305, 0, %v6304
    %v6307 = vsub.s32 32, %v6306
    %v6308 = vshll.u32 %v6299, %v6306
    %v6309 = vshrl.u32 %v6291, %v6307
    %v6310 = vor.u32 %v6308, %v6309
    %v6311 = vsub.s32 4294967266, %v6306
    %v6312 = vadd.s32 %v6311, 127
    %v6313 = vshll.u32 %v6312, 23
    %v6314 = vor.u32 4788187, %v6313
    %v6315 = vand.u32 2147483647, %v6314
    %v6317 = vcvt.s32.f32 %v6310
    %v6318 = vmul.f32 %v6317, %v6315
    %v6319 = vxor.u32 %v6318, 2147483648
    %v6320 = vsel %vm6199, %v6319, %v6318
    %v6321 = vsub.s32 4, %v6297
    %v6322 = vsel %vm6199, %v6321, %v6297
    %v6323 = vsel %vm6198, %v5494, %v6320
    %v6324 = vsel %vm6198, 0, %v6322
    %v6325 = vmul.f32 %v6323, %v6323
    %v6326 = vmul.f32 %v6325, -0.001358992
    %v6327 = vadd.f32 %v6326, 0.041655596
    %v6328 = vmul.f32 %v6325, %v6327
    %v6329 = vadd.f32 %v6328, -0.4999988
    %v6330 = vmul.f32 %v6325, %v6329
    %v6331 = vadd.f32 1.0, %v6330
    %v6332 = vmul.f32 %v6323, %v6323
    %v6333 = vmul.f32 %v6332, -0.00019511016
    %v6334 = vadd.f32 %v6333, 0.008332121
    %v6335 = vmul.f32 %v6332, %v6334
    %v6336 = vadd.f32 %v6335, -0.16666654
    %v6337 = vmul.f32 %v6332, %v6336
    %v6338 = vadd.f32 %v6337, 1.0
    %v6339 = vmul.f32 %v6338, %v6323
    %vm6340 = vweird.f32 %v5494
    %v6341 = vadd.s32 %v6324, 3
    %v6342 = vand.u32 %v6341, 3
    %vm6343 = vcmp.lt.s32.totalorder %v6342, 2
    %vm6344 = vcmp.eq.s32.totalorder %v6342, 0
    %v6345 = vxor.u32 %v6339, 2147483648
    %v6346 = vsel %vm6344, %v6331, %v6345
    %vm6347 = vcmp.eq.s32.totalorder %v6342, 2
    %v6348 = vxor.u32 %v6331, 2147483648
    %v6349 = vsel %vm6347, %v6348, %v6339
    %v6350 = vsel %vm6343, %v6346, %v6349
    %v6351 = vsel %vm6340, nan, %v6350
    %v6352 = vand.u32 2147483647, %v5497
    %vm6353 = vcmp.le.f32.partialorder %v6352, 0.7853982
    %vm6354 = vcmp.lt.s32.totalorder %v5497, 0
    %v6355 = vand.u32 %v5497, 2139095040
    %v6356 = vshrl.u32 %v6355, 23
    %v6357 = vsub.s32 %v6356, 127
    %v6358 = vand.u32 2147483647, %v5497
    %v6359 = vand.u32 %v6358, 8388607
    %v6360 = vor.u32 %v6359, 8388608
    %v6361 = vsub.s32 0, %v6360
    %v6362 = vadd.s32 %v6357, 1
    %vm6363 = vcmp.gt.s32.totalorder %v6362, 0
    %v6364 = vsel %vm6363, %v6362, 0
    %v6365 = vshrl.u32 %v6364, 5
    %v6366 = vand.u32 %v6364, 31
    %v6367 = vsub.s32 32, %v6366
    %v6368 = vshrl.u32 683565275, %v6367
    %v6369 = vshll.u32 683565275, %v6366
    %v6370 = vshrl.u32 2475754826, %v6367
    %v6371 = vor.u32 %v6369, %v6370
    %v6372 = vshll.u32 2475754826, %v6366
    %v6373 = vshrl.u32 2131351028, %v6367
    %v6374 = vor.u32 %v6372, %v6373
    %v6375 = vshll.u32 2131351028, %v6366
    %v6376 = vshrl.u32 2102212464, %v6367
    %v6377 = vor.u32 %v6375, %v6376
    %v6378 = vshll.u32 2102212464, %v6366
    %v6379 = vshrl.u32 920167782, %v6367
    %v6380 = vor.u32 %v6378, %v6379
    %v6381 = vshll.u32 920167782, %v6366
    %v6382 = vshrl.u32 1326507024, %v6367
    %v6383 = vor.u32 %v6381, %v6382
    %vm6384 = vcmp.lt.s32.totalorder %v6365, 1
    %vm6385 = vcmp.lt.s32.totalorder %v6365, 2
    %vm6386 = vcmp.lt.s32.totalorder %v6365, 3
    %vm6387 = vcmp.lt.s32.totalorder %v6365, 4
    %v6388 = vsel %vm6384, %v6368, %v6371
    %v6389 = vsel %vm6387, %v6377, 2102212464
    %v6390 = vsel %vm6386, %v6374, %v6389
    %v6391 = vsel %vm6385, %v6388, %v6390
    %v6392 = vsel %vm6384, %v6371, %v6374
    %v6393 = vsel %vm6387, %v6380, 920167782
    %v6394 = vsel %vm6386, %v6377, %v6393
    %v6395 = vsel %vm6385, %v6392, %v6394
    %v6396 = vsel %vm6384, %v6374, %v6377
    %v6397 = vsel %vm6387, %v6383, 1326507024
    %v6398 = vsel %vm6386, %v6380, %v6397
    %v6399 = vsel %vm6385, %v6396, %v6398
    %v6400 = vshll.u32 %v6360, 8
    %v6401 = vand.u32 %v6400, 65535
    %v6402 = vshrl.u32 %v6400, 16
    %v6403 = vand.u32 %v6399, 65535
    %v6404 = vshrl.u32 %v6399, 16
    %v6405 = vmul.u32 %v6401, %v6403
    %v6406 = vmul.u32 %v6401, %v6404
    %v6407 = vmul.u32 %v6402, %v6403
    %v6408 = vmul.u32 %v6402, %v6404
    %v6409 = vshll.u32 %v6406, 16
    %v6410 = vshrl.u32 %v6406, 16
    %v6411 = vshll.u32 %v6407, 16
    %v6412 = vshrl.u32 %v6407, 16
    %vm6413 = vc.u32 %v6405, %v6409
    %v6414 = vsel %vm6413, 1, 0
    %v6415 = vadd.s32 %v6405, %v6409
    %v6416 = vadd.s32 %v6408, %v6414
    %vm6417 = vc.u32 %v6415, %v6411
    %v6418 = vsel %vm6417, 1, 0
    %v6419 = vadd.s32 %v6415, %v6411
    %v6420 = vadd.s32 %v6416, %v6418
    %v6421 = vadd.s32 %v6420, %v6410
    %v6422 = vadd.s32 %v6421, %v6412
    %v6423 = vand.u32 %v6400, 65535
    %v6424 = vshrl.u32 %v6400, 16
    %v6425 = vand.u32 %v6395, 65535
    %v6426 = vshrl.u32 %v6395, 16
    %v6427 = vmul.u32 %v6423, %v6425
    %v6428 = vmul.u32 %v6423, %v6426
    %v6429 = vmul.u32 %v6424, %v6425
    %v6430 = vmul.u32 %v6424, %v6426
    %v6431 = vshll.u32 %v6428, 16
    %v6432 = vshrl.u32 %v6428, 16
    %v6433 = vshll.u32 %v6429, 16
    %v6434 = vshrl.u32 %v6429, 16
    %vm6435 = vc.u32 %v6427, %v6431
    %v6436 = vsel %vm6435, 1, 0
    %v6437 = vadd.s32 %v6427, %v6431
    %v6438 = vadd.s32 %v6430, %v6436
    %vm6439 = vc.u32 %v6437, %v6433
    %v6440 = vsel %vm6439, 1, 0
    %v6441 = vadd.s32 %v6437, %v6433
    %v6442 = vadd.s32 %v6438, %v6440
    %v6443 = vadd.s32 %v6442, %v6432
    %v6444 = vadd.s32 %v6443, %v6434
    %v6445 = vmul.u32 %v6400, %v6391
    %v6446 = vadd.s32 %v6422, %v6441
    %vm6447 = vc.u32 %v6422, %v6441
    %v6448 = vadd.s32 %v6444, 1
    %v6449 = vsel %vm6447, %v6448, %v6444
    %v6450 = vadd.s32 %v6445, %v6449
    %v6451 = vadd.s32 %v6450, 536870912
    %v6452 = vshrl.u32 %v6451, 30
    %v6453 = vshll.u32 %v6452, 30
    %v6454 = vsub.s32 %v6450, %v6453
    %vm6455 = vcmp.lt.s32.totalorder %v6454, 0
    %v6456 = vsub.s32 0, %v6454
    %v6457 = vsel %vm6455, %v6456, %v6454
    %v6458 = vclz %v6457
    %v6459 = vsub.s32 %v6458, 2
    %vm6460 = vcmp.gt.s32.totalorder 0, %v6459
    %v6461 = vsel %vm6460, 0, %v6459
    %v6462 = vsub.s32 32, %v6461
    %v6463 = vshll.u32 %v6454, %v6461
    %v6464 = vshrl.u32 %v6446, %v6462
    %v6465 = vor.u32 %v6463, %v6464
    %v6466 = vsub.s32 4294967266, %v6461
    %v6467 = vadd.s32 %v6466, 127
    %v6468 = vshll.u32 %v6467, 23
    %v6469 = vor.u32 4788187, %v6468
    %v6470 = vand.u32 2147483647, %v6469
    %v6472 = vcvt.s32.f32 %v6465
    %v6473 = vmul.f32 %v6472, %v6470
    %v6474 = vxor.u32 %v6473, 2147483648
    %v6475 = vsel %vm6354, %v6474, %v6473
    %v6476 = vsub.s32 4, %v6452
    %v6477 = vsel %vm6354, %v6476, %v6452
    %v6478 = vsel %vm6353, %v5497, %v6475
    %v6479 = vsel %vm6353, 0, %v6477
    %v6480 = vmul.f32 %v6478, %v6478
    %v6481 = vmul.f32 %v6480, -0.001358992
    %v6482 = vadd.f32 %v6481, 0.041655596
    %v6483 = vmul.f32 %v6480, %v6482
    %v6484 = vadd.f32 %v6483, -0.4999988
    %v6485 = vmul.f32 %v6480, %v6484
    %v6486 = vadd.f32 1.0, %v6485
    %v6487 = vmul.f32 %v6478, %v6478
    %v6488 = vmul.f32 %v6487, -0.00019511016
    %v6489 = vadd.f32 %v6488, 0.008332121
    %v6490 = vmul.f32 %v6487, %v6489
    %v6491 = vadd.f32 %v6490, -0.16666654
    %v6492 = vmul.f32 %v6487, %v6491
    %v6493 = vadd.f32 %v6492, 1.0
    %v6494 = vmul.f32 %v6493, %v6478
    %vm6495 = vweird.f32 %v5497
    %v6496 = vadd.s32 %v6479, 3
    %v6497 = vand.u32 %v6496, 3
    %vm6498 = vcmp.lt.s32.totalorder %v6497, 2
    %vm6499 = vcmp.eq.s32.totalorder %v6497, 0
    %v6500 = vxor.u32 %v6494, 2147483648
    %v6501 = vsel %vm6499, %v6486, %v6500
    %vm6502 = vcmp.eq.s32.totalorder %v6497, 2
    %v6503 = vxor.u32 %v6486, 2147483648
    %v6504 = vsel %vm6502, %v6503, %v6494
    %v6505 = vsel %vm6498, %v6501, %v6504
    %v6506 = vsel %vm6495, nan, %v6505
    %v6507 = vand.u32 2147483647, %v5500
    %vm6508 = vcmp.le.f32.partialorder %v6507, 0.7853982
    %vm6509 = vcmp.lt.s32.totalorder %v5500, 0
    %v6510 = vand.u32 %v5500, 2139095040
    %v6511 = vshrl.u32 %v6510, 23
    %v6512 = vsub.s32 %v6511, 127
    %v6513 = vand.u32 2147483647, %v5500
    %v6514 = vand.u32 %v6513, 8388607
    %v6515 = vor.u32 %v6514, 8388608
    %v6516 = vsub.s32 0, %v6515
    %v6517 = vadd.s32 %v6512, 1
    %vm6518 = vcmp.gt.s32.totalorder %v6517, 0
    %v6519 = vsel %vm6518, %v6517, 0
    %v6520 = vshrl.u32 %v6519, 5
    %v6521 = vand.u32 %v6519, 31
    %v6522 = vsub.s32 32, %v6521
    %v6523 = vshrl.u32 683565275, %v6522
    %v6524 = vshll.u32 683565275, %v6521
    %v6525 = vshrl.u32 2475754826, %v6522
    %v6526 = vor.u32 %v6524, %v6525
    %v6527 = vshll.u32 2475754826, %v6521
    %v6528 = vshrl.u32 2131351028, %v6522
    %v6529 = vor.u32 %v6527, %v6528
    %v6530 = vshll.u32 2131351028, %v6521
    %v6531 = vshrl.u32 2102212464, %v6522
    %v6532 = vor.u32 %v6530, %v6531
    %v6533 = vshll.u32 2102212464, %v6521
    %v6534 = vshrl.u32 920167782, %v6522
    %v6535 = vor.u32 %v6533, %v6534
    %v6536 = vshll.u32 920167782, %v6521
    %v6537 = vshrl.u32 1326507024, %v6522
    %v6538 = vor.u32 %v6536, %v6537
    %vm6539 = vcmp.lt.s32.totalorder %v6520, 1
    %vm6540 = vcmp.lt.s32.totalorder %v6520, 2
    %vm6541 = vcmp.lt.s32.totalorder %v6520, 3
    %vm6542 = vcmp.lt.s32.totalorder %v6520, 4
    %v6543 = vsel %vm6539, %v6523, %v6526
    %v6544 = vsel %vm6542, %v6532, 2102212464
    %v6545 = vsel %vm6541, %v6529, %v6544
    %v6546 = vsel %vm6540, %v6543, %v6545
    %v6547 = vsel %vm6539, %v6526, %v6529
    %v6548 = vsel %vm6542, %v6535, 920167782
    %v6549 = vsel %vm6541, %v6532, %v6548
    %v6550 = vsel %vm6540, %v6547, %v6549
    %v6551 = vsel %vm6539, %v6529, %v6532
    %v6552 = vsel %vm6542, %v6538, 1326507024
    %v6553 = vsel %vm6541, %v6535, %v6552
    %v6554 = vsel %vm6540, %v6551, %v6553
    %v6555 = vshll.u32 %v6515, 8
    %v6556 = vand.u32 %v6555, 65535
    %v6557 = vshrl.u32 %v6555, 16
    %v6558 = vand.u32 %v6554, 65535
    %v6559 = vshrl.u32 %v6554, 16
    %v6560 = vmul.u32 %v6556, %v6558
    %v6561 = vmul.u32 %v6556, %v6559
    %v6562 = vmul.u32 %v6557, %v6558
    %v6563 = vmul.u32 %v6557, %v6559
    %v6564 = vshll.u32 %v6561, 16
    %v6565 = vshrl.u32 %v6561, 16
    %v6566 = vshll.u32 %v6562, 16
    %v6567 = vshrl.u32 %v6562, 16
    %vm6568 = vc.u32 %v6560, %v6564
    %v6569 = vsel %vm6568, 1, 0
    %v6570 = vadd.s32 %v6560, %v6564
    %v6571 = vadd.s32 %v6563, %v6569
    %vm6572 = vc.u32 %v6570, %v6566
    %v6573 = vsel %vm6572, 1, 0
    %v6574 = vadd.s32 %v6570, %v6566
    %v6575 = vadd.s32 %v6571, %v6573
    %v6576 = vadd.s32 %v6575, %v6565
    %v6577 = vadd.s32 %v6576, %v6567
    %v6578 = vand.u32 %v6555, 65535
    %v6579 = vshrl.u32 %v6555, 16
    %v6580 = vand.u32 %v6550, 65535
    %v6581 = vshrl.u32 %v6550, 16
    %v6582 = vmul.u32 %v6578, %v6580
    %v6583 = vmul.u32 %v6578, %v6581
    %v6584 = vmul.u32 %v6579, %v6580
    %v6585 = vmul.u32 %v6579, %v6581
    %v6586 = vshll.u32 %v6583, 16
    %v6587 = vshrl.u32 %v6583, 16
    %v6588 = vshll.u32 %v6584, 16
    %v6589 = vshrl.u32 %v6584, 16
    %vm6590 = vc.u32 %v6582, %v6586
    %v6591 = vsel %vm6590, 1, 0
    %v6592 = vadd.s32 %v6582, %v6586
    %v6593 = vadd.s32 %v6585, %v6591
    %vm6594 = vc.u32 %v6592, %v6588
    %v6595 = vsel %vm6594, 1, 0
    %v6596 = vadd.s32 %v6592, %v6588
    %v6597 = vadd.s32 %v6593, %v6595
    %v6598 = vadd.s32 %v6597, %v6587
    %v6599 = vadd.s32 %v6598, %v6589
    %v6600 = vmul.u32 %v6555, %v6546
    %v6601 = vadd.s32 %v6577, %v6596
    %vm6602 = vc.u32 %v6577, %v6596
    %v6603 = vadd.s32 %v6599, 1
    %v6604 = vsel %vm6602, %v6603, %v6599
    %v6605 = vadd.s32 %v6600, %v6604
    %v6606 = vadd.s32 %v6605, 536870912
    %v6607 = vshrl.u32 %v6606, 30
    %v6608 = vshll.u32 %v6607, 30
    %v6609 = vsub.s32 %v6605, %v6608
    %vm6610 = vcmp.lt.s32.totalorder %v6609, 0
    %v6611 = vsub.s32 0, %v6609
    %v6612 = vsel %vm6610, %v6611, %v6609
    %v6613 = vclz %v6612
    %v6614 = vsub.s32 %v6613, 2
    %vm6615 = vcmp.gt.s32.totalorder 0, %v6614
    %v6616 = vsel %vm6615, 0, %v6614
    %v6617 = vsub.s32 32, %v6616
    %v6618 = vshll.u32 %v6609, %v6616
    %v6619 = vshrl.u32 %v6601, %v6617
    %v6620 = vor.u32 %v6618, %v6619
    %v6621 = vsub.s32 4294967266, %v6616
    %v6622 = vadd.s32 %v6621, 127
    %v6623 = vshll.u32 %v6622, 23
    %v6624 = vor.u32 4788187, %v6623
    %v6625 = vand.u32 2147483647, %v6624
    %v6627 = vcvt.s32.f32 %v6620
    %v6628 = vmul.f32 %v6627, %v6625
    %v6629 = vxor.u32 %v6628, 2147483648
    %v6630 = vsel %vm6509, %v6629, %v6628
    %v6631 = vsub.s32 4, %v6607
    %v6632 = vsel %vm6509, %v6631, %v6607
    %v6633 = vsel %vm6508, %v5500, %v6630
    %v6634 = vsel %vm6508, 0, %v6632
    %v6635 = vmul.f32 %v6633, %v6633
    %v6636 = vmul.f32 %v6635, -0.001358992
    %v6637 = vadd.f32 %v6636, 0.041655596
    %v6638 = vmul.f32 %v6635, %v6637
    %v6639 = vadd.f32 %v6638, -0.4999988
    %v6640 = vmul.f32 %v6635, %v6639
    %v6641 = vadd.f32 1.0, %v6640
    %v6642 = vmul.f32 %v6633, %v6633
    %v6643 = vmul.f32 %v6642, -0.00019511016
    %v6644 = vadd.f32 %v6643, 0.008332121
    %v6645 = vmul.f32 %v6642, %v6644
    %v6646 = vadd.f32 %v6645, -0.16666654
    %v6647 = vmul.f32 %v6642, %v6646
    %v6648 = vadd.f32 %v6647, 1.0
    %v6649 = vmul.f32 %v6648, %v6633
    %vm6650 = vweird.f32 %v5500
    %v6651 = vadd.s32 %v6634, 3
    %v6652 = vand.u32 %v6651, 3
    %vm6653 = vcmp.lt.s32.totalorder %v6652, 2
    %vm6654 = vcmp.eq.s32.totalorder %v6652, 0
    %v6655 = vxor.u32 %v6649, 2147483648
    %v6656 = vsel %vm6654, %v6641, %v6655
    %vm6657 = vcmp.eq.s32.totalorder %v6652, 2
    %v6658 = vxor.u32 %v6641, 2147483648
    %v6659 = vsel %vm6657, %v6658, %v6649
    %v6660 = vsel %vm6653, %v6656, %v6659
    %v6661 = vsel %vm6650, nan, %v6660
    %v6662 = vand.u32 2147483647, %v5503
    %vm6663 = vcmp.le.f32.partialorder %v6662, 0.7853982
    %vm6664 = vcmp.lt.s32.totalorder %v5503, 0
    %v6665 = vand.u32 %v5503, 2139095040
    %v6666 = vshrl.u32 %v6665, 23
    %v6667 = vsub.s32 %v6666, 127
    %v6668 = vand.u32 2147483647, %v5503
    %v6669 = vand.u32 %v6668, 8388607
    %v6670 = vor.u32 %v6669, 8388608
    %v6671 = vsub.s32 0, %v6670
    %v6672 = vadd.s32 %v6667, 1
    %vm6673 = vcmp.gt.s32.totalorder %v6672, 0
    %v6674 = vsel %vm6673, %v6672, 0
    %v6675 = vshrl.u32 %v6674, 5
    %v6676 = vand.u32 %v6674, 31
    %v6677 = vsub.s32 32, %v6676
    %v6678 = vshrl.u32 683565275, %v6677
    %v6679 = vshll.u32 683565275, %v6676
    %v6680 = vshrl.u32 2475754826, %v6677
    %v6681 = vor.u32 %v6679, %v6680
    %v6682 = vshll.u32 2475754826, %v6676
    %v6683 = vshrl.u32 2131351028, %v6677
    %v6684 = vor.u32 %v6682, %v6683
    %v6685 = vshll.u32 2131351028, %v6676
    %v6686 = vshrl.u32 2102212464, %v6677
    %v6687 = vor.u32 %v6685, %v6686
    %v6688 = vshll.u32 2102212464, %v6676
    %v6689 = vshrl.u32 920167782, %v6677
    %v6690 = vor.u32 %v6688, %v6689
    %v6691 = vshll.u32 920167782, %v6676
    %v6692 = vshrl.u32 1326507024, %v6677
    %v6693 = vor.u32 %v6691, %v6692
    %vm6694 = vcmp.lt.s32.totalorder %v6675, 1
    %vm6695 = vcmp.lt.s32.totalorder %v6675, 2
    %vm6696 = vcmp.lt.s32.totalorder %v6675, 3
    %vm6697 = vcmp.lt.s32.totalorder %v6675, 4
    %v6698 = vsel %vm6694, %v6678, %v6681
    %v6699 = vsel %vm6697, %v6687, 2102212464
    %v6700 = vsel %vm6696, %v6684, %v6699
    %v6701 = vsel %vm6695, %v6698, %v6700
    %v6702 = vsel %vm6694, %v6681, %v6684
    %v6703 = vsel %vm6697, %v6690, 920167782
    %v6704 = vsel %vm6696, %v6687, %v6703
    %v6705 = vsel %vm6695, %v6702, %v6704
    %v6706 = vsel %vm6694, %v6684, %v6687
    %v6707 = vsel %vm6697, %v6693, 1326507024
    %v6708 = vsel %vm6696, %v6690, %v6707
    %v6709 = vsel %vm6695, %v6706, %v6708
    %v6710 = vshll.u32 %v6670, 8
    %v6711 = vand.u32 %v6710, 65535
    %v6712 = vshrl.u32 %v6710, 16
    %v6713 = vand.u32 %v6709, 65535
    %v6714 = vshrl.u32 %v6709, 16
    %v6715 = vmul.u32 %v6711, %v6713
    %v6716 = vmul.u32 %v6711, %v6714
    %v6717 = vmul.u32 %v6712, %v6713
    %v6718 = vmul.u32 %v6712, %v6714
    %v6719 = vshll.u32 %v6716, 16
    %v6720 = vshrl.u32 %v6716, 16
    %v6721 = vshll.u32 %v6717, 16
    %v6722 = vshrl.u32 %v6717, 16
    %vm6723 = vc.u32 %v6715, %v6719
    %v6724 = vsel %vm6723, 1, 0
    %v6725 = vadd.s32 %v6715, %v6719
    %v6726 = vadd.s32 %v6718, %v6724
    %vm6727 = vc.u32 %v6725, %v6721
    %v6728 = vsel %vm6727, 1, 0
    %v6729 = vadd.s32 %v6725, %v6721
    %v6730 = vadd.s32 %v6726, %v6728
    %v6731 = vadd.s32 %v6730, %v6720
    %v6732 = vadd.s32 %v6731, %v6722
    %v6733 = vand.u32 %v6710, 65535
    %v6734 = vshrl.u32 %v6710, 16
    %v6735 = vand.u32 %v6705, 65535
    %v6736 = vshrl.u32 %v6705, 16
    %v6737 = vmul.u32 %v6733, %v6735
    %v6738 = vmul.u32 %v6733, %v6736
    %v6739 = vmul.u32 %v6734, %v6735
    %v6740 = vmul.u32 %v6734, %v6736
    %v6741 = vshll.u32 %v6738, 16
    %v6742 = vshrl.u32 %v6738, 16
    %v6743 = vshll.u32 %v6739, 16
    %v6744 = vshrl.u32 %v6739, 16
    %vm6745 = vc.u32 %v6737, %v6741
    %v6746 = vsel %vm6745, 1, 0
    %v6747 = vadd.s32 %v6737, %v6741
    %v6748 = vadd.s32 %v6740, %v6746
    %vm6749 = vc.u32 %v6747, %v6743
    %v6750 = vsel %vm6749, 1, 0
    %v6751 = vadd.s32 %v6747, %v6743
    %v6752 = vadd.s32 %v6748, %v6750
    %v6753 = vadd.s32 %v6752, %v6742
    %v6754 = vadd.s32 %v6753, %v6744
    %v6755 = vmul.u32 %v6710, %v6701
    %v6756 = vadd.s32 %v6732, %v6751
    %vm6757 = vc.u32 %v6732, %v6751
    %v6758 = vadd.s32 %v6754, 1
    %v6759 = vsel %vm6757, %v6758, %v6754
    %v6760 = vadd.s32 %v6755, %v6759
    %v6761 = vadd.s32 %v6760, 536870912
    %v6762 = vshrl.u32 %v6761, 30
    %v6763 = vshll.u32 %v6762, 30
    %v6764 = vsub.s32 %v6760, %v6763
    %vm6765 = vcmp.lt.s32.totalorder %v6764, 0
    %v6766 = vsub.s32 0, %v6764
    %v6767 = vsel %vm6765, %v6766, %v6764
    %v6768 = vclz %v6767
    %v6769 = vsub.s32 %v6768, 2
    %vm6770 = vcmp.gt.s32.totalorder 0, %v6769
    %v6771 = vsel %vm6770, 0, %v6769
    %v6772 = vsub.s32 32, %v6771
    %v6773 = vshll.u32 %v6764, %v6771
    %v6774 = vshrl.u32 %v6756, %v6772
    %v6775 = vor.u32 %v6773, %v6774
    %v6776 = vsub.s32 4294967266, %v6771
    %v6777 = vadd.s32 %v6776, 127
    %v6778 = vshll.u32 %v6777, 23
    %v6779 = vor.u32 4788187, %v6778
    %v6780 = vand.u32 2147483647, %v6779
    %v6782 = vcvt.s32.f32 %v6775
    %v6783 = vmul.f32 %v6782, %v6780
    %v6784 = vxor.u32 %v6783, 2147483648
    %v6785 = vsel %vm6664, %v6784, %v6783
    %v6786 = vsub.s32 4, %v6762
    %v6787 = vsel %vm6664, %v6786, %v6762
    %v6788 = vsel %vm6663, %v5503, %v6785
    %v6789 = vsel %vm6663, 0, %v6787
    %v6790 = vmul.f32 %v6788, %v6788
    %v6791 = vmul.f32 %v6790, -0.001358992
    %v6792 = vadd.f32 %v6791, 0.041655596
    %v6793 = vmul.f32 %v6790, %v6792
    %v6794 = vadd.f32 %v6793, -0.4999988
    %v6795 = vmul.f32 %v6790, %v6794
    %v6796 = vadd.f32 1.0, %v6795
    %v6797 = vmul.f32 %v6788, %v6788
    %v6798 = vmul.f32 %v6797, -0.00019511016
    %v6799 = vadd.f32 %v6798, 0.008332121
    %v6800 = vmul.f32 %v6797, %v6799
    %v6801 = vadd.f32 %v6800, -0.16666654
    %v6802 = vmul.f32 %v6797, %v6801
    %v6803 = vadd.f32 %v6802, 1.0
    %v6804 = vmul.f32 %v6803, %v6788
    %vm6805 = vweird.f32 %v5503
    %v6806 = vadd.s32 %v6789, 3
    %v6807 = vand.u32 %v6806, 3
    %vm6808 = vcmp.lt.s32.totalorder %v6807, 2
    %vm6809 = vcmp.eq.s32.totalorder %v6807, 0
    %v6810 = vxor.u32 %v6804, 2147483648
    %v6811 = vsel %vm6809, %v6796, %v6810
    %vm6812 = vcmp.eq.s32.totalorder %v6807, 2
    %v6813 = vxor.u32 %v6796, 2147483648
    %v6814 = vsel %vm6812, %v6813, %v6804
    %v6815 = vsel %vm6808, %v6811, %v6814
    %v6816 = vsel %vm6805, nan, %v6815
    %v6817 = vand.u32 2147483647, %v5506
    %vm6818 = vcmp.le.f32.partialorder %v6817, 0.7853982
    %vm6819 = vcmp.lt.s32.totalorder %v5506, 0
    %v6820 = vand.u32 %v5506, 2139095040
    %v6821 = vshrl.u32 %v6820, 23
    %v6822 = vsub.s32 %v6821, 127
    %v6823 = vand.u32 2147483647, %v5506
    %v6824 = vand.u32 %v6823, 8388607
    %v6825 = vor.u32 %v6824, 8388608
    %v6826 = vsub.s32 0, %v6825
    %v6827 = vadd.s32 %v6822, 1
    %vm6828 = vcmp.gt.s32.totalorder %v6827, 0
    %v6829 = vsel %vm6828, %v6827, 0
    %v6830 = vshrl.u32 %v6829, 5
    %v6831 = vand.u32 %v6829, 31
    %v6832 = vsub.s32 32, %v6831
    %v6833 = vshrl.u32 683565275, %v6832
    %v6834 = vshll.u32 683565275, %v6831
    %v6835 = vshrl.u32 2475754826, %v6832
    %v6836 = vor.u32 %v6834, %v6835
    %v6837 = vshll.u32 2475754826, %v6831
    %v6838 = vshrl.u32 2131351028, %v6832
    %v6839 = vor.u32 %v6837, %v6838
    %v6840 = vshll.u32 2131351028, %v6831
    %v6841 = vshrl.u32 2102212464, %v6832
    %v6842 = vor.u32 %v6840, %v6841
    %v6843 = vshll.u32 2102212464, %v6831
    %v6844 = vshrl.u32 920167782, %v6832
    %v6845 = vor.u32 %v6843, %v6844
    %v6846 = vshll.u32 920167782, %v6831
    %v6847 = vshrl.u32 1326507024, %v6832
    %v6848 = vor.u32 %v6846, %v6847
    %vm6849 = vcmp.lt.s32.totalorder %v6830, 1
    %vm6850 = vcmp.lt.s32.totalorder %v6830, 2
    %vm6851 = vcmp.lt.s32.totalorder %v6830, 3
    %vm6852 = vcmp.lt.s32.totalorder %v6830, 4
    %v6853 = vsel %vm6849, %v6833, %v6836
    %v6854 = vsel %vm6852, %v6842, 2102212464
    %v6855 = vsel %vm6851, %v6839, %v6854
    %v6856 = vsel %vm6850, %v6853, %v6855
    %v6857 = vsel %vm6849, %v6836, %v6839
    %v6858 = vsel %vm6852, %v6845, 920167782
    %v6859 = vsel %vm6851, %v6842, %v6858
    %v6860 = vsel %vm6850, %v6857, %v6859
    %v6861 = vsel %vm6849, %v6839, %v6842
    %v6862 = vsel %vm6852, %v6848, 1326507024
    %v6863 = vsel %vm6851, %v6845, %v6862
    %v6864 = vsel %vm6850, %v6861, %v6863
    %v6865 = vshll.u32 %v6825, 8
    %v6866 = vand.u32 %v6865, 65535
    %v6867 = vshrl.u32 %v6865, 16
    %v6868 = vand.u32 %v6864, 65535
    %v6869 = vshrl.u32 %v6864, 16
    %v6870 = vmul.u32 %v6866, %v6868
    %v6871 = vmul.u32 %v6866, %v6869
    %v6872 = vmul.u32 %v6867, %v6868
    %v6873 = vmul.u32 %v6867, %v6869
    %v6874 = vshll.u32 %v6871, 16
    %v6875 = vshrl.u32 %v6871, 16
    %v6876 = vshll.u32 %v6872, 16
    %v6877 = vshrl.u32 %v6872, 16
    %vm6878 = vc.u32 %v6870, %v6874
    %v6879 = vsel %vm6878, 1, 0
    %v6880 = vadd.s32 %v6870, %v6874
    %v6881 = vadd.s32 %v6873, %v6879
    %vm6882 = vc.u32 %v6880, %v6876
    %v6883 = vsel %vm6882, 1, 0
    %v6884 = vadd.s32 %v6880, %v6876
    %v6885 = vadd.s32 %v6881, %v6883
    %v6886 = vadd.s32 %v6885, %v6875
    %v6887 = vadd.s32 %v6886, %v6877
    %v6888 = vand.u32 %v6865, 65535
    %v6889 = vshrl.u32 %v6865, 16
    %v6890 = vand.u32 %v6860, 65535
    %v6891 = vshrl.u32 %v6860, 16
    %v6892 = vmul.u32 %v6888, %v6890
    %v6893 = vmul.u32 %v6888, %v6891
    %v6894 = vmul.u32 %v6889, %v6890
    %v6895 = vmul.u32 %v6889, %v6891
    %v6896 = vshll.u32 %v6893, 16
    %v6897 = vshrl.u32 %v6893, 16
    %v6898 = vshll.u32 %v6894, 16
    %v6899 = vshrl.u32 %v6894, 16
    %vm6900 = vc.u32 %v6892, %v6896
    %v6901 = vsel %vm6900, 1, 0
    %v6902 = vadd.s32 %v6892, %v6896
    %v6903 = vadd.s32 %v6895, %v6901
    %vm6904 = vc.u32 %v6902, %v6898
    %v6905 = vsel %vm6904, 1, 0
    %v6906 = vadd.s32 %v6902, %v6898
    %v6907 = vadd.s32 %v6903, %v6905
    %v6908 = vadd.s32 %v6907, %v6897
    %v6909 = vadd.s32 %v6908, %v6899
    %v6910 = vmul.u32 %v6865, %v6856
    %v6911 = vadd.s32 %v6887, %v6906
    %vm6912 = vc.u32 %v6887, %v6906
    %v6913 = vadd.s32 %v6909, 1
    %v6914 = vsel %vm6912, %v6913, %v6909
    %v6915 = vadd.s32 %v6910, %v6914
    %v6916 = vadd.s32 %v6915, 536870912
    %v6917 = vshrl.u32 %v6916, 30
    %v6918 = vshll.u32 %v6917, 30
    %v6919 = vsub.s32 %v6915, %v6918
    %vm6920 = vcmp.lt.s32.totalorder %v6919, 0
    %v6921 = vsub.s32 0, %v6919
    %v6922 = vsel %vm6920, %v6921, %v6919
    %v6923 = vclz %v6922
    %v6924 = vsub.s32 %v6923, 2
    %vm6925 = vcmp.gt.s32.totalorder 0, %v6924
    %v6926 = vsel %vm6925, 0, %v6924
    %v6927 = vsub.s32 32, %v6926
    %v6928 = vshll.u32 %v6919, %v6926
    %v6929 = vshrl.u32 %v6911, %v6927
    %v6930 = vor.u32 %v6928, %v6929
    %v6931 = vsub.s32 4294967266, %v6926
    %v6932 = vadd.s32 %v6931, 127
    %v6933 = vshll.u32 %v6932, 23
    %v6934 = vor.u32 4788187, %v6933
    %v6935 = vand.u32 2147483647, %v6934
    %v6937 = vcvt.s32.f32 %v6930
    %v6938 = vmul.f32 %v6937, %v6935
    %v6939 = vxor.u32 %v6938, 2147483648
    %v6940 = vsel %vm6819, %v6939, %v6938
    %v6941 = vsub.s32 4, %v6917
    %v6942 = vsel %vm6819, %v6941, %v6917
    %v6943 = vsel %vm6818, %v5506, %v6940
    %v6944 = vsel %vm6818, 0, %v6942
    %v6945 = vmul.f32 %v6943, %v6943
    %v6946 = vmul.f32 %v6945, -0.001358992
    %v6947 = vadd.f32 %v6946, 0.041655596
    %v6948 = vmul.f32 %v6945, %v6947
    %v6949 = vadd.f32 %v6948, -0.4999988
    %v6950 = vmul.f32 %v6945, %v6949
    %v6951 = vadd.f32 1.0, %v6950
    %v6952 = vmul.f32 %v6943, %v6943
    %v6953 = vmul.f32 %v6952, -0.00019511016
    %v6954 = vadd.f32 %v6953, 0.008332121
    %v6955 = vmul.f32 %v6952, %v6954
    %v6956 = vadd.f32 %v6955, -0.16666654
    %v6957 = vmul.f32 %v6952, %v6956
    %v6958 = vadd.f32 %v6957, 1.0
    %v6959 = vmul.f32 %v6958, %v6943
    %vm6960 = vweird.f32 %v5506
    %v6961 = vadd.s32 %v6944, 3
    %v6962 = vand.u32 %v6961, 3
    %vm6963 = vcmp.lt.s32.totalorder %v6962, 2
    %vm6964 = vcmp.eq.s32.totalorder %v6962, 0
    %v6965 = vxor.u32 %v6959, 2147483648
    %v6966 = vsel %vm6964, %v6951, %v6965
    %vm6967 = vcmp.eq.s32.totalorder %v6962, 2
    %v6968 = vxor.u32 %v6951, 2147483648
    %v6969 = vsel %vm6967, %v6968, %v6959
    %v6970 = vsel %vm6963, %v6966, %v6969
    %v6971 = vsel %vm6960, nan, %v6970
    %v6972 = vand.u32 2147483647, %v5509
    %vm6973 = vcmp.le.f32.partialorder %v6972, 0.7853982
    %vm6974 = vcmp.lt.s32.totalorder %v5509, 0
    %v6975 = vand.u32 %v5509, 2139095040
    %v6976 = vshrl.u32 %v6975, 23
    %v6977 = vsub.s32 %v6976, 127
    %v6978 = vand.u32 2147483647, %v5509
    %v6979 = vand.u32 %v6978, 8388607
    %v6980 = vor.u32 %v6979, 8388608
    %v6981 = vsub.s32 0, %v6980
    %v6982 = vadd.s32 %v6977, 1
    %vm6983 = vcmp.gt.s32.totalorder %v6982, 0
    %v6984 = vsel %vm6983, %v6982, 0
    %v6985 = vshrl.u32 %v6984, 5
    %v6986 = vand.u32 %v6984, 31
    %v6987 = vsub.s32 32, %v6986
    %v6988 = vshrl.u32 683565275, %v6987
    %v6989 = vshll.u32 683565275, %v6986
    %v6990 = vshrl.u32 2475754826, %v6987
    %v6991 = vor.u32 %v6989, %v6990
    %v6992 = vshll.u32 2475754826, %v6986
    %v6993 = vshrl.u32 2131351028, %v6987
    %v6994 = vor.u32 %v6992, %v6993
    %v6995 = vshll.u32 2131351028, %v6986
    %v6996 = vshrl.u32 2102212464, %v6987
    %v6997 = vor.u32 %v6995, %v6996
    %v6998 = vshll.u32 2102212464, %v6986
    %v6999 = vshrl.u32 920167782, %v6987
    %v7000 = vor.u32 %v6998, %v6999
    %v7001 = vshll.u32 920167782, %v6986
    %v7002 = vshrl.u32 1326507024, %v6987
    %v7003 = vor.u32 %v7001, %v7002
    %vm7004 = vcmp.lt.s32.totalorder %v6985, 1
    %vm7005 = vcmp.lt.s32.totalorder %v6985, 2
    %vm7006 = vcmp.lt.s32.totalorder %v6985, 3
    %vm7007 = vcmp.lt.s32.totalorder %v6985, 4
    %v7008 = vsel %vm7004, %v6988, %v6991
    %v7009 = vsel %vm7007, %v6997, 2102212464
    %v7010 = vsel %vm7006, %v6994, %v7009
    %v7011 = vsel %vm7005, %v7008, %v7010
    %v7012 = vsel %vm7004, %v6991, %v6994
    %v7013 = vsel %vm7007, %v7000, 920167782
    %v7014 = vsel %vm7006, %v6997, %v7013
    %v7015 = vsel %vm7005, %v7012, %v7014
    %v7016 = vsel %vm7004, %v6994, %v6997
    %v7017 = vsel %vm7007, %v7003, 1326507024
    %v7018 = vsel %vm7006, %v7000, %v7017
    %v7019 = vsel %vm7005, %v7016, %v7018
    %v7020 = vshll.u32 %v6980, 8
    %v7021 = vand.u32 %v7020, 65535
    %v7022 = vshrl.u32 %v7020, 16
    %v7023 = vand.u32 %v7019, 65535
    %v7024 = vshrl.u32 %v7019, 16
    %v7025 = vmul.u32 %v7021, %v7023
    %v7026 = vmul.u32 %v7021, %v7024
    %v7027 = vmul.u32 %v7022, %v7023
    %v7028 = vmul.u32 %v7022, %v7024
    %v7029 = vshll.u32 %v7026, 16
    %v7030 = vshrl.u32 %v7026, 16
    %v7031 = vshll.u32 %v7027, 16
    %v7032 = vshrl.u32 %v7027, 16
    %vm7033 = vc.u32 %v7025, %v7029
    %v7034 = vsel %vm7033, 1, 0
    %v7035 = vadd.s32 %v7025, %v7029
    %v7036 = vadd.s32 %v7028, %v7034
    %vm7037 = vc.u32 %v7035, %v7031
    %v7038 = vsel %vm7037, 1, 0
    %v7039 = vadd.s32 %v7035, %v7031
    %v7040 = vadd.s32 %v7036, %v7038
    %v7041 = vadd.s32 %v7040, %v7030
    %v7042 = vadd.s32 %v7041, %v7032
    %v7043 = vand.u32 %v7020, 65535
    %v7044 = vshrl.u32 %v7020, 16
    %v7045 = vand.u32 %v7015, 65535
    %v7046 = vshrl.u32 %v7015, 16
    %v7047 = vmul.u32 %v7043, %v7045
    %v7048 = vmul.u32 %v7043, %v7046
    %v7049 = vmul.u32 %v7044, %v7045
    %v7050 = vmul.u32 %v7044, %v7046
    %v7051 = vshll.u32 %v7048, 16
    %v7052 = vshrl.u32 %v7048, 16
    %v7053 = vshll.u32 %v7049, 16
    %v7054 = vshrl.u32 %v7049, 16
    %vm7055 = vc.u32 %v7047, %v7051
    %v7056 = vsel %vm7055, 1, 0
    %v7057 = vadd.s32 %v7047, %v7051
    %v7058 = vadd.s32 %v7050, %v7056
    %vm7059 = vc.u32 %v7057, %v7053
    %v7060 = vsel %vm7059, 1, 0
    %v7061 = vadd.s32 %v7057, %v7053
    %v7062 = vadd.s32 %v7058, %v7060
    %v7063 = vadd.s32 %v7062, %v7052
    %v7064 = vadd.s32 %v7063, %v7054
    %v7065 = vmul.u32 %v7020, %v7011
    %v7066 = vadd.s32 %v7042, %v7061
    %vm7067 = vc.u32 %v7042, %v7061
    %v7068 = vadd.s32 %v7064, 1
    %v7069 = vsel %vm7067, %v7068, %v7064
    %v7070 = vadd.s32 %v7065, %v7069
    %v7071 = vadd.s32 %v7070, 536870912
    %v7072 = vshrl.u32 %v7071, 30
    %v7073 = vshll.u32 %v7072, 30
    %v7074 = vsub.s32 %v7070, %v7073
    %vm7075 = vcmp.lt.s32.totalorder %v7074, 0
    %v7076 = vsub.s32 0, %v7074
    %v7077 = vsel %vm7075, %v7076, %v7074
    %v7078 = vclz %v7077
    %v7079 = vsub.s32 %v7078, 2
    %vm7080 = vcmp.gt.s32.totalorder 0, %v7079
    %v7081 = vsel %vm7080, 0, %v7079
    %v7082 = vsub.s32 32, %v7081
    %v7083 = vshll.u32 %v7074, %v7081
    %v7084 = vshrl.u32 %v7066, %v7082
    %v7085 = vor.u32 %v7083, %v7084
    %v7086 = vsub.s32 4294967266, %v7081
    %v7087 = vadd.s32 %v7086, 127
    %v7088 = vshll.u32 %v7087, 23
    %v7089 = vor.u32 4788187, %v7088
    %v7090 = vand.u32 2147483647, %v7089
    %v7092 = vcvt.s32.f32 %v7085
    %v7093 = vmul.f32 %v7092, %v7090
    %v7094 = vxor.u32 %v7093, 2147483648
    %v7095 = vsel %vm6974, %v7094, %v7093
    %v7096 = vsub.s32 4, %v7072
    %v7097 = vsel %vm6974, %v7096, %v7072
    %v7098 = vsel %vm6973, %v5509, %v7095
    %v7099 = vsel %vm6973, 0, %v7097
    %v7100 = vmul.f32 %v7098, %v7098
    %v7101 = vmul.f32 %v7100, -0.001358992
    %v7102 = vadd.f32 %v7101, 0.041655596
    %v7103 = vmul.f32 %v7100, %v7102
    %v7104 = vadd.f32 %v7103, -0.4999988
    %v7105 = vmul.f32 %v7100, %v7104
    %v7106 = vadd.f32 1.0, %v7105
    %v7107 = vmul.f32 %v7098, %v7098
    %v7108 = vmul.f32 %v7107, -0.00019511016
    %v7109 = vadd.f32 %v7108, 0.008332121
    %v7110 = vmul.f32 %v7107, %v7109
    %v7111 = vadd.f32 %v7110, -0.16666654
    %v7112 = vmul.f32 %v7107, %v7111
    %v7113 = vadd.f32 %v7112, 1.0
    %v7114 = vmul.f32 %v7113, %v7098
    %vm7115 = vweird.f32 %v5509
    %v7116 = vadd.s32 %v7099, 3
    %v7117 = vand.u32 %v7116, 3
    %vm7118 = vcmp.lt.s32.totalorder %v7117, 2
    %vm7119 = vcmp.eq.s32.totalorder %v7117, 0
    %v7120 = vxor.u32 %v7114, 2147483648
    %v7121 = vsel %vm7119, %v7106, %v7120
    %vm7122 = vcmp.eq.s32.totalorder %v7117, 2
    %v7123 = vxor.u32 %v7106, 2147483648
    %v7124 = vsel %vm7122, %v7123, %v7114
    %v7125 = vsel %vm7118, %v7121, %v7124
    %v7126 = vsel %vm7115, nan, %v7125
    %v7127 = vand.u32 2147483647, %v5512
    %vm7128 = vcmp.le.f32.partialorder %v7127, 0.7853982
    %vm7129 = vcmp.lt.s32.totalorder %v5512, 0
    %v7130 = vand.u32 %v5512, 2139095040
    %v7131 = vshrl.u32 %v7130, 23
    %v7132 = vsub.s32 %v7131, 127
    %v7133 = vand.u32 2147483647, %v5512
    %v7134 = vand.u32 %v7133, 8388607
    %v7135 = vor.u32 %v7134, 8388608
    %v7136 = vsub.s32 0, %v7135
    %v7137 = vadd.s32 %v7132, 1
    %vm7138 = vcmp.gt.s32.totalorder %v7137, 0
    %v7139 = vsel %vm7138, %v7137, 0
    %v7140 = vshrl.u32 %v7139, 5
    %v7141 = vand.u32 %v7139, 31
    %v7142 = vsub.s32 32, %v7141
    %v7143 = vshrl.u32 683565275, %v7142
    %v7144 = vshll.u32 683565275, %v7141
    %v7145 = vshrl.u32 2475754826, %v7142
    %v7146 = vor.u32 %v7144, %v7145
    %v7147 = vshll.u32 2475754826, %v7141
    %v7148 = vshrl.u32 2131351028, %v7142
    %v7149 = vor.u32 %v7147, %v7148
    %v7150 = vshll.u32 2131351028, %v7141
    %v7151 = vshrl.u32 2102212464, %v7142
    %v7152 = vor.u32 %v7150, %v7151
    %v7153 = vshll.u32 2102212464, %v7141
    %v7154 = vshrl.u32 920167782, %v7142
    %v7155 = vor.u32 %v7153, %v7154
    %v7156 = vshll.u32 920167782, %v7141
    %v7157 = vshrl.u32 1326507024, %v7142
    %v7158 = vor.u32 %v7156, %v7157
    %vm7159 = vcmp.lt.s32.totalorder %v7140, 1
    %vm7160 = vcmp.lt.s32.totalorder %v7140, 2
    %vm7161 = vcmp.lt.s32.totalorder %v7140, 3
    %vm7162 = vcmp.lt.s32.totalorder %v7140, 4
    %v7163 = vsel %vm7159, %v7143, %v7146
    %v7164 = vsel %vm7162, %v7152, 2102212464
    %v7165 = vsel %vm7161, %v7149, %v7164
    %v7166 = vsel %vm7160, %v7163, %v7165
    %v7167 = vsel %vm7159, %v7146, %v7149
    %v7168 = vsel %vm7162, %v7155, 920167782
    %v7169 = vsel %vm7161, %v7152, %v7168
    %v7170 = vsel %vm7160, %v7167, %v7169
    %v7171 = vsel %vm7159, %v7149, %v7152
    %v7172 = vsel %vm7162, %v7158, 1326507024
    %v7173 = vsel %vm7161, %v7155, %v7172
    %v7174 = vsel %vm7160, %v7171, %v7173
    %v7175 = vshll.u32 %v7135, 8
    %v7176 = vand.u32 %v7175, 65535
    %v7177 = vshrl.u32 %v7175, 16
    %v7178 = vand.u32 %v7174, 65535
    %v7179 = vshrl.u32 %v7174, 16
    %v7180 = vmul.u32 %v7176, %v7178
    %v7181 = vmul.u32 %v7176, %v7179
    %v7182 = vmul.u32 %v7177, %v7178
    %v7183 = vmul.u32 %v7177, %v7179
    %v7184 = vshll.u32 %v7181, 16
    %v7185 = vshrl.u32 %v7181, 16
    %v7186 = vshll.u32 %v7182, 16
    %v7187 = vshrl.u32 %v7182, 16
    %vm7188 = vc.u32 %v7180, %v7184
    %v7189 = vsel %vm7188, 1, 0
    %v7190 = vadd.s32 %v7180, %v7184
    %v7191 = vadd.s32 %v7183, %v7189
    %vm7192 = vc.u32 %v7190, %v7186
    %v7193 = vsel %vm7192, 1, 0
    %v7194 = vadd.s32 %v7190, %v7186
    %v7195 = vadd.s32 %v7191, %v7193
    %v7196 = vadd.s32 %v7195, %v7185
    %v7197 = vadd.s32 %v7196, %v7187
    %v7198 = vand.u32 %v7175, 65535
    %v7199 = vshrl.u32 %v7175, 16
    %v7200 = vand.u32 %v7170, 65535
    %v7201 = vshrl.u32 %v7170, 16
    %v7202 = vmul.u32 %v7198, %v7200
    %v7203 = vmul.u32 %v7198, %v7201
    %v7204 = vmul.u32 %v7199, %v7200
    %v7205 = vmul.u32 %v7199, %v7201
    %v7206 = vshll.u32 %v7203, 16
    %v7207 = vshrl.u32 %v7203, 16
    %v7208 = vshll.u32 %v7204, 16
    %v7209 = vshrl.u32 %v7204, 16
    %vm7210 = vc.u32 %v7202, %v7206
    %v7211 = vsel %vm7210, 1, 0
    %v7212 = vadd.s32 %v7202, %v7206
    %v7213 = vadd.s32 %v7205, %v7211
    %vm7214 = vc.u32 %v7212, %v7208
    %v7215 = vsel %vm7214, 1, 0
    %v7216 = vadd.s32 %v7212, %v7208
    %v7217 = vadd.s32 %v7213, %v7215
    %v7218 = vadd.s32 %v7217, %v7207
    %v7219 = vadd.s32 %v7218, %v7209
    %v7220 = vmul.u32 %v7175, %v7166
    %v7221 = vadd.s32 %v7197, %v7216
    %vm7222 = vc.u32 %v7197, %v7216
    %v7223 = vadd.s32 %v7219, 1
    %v7224 = vsel %vm7222, %v7223, %v7219
    %v7225 = vadd.s32 %v7220, %v7224
    %v7226 = vadd.s32 %v7225, 536870912
    %v7227 = vshrl.u32 %v7226, 30
    %v7228 = vshll.u32 %v7227, 30
    %v7229 = vsub.s32 %v7225, %v7228
    %vm7230 = vcmp.lt.s32.totalorder %v7229, 0
    %v7231 = vsub.s32 0, %v7229
    %v7232 = vsel %vm7230, %v7231, %v7229
    %v7233 = vclz %v7232
    %v7234 = vsub.s32 %v7233, 2
    %vm7235 = vcmp.gt.s32.totalorder 0, %v7234
    %v7236 = vsel %vm7235, 0, %v7234
    %v7237 = vsub.s32 32, %v7236
    %v7238 = vshll.u32 %v7229, %v7236
    %v7239 = vshrl.u32 %v7221, %v7237
    %v7240 = vor.u32 %v7238, %v7239
    %v7241 = vsub.s32 4294967266, %v7236
    %v7242 = vadd.s32 %v7241, 127
    %v7243 = vshll.u32 %v7242, 23
    %v7244 = vor.u32 4788187, %v7243
    %v7245 = vand.u32 2147483647, %v7244
    %v7247 = vcvt.s32.f32 %v7240
    %v7248 = vmul.f32 %v7247, %v7245
    %v7249 = vxor.u32 %v7248, 2147483648
    %v7250 = vsel %vm7129, %v7249, %v7248
    %v7251 = vsub.s32 4, %v7227
    %v7252 = vsel %vm7129, %v7251, %v7227
    %v7253 = vsel %vm7128, %v5512, %v7250
    %v7254 = vsel %vm7128, 0, %v7252
    %v7255 = vmul.f32 %v7253, %v7253
    %v7256 = vmul.f32 %v7255, -0.001358992
    %v7257 = vadd.f32 %v7256, 0.041655596
    %v7258 = vmul.f32 %v7255, %v7257
    %v7259 = vadd.f32 %v7258, -0.4999988
    %v7260 = vmul.f32 %v7255, %v7259
    %v7261 = vadd.f32 1.0, %v7260
    %v7262 = vmul.f32 %v7253, %v7253
    %v7263 = vmul.f32 %v7262, -0.00019511016
    %v7264 = vadd.f32 %v7263, 0.008332121
    %v7265 = vmul.f32 %v7262, %v7264
    %v7266 = vadd.f32 %v7265, -0.16666654
    %v7267 = vmul.f32 %v7262, %v7266
    %v7268 = vadd.f32 %v7267, 1.0
    %v7269 = vmul.f32 %v7268, %v7253
    %vm7270 = vweird.f32 %v5512
    %v7271 = vadd.s32 %v7254, 3
    %v7272 = vand.u32 %v7271, 3
    %vm7273 = vcmp.lt.s32.totalorder %v7272, 2
    %vm7274 = vcmp.eq.s32.totalorder %v7272, 0
    %v7275 = vxor.u32 %v7269, 2147483648
    %v7276 = vsel %vm7274, %v7261, %v7275
    %vm7277 = vcmp.eq.s32.totalorder %v7272, 2
    %v7278 = vxor.u32 %v7261, 2147483648
    %v7279 = vsel %vm7277, %v7278, %v7269
    %v7280 = vsel %vm7273, %v7276, %v7279
    %v7281 = vsel %vm7270, nan, %v7280
    %v7282 = vand.u32 2147483647, %v5515
    %vm7283 = vcmp.le.f32.partialorder %v7282, 0.7853982
    %vm7284 = vcmp.lt.s32.totalorder %v5515, 0
    %v7285 = vand.u32 %v5515, 2139095040
    %v7286 = vshrl.u32 %v7285, 23
    %v7287 = vsub.s32 %v7286, 127
    %v7288 = vand.u32 2147483647, %v5515
    %v7289 = vand.u32 %v7288, 8388607
    %v7290 = vor.u32 %v7289, 8388608
    %v7291 = vsub.s32 0, %v7290
    %v7292 = vadd.s32 %v7287, 1
    %vm7293 = vcmp.gt.s32.totalorder %v7292, 0
    %v7294 = vsel %vm7293, %v7292, 0
    %v7295 = vshrl.u32 %v7294, 5
    %v7296 = vand.u32 %v7294, 31
    %v7297 = vsub.s32 32, %v7296
    %v7298 = vshrl.u32 683565275, %v7297
    %v7299 = vshll.u32 683565275, %v7296
    %v7300 = vshrl.u32 2475754826, %v7297
    %v7301 = vor.u32 %v7299, %v7300
    %v7302 = vshll.u32 2475754826, %v7296
    %v7303 = vshrl.u32 2131351028, %v7297
    %v7304 = vor.u32 %v7302, %v7303
    %v7305 = vshll.u32 2131351028, %v7296
    %v7306 = vshrl.u32 2102212464, %v7297
    %v7307 = vor.u32 %v7305, %v7306
    %v7308 = vshll.u32 2102212464, %v7296
    %v7309 = vshrl.u32 920167782, %v7297
    %v7310 = vor.u32 %v7308, %v7309
    %v7311 = vshll.u32 920167782, %v7296
    %v7312 = vshrl.u32 1326507024, %v7297
    %v7313 = vor.u32 %v7311, %v7312
    %vm7314 = vcmp.lt.s32.totalorder %v7295, 1
    %vm7315 = vcmp.lt.s32.totalorder %v7295, 2
    %vm7316 = vcmp.lt.s32.totalorder %v7295, 3
    %vm7317 = vcmp.lt.s32.totalorder %v7295, 4
    %v7318 = vsel %vm7314, %v7298, %v7301
    %v7319 = vsel %vm7317, %v7307, 2102212464
    %v7320 = vsel %vm7316, %v7304, %v7319
    %v7321 = vsel %vm7315, %v7318, %v7320
    %v7322 = vsel %vm7314, %v7301, %v7304
    %v7323 = vsel %vm7317, %v7310, 920167782
    %v7324 = vsel %vm7316, %v7307, %v7323
    %v7325 = vsel %vm7315, %v7322, %v7324
    %v7326 = vsel %vm7314, %v7304, %v7307
    %v7327 = vsel %vm7317, %v7313, 1326507024
    %v7328 = vsel %vm7316, %v7310, %v7327
    %v7329 = vsel %vm7315, %v7326, %v7328
    %v7330 = vshll.u32 %v7290, 8
    %v7331 = vand.u32 %v7330, 65535
    %v7332 = vshrl.u32 %v7330, 16
    %v7333 = vand.u32 %v7329, 65535
    %v7334 = vshrl.u32 %v7329, 16
    %v7335 = vmul.u32 %v7331, %v7333
    %v7336 = vmul.u32 %v7331, %v7334
    %v7337 = vmul.u32 %v7332, %v7333
    %v7338 = vmul.u32 %v7332, %v7334
    %v7339 = vshll.u32 %v7336, 16
    %v7340 = vshrl.u32 %v7336, 16
    %v7341 = vshll.u32 %v7337, 16
    %v7342 = vshrl.u32 %v7337, 16
    %vm7343 = vc.u32 %v7335, %v7339
    %v7344 = vsel %vm7343, 1, 0
    %v7345 = vadd.s32 %v7335, %v7339
    %v7346 = vadd.s32 %v7338, %v7344
    %vm7347 = vc.u32 %v7345, %v7341
    %v7348 = vsel %vm7347, 1, 0
    %v7349 = vadd.s32 %v7345, %v7341
    %v7350 = vadd.s32 %v7346, %v7348
    %v7351 = vadd.s32 %v7350, %v7340
    %v7352 = vadd.s32 %v7351, %v7342
    %v7353 = vand.u32 %v7330, 65535
    %v7354 = vshrl.u32 %v7330, 16
    %v7355 = vand.u32 %v7325, 65535
    %v7356 = vshrl.u32 %v7325, 16
    %v7357 = vmul.u32 %v7353, %v7355
    %v7358 = vmul.u32 %v7353, %v7356
    %v7359 = vmul.u32 %v7354, %v7355
    %v7360 = vmul.u32 %v7354, %v7356
    %v7361 = vshll.u32 %v7358, 16
    %v7362 = vshrl.u32 %v7358, 16
    %v7363 = vshll.u32 %v7359, 16
    %v7364 = vshrl.u32 %v7359, 16
    %vm7365 = vc.u32 %v7357, %v7361
    %v7366 = vsel %vm7365, 1, 0
    %v7367 = vadd.s32 %v7357, %v7361
    %v7368 = vadd.s32 %v7360, %v7366
    %vm7369 = vc.u32 %v7367, %v7363
    %v7370 = vsel %vm7369, 1, 0
    %v7371 = vadd.s32 %v7367, %v7363
    %v7372 = vadd.s32 %v7368, %v7370
    %v7373 = vadd.s32 %v7372, %v7362
    %v7374 = vadd.s32 %v7373, %v7364
    %v7375 = vmul.u32 %v7330, %v7321
    %v7376 = vadd.s32 %v7352, %v7371
    %vm7377 = vc.u32 %v7352, %v7371
    %v7378 = vadd.s32 %v7374, 1
    %v7379 = vsel %vm7377, %v7378, %v7374
    %v7380 = vadd.s32 %v7375, %v7379
    %v7381 = vadd.s32 %v7380, 536870912
    %v7382 = vshrl.u32 %v7381, 30
    %v7383 = vshll.u32 %v7382, 30
    %v7384 = vsub.s32 %v7380, %v7383
    %vm7385 = vcmp.lt.s32.totalorder %v7384, 0
    %v7386 = vsub.s32 0, %v7384
    %v7387 = vsel %vm7385, %v7386, %v7384
    %v7388 = vclz %v7387
    %v7389 = vsub.s32 %v7388, 2
    %vm7390 = vcmp.gt.s32.totalorder 0, %v7389
    %v7391 = vsel %vm7390, 0, %v7389
    %v7392 = vsub.s32 32, %v7391
    %v7393 = vshll.u32 %v7384, %v7391
    %v7394 = vshrl.u32 %v7376, %v7392
    %v7395 = vor.u32 %v7393, %v7394
    %v7396 = vsub.s32 4294967266, %v7391
    %v7397 = vadd.s32 %v7396, 127
    %v7398 = vshll.u32 %v7397, 23
    %v7399 = vor.u32 4788187, %v7398
    %v7400 = vand.u32 2147483647, %v7399
    %v7402 = vcvt.s32.f32 %v7395
    %v7403 = vmul.f32 %v7402, %v7400
    %v7404 = vxor.u32 %v7403, 2147483648
    %v7405 = vsel %vm7284, %v7404, %v7403
    %v7406 = vsub.s32 4, %v7382
    %v7407 = vsel %vm7284, %v7406, %v7382
    %v7408 = vsel %vm7283, %v5515, %v7405
    %v7409 = vsel %vm7283, 0, %v7407
    %v7410 = vmul.f32 %v7408, %v7408
    %v7411 = vmul.f32 %v7410, -0.001358992
    %v7412 = vadd.f32 %v7411, 0.041655596
    %v7413 = vmul.f32 %v7410, %v7412
    %v7414 = vadd.f32 %v7413, -0.4999988
    %v7415 = vmul.f32 %v7410, %v7414
    %v7416 = vadd.f32 1.0, %v7415
    %v7417 = vmul.f32 %v7408, %v7408
    %v7418 = vmul.f32 %v7417, -0.00019511016
    %v7419 = vadd.f32 %v7418, 0.008332121
    %v7420 = vmul.f32 %v7417, %v7419
    %v7421 = vadd.f32 %v7420, -0.16666654
    %v7422 = vmul.f32 %v7417, %v7421
    %v7423 = vadd.f32 %v7422, 1.0
    %v7424 = vmul.f32 %v7423, %v7408
    %vm7425 = vweird.f32 %v5515
    %v7426 = vadd.s32 %v7409, 3
    %v7427 = vand.u32 %v7426, 3
    %vm7428 = vcmp.lt.s32.totalorder %v7427, 2
    %vm7429 = vcmp.eq.s32.totalorder %v7427, 0
    %v7430 = vxor.u32 %v7424, 2147483648
    %v7431 = vsel %vm7429, %v7416, %v7430
    %vm7432 = vcmp.eq.s32.totalorder %v7427, 2
    %v7433 = vxor.u32 %v7416, 2147483648
    %v7434 = vsel %vm7432, %v7433, %v7424
    %v7435 = vsel %vm7428, %v7431, %v7434
    %v7436 = vsel %vm7425, nan, %v7435
    %v7437 = vand.u32 2147483647, %v5518
    %vm7438 = vcmp.le.f32.partialorder %v7437, 0.7853982
    %vm7439 = vcmp.lt.s32.totalorder %v5518, 0
    %v7440 = vand.u32 %v5518, 2139095040
    %v7441 = vshrl.u32 %v7440, 23
    %v7442 = vsub.s32 %v7441, 127
    %v7443 = vand.u32 2147483647, %v5518
    %v7444 = vand.u32 %v7443, 8388607
    %v7445 = vor.u32 %v7444, 8388608
    %v7446 = vsub.s32 0, %v7445
    %v7447 = vadd.s32 %v7442, 1
    %vm7448 = vcmp.gt.s32.totalorder %v7447, 0
    %v7449 = vsel %vm7448, %v7447, 0
    %v7450 = vshrl.u32 %v7449, 5
    %v7451 = vand.u32 %v7449, 31
    %v7452 = vsub.s32 32, %v7451
    %v7453 = vshrl.u32 683565275, %v7452
    %v7454 = vshll.u32 683565275, %v7451
    %v7455 = vshrl.u32 2475754826, %v7452
    %v7456 = vor.u32 %v7454, %v7455
    %v7457 = vshll.u32 2475754826, %v7451
    %v7458 = vshrl.u32 2131351028, %v7452
    %v7459 = vor.u32 %v7457, %v7458
    %v7460 = vshll.u32 2131351028, %v7451
    %v7461 = vshrl.u32 2102212464, %v7452
    %v7462 = vor.u32 %v7460, %v7461
    %v7463 = vshll.u32 2102212464, %v7451
    %v7464 = vshrl.u32 920167782, %v7452
    %v7465 = vor.u32 %v7463, %v7464
    %v7466 = vshll.u32 920167782, %v7451
    %v7467 = vshrl.u32 1326507024, %v7452
    %v7468 = vor.u32 %v7466, %v7467
    %vm7469 = vcmp.lt.s32.totalorder %v7450, 1
    %vm7470 = vcmp.lt.s32.totalorder %v7450, 2
    %vm7471 = vcmp.lt.s32.totalorder %v7450, 3
    %vm7472 = vcmp.lt.s32.totalorder %v7450, 4
    %v7473 = vsel %vm7469, %v7453, %v7456
    %v7474 = vsel %vm7472, %v7462, 2102212464
    %v7475 = vsel %vm7471, %v7459, %v7474
    %v7476 = vsel %vm7470, %v7473, %v7475
    %v7477 = vsel %vm7469, %v7456, %v7459
    %v7478 = vsel %vm7472, %v7465, 920167782
    %v7479 = vsel %vm7471, %v7462, %v7478
    %v7480 = vsel %vm7470, %v7477, %v7479
    %v7481 = vsel %vm7469, %v7459, %v7462
    %v7482 = vsel %vm7472, %v7468, 1326507024
    %v7483 = vsel %vm7471, %v7465, %v7482
    %v7484 = vsel %vm7470, %v7481, %v7483
    %v7485 = vshll.u32 %v7445, 8
    %v7486 = vand.u32 %v7485, 65535
    %v7487 = vshrl.u32 %v7485, 16
    %v7488 = vand.u32 %v7484, 65535
    %v7489 = vshrl.u32 %v7484, 16
    %v7490 = vmul.u32 %v7486, %v7488
    %v7491 = vmul.u32 %v7486, %v7489
    %v7492 = vmul.u32 %v7487, %v7488
    %v7493 = vmul.u32 %v7487, %v7489
    %v7494 = vshll.u32 %v7491, 16
    %v7495 = vshrl.u32 %v7491, 16
    %v7496 = vshll.u32 %v7492, 16
    %v7497 = vshrl.u32 %v7492, 16
    %vm7498 = vc.u32 %v7490, %v7494
    %v7499 = vsel %vm7498, 1, 0
    %v7500 = vadd.s32 %v7490, %v7494
    %v7501 = vadd.s32 %v7493, %v7499
    %vm7502 = vc.u32 %v7500, %v7496
    %v7503 = vsel %vm7502, 1, 0
    %v7504 = vadd.s32 %v7500, %v7496
    %v7505 = vadd.s32 %v7501, %v7503
    %v7506 = vadd.s32 %v7505, %v7495
    %v7507 = vadd.s32 %v7506, %v7497
    %v7508 = vand.u32 %v7485, 65535
    %v7509 = vshrl.u32 %v7485, 16
    %v7510 = vand.u32 %v7480, 65535
    %v7511 = vshrl.u32 %v7480, 16
    %v7512 = vmul.u32 %v7508, %v7510
    %v7513 = vmul.u32 %v7508, %v7511
    %v7514 = vmul.u32 %v7509, %v7510
    %v7515 = vmul.u32 %v7509, %v7511
    %v7516 = vshll.u32 %v7513, 16
    %v7517 = vshrl.u32 %v7513, 16
    %v7518 = vshll.u32 %v7514, 16
    %v7519 = vshrl.u32 %v7514, 16
    %vm7520 = vc.u32 %v7512, %v7516
    %v7521 = vsel %vm7520, 1, 0
    %v7522 = vadd.s32 %v7512, %v7516
    %v7523 = vadd.s32 %v7515, %v7521
    %vm7524 = vc.u32 %v7522, %v7518
    %v7525 = vsel %vm7524, 1, 0
    %v7526 = vadd.s32 %v7522, %v7518
    %v7527 = vadd.s32 %v7523, %v7525
    %v7528 = vadd.s32 %v7527, %v7517
    %v7529 = vadd.s32 %v7528, %v7519
    %v7530 = vmul.u32 %v7485, %v7476
    %v7531 = vadd.s32 %v7507, %v7526
    %vm7532 = vc.u32 %v7507, %v7526
    %v7533 = vadd.s32 %v7529, 1
    %v7534 = vsel %vm7532, %v7533, %v7529
    %v7535 = vadd.s32 %v7530, %v7534
    %v7536 = vadd.s32 %v7535, 536870912
    %v7537 = vshrl.u32 %v7536, 30
    %v7538 = vshll.u32 %v7537, 30
    %v7539 = vsub.s32 %v7535, %v7538
    %vm7540 = vcmp.lt.s32.totalorder %v7539, 0
    %v7541 = vsub.s32 0, %v7539
    %v7542 = vsel %vm7540, %v7541, %v7539
    %v7543 = vclz %v7542
    %v7544 = vsub.s32 %v7543, 2
    %vm7545 = vcmp.gt.s32.totalorder 0, %v7544
    %v7546 = vsel %vm7545, 0, %v7544
    %v7547 = vsub.s32 32, %v7546
    %v7548 = vshll.u32 %v7539, %v7546
    %v7549 = vshrl.u32 %v7531, %v7547
    %v7550 = vor.u32 %v7548, %v7549
    %v7551 = vsub.s32 4294967266, %v7546
    %v7552 = vadd.s32 %v7551, 127
    %v7553 = vshll.u32 %v7552, 23
    %v7554 = vor.u32 4788187, %v7553
    %v7555 = vand.u32 2147483647, %v7554
    %v7557 = vcvt.s32.f32 %v7550
    %v7558 = vmul.f32 %v7557, %v7555
    %v7559 = vxor.u32 %v7558, 2147483648
    %v7560 = vsel %vm7439, %v7559, %v7558
    %v7561 = vsub.s32 4, %v7537
    %v7562 = vsel %vm7439, %v7561, %v7537
    %v7563 = vsel %vm7438, %v5518, %v7560
    %v7564 = vsel %vm7438, 0, %v7562
    %v7565 = vmul.f32 %v7563, %v7563
    %v7566 = vmul.f32 %v7565, -0.001358992
    %v7567 = vadd.f32 %v7566, 0.041655596
    %v7568 = vmul.f32 %v7565, %v7567
    %v7569 = vadd.f32 %v7568, -0.4999988
    %v7570 = vmul.f32 %v7565, %v7569
    %v7571 = vadd.f32 1.0, %v7570
    %v7572 = vmul.f32 %v7563, %v7563
    %v7573 = vmul.f32 %v7572, -0.00019511016
    %v7574 = vadd.f32 %v7573, 0.008332121
    %v7575 = vmul.f32 %v7572, %v7574
    %v7576 = vadd.f32 %v7575, -0.16666654
    %v7577 = vmul.f32 %v7572, %v7576
    %v7578 = vadd.f32 %v7577, 1.0
    %v7579 = vmul.f32 %v7578, %v7563
    %vm7580 = vweird.f32 %v5518
    %v7581 = vadd.s32 %v7564, 3
    %v7582 = vand.u32 %v7581, 3
    %vm7583 = vcmp.lt.s32.totalorder %v7582, 2
    %vm7584 = vcmp.eq.s32.totalorder %v7582, 0
    %v7585 = vxor.u32 %v7579, 2147483648
    %v7586 = vsel %vm7584, %v7571, %v7585
    %vm7587 = vcmp.eq.s32.totalorder %v7582, 2
    %v7588 = vxor.u32 %v7571, 2147483648
    %v7589 = vsel %vm7587, %v7588, %v7579
    %v7590 = vsel %vm7583, %v7586, %v7589
    %v7591 = vsel %vm7580, nan, %v7590
    %v7592 = vand.u32 2147483647, %v5521
    %vm7593 = vcmp.le.f32.partialorder %v7592, 0.7853982
    %vm7594 = vcmp.lt.s32.totalorder %v5521, 0
    %v7595 = vand.u32 %v5521, 2139095040
    %v7596 = vshrl.u32 %v7595, 23
    %v7597 = vsub.s32 %v7596, 127
    %v7598 = vand.u32 2147483647, %v5521
    %v7599 = vand.u32 %v7598, 8388607
    %v7600 = vor.u32 %v7599, 8388608
    %v7601 = vsub.s32 0, %v7600
    %v7602 = vadd.s32 %v7597, 1
    %vm7603 = vcmp.gt.s32.totalorder %v7602, 0
    %v7604 = vsel %vm7603, %v7602, 0
    %v7605 = vshrl.u32 %v7604, 5
    %v7606 = vand.u32 %v7604, 31
    %v7607 = vsub.s32 32, %v7606
    %v7608 = vshrl.u32 683565275, %v7607
    %v7609 = vshll.u32 683565275, %v7606
    %v7610 = vshrl.u32 2475754826, %v7607
    %v7611 = vor.u32 %v7609, %v7610
    %v7612 = vshll.u32 2475754826, %v7606
    %v7613 = vshrl.u32 2131351028, %v7607
    %v7614 = vor.u32 %v7612, %v7613
    %v7615 = vshll.u32 2131351028, %v7606
    %v7616 = vshrl.u32 2102212464, %v7607
    %v7617 = vor.u32 %v7615, %v7616
    %v7618 = vshll.u32 2102212464, %v7606
    %v7619 = vshrl.u32 920167782, %v7607
    %v7620 = vor.u32 %v7618, %v7619
    %v7621 = vshll.u32 920167782, %v7606
    %v7622 = vshrl.u32 1326507024, %v7607
    %v7623 = vor.u32 %v7621, %v7622
    %vm7624 = vcmp.lt.s32.totalorder %v7605, 1
    %vm7625 = vcmp.lt.s32.totalorder %v7605, 2
    %vm7626 = vcmp.lt.s32.totalorder %v7605, 3
    %vm7627 = vcmp.lt.s32.totalorder %v7605, 4
    %v7628 = vsel %vm7624, %v7608, %v7611
    %v7629 = vsel %vm7627, %v7617, 2102212464
    %v7630 = vsel %vm7626, %v7614, %v7629
    %v7631 = vsel %vm7625, %v7628, %v7630
    %v7632 = vsel %vm7624, %v7611, %v7614
    %v7633 = vsel %vm7627, %v7620, 920167782
    %v7634 = vsel %vm7626, %v7617, %v7633
    %v7635 = vsel %vm7625, %v7632, %v7634
    %v7636 = vsel %vm7624, %v7614, %v7617
    %v7637 = vsel %vm7627, %v7623, 1326507024
    %v7638 = vsel %vm7626, %v7620, %v7637
    %v7639 = vsel %vm7625, %v7636, %v7638
    %v7640 = vshll.u32 %v7600, 8
    %v7641 = vand.u32 %v7640, 65535
    %v7642 = vshrl.u32 %v7640, 16
    %v7643 = vand.u32 %v7639, 65535
    %v7644 = vshrl.u32 %v7639, 16
    %v7645 = vmul.u32 %v7641, %v7643
    %v7646 = vmul.u32 %v7641, %v7644
    %v7647 = vmul.u32 %v7642, %v7643
    %v7648 = vmul.u32 %v7642, %v7644
    %v7649 = vshll.u32 %v7646, 16
    %v7650 = vshrl.u32 %v7646, 16
    %v7651 = vshll.u32 %v7647, 16
    %v7652 = vshrl.u32 %v7647, 16
    %vm7653 = vc.u32 %v7645, %v7649
    %v7654 = vsel %vm7653, 1, 0
    %v7655 = vadd.s32 %v7645, %v7649
    %v7656 = vadd.s32 %v7648, %v7654
    %vm7657 = vc.u32 %v7655, %v7651
    %v7658 = vsel %vm7657, 1, 0
    %v7659 = vadd.s32 %v7655, %v7651
    %v7660 = vadd.s32 %v7656, %v7658
    %v7661 = vadd.s32 %v7660, %v7650
    %v7662 = vadd.s32 %v7661, %v7652
    %v7663 = vand.u32 %v7640, 65535
    %v7664 = vshrl.u32 %v7640, 16
    %v7665 = vand.u32 %v7635, 65535
    %v7666 = vshrl.u32 %v7635, 16
    %v7667 = vmul.u32 %v7663, %v7665
    %v7668 = vmul.u32 %v7663, %v7666
    %v7669 = vmul.u32 %v7664, %v7665
    %v7670 = vmul.u32 %v7664, %v7666
    %v7671 = vshll.u32 %v7668, 16
    %v7672 = vshrl.u32 %v7668, 16
    %v7673 = vshll.u32 %v7669, 16
    %v7674 = vshrl.u32 %v7669, 16
    %vm7675 = vc.u32 %v7667, %v7671
    %v7676 = vsel %vm7675, 1, 0
    %v7677 = vadd.s32 %v7667, %v7671
    %v7678 = vadd.s32 %v7670, %v7676
    %vm7679 = vc.u32 %v7677, %v7673
    %v7680 = vsel %vm7679, 1, 0
    %v7681 = vadd.s32 %v7677, %v7673
    %v7682 = vadd.s32 %v7678, %v7680
    %v7683 = vadd.s32 %v7682, %v7672
    %v7684 = vadd.s32 %v7683, %v7674
    %v7685 = vmul.u32 %v7640, %v7631
    %v7686 = vadd.s32 %v7662, %v7681
    %vm7687 = vc.u32 %v7662, %v7681
    %v7688 = vadd.s32 %v7684, 1
    %v7689 = vsel %vm7687, %v7688, %v7684
    %v7690 = vadd.s32 %v7685, %v7689
    %v7691 = vadd.s32 %v7690, 536870912
    %v7692 = vshrl.u32 %v7691, 30
    %v7693 = vshll.u32 %v7692, 30
    %v7694 = vsub.s32 %v7690, %v7693
    %vm7695 = vcmp.lt.s32.totalorder %v7694, 0
    %v7696 = vsub.s32 0, %v7694
    %v7697 = vsel %vm7695, %v7696, %v7694
    %v7698 = vclz %v7697
    %v7699 = vsub.s32 %v7698, 2
    %vm7700 = vcmp.gt.s32.totalorder 0, %v7699
    %v7701 = vsel %vm7700, 0, %v7699
    %v7702 = vsub.s32 32, %v7701
    %v7703 = vshll.u32 %v7694, %v7701
    %v7704 = vshrl.u32 %v7686, %v7702
    %v7705 = vor.u32 %v7703, %v7704
    %v7706 = vsub.s32 4294967266, %v7701
    %v7707 = vadd.s32 %v7706, 127
    %v7708 = vshll.u32 %v7707, 23
    %v7709 = vor.u32 4788187, %v7708
    %v7710 = vand.u32 2147483647, %v7709
    %v7712 = vcvt.s32.f32 %v7705
    %v7713 = vmul.f32 %v7712, %v7710
    %v7714 = vxor.u32 %v7713, 2147483648
    %v7715 = vsel %vm7594, %v7714, %v7713
    %v7716 = vsub.s32 4, %v7692
    %v7717 = vsel %vm7594, %v7716, %v7692
    %v7718 = vsel %vm7593, %v5521, %v7715
    %v7719 = vsel %vm7593, 0, %v7717
    %v7720 = vmul.f32 %v7718, %v7718
    %v7721 = vmul.f32 %v7720, -0.001358992
    %v7722 = vadd.f32 %v7721, 0.041655596
    %v7723 = vmul.f32 %v7720, %v7722
    %v7724 = vadd.f32 %v7723, -0.4999988
    %v7725 = vmul.f32 %v7720, %v7724
    %v7726 = vadd.f32 1.0, %v7725
    %v7727 = vmul.f32 %v7718, %v7718
    %v7728 = vmul.f32 %v7727, -0.00019511016
    %v7729 = vadd.f32 %v7728, 0.008332121
    %v7730 = vmul.f32 %v7727, %v7729
    %v7731 = vadd.f32 %v7730, -0.16666654
    %v7732 = vmul.f32 %v7727, %v7731
    %v7733 = vadd.f32 %v7732, 1.0
    %v7734 = vmul.f32 %v7733, %v7718
    %vm7735 = vweird.f32 %v5521
    %v7736 = vadd.s32 %v7719, 3
    %v7737 = vand.u32 %v7736, 3
    %vm7738 = vcmp.lt.s32.totalorder %v7737, 2
    %vm7739 = vcmp.eq.s32.totalorder %v7737, 0
    %v7740 = vxor.u32 %v7734, 2147483648
    %v7741 = vsel %vm7739, %v7726, %v7740
    %vm7742 = vcmp.eq.s32.totalorder %v7737, 2
    %v7743 = vxor.u32 %v7726, 2147483648
    %v7744 = vsel %vm7742, %v7743, %v7734
    %v7745 = vsel %vm7738, %v7741, %v7744
    %v7746 = vsel %vm7735, nan, %v7745
    %v7747 = vand.u32 2147483647, %v5524
    %vm7748 = vcmp.le.f32.partialorder %v7747, 0.7853982
    %vm7749 = vcmp.lt.s32.totalorder %v5524, 0
    %v7750 = vand.u32 %v5524, 2139095040
    %v7751 = vshrl.u32 %v7750, 23
    %v7752 = vsub.s32 %v7751, 127
    %v7753 = vand.u32 2147483647, %v5524
    %v7754 = vand.u32 %v7753, 8388607
    %v7755 = vor.u32 %v7754, 8388608
    %v7756 = vsub.s32 0, %v7755
    %v7757 = vadd.s32 %v7752, 1
    %vm7758 = vcmp.gt.s32.totalorder %v7757, 0
    %v7759 = vsel %vm7758, %v7757, 0
    %v7760 = vshrl.u32 %v7759, 5
    %v7761 = vand.u32 %v7759, 31
    %v7762 = vsub.s32 32, %v7761
    %v7763 = vshrl.u32 683565275, %v7762
    %v7764 = vshll.u32 683565275, %v7761
    %v7765 = vshrl.u32 2475754826, %v7762
    %v7766 = vor.u32 %v7764, %v7765
    %v7767 = vshll.u32 2475754826, %v7761
    %v7768 = vshrl.u32 2131351028, %v7762
    %v7769 = vor.u32 %v7767, %v7768
    %v7770 = vshll.u32 2131351028, %v7761
    %v7771 = vshrl.u32 2102212464, %v7762
    %v7772 = vor.u32 %v7770, %v7771
    %v7773 = vshll.u32 2102212464, %v7761
    %v7774 = vshrl.u32 920167782, %v7762
    %v7775 = vor.u32 %v7773, %v7774
    %v7776 = vshll.u32 920167782, %v7761
    %v7777 = vshrl.u32 1326507024, %v7762
    %v7778 = vor.u32 %v7776, %v7777
    %vm7779 = vcmp.lt.s32.totalorder %v7760, 1
    %vm7780 = vcmp.lt.s32.totalorder %v7760, 2
    %vm7781 = vcmp.lt.s32.totalorder %v7760, 3
    %vm7782 = vcmp.lt.s32.totalorder %v7760, 4
    %v7783 = vsel %vm7779, %v7763, %v7766
    %v7784 = vsel %vm7782, %v7772, 2102212464
    %v7785 = vsel %vm7781, %v7769, %v7784
    %v7786 = vsel %vm7780, %v7783, %v7785
    %v7787 = vsel %vm7779, %v7766, %v7769
    %v7788 = vsel %vm7782, %v7775, 920167782
    %v7789 = vsel %vm7781, %v7772, %v7788
    %v7790 = vsel %vm7780, %v7787, %v7789
    %v7791 = vsel %vm7779, %v7769, %v7772
    %v7792 = vsel %vm7782, %v7778, 1326507024
    %v7793 = vsel %vm7781, %v7775, %v7792
    %v7794 = vsel %vm7780, %v7791, %v7793
    %v7795 = vshll.u32 %v7755, 8
    %v7796 = vand.u32 %v7795, 65535
    %v7797 = vshrl.u32 %v7795, 16
    %v7798 = vand.u32 %v7794, 65535
    %v7799 = vshrl.u32 %v7794, 16
    %v7800 = vmul.u32 %v7796, %v7798
    %v7801 = vmul.u32 %v7796, %v7799
    %v7802 = vmul.u32 %v7797, %v7798
    %v7803 = vmul.u32 %v7797, %v7799
    %v7804 = vshll.u32 %v7801, 16
    %v7805 = vshrl.u32 %v7801, 16
    %v7806 = vshll.u32 %v7802, 16
    %v7807 = vshrl.u32 %v7802, 16
    %vm7808 = vc.u32 %v7800, %v7804
    %v7809 = vsel %vm7808, 1, 0
    %v7810 = vadd.s32 %v7800, %v7804
    %v7811 = vadd.s32 %v7803, %v7809
    %vm7812 = vc.u32 %v7810, %v7806
    %v7813 = vsel %vm7812, 1, 0
    %v7814 = vadd.s32 %v7810, %v7806
    %v7815 = vadd.s32 %v7811, %v7813
    %v7816 = vadd.s32 %v7815, %v7805
    %v7817 = vadd.s32 %v7816, %v7807
    %v7818 = vand.u32 %v7795, 65535
    %v7819 = vshrl.u32 %v7795, 16
    %v7820 = vand.u32 %v7790, 65535
    %v7821 = vshrl.u32 %v7790, 16
    %v7822 = vmul.u32 %v7818, %v7820
    %v7823 = vmul.u32 %v7818, %v7821
    %v7824 = vmul.u32 %v7819, %v7820
    %v7825 = vmul.u32 %v7819, %v7821
    %v7826 = vshll.u32 %v7823, 16
    %v7827 = vshrl.u32 %v7823, 16
    %v7828 = vshll.u32 %v7824, 16
    %v7829 = vshrl.u32 %v7824, 16
    %vm7830 = vc.u32 %v7822, %v7826
    %v7831 = vsel %vm7830, 1, 0
    %v7832 = vadd.s32 %v7822, %v7826
    %v7833 = vadd.s32 %v7825, %v7831
    %vm7834 = vc.u32 %v7832, %v7828
    %v7835 = vsel %vm7834, 1, 0
    %v7836 = vadd.s32 %v7832, %v7828
    %v7837 = vadd.s32 %v7833, %v7835
    %v7838 = vadd.s32 %v7837, %v7827
    %v7839 = vadd.s32 %v7838, %v7829
    %v7840 = vmul.u32 %v7795, %v7786
    %v7841 = vadd.s32 %v7817, %v7836
    %vm7842 = vc.u32 %v7817, %v7836
    %v7843 = vadd.s32 %v7839, 1
    %v7844 = vsel %vm7842, %v7843, %v7839
    %v7845 = vadd.s32 %v7840, %v7844
    %v7846 = vadd.s32 %v7845, 536870912
    %v7847 = vshrl.u32 %v7846, 30
    %v7848 = vshll.u32 %v7847, 30
    %v7849 = vsub.s32 %v7845, %v7848
    %vm7850 = vcmp.lt.s32.totalorder %v7849, 0
    %v7851 = vsub.s32 0, %v7849
    %v7852 = vsel %vm7850, %v7851, %v7849
    %v7853 = vclz %v7852
    %v7854 = vsub.s32 %v7853, 2
    %vm7855 = vcmp.gt.s32.totalorder 0, %v7854
    %v7856 = vsel %vm7855, 0, %v7854
    %v7857 = vsub.s32 32, %v7856
    %v7858 = vshll.u32 %v7849, %v7856
    %v7859 = vshrl.u32 %v7841, %v7857
    %v7860 = vor.u32 %v7858, %v7859
    %v7861 = vsub.s32 4294967266, %v7856
    %v7862 = vadd.s32 %v7861, 127
    %v7863 = vshll.u32 %v7862, 23
    %v7864 = vor.u32 4788187, %v7863
    %v7865 = vand.u32 2147483647, %v7864
    %v7867 = vcvt.s32.f32 %v7860
    %v7868 = vmul.f32 %v7867, %v7865
    %v7869 = vxor.u32 %v7868, 2147483648
    %v7870 = vsel %vm7749, %v7869, %v7868
    %v7871 = vsub.s32 4, %v7847
    %v7872 = vsel %vm7749, %v7871, %v7847
    %v7873 = vsel %vm7748, %v5524, %v7870
    %v7874 = vsel %vm7748, 0, %v7872
    %v7875 = vmul.f32 %v7873, %v7873
    %v7876 = vmul.f32 %v7875, -0.001358992
    %v7877 = vadd.f32 %v7876, 0.041655596
    %v7878 = vmul.f32 %v7875, %v7877
    %v7879 = vadd.f32 %v7878, -0.4999988
    %v7880 = vmul.f32 %v7875, %v7879
    %v7881 = vadd.f32 1.0, %v7880
    %v7882 = vmul.f32 %v7873, %v7873
    %v7883 = vmul.f32 %v7882, -0.00019511016
    %v7884 = vadd.f32 %v7883, 0.008332121
    %v7885 = vmul.f32 %v7882, %v7884
    %v7886 = vadd.f32 %v7885, -0.16666654
    %v7887 = vmul.f32 %v7882, %v7886
    %v7888 = vadd.f32 %v7887, 1.0
    %v7889 = vmul.f32 %v7888, %v7873
    %vm7890 = vweird.f32 %v5524
    %v7891 = vadd.s32 %v7874, 3
    %v7892 = vand.u32 %v7891, 3
    %vm7893 = vcmp.lt.s32.totalorder %v7892, 2
    %vm7894 = vcmp.eq.s32.totalorder %v7892, 0
    %v7895 = vxor.u32 %v7889, 2147483648
    %v7896 = vsel %vm7894, %v7881, %v7895
    %vm7897 = vcmp.eq.s32.totalorder %v7892, 2
    %v7898 = vxor.u32 %v7881, 2147483648
    %v7899 = vsel %vm7897, %v7898, %v7889
    %v7900 = vsel %vm7893, %v7896, %v7899
    %v7901 = vsel %vm7890, nan, %v7900
    %v7902 = vand.u32 2147483647, %v5527
    %vm7903 = vcmp.le.f32.partialorder %v7902, 0.7853982
    %vm7904 = vcmp.lt.s32.totalorder %v5527, 0
    %v7905 = vand.u32 %v5527, 2139095040
    %v7906 = vshrl.u32 %v7905, 23
    %v7907 = vsub.s32 %v7906, 127
    %v7908 = vand.u32 2147483647, %v5527
    %v7909 = vand.u32 %v7908, 8388607
    %v7910 = vor.u32 %v7909, 8388608
    %v7911 = vsub.s32 0, %v7910
    %v7912 = vadd.s32 %v7907, 1
    %vm7913 = vcmp.gt.s32.totalorder %v7912, 0
    %v7914 = vsel %vm7913, %v7912, 0
    %v7915 = vshrl.u32 %v7914, 5
    %v7916 = vand.u32 %v7914, 31
    %v7917 = vsub.s32 32, %v7916
    %v7918 = vshrl.u32 683565275, %v7917
    %v7919 = vshll.u32 683565275, %v7916
    %v7920 = vshrl.u32 2475754826, %v7917
    %v7921 = vor.u32 %v7919, %v7920
    %v7922 = vshll.u32 2475754826, %v7916
    %v7923 = vshrl.u32 2131351028, %v7917
    %v7924 = vor.u32 %v7922, %v7923
    %v7925 = vshll.u32 2131351028, %v7916
    %v7926 = vshrl.u32 2102212464, %v7917
    %v7927 = vor.u32 %v7925, %v7926
    %v7928 = vshll.u32 2102212464, %v7916
    %v7929 = vshrl.u32 920167782, %v7917
    %v7930 = vor.u32 %v7928, %v7929
    %v7931 = vshll.u32 920167782, %v7916
    %v7932 = vshrl.u32 1326507024, %v7917
    %v7933 = vor.u32 %v7931, %v7932
    %vm7934 = vcmp.lt.s32.totalorder %v7915, 1
    %vm7935 = vcmp.lt.s32.totalorder %v7915, 2
    %vm7936 = vcmp.lt.s32.totalorder %v7915, 3
    %vm7937 = vcmp.lt.s32.totalorder %v7915, 4
    %v7938 = vsel %vm7934, %v7918, %v7921
    %v7939 = vsel %vm7937, %v7927, 2102212464
    %v7940 = vsel %vm7936, %v7924, %v7939
    %v7941 = vsel %vm7935, %v7938, %v7940
    %v7942 = vsel %vm7934, %v7921, %v7924
    %v7943 = vsel %vm7937, %v7930, 920167782
    %v7944 = vsel %vm7936, %v7927, %v7943
    %v7945 = vsel %vm7935, %v7942, %v7944
    %v7946 = vsel %vm7934, %v7924, %v7927
    %v7947 = vsel %vm7937, %v7933, 1326507024
    %v7948 = vsel %vm7936, %v7930, %v7947
    %v7949 = vsel %vm7935, %v7946, %v7948
    %v7950 = vshll.u32 %v7910, 8
    %v7951 = vand.u32 %v7950, 65535
    %v7952 = vshrl.u32 %v7950, 16
    %v7953 = vand.u32 %v7949, 65535
    %v7954 = vshrl.u32 %v7949, 16
    %v7955 = vmul.u32 %v7951, %v7953
    %v7956 = vmul.u32 %v7951, %v7954
    %v7957 = vmul.u32 %v7952, %v7953
    %v7958 = vmul.u32 %v7952, %v7954
    %v7959 = vshll.u32 %v7956, 16
    %v7960 = vshrl.u32 %v7956, 16
    %v7961 = vshll.u32 %v7957, 16
    %v7962 = vshrl.u32 %v7957, 16
    %vm7963 = vc.u32 %v7955, %v7959
    %v7964 = vsel %vm7963, 1, 0
    %v7965 = vadd.s32 %v7955, %v7959
    %v7966 = vadd.s32 %v7958, %v7964
    %vm7967 = vc.u32 %v7965, %v7961
    %v7968 = vsel %vm7967, 1, 0
    %v7969 = vadd.s32 %v7965, %v7961
    %v7970 = vadd.s32 %v7966, %v7968
    %v7971 = vadd.s32 %v7970, %v7960
    %v7972 = vadd.s32 %v7971, %v7962
    %v7973 = vand.u32 %v7950, 65535
    %v7974 = vshrl.u32 %v7950, 16
    %v7975 = vand.u32 %v7945, 65535
    %v7976 = vshrl.u32 %v7945, 16
    %v7977 = vmul.u32 %v7973, %v7975
    %v7978 = vmul.u32 %v7973, %v7976
    %v7979 = vmul.u32 %v7974, %v7975
    %v7980 = vmul.u32 %v7974, %v7976
    %v7981 = vshll.u32 %v7978, 16
    %v7982 = vshrl.u32 %v7978, 16
    %v7983 = vshll.u32 %v7979, 16
    %v7984 = vshrl.u32 %v7979, 16
    %vm7985 = vc.u32 %v7977, %v7981
    %v7986 = vsel %vm7985, 1, 0
    %v7987 = vadd.s32 %v7977, %v7981
    %v7988 = vadd.s32 %v7980, %v7986
    %vm7989 = vc.u32 %v7987, %v7983
    %v7990 = vsel %vm7989, 1, 0
    %v7991 = vadd.s32 %v7987, %v7983
    %v7992 = vadd.s32 %v7988, %v7990
    %v7993 = vadd.s32 %v7992, %v7982
    %v7994 = vadd.s32 %v7993, %v7984
    %v7995 = vmul.u32 %v7950, %v7941
    %v7996 = vadd.s32 %v7972, %v7991
    %vm7997 = vc.u32 %v7972, %v7991
    %v7998 = vadd.s32 %v7994, 1
    %v7999 = vsel %vm7997, %v7998, %v7994
    %v8000 = vadd.s32 %v7995, %v7999
    %v8001 = vadd.s32 %v8000, 536870912
    %v8002 = vshrl.u32 %v8001, 30
    %v8003 = vshll.u32 %v8002, 30
    %v8004 = vsub.s32 %v8000, %v8003
    %vm8005 = vcmp.lt.s32.totalorder %v8004, 0
    %v8006 = vsub.s32 0, %v8004
    %v8007 = vsel %vm8005, %v8006, %v8004
    %v8008 = vclz %v8007
    %v8009 = vsub.s32 %v8008, 2
    %vm8010 = vcmp.gt.s32.totalorder 0, %v8009
    %v8011 = vsel %vm8010, 0, %v8009
    %v8012 = vsub.s32 32, %v8011
    %v8013 = vshll.u32 %v8004, %v8011
    %v8014 = vshrl.u32 %v7996, %v8012
    %v8015 = vor.u32 %v8013, %v8014
    %v8016 = vsub.s32 4294967266, %v8011
    %v8017 = vadd.s32 %v8016, 127
    %v8018 = vshll.u32 %v8017, 23
    %v8019 = vor.u32 4788187, %v8018
    %v8020 = vand.u32 2147483647, %v8019
    %v8022 = vcvt.s32.f32 %v8015
    %v8023 = vmul.f32 %v8022, %v8020
    %v8024 = vxor.u32 %v8023, 2147483648
    %v8025 = vsel %vm7904, %v8024, %v8023
    %v8026 = vsub.s32 4, %v8002
    %v8027 = vsel %vm7904, %v8026, %v8002
    %v8028 = vsel %vm7903, %v5527, %v8025
    %v8029 = vsel %vm7903, 0, %v8027
    %v8030 = vmul.f32 %v8028, %v8028
    %v8031 = vmul.f32 %v8030, -0.001358992
    %v8032 = vadd.f32 %v8031, 0.041655596
    %v8033 = vmul.f32 %v8030, %v8032
    %v8034 = vadd.f32 %v8033, -0.4999988
    %v8035 = vmul.f32 %v8030, %v8034
    %v8036 = vadd.f32 1.0, %v8035
    %v8037 = vmul.f32 %v8028, %v8028
    %v8038 = vmul.f32 %v8037, -0.00019511016
    %v8039 = vadd.f32 %v8038, 0.008332121
    %v8040 = vmul.f32 %v8037, %v8039
    %v8041 = vadd.f32 %v8040, -0.16666654
    %v8042 = vmul.f32 %v8037, %v8041
    %v8043 = vadd.f32 %v8042, 1.0
    %v8044 = vmul.f32 %v8043, %v8028
    %vm8045 = vweird.f32 %v5527
    %v8046 = vadd.s32 %v8029, 3
    %v8047 = vand.u32 %v8046, 3
    %vm8048 = vcmp.lt.s32.totalorder %v8047, 2
    %vm8049 = vcmp.eq.s32.totalorder %v8047, 0
    %v8050 = vxor.u32 %v8044, 2147483648
    %v8051 = vsel %vm8049, %v8036, %v8050
    %vm8052 = vcmp.eq.s32.totalorder %v8047, 2
    %v8053 = vxor.u32 %v8036, 2147483648
    %v8054 = vsel %vm8052, %v8053, %v8044
    %v8055 = vsel %vm8048, %v8051, %v8054
    %v8056 = vsel %vm8045, nan, %v8055
    %v8057 = vand.u32 2147483647, %v5530
    %vm8058 = vcmp.le.f32.partialorder %v8057, 0.7853982
    %vm8059 = vcmp.lt.s32.totalorder %v5530, 0
    %v8060 = vand.u32 %v5530, 2139095040
    %v8061 = vshrl.u32 %v8060, 23
    %v8062 = vsub.s32 %v8061, 127
    %v8063 = vand.u32 2147483647, %v5530
    %v8064 = vand.u32 %v8063, 8388607
    %v8065 = vor.u32 %v8064, 8388608
    %v8066 = vsub.s32 0, %v8065
    %v8067 = vadd.s32 %v8062, 1
    %vm8068 = vcmp.gt.s32.totalorder %v8067, 0
    %v8069 = vsel %vm8068, %v8067, 0
    %v8070 = vshrl.u32 %v8069, 5
    %v8071 = vand.u32 %v8069, 31
    %v8072 = vsub.s32 32, %v8071
    %v8073 = vshrl.u32 683565275, %v8072
    %v8074 = vshll.u32 683565275, %v8071
    %v8075 = vshrl.u32 2475754826, %v8072
    %v8076 = vor.u32 %v8074, %v8075
    %v8077 = vshll.u32 2475754826, %v8071
    %v8078 = vshrl.u32 2131351028, %v8072
    %v8079 = vor.u32 %v8077, %v8078
    %v8080 = vshll.u32 2131351028, %v8071
    %v8081 = vshrl.u32 2102212464, %v8072
    %v8082 = vor.u32 %v8080, %v8081
    %v8083 = vshll.u32 2102212464, %v8071
    %v8084 = vshrl.u32 920167782, %v8072
    %v8085 = vor.u32 %v8083, %v8084
    %v8086 = vshll.u32 920167782, %v8071
    %v8087 = vshrl.u32 1326507024, %v8072
    %v8088 = vor.u32 %v8086, %v8087
    %vm8089 = vcmp.lt.s32.totalorder %v8070, 1
    %vm8090 = vcmp.lt.s32.totalorder %v8070, 2
    %vm8091 = vcmp.lt.s32.totalorder %v8070, 3
    %vm8092 = vcmp.lt.s32.totalorder %v8070, 4
    %v8093 = vsel %vm8089, %v8073, %v8076
    %v8094 = vsel %vm8092, %v8082, 2102212464
    %v8095 = vsel %vm8091, %v8079, %v8094
    %v8096 = vsel %vm8090, %v8093, %v8095
    %v8097 = vsel %vm8089, %v8076, %v8079
    %v8098 = vsel %vm8092, %v8085, 920167782
    %v8099 = vsel %vm8091, %v8082, %v8098
    %v8100 = vsel %vm8090, %v8097, %v8099
    %v8101 = vsel %vm8089, %v8079, %v8082
    %v8102 = vsel %vm8092, %v8088, 1326507024
    %v8103 = vsel %vm8091, %v8085, %v8102
    %v8104 = vsel %vm8090, %v8101, %v8103
    %v8105 = vshll.u32 %v8065, 8
    %v8106 = vand.u32 %v8105, 65535
    %v8107 = vshrl.u32 %v8105, 16
    %v8108 = vand.u32 %v8104, 65535
    %v8109 = vshrl.u32 %v8104, 16
    %v8110 = vmul.u32 %v8106, %v8108
    %v8111 = vmul.u32 %v8106, %v8109
    %v8112 = vmul.u32 %v8107, %v8108
    %v8113 = vmul.u32 %v8107, %v8109
    %v8114 = vshll.u32 %v8111, 16
    %v8115 = vshrl.u32 %v8111, 16
    %v8116 = vshll.u32 %v8112, 16
    %v8117 = vshrl.u32 %v8112, 16
    %vm8118 = vc.u32 %v8110, %v8114
    %v8119 = vsel %vm8118, 1, 0
    %v8120 = vadd.s32 %v8110, %v8114
    %v8121 = vadd.s32 %v8113, %v8119
    %vm8122 = vc.u32 %v8120, %v8116
    %v8123 = vsel %vm8122, 1, 0
    %v8124 = vadd.s32 %v8120, %v8116
    %v8125 = vadd.s32 %v8121, %v8123
    %v8126 = vadd.s32 %v8125, %v8115
    %v8127 = vadd.s32 %v8126, %v8117
    %v8128 = vand.u32 %v8105, 65535
    %v8129 = vshrl.u32 %v8105, 16
    %v8130 = vand.u32 %v8100, 65535
    %v8131 = vshrl.u32 %v8100, 16
    %v8132 = vmul.u32 %v8128, %v8130
    %v8133 = vmul.u32 %v8128, %v8131
    %v8134 = vmul.u32 %v8129, %v8130
    %v8135 = vmul.u32 %v8129, %v8131
    %v8136 = vshll.u32 %v8133, 16
    %v8137 = vshrl.u32 %v8133, 16
    %v8138 = vshll.u32 %v8134, 16
    %v8139 = vshrl.u32 %v8134, 16
    %vm8140 = vc.u32 %v8132, %v8136
    %v8141 = vsel %vm8140, 1, 0
    %v8142 = vadd.s32 %v8132, %v8136
    %v8143 = vadd.s32 %v8135, %v8141
    %vm8144 = vc.u32 %v8142, %v8138
    %v8145 = vsel %vm8144, 1, 0
    %v8146 = vadd.s32 %v8142, %v8138
    %v8147 = vadd.s32 %v8143, %v8145
    %v8148 = vadd.s32 %v8147, %v8137
    %v8149 = vadd.s32 %v8148, %v8139
    %v8150 = vmul.u32 %v8105, %v8096
    %v8151 = vadd.s32 %v8127, %v8146
    %vm8152 = vc.u32 %v8127, %v8146
    %v8153 = vadd.s32 %v8149, 1
    %v8154 = vsel %vm8152, %v8153, %v8149
    %v8155 = vadd.s32 %v8150, %v8154
    %v8156 = vadd.s32 %v8155, 536870912
    %v8157 = vshrl.u32 %v8156, 30
    %v8158 = vshll.u32 %v8157, 30
    %v8159 = vsub.s32 %v8155, %v8158
    %vm8160 = vcmp.lt.s32.totalorder %v8159, 0
    %v8161 = vsub.s32 0, %v8159
    %v8162 = vsel %vm8160, %v8161, %v8159
    %v8163 = vclz %v8162
    %v8164 = vsub.s32 %v8163, 2
    %vm8165 = vcmp.gt.s32.totalorder 0, %v8164
    %v8166 = vsel %vm8165, 0, %v8164
    %v8167 = vsub.s32 32, %v8166
    %v8168 = vshll.u32 %v8159, %v8166
    %v8169 = vshrl.u32 %v8151, %v8167
    %v8170 = vor.u32 %v8168, %v8169
    %v8171 = vsub.s32 4294967266, %v8166
    %v8172 = vadd.s32 %v8171, 127
    %v8173 = vshll.u32 %v8172, 23
    %v8174 = vor.u32 4788187, %v8173
    %v8175 = vand.u32 2147483647, %v8174
    %v8177 = vcvt.s32.f32 %v8170
    %v8178 = vmul.f32 %v8177, %v8175
    %v8179 = vxor.u32 %v8178, 2147483648
    %v8180 = vsel %vm8059, %v8179, %v8178
    %v8181 = vsub.s32 4, %v8157
    %v8182 = vsel %vm8059, %v8181, %v8157
    %v8183 = vsel %vm8058, %v5530, %v8180
    %v8184 = vsel %vm8058, 0, %v8182
    %v8185 = vmul.f32 %v8183, %v8183
    %v8186 = vmul.f32 %v8185, -0.001358992
    %v8187 = vadd.f32 %v8186, 0.041655596
    %v8188 = vmul.f32 %v8185, %v8187
    %v8189 = vadd.f32 %v8188, -0.4999988
    %v8190 = vmul.f32 %v8185, %v8189
    %v8191 = vadd.f32 1.0, %v8190
    %v8192 = vmul.f32 %v8183, %v8183
    %v8193 = vmul.f32 %v8192, -0.00019511016
    %v8194 = vadd.f32 %v8193, 0.008332121
    %v8195 = vmul.f32 %v8192, %v8194
    %v8196 = vadd.f32 %v8195, -0.16666654
    %v8197 = vmul.f32 %v8192, %v8196
    %v8198 = vadd.f32 %v8197, 1.0
    %v8199 = vmul.f32 %v8198, %v8183
    %vm8200 = vweird.f32 %v5530
    %v8201 = vadd.s32 %v8184, 3
    %v8202 = vand.u32 %v8201, 3
    %vm8203 = vcmp.lt.s32.totalorder %v8202, 2
    %vm8204 = vcmp.eq.s32.totalorder %v8202, 0
    %v8205 = vxor.u32 %v8199, 2147483648
    %v8206 = vsel %vm8204, %v8191, %v8205
    %vm8207 = vcmp.eq.s32.totalorder %v8202, 2
    %v8208 = vxor.u32 %v8191, 2147483648
    %v8209 = vsel %vm8207, %v8208, %v8199
    %v8210 = vsel %vm8203, %v8206, %v8209
    %v8211 = vsel %vm8200, nan, %v8210
    %v8212 = vand.u32 2147483647, %v5533
    %vm8213 = vcmp.le.f32.partialorder %v8212, 0.7853982
    %vm8214 = vcmp.lt.s32.totalorder %v5533, 0
    %v8215 = vand.u32 %v5533, 2139095040
    %v8216 = vshrl.u32 %v8215, 23
    %v8217 = vsub.s32 %v8216, 127
    %v8218 = vand.u32 2147483647, %v5533
    %v8219 = vand.u32 %v8218, 8388607
    %v8220 = vor.u32 %v8219, 8388608
    %v8221 = vsub.s32 0, %v8220
    %v8222 = vadd.s32 %v8217, 1
    %vm8223 = vcmp.gt.s32.totalorder %v8222, 0
    %v8224 = vsel %vm8223, %v8222, 0
    %v8225 = vshrl.u32 %v8224, 5
    %v8226 = vand.u32 %v8224, 31
    %v8227 = vsub.s32 32, %v8226
    %v8228 = vshrl.u32 683565275, %v8227
    %v8229 = vshll.u32 683565275, %v8226
    %v8230 = vshrl.u32 2475754826, %v8227
    %v8231 = vor.u32 %v8229, %v8230
    %v8232 = vshll.u32 2475754826, %v8226
    %v8233 = vshrl.u32 2131351028, %v8227
    %v8234 = vor.u32 %v8232, %v8233
    %v8235 = vshll.u32 2131351028, %v8226
    %v8236 = vshrl.u32 2102212464, %v8227
    %v8237 = vor.u32 %v8235, %v8236
    %v8238 = vshll.u32 2102212464, %v8226
    %v8239 = vshrl.u32 920167782, %v8227
    %v8240 = vor.u32 %v8238, %v8239
    %v8241 = vshll.u32 920167782, %v8226
    %v8242 = vshrl.u32 1326507024, %v8227
    %v8243 = vor.u32 %v8241, %v8242
    %vm8244 = vcmp.lt.s32.totalorder %v8225, 1
    %vm8245 = vcmp.lt.s32.totalorder %v8225, 2
    %vm8246 = vcmp.lt.s32.totalorder %v8225, 3
    %vm8247 = vcmp.lt.s32.totalorder %v8225, 4
    %v8248 = vsel %vm8244, %v8228, %v8231
    %v8249 = vsel %vm8247, %v8237, 2102212464
    %v8250 = vsel %vm8246, %v8234, %v8249
    %v8251 = vsel %vm8245, %v8248, %v8250
    %v8252 = vsel %vm8244, %v8231, %v8234
    %v8253 = vsel %vm8247, %v8240, 920167782
    %v8254 = vsel %vm8246, %v8237, %v8253
    %v8255 = vsel %vm8245, %v8252, %v8254
    %v8256 = vsel %vm8244, %v8234, %v8237
    %v8257 = vsel %vm8247, %v8243, 1326507024
    %v8258 = vsel %vm8246, %v8240, %v8257
    %v8259 = vsel %vm8245, %v8256, %v8258
    %v8260 = vshll.u32 %v8220, 8
    %v8261 = vand.u32 %v8260, 65535
    %v8262 = vshrl.u32 %v8260, 16
    %v8263 = vand.u32 %v8259, 65535
    %v8264 = vshrl.u32 %v8259, 16
    %v8265 = vmul.u32 %v8261, %v8263
    %v8266 = vmul.u32 %v8261, %v8264
    %v8267 = vmul.u32 %v8262, %v8263
    %v8268 = vmul.u32 %v8262, %v8264
    %v8269 = vshll.u32 %v8266, 16
    %v8270 = vshrl.u32 %v8266, 16
    %v8271 = vshll.u32 %v8267, 16
    %v8272 = vshrl.u32 %v8267, 16
    %vm8273 = vc.u32 %v8265, %v8269
    %v8274 = vsel %vm8273, 1, 0
    %v8275 = vadd.s32 %v8265, %v8269
    %v8276 = vadd.s32 %v8268, %v8274
    %vm8277 = vc.u32 %v8275, %v8271
    %v8278 = vsel %vm8277, 1, 0
    %v8279 = vadd.s32 %v8275, %v8271
    %v8280 = vadd.s32 %v8276, %v8278
    %v8281 = vadd.s32 %v8280, %v8270
    %v8282 = vadd.s32 %v8281, %v8272
    %v8283 = vand.u32 %v8260, 65535
    %v8284 = vshrl.u32 %v8260, 16
    %v8285 = vand.u32 %v8255, 65535
    %v8286 = vshrl.u32 %v8255, 16
    %v8287 = vmul.u32 %v8283, %v8285
    %v8288 = vmul.u32 %v8283, %v8286
    %v8289 = vmul.u32 %v8284, %v8285
    %v8290 = vmul.u32 %v8284, %v8286
    %v8291 = vshll.u32 %v8288, 16
    %v8292 = vshrl.u32 %v8288, 16
    %v8293 = vshll.u32 %v8289, 16
    %v8294 = vshrl.u32 %v8289, 16
    %vm8295 = vc.u32 %v8287, %v8291
    %v8296 = vsel %vm8295, 1, 0
    %v8297 = vadd.s32 %v8287, %v8291
    %v8298 = vadd.s32 %v8290, %v8296
    %vm8299 = vc.u32 %v8297, %v8293
    %v8300 = vsel %vm8299, 1, 0
    %v8301 = vadd.s32 %v8297, %v8293
    %v8302 = vadd.s32 %v8298, %v8300
    %v8303 = vadd.s32 %v8302, %v8292
    %v8304 = vadd.s32 %v8303, %v8294
    %v8305 = vmul.u32 %v8260, %v8251
    %v8306 = vadd.s32 %v8282, %v8301
    %vm8307 = vc.u32 %v8282, %v8301
    %v8308 = vadd.s32 %v8304, 1
    %v8309 = vsel %vm8307, %v8308, %v8304
    %v8310 = vadd.s32 %v8305, %v8309
    %v8311 = vadd.s32 %v8310, 536870912
    %v8312 = vshrl.u32 %v8311, 30
    %v8313 = vshll.u32 %v8312, 30
    %v8314 = vsub.s32 %v8310, %v8313
    %vm8315 = vcmp.lt.s32.totalorder %v8314, 0
    %v8316 = vsub.s32 0, %v8314
    %v8317 = vsel %vm8315, %v8316, %v8314
    %v8318 = vclz %v8317
    %v8319 = vsub.s32 %v8318, 2
    %vm8320 = vcmp.gt.s32.totalorder 0, %v8319
    %v8321 = vsel %vm8320, 0, %v8319
    %v8322 = vsub.s32 32, %v8321
    %v8323 = vshll.u32 %v8314, %v8321
    %v8324 = vshrl.u32 %v8306, %v8322
    %v8325 = vor.u32 %v8323, %v8324
    %v8326 = vsub.s32 4294967266, %v8321
    %v8327 = vadd.s32 %v8326, 127
    %v8328 = vshll.u32 %v8327, 23
    %v8329 = vor.u32 4788187, %v8328
    %v8330 = vand.u32 2147483647, %v8329
    %v8332 = vcvt.s32.f32 %v8325
    %v8333 = vmul.f32 %v8332, %v8330
    %v8334 = vxor.u32 %v8333, 2147483648
    %v8335 = vsel %vm8214, %v8334, %v8333
    %v8336 = vsub.s32 4, %v8312
    %v8337 = vsel %vm8214, %v8336, %v8312
    %v8338 = vsel %vm8213, %v5533, %v8335
    %v8339 = vsel %vm8213, 0, %v8337
    %v8340 = vmul.f32 %v8338, %v8338
    %v8341 = vmul.f32 %v8340, -0.001358992
    %v8342 = vadd.f32 %v8341, 0.041655596
    %v8343 = vmul.f32 %v8340, %v8342
    %v8344 = vadd.f32 %v8343, -0.4999988
    %v8345 = vmul.f32 %v8340, %v8344
    %v8346 = vadd.f32 1.0, %v8345
    %v8347 = vmul.f32 %v8338, %v8338
    %v8348 = vmul.f32 %v8347, -0.00019511016
    %v8349 = vadd.f32 %v8348, 0.008332121
    %v8350 = vmul.f32 %v8347, %v8349
    %v8351 = vadd.f32 %v8350, -0.16666654
    %v8352 = vmul.f32 %v8347, %v8351
    %v8353 = vadd.f32 %v8352, 1.0
    %v8354 = vmul.f32 %v8353, %v8338
    %vm8355 = vweird.f32 %v5533
    %v8356 = vadd.s32 %v8339, 3
    %v8357 = vand.u32 %v8356, 3
    %vm8358 = vcmp.lt.s32.totalorder %v8357, 2
    %vm8359 = vcmp.eq.s32.totalorder %v8357, 0
    %v8360 = vxor.u32 %v8354, 2147483648
    %v8361 = vsel %vm8359, %v8346, %v8360
    %vm8362 = vcmp.eq.s32.totalorder %v8357, 2
    %v8363 = vxor.u32 %v8346, 2147483648
    %v8364 = vsel %vm8362, %v8363, %v8354
    %v8365 = vsel %vm8358, %v8361, %v8364
    %v8366 = vsel %vm8355, nan, %v8365
    %v8367 = vand.u32 2147483647, %v5536
    %vm8368 = vcmp.le.f32.partialorder %v8367, 0.7853982
    %vm8369 = vcmp.lt.s32.totalorder %v5536, 0
    %v8370 = vand.u32 %v5536, 2139095040
    %v8371 = vshrl.u32 %v8370, 23
    %v8372 = vsub.s32 %v8371, 127
    %v8373 = vand.u32 2147483647, %v5536
    %v8374 = vand.u32 %v8373, 8388607
    %v8375 = vor.u32 %v8374, 8388608
    %v8376 = vsub.s32 0, %v8375
    %v8377 = vadd.s32 %v8372, 1
    %vm8378 = vcmp.gt.s32.totalorder %v8377, 0
    %v8379 = vsel %vm8378, %v8377, 0
    %v8380 = vshrl.u32 %v8379, 5
    %v8381 = vand.u32 %v8379, 31
    %v8382 = vsub.s32 32, %v8381
    %v8383 = vshrl.u32 683565275, %v8382
    %v8384 = vshll.u32 683565275, %v8381
    %v8385 = vshrl.u32 2475754826, %v8382
    %v8386 = vor.u32 %v8384, %v8385
    %v8387 = vshll.u32 2475754826, %v8381
    %v8388 = vshrl.u32 2131351028, %v8382
    %v8389 = vor.u32 %v8387, %v8388
    %v8390 = vshll.u32 2131351028, %v8381
    %v8391 = vshrl.u32 2102212464, %v8382
    %v8392 = vor.u32 %v8390, %v8391
    %v8393 = vshll.u32 2102212464, %v8381
    %v8394 = vshrl.u32 920167782, %v8382
    %v8395 = vor.u32 %v8393, %v8394
    %v8396 = vshll.u32 920167782, %v8381
    %v8397 = vshrl.u32 1326507024, %v8382
    %v8398 = vor.u32 %v8396, %v8397
    %vm8399 = vcmp.lt.s32.totalorder %v8380, 1
    %vm8400 = vcmp.lt.s32.totalorder %v8380, 2
    %vm8401 = vcmp.lt.s32.totalorder %v8380, 3
    %vm8402 = vcmp.lt.s32.totalorder %v8380, 4
    %v8403 = vsel %vm8399, %v8383, %v8386
    %v8404 = vsel %vm8402, %v8392, 2102212464
    %v8405 = vsel %vm8401, %v8389, %v8404
    %v8406 = vsel %vm8400, %v8403, %v8405
    %v8407 = vsel %vm8399, %v8386, %v8389
    %v8408 = vsel %vm8402, %v8395, 920167782
    %v8409 = vsel %vm8401, %v8392, %v8408
    %v8410 = vsel %vm8400, %v8407, %v8409
    %v8411 = vsel %vm8399, %v8389, %v8392
    %v8412 = vsel %vm8402, %v8398, 1326507024
    %v8413 = vsel %vm8401, %v8395, %v8412
    %v8414 = vsel %vm8400, %v8411, %v8413
    %v8415 = vshll.u32 %v8375, 8
    %v8416 = vand.u32 %v8415, 65535
    %v8417 = vshrl.u32 %v8415, 16
    %v8418 = vand.u32 %v8414, 65535
    %v8419 = vshrl.u32 %v8414, 16
    %v8420 = vmul.u32 %v8416, %v8418
    %v8421 = vmul.u32 %v8416, %v8419
    %v8422 = vmul.u32 %v8417, %v8418
    %v8423 = vmul.u32 %v8417, %v8419
    %v8424 = vshll.u32 %v8421, 16
    %v8425 = vshrl.u32 %v8421, 16
    %v8426 = vshll.u32 %v8422, 16
    %v8427 = vshrl.u32 %v8422, 16
    %vm8428 = vc.u32 %v8420, %v8424
    %v8429 = vsel %vm8428, 1, 0
    %v8430 = vadd.s32 %v8420, %v8424
    %v8431 = vadd.s32 %v8423, %v8429
    %vm8432 = vc.u32 %v8430, %v8426
    %v8433 = vsel %vm8432, 1, 0
    %v8434 = vadd.s32 %v8430, %v8426
    %v8435 = vadd.s32 %v8431, %v8433
    %v8436 = vadd.s32 %v8435, %v8425
    %v8437 = vadd.s32 %v8436, %v8427
    %v8438 = vand.u32 %v8415, 65535
    %v8439 = vshrl.u32 %v8415, 16
    %v8440 = vand.u32 %v8410, 65535
    %v8441 = vshrl.u32 %v8410, 16
    %v8442 = vmul.u32 %v8438, %v8440
    %v8443 = vmul.u32 %v8438, %v8441
    %v8444 = vmul.u32 %v8439, %v8440
    %v8445 = vmul.u32 %v8439, %v8441
    %v8446 = vshll.u32 %v8443, 16
    %v8447 = vshrl.u32 %v8443, 16
    %v8448 = vshll.u32 %v8444, 16
    %v8449 = vshrl.u32 %v8444, 16
    %vm8450 = vc.u32 %v8442, %v8446
    %v8451 = vsel %vm8450, 1, 0
    %v8452 = vadd.s32 %v8442, %v8446
    %v8453 = vadd.s32 %v8445, %v8451
    %vm8454 = vc.u32 %v8452, %v8448
    %v8455 = vsel %vm8454, 1, 0
    %v8456 = vadd.s32 %v8452, %v8448
    %v8457 = vadd.s32 %v8453, %v8455
    %v8458 = vadd.s32 %v8457, %v8447
    %v8459 = vadd.s32 %v8458, %v8449
    %v8460 = vmul.u32 %v8415, %v8406
    %v8461 = vadd.s32 %v8437, %v8456
    %vm8462 = vc.u32 %v8437, %v8456
    %v8463 = vadd.s32 %v8459, 1
    %v8464 = vsel %vm8462, %v8463, %v8459
    %v8465 = vadd.s32 %v8460, %v8464
    %v8466 = vadd.s32 %v8465, 536870912
    %v8467 = vshrl.u32 %v8466, 30
    %v8468 = vshll.u32 %v8467, 30
    %v8469 = vsub.s32 %v8465, %v8468
    %vm8470 = vcmp.lt.s32.totalorder %v8469, 0
    %v8471 = vsub.s32 0, %v8469
    %v8472 = vsel %vm8470, %v8471, %v8469
    %v8473 = vclz %v8472
    %v8474 = vsub.s32 %v8473, 2
    %vm8475 = vcmp.gt.s32.totalorder 0, %v8474
    %v8476 = vsel %vm8475, 0, %v8474
    %v8477 = vsub.s32 32, %v8476
    %v8478 = vshll.u32 %v8469, %v8476
    %v8479 = vshrl.u32 %v8461, %v8477
    %v8480 = vor.u32 %v8478, %v8479
    %v8481 = vsub.s32 4294967266, %v8476
    %v8482 = vadd.s32 %v8481, 127
    %v8483 = vshll.u32 %v8482, 23
    %v8484 = vor.u32 4788187, %v8483
    %v8485 = vand.u32 2147483647, %v8484
    %v8487 = vcvt.s32.f32 %v8480
    %v8488 = vmul.f32 %v8487, %v8485
    %v8489 = vxor.u32 %v8488, 2147483648
    %v8490 = vsel %vm8369, %v8489, %v8488
    %v8491 = vsub.s32 4, %v8467
    %v8492 = vsel %vm8369, %v8491, %v8467
    %v8493 = vsel %vm8368, %v5536, %v8490
    %v8494 = vsel %vm8368, 0, %v8492
    %v8495 = vmul.f32 %v8493, %v8493
    %v8496 = vmul.f32 %v8495, -0.001358992
    %v8497 = vadd.f32 %v8496, 0.041655596
    %v8498 = vmul.f32 %v8495, %v8497
    %v8499 = vadd.f32 %v8498, -0.4999988
    %v8500 = vmul.f32 %v8495, %v8499
    %v8501 = vadd.f32 1.0, %v8500
    %v8502 = vmul.f32 %v8493, %v8493
    %v8503 = vmul.f32 %v8502, -0.00019511016
    %v8504 = vadd.f32 %v8503, 0.008332121
    %v8505 = vmul.f32 %v8502, %v8504
    %v8506 = vadd.f32 %v8505, -0.16666654
    %v8507 = vmul.f32 %v8502, %v8506
    %v8508 = vadd.f32 %v8507, 1.0
    %v8509 = vmul.f32 %v8508, %v8493
    %vm8510 = vweird.f32 %v5536
    %v8511 = vadd.s32 %v8494, 3
    %v8512 = vand.u32 %v8511, 3
    %vm8513 = vcmp.lt.s32.totalorder %v8512, 2
    %vm8514 = vcmp.eq.s32.totalorder %v8512, 0
    %v8515 = vxor.u32 %v8509, 2147483648
    %v8516 = vsel %vm8514, %v8501, %v8515
    %vm8517 = vcmp.eq.s32.totalorder %v8512, 2
    %v8518 = vxor.u32 %v8501, 2147483648
    %v8519 = vsel %vm8517, %v8518, %v8509
    %v8520 = vsel %vm8513, %v8516, %v8519
    %v8521 = vsel %vm8510, nan, %v8520
    %v8522 = vand.u32 2147483647, %v5539
    %vm8523 = vcmp.le.f32.partialorder %v8522, 0.7853982
    %vm8524 = vcmp.lt.s32.totalorder %v5539, 0
    %v8525 = vand.u32 %v5539, 2139095040
    %v8526 = vshrl.u32 %v8525, 23
    %v8527 = vsub.s32 %v8526, 127
    %v8528 = vand.u32 2147483647, %v5539
    %v8529 = vand.u32 %v8528, 8388607
    %v8530 = vor.u32 %v8529, 8388608
    %v8531 = vsub.s32 0, %v8530
    %v8532 = vadd.s32 %v8527, 1
    %vm8533 = vcmp.gt.s32.totalorder %v8532, 0
    %v8534 = vsel %vm8533, %v8532, 0
    %v8535 = vshrl.u32 %v8534, 5
    %v8536 = vand.u32 %v8534, 31
    %v8537 = vsub.s32 32, %v8536
    %v8538 = vshrl.u32 683565275, %v8537
    %v8539 = vshll.u32 683565275, %v8536
    %v8540 = vshrl.u32 2475754826, %v8537
    %v8541 = vor.u32 %v8539, %v8540
    %v8542 = vshll.u32 2475754826, %v8536
    %v8543 = vshrl.u32 2131351028, %v8537
    %v8544 = vor.u32 %v8542, %v8543
    %v8545 = vshll.u32 2131351028, %v8536
    %v8546 = vshrl.u32 2102212464, %v8537
    %v8547 = vor.u32 %v8545, %v8546
    %v8548 = vshll.u32 2102212464, %v8536
    %v8549 = vshrl.u32 920167782, %v8537
    %v8550 = vor.u32 %v8548, %v8549
    %v8551 = vshll.u32 920167782, %v8536
    %v8552 = vshrl.u32 1326507024, %v8537
    %v8553 = vor.u32 %v8551, %v8552
    %vm8554 = vcmp.lt.s32.totalorder %v8535, 1
    %vm8555 = vcmp.lt.s32.totalorder %v8535, 2
    %vm8556 = vcmp.lt.s32.totalorder %v8535, 3
    %vm8557 = vcmp.lt.s32.totalorder %v8535, 4
    %v8558 = vsel %vm8554, %v8538, %v8541
    %v8559 = vsel %vm8557, %v8547, 2102212464
    %v8560 = vsel %vm8556, %v8544, %v8559
    %v8561 = vsel %vm8555, %v8558, %v8560
    %v8562 = vsel %vm8554, %v8541, %v8544
    %v8563 = vsel %vm8557, %v8550, 920167782
    %v8564 = vsel %vm8556, %v8547, %v8563
    %v8565 = vsel %vm8555, %v8562, %v8564
    %v8566 = vsel %vm8554, %v8544, %v8547
    %v8567 = vsel %vm8557, %v8553, 1326507024
    %v8568 = vsel %vm8556, %v8550, %v8567
    %v8569 = vsel %vm8555, %v8566, %v8568
    %v8570 = vshll.u32 %v8530, 8
    %v8571 = vand.u32 %v8570, 65535
    %v8572 = vshrl.u32 %v8570, 16
    %v8573 = vand.u32 %v8569, 65535
    %v8574 = vshrl.u32 %v8569, 16
    %v8575 = vmul.u32 %v8571, %v8573
    %v8576 = vmul.u32 %v8571, %v8574
    %v8577 = vmul.u32 %v8572, %v8573
    %v8578 = vmul.u32 %v8572, %v8574
    %v8579 = vshll.u32 %v8576, 16
    %v8580 = vshrl.u32 %v8576, 16
    %v8581 = vshll.u32 %v8577, 16
    %v8582 = vshrl.u32 %v8577, 16
    %vm8583 = vc.u32 %v8575, %v8579
    %v8584 = vsel %vm8583, 1, 0
    %v8585 = vadd.s32 %v8575, %v8579
    %v8586 = vadd.s32 %v8578, %v8584
    %vm8587 = vc.u32 %v8585, %v8581
    %v8588 = vsel %vm8587, 1, 0
    %v8589 = vadd.s32 %v8585, %v8581
    %v8590 = vadd.s32 %v8586, %v8588
    %v8591 = vadd.s32 %v8590, %v8580
    %v8592 = vadd.s32 %v8591, %v8582
    %v8593 = vand.u32 %v8570, 65535
    %v8594 = vshrl.u32 %v8570, 16
    %v8595 = vand.u32 %v8565, 65535
    %v8596 = vshrl.u32 %v8565, 16
    %v8597 = vmul.u32 %v8593, %v8595
    %v8598 = vmul.u32 %v8593, %v8596
    %v8599 = vmul.u32 %v8594, %v8595
    %v8600 = vmul.u32 %v8594, %v8596
    %v8601 = vshll.u32 %v8598, 16
    %v8602 = vshrl.u32 %v8598, 16
    %v8603 = vshll.u32 %v8599, 16
    %v8604 = vshrl.u32 %v8599, 16
    %vm8605 = vc.u32 %v8597, %v8601
    %v8606 = vsel %vm8605, 1, 0
    %v8607 = vadd.s32 %v8597, %v8601
    %v8608 = vadd.s32 %v8600, %v8606
    %vm8609 = vc.u32 %v8607, %v8603
    %v8610 = vsel %vm8609, 1, 0
    %v8611 = vadd.s32 %v8607, %v8603
    %v8612 = vadd.s32 %v8608, %v8610
    %v8613 = vadd.s32 %v8612, %v8602
    %v8614 = vadd.s32 %v8613, %v8604
    %v8615 = vmul.u32 %v8570, %v8561
    %v8616 = vadd.s32 %v8592, %v8611
    %vm8617 = vc.u32 %v8592, %v8611
    %v8618 = vadd.s32 %v8614, 1
    %v8619 = vsel %vm8617, %v8618, %v8614
    %v8620 = vadd.s32 %v8615, %v8619
    %v8621 = vadd.s32 %v8620, 536870912
    %v8622 = vshrl.u32 %v8621, 30
    %v8623 = vshll.u32 %v8622, 30
    %v8624 = vsub.s32 %v8620, %v8623
    %vm8625 = vcmp.lt.s32.totalorder %v8624, 0
    %v8626 = vsub.s32 0, %v8624
    %v8627 = vsel %vm8625, %v8626, %v8624
    %v8628 = vclz %v8627
    %v8629 = vsub.s32 %v8628, 2
    %vm8630 = vcmp.gt.s32.totalorder 0, %v8629
    %v8631 = vsel %vm8630, 0, %v8629
    %v8632 = vsub.s32 32, %v8631
    %v8633 = vshll.u32 %v8624, %v8631
    %v8634 = vshrl.u32 %v8616, %v8632
    %v8635 = vor.u32 %v8633, %v8634
    %v8636 = vsub.s32 4294967266, %v8631
    %v8637 = vadd.s32 %v8636, 127
    %v8638 = vshll.u32 %v8637, 23
    %v8639 = vor.u32 4788187, %v8638
    %v8640 = vand.u32 2147483647, %v8639
    %v8642 = vcvt.s32.f32 %v8635
    %v8643 = vmul.f32 %v8642, %v8640
    %v8644 = vxor.u32 %v8643, 2147483648
    %v8645 = vsel %vm8524, %v8644, %v8643
    %v8646 = vsub.s32 4, %v8622
    %v8647 = vsel %vm8524, %v8646, %v8622
    %v8648 = vsel %vm8523, %v5539, %v8645
    %v8649 = vsel %vm8523, 0, %v8647
    %v8650 = vmul.f32 %v8648, %v8648
    %v8651 = vmul.f32 %v8650, -0.001358992
    %v8652 = vadd.f32 %v8651, 0.041655596
    %v8653 = vmul.f32 %v8650, %v8652
    %v8654 = vadd.f32 %v8653, -0.4999988
    %v8655 = vmul.f32 %v8650, %v8654
    %v8656 = vadd.f32 1.0, %v8655
    %v8657 = vmul.f32 %v8648, %v8648
    %v8658 = vmul.f32 %v8657, -0.00019511016
    %v8659 = vadd.f32 %v8658, 0.008332121
    %v8660 = vmul.f32 %v8657, %v8659
    %v8661 = vadd.f32 %v8660, -0.16666654
    %v8662 = vmul.f32 %v8657, %v8661
    %v8663 = vadd.f32 %v8662, 1.0
    %v8664 = vmul.f32 %v8663, %v8648
    %vm8665 = vweird.f32 %v5539
    %v8666 = vadd.s32 %v8649, 3
    %v8667 = vand.u32 %v8666, 3
    %vm8668 = vcmp.lt.s32.totalorder %v8667, 2
    %vm8669 = vcmp.eq.s32.totalorder %v8667, 0
    %v8670 = vxor.u32 %v8664, 2147483648
    %v8671 = vsel %vm8669, %v8656, %v8670
    %vm8672 = vcmp.eq.s32.totalorder %v8667, 2
    %v8673 = vxor.u32 %v8656, 2147483648
    %v8674 = vsel %vm8672, %v8673, %v8664
    %v8675 = vsel %vm8668, %v8671, %v8674
    %v8676 = vsel %vm8665, nan, %v8675
    %v8677 = vand.u32 2147483647, %v5542
    %vm8678 = vcmp.le.f32.partialorder %v8677, 0.7853982
    %vm8679 = vcmp.lt.s32.totalorder %v5542, 0
    %v8680 = vand.u32 %v5542, 2139095040
    %v8681 = vshrl.u32 %v8680, 23
    %v8682 = vsub.s32 %v8681, 127
    %v8683 = vand.u32 2147483647, %v5542
    %v8684 = vand.u32 %v8683, 8388607
    %v8685 = vor.u32 %v8684, 8388608
    %v8686 = vsub.s32 0, %v8685
    %v8687 = vadd.s32 %v8682, 1
    %vm8688 = vcmp.gt.s32.totalorder %v8687, 0
    %v8689 = vsel %vm8688, %v8687, 0
    %v8690 = vshrl.u32 %v8689, 5
    %v8691 = vand.u32 %v8689, 31
    %v8692 = vsub.s32 32, %v8691
    %v8693 = vshrl.u32 683565275, %v8692
    %v8694 = vshll.u32 683565275, %v8691
    %v8695 = vshrl.u32 2475754826, %v8692
    %v8696 = vor.u32 %v8694, %v8695
    %v8697 = vshll.u32 2475754826, %v8691
    %v8698 = vshrl.u32 2131351028, %v8692
    %v8699 = vor.u32 %v8697, %v8698
    %v8700 = vshll.u32 2131351028, %v8691
    %v8701 = vshrl.u32 2102212464, %v8692
    %v8702 = vor.u32 %v8700, %v8701
    %v8703 = vshll.u32 2102212464, %v8691
    %v8704 = vshrl.u32 920167782, %v8692
    %v8705 = vor.u32 %v8703, %v8704
    %v8706 = vshll.u32 920167782, %v8691
    %v8707 = vshrl.u32 1326507024, %v8692
    %v8708 = vor.u32 %v8706, %v8707
    %vm8709 = vcmp.lt.s32.totalorder %v8690, 1
    %vm8710 = vcmp.lt.s32.totalorder %v8690, 2
    %vm8711 = vcmp.lt.s32.totalorder %v8690, 3
    %vm8712 = vcmp.lt.s32.totalorder %v8690, 4
    %v8713 = vsel %vm8709, %v8693, %v8696
    %v8714 = vsel %vm8712, %v8702, 2102212464
    %v8715 = vsel %vm8711, %v8699, %v8714
    %v8716 = vsel %vm8710, %v8713, %v8715
    %v8717 = vsel %vm8709, %v8696, %v8699
    %v8718 = vsel %vm8712, %v8705, 920167782
    %v8719 = vsel %vm8711, %v8702, %v8718
    %v8720 = vsel %vm8710, %v8717, %v8719
    %v8721 = vsel %vm8709, %v8699, %v8702
    %v8722 = vsel %vm8712, %v8708, 1326507024
    %v8723 = vsel %vm8711, %v8705, %v8722
    %v8724 = vsel %vm8710, %v8721, %v8723
    %v8725 = vshll.u32 %v8685, 8
    %v8726 = vand.u32 %v8725, 65535
    %v8727 = vshrl.u32 %v8725, 16
    %v8728 = vand.u32 %v8724, 65535
    %v8729 = vshrl.u32 %v8724, 16
    %v8730 = vmul.u32 %v8726, %v8728
    %v8731 = vmul.u32 %v8726, %v8729
    %v8732 = vmul.u32 %v8727, %v8728
    %v8733 = vmul.u32 %v8727, %v8729
    %v8734 = vshll.u32 %v8731, 16
    %v8735 = vshrl.u32 %v8731, 16
    %v8736 = vshll.u32 %v8732, 16
    %v8737 = vshrl.u32 %v8732, 16
    %vm8738 = vc.u32 %v8730, %v8734
    %v8739 = vsel %vm8738, 1, 0
    %v8740 = vadd.s32 %v8730, %v8734
    %v8741 = vadd.s32 %v8733, %v8739
    %vm8742 = vc.u32 %v8740, %v8736
    %v8743 = vsel %vm8742, 1, 0
    %v8744 = vadd.s32 %v8740, %v8736
    %v8745 = vadd.s32 %v8741, %v8743
    %v8746 = vadd.s32 %v8745, %v8735
    %v8747 = vadd.s32 %v8746, %v8737
    %v8748 = vand.u32 %v8725, 65535
    %v8749 = vshrl.u32 %v8725, 16
    %v8750 = vand.u32 %v8720, 65535
    %v8751 = vshrl.u32 %v8720, 16
    %v8752 = vmul.u32 %v8748, %v8750
    %v8753 = vmul.u32 %v8748, %v8751
    %v8754 = vmul.u32 %v8749, %v8750
    %v8755 = vmul.u32 %v8749, %v8751
    %v8756 = vshll.u32 %v8753, 16
    %v8757 = vshrl.u32 %v8753, 16
    %v8758 = vshll.u32 %v8754, 16
    %v8759 = vshrl.u32 %v8754, 16
    %vm8760 = vc.u32 %v8752, %v8756
    %v8761 = vsel %vm8760, 1, 0
    %v8762 = vadd.s32 %v8752, %v8756
    %v8763 = vadd.s32 %v8755, %v8761
    %vm8764 = vc.u32 %v8762, %v8758
    %v8765 = vsel %vm8764, 1, 0
    %v8766 = vadd.s32 %v8762, %v8758
    %v8767 = vadd.s32 %v8763, %v8765
    %v8768 = vadd.s32 %v8767, %v8757
    %v8769 = vadd.s32 %v8768, %v8759
    %v8770 = vmul.u32 %v8725, %v8716
    %v8771 = vadd.s32 %v8747, %v8766
    %vm8772 = vc.u32 %v8747, %v8766
    %v8773 = vadd.s32 %v8769, 1
    %v8774 = vsel %vm8772, %v8773, %v8769
    %v8775 = vadd.s32 %v8770, %v8774
    %v8776 = vadd.s32 %v8775, 536870912
    %v8777 = vshrl.u32 %v8776, 30
    %v8778 = vshll.u32 %v8777, 30
    %v8779 = vsub.s32 %v8775, %v8778
    %vm8780 = vcmp.lt.s32.totalorder %v8779, 0
    %v8781 = vsub.s32 0, %v8779
    %v8782 = vsel %vm8780, %v8781, %v8779
    %v8783 = vclz %v8782
    %v8784 = vsub.s32 %v8783, 2
    %vm8785 = vcmp.gt.s32.totalorder 0, %v8784
    %v8786 = vsel %vm8785, 0, %v8784
    %v8787 = vsub.s32 32, %v8786
    %v8788 = vshll.u32 %v8779, %v8786
    %v8789 = vshrl.u32 %v8771, %v8787
    %v8790 = vor.u32 %v8788, %v8789
    %v8791 = vsub.s32 4294967266, %v8786
    %v8792 = vadd.s32 %v8791, 127
    %v8793 = vshll.u32 %v8792, 23
    %v8794 = vor.u32 4788187, %v8793
    %v8795 = vand.u32 2147483647, %v8794
    %v8797 = vcvt.s32.f32 %v8790
    %v8798 = vmul.f32 %v8797, %v8795
    %v8799 = vxor.u32 %v8798, 2147483648
    %v8800 = vsel %vm8679, %v8799, %v8798
    %v8801 = vsub.s32 4, %v8777
    %v8802 = vsel %vm8679, %v8801, %v8777
    %v8803 = vsel %vm8678, %v5542, %v8800
    %v8804 = vsel %vm8678, 0, %v8802
    %v8805 = vmul.f32 %v8803, %v8803
    %v8806 = vmul.f32 %v8805, -0.001358992
    %v8807 = vadd.f32 %v8806, 0.041655596
    %v8808 = vmul.f32 %v8805, %v8807
    %v8809 = vadd.f32 %v8808, -0.4999988
    %v8810 = vmul.f32 %v8805, %v8809
    %v8811 = vadd.f32 1.0, %v8810
    %v8812 = vmul.f32 %v8803, %v8803
    %v8813 = vmul.f32 %v8812, -0.00019511016
    %v8814 = vadd.f32 %v8813, 0.008332121
    %v8815 = vmul.f32 %v8812, %v8814
    %v8816 = vadd.f32 %v8815, -0.16666654
    %v8817 = vmul.f32 %v8812, %v8816
    %v8818 = vadd.f32 %v8817, 1.0
    %v8819 = vmul.f32 %v8818, %v8803
    %vm8820 = vweird.f32 %v5542
    %v8821 = vadd.s32 %v8804, 3
    %v8822 = vand.u32 %v8821, 3
    %vm8823 = vcmp.lt.s32.totalorder %v8822, 2
    %vm8824 = vcmp.eq.s32.totalorder %v8822, 0
    %v8825 = vxor.u32 %v8819, 2147483648
    %v8826 = vsel %vm8824, %v8811, %v8825
    %vm8827 = vcmp.eq.s32.totalorder %v8822, 2
    %v8828 = vxor.u32 %v8811, 2147483648
    %v8829 = vsel %vm8827, %v8828, %v8819
    %v8830 = vsel %vm8823, %v8826, %v8829
    %v8831 = vsel %vm8820, nan, %v8830
    %v8832 = vand.u32 2147483647, %v5545
    %vm8833 = vcmp.le.f32.partialorder %v8832, 0.7853982
    %vm8834 = vcmp.lt.s32.totalorder %v5545, 0
    %v8835 = vand.u32 %v5545, 2139095040
    %v8836 = vshrl.u32 %v8835, 23
    %v8837 = vsub.s32 %v8836, 127
    %v8838 = vand.u32 2147483647, %v5545
    %v8839 = vand.u32 %v8838, 8388607
    %v8840 = vor.u32 %v8839, 8388608
    %v8841 = vsub.s32 0, %v8840
    %v8842 = vadd.s32 %v8837, 1
    %vm8843 = vcmp.gt.s32.totalorder %v8842, 0
    %v8844 = vsel %vm8843, %v8842, 0
    %v8845 = vshrl.u32 %v8844, 5
    %v8846 = vand.u32 %v8844, 31
    %v8847 = vsub.s32 32, %v8846
    %v8848 = vshrl.u32 683565275, %v8847
    %v8849 = vshll.u32 683565275, %v8846
    %v8850 = vshrl.u32 2475754826, %v8847
    %v8851 = vor.u32 %v8849, %v8850
    %v8852 = vshll.u32 2475754826, %v8846
    %v8853 = vshrl.u32 2131351028, %v8847
    %v8854 = vor.u32 %v8852, %v8853
    %v8855 = vshll.u32 2131351028, %v8846
    %v8856 = vshrl.u32 2102212464, %v8847
    %v8857 = vor.u32 %v8855, %v8856
    %v8858 = vshll.u32 2102212464, %v8846
    %v8859 = vshrl.u32 920167782, %v8847
    %v8860 = vor.u32 %v8858, %v8859
    %v8861 = vshll.u32 920167782, %v8846
    %v8862 = vshrl.u32 1326507024, %v8847
    %v8863 = vor.u32 %v8861, %v8862
    %vm8864 = vcmp.lt.s32.totalorder %v8845, 1
    %vm8865 = vcmp.lt.s32.totalorder %v8845, 2
    %vm8866 = vcmp.lt.s32.totalorder %v8845, 3
    %vm8867 = vcmp.lt.s32.totalorder %v8845, 4
    %v8868 = vsel %vm8864, %v8848, %v8851
    %v8869 = vsel %vm8867, %v8857, 2102212464
    %v8870 = vsel %vm8866, %v8854, %v8869
    %v8871 = vsel %vm8865, %v8868, %v8870
    %v8872 = vsel %vm8864, %v8851, %v8854
    %v8873 = vsel %vm8867, %v8860, 920167782
    %v8874 = vsel %vm8866, %v8857, %v8873
    %v8875 = vsel %vm8865, %v8872, %v8874
    %v8876 = vsel %vm8864, %v8854, %v8857
    %v8877 = vsel %vm8867, %v8863, 1326507024
    %v8878 = vsel %vm8866, %v8860, %v8877
    %v8879 = vsel %vm8865, %v8876, %v8878
    %v8880 = vshll.u32 %v8840, 8
    %v8881 = vand.u32 %v8880, 65535
    %v8882 = vshrl.u32 %v8880, 16
    %v8883 = vand.u32 %v8879, 65535
    %v8884 = vshrl.u32 %v8879, 16
    %v8885 = vmul.u32 %v8881, %v8883
    %v8886 = vmul.u32 %v8881, %v8884
    %v8887 = vmul.u32 %v8882, %v8883
    %v8888 = vmul.u32 %v8882, %v8884
    %v8889 = vshll.u32 %v8886, 16
    %v8890 = vshrl.u32 %v8886, 16
    %v8891 = vshll.u32 %v8887, 16
    %v8892 = vshrl.u32 %v8887, 16
    %vm8893 = vc.u32 %v8885, %v8889
    %v8894 = vsel %vm8893, 1, 0
    %v8895 = vadd.s32 %v8885, %v8889
    %v8896 = vadd.s32 %v8888, %v8894
    %vm8897 = vc.u32 %v8895, %v8891
    %v8898 = vsel %vm8897, 1, 0
    %v8899 = vadd.s32 %v8895, %v8891
    %v8900 = vadd.s32 %v8896, %v8898
    %v8901 = vadd.s32 %v8900, %v8890
    %v8902 = vadd.s32 %v8901, %v8892
    %v8903 = vand.u32 %v8880, 65535
    %v8904 = vshrl.u32 %v8880, 16
    %v8905 = vand.u32 %v8875, 65535
    %v8906 = vshrl.u32 %v8875, 16
    %v8907 = vmul.u32 %v8903, %v8905
    %v8908 = vmul.u32 %v8903, %v8906
    %v8909 = vmul.u32 %v8904, %v8905
    %v8910 = vmul.u32 %v8904, %v8906
    %v8911 = vshll.u32 %v8908, 16
    %v8912 = vshrl.u32 %v8908, 16
    %v8913 = vshll.u32 %v8909, 16
    %v8914 = vshrl.u32 %v8909, 16
    %vm8915 = vc.u32 %v8907, %v8911
    %v8916 = vsel %vm8915, 1, 0
    %v8917 = vadd.s32 %v8907, %v8911
    %v8918 = vadd.s32 %v8910, %v8916
    %vm8919 = vc.u32 %v8917, %v8913
    %v8920 = vsel %vm8919, 1, 0
    %v8921 = vadd.s32 %v8917, %v8913
    %v8922 = vadd.s32 %v8918, %v8920
    %v8923 = vadd.s32 %v8922, %v8912
    %v8924 = vadd.s32 %v8923, %v8914
    %v8925 = vmul.u32 %v8880, %v8871
    %v8926 = vadd.s32 %v8902, %v8921
    %vm8927 = vc.u32 %v8902, %v8921
    %v8928 = vadd.s32 %v8924, 1
    %v8929 = vsel %vm8927, %v8928, %v8924
    %v8930 = vadd.s32 %v8925, %v8929
    %v8931 = vadd.s32 %v8930, 536870912
    %v8932 = vshrl.u32 %v8931, 30
    %v8933 = vshll.u32 %v8932, 30
    %v8934 = vsub.s32 %v8930, %v8933
    %vm8935 = vcmp.lt.s32.totalorder %v8934, 0
    %v8936 = vsub.s32 0, %v8934
    %v8937 = vsel %vm8935, %v8936, %v8934
    %v8938 = vclz %v8937
    %v8939 = vsub.s32 %v8938, 2
    %vm8940 = vcmp.gt.s32.totalorder 0, %v8939
    %v8941 = vsel %vm8940, 0, %v8939
    %v8942 = vsub.s32 32, %v8941
    %v8943 = vshll.u32 %v8934, %v8941
    %v8944 = vshrl.u32 %v8926, %v8942
    %v8945 = vor.u32 %v8943, %v8944
    %v8946 = vsub.s32 4294967266, %v8941
    %v8947 = vadd.s32 %v8946, 127
    %v8948 = vshll.u32 %v8947, 23
    %v8949 = vor.u32 4788187, %v8948
    %v8950 = vand.u32 2147483647, %v8949
    %v8952 = vcvt.s32.f32 %v8945
    %v8953 = vmul.f32 %v8952, %v8950
    %v8954 = vxor.u32 %v8953, 2147483648
    %v8955 = vsel %vm8834, %v8954, %v8953
    %v8956 = vsub.s32 4, %v8932
    %v8957 = vsel %vm8834, %v8956, %v8932
    %v8958 = vsel %vm8833, %v5545, %v8955
    %v8959 = vsel %vm8833, 0, %v8957
    %v8960 = vmul.f32 %v8958, %v8958
    %v8961 = vmul.f32 %v8960, -0.001358992
    %v8962 = vadd.f32 %v8961, 0.041655596
    %v8963 = vmul.f32 %v8960, %v8962
    %v8964 = vadd.f32 %v8963, -0.4999988
    %v8965 = vmul.f32 %v8960, %v8964
    %v8966 = vadd.f32 1.0, %v8965
    %v8967 = vmul.f32 %v8958, %v8958
    %v8968 = vmul.f32 %v8967, -0.00019511016
    %v8969 = vadd.f32 %v8968, 0.008332121
    %v8970 = vmul.f32 %v8967, %v8969
    %v8971 = vadd.f32 %v8970, -0.16666654
    %v8972 = vmul.f32 %v8967, %v8971
    %v8973 = vadd.f32 %v8972, 1.0
    %v8974 = vmul.f32 %v8973, %v8958
    %vm8975 = vweird.f32 %v5545
    %v8976 = vadd.s32 %v8959, 3
    %v8977 = vand.u32 %v8976, 3
    %vm8978 = vcmp.lt.s32.totalorder %v8977, 2
    %vm8979 = vcmp.eq.s32.totalorder %v8977, 0
    %v8980 = vxor.u32 %v8974, 2147483648
    %v8981 = vsel %vm8979, %v8966, %v8980
    %vm8982 = vcmp.eq.s32.totalorder %v8977, 2
    %v8983 = vxor.u32 %v8966, 2147483648
    %v8984 = vsel %vm8982, %v8983, %v8974
    %v8985 = vsel %vm8978, %v8981, %v8984
    %v8986 = vsel %vm8975, nan, %v8985
    %v8987 = vand.u32 2147483647, %v5548
    %vm8988 = vcmp.le.f32.partialorder %v8987, 0.7853982
    %vm8989 = vcmp.lt.s32.totalorder %v5548, 0
    %v8990 = vand.u32 %v5548, 2139095040
    %v8991 = vshrl.u32 %v8990, 23
    %v8992 = vsub.s32 %v8991, 127
    %v8993 = vand.u32 2147483647, %v5548
    %v8994 = vand.u32 %v8993, 8388607
    %v8995 = vor.u32 %v8994, 8388608
    %v8996 = vsub.s32 0, %v8995
    %v8997 = vadd.s32 %v8992, 1
    %vm8998 = vcmp.gt.s32.totalorder %v8997, 0
    %v8999 = vsel %vm8998, %v8997, 0
    %v9000 = vshrl.u32 %v8999, 5
    %v9001 = vand.u32 %v8999, 31
    %v9002 = vsub.s32 32, %v9001
    %v9003 = vshrl.u32 683565275, %v9002
    %v9004 = vshll.u32 683565275, %v9001
    %v9005 = vshrl.u32 2475754826, %v9002
    %v9006 = vor.u32 %v9004, %v9005
    %v9007 = vshll.u32 2475754826, %v9001
    %v9008 = vshrl.u32 2131351028, %v9002
    %v9009 = vor.u32 %v9007, %v9008
    %v9010 = vshll.u32 2131351028, %v9001
    %v9011 = vshrl.u32 2102212464, %v9002
    %v9012 = vor.u32 %v9010, %v9011
    %v9013 = vshll.u32 2102212464, %v9001
    %v9014 = vshrl.u32 920167782, %v9002
    %v9015 = vor.u32 %v9013, %v9014
    %v9016 = vshll.u32 920167782, %v9001
    %v9017 = vshrl.u32 1326507024, %v9002
    %v9018 = vor.u32 %v9016, %v9017
    %vm9019 = vcmp.lt.s32.totalorder %v9000, 1
    %vm9020 = vcmp.lt.s32.totalorder %v9000, 2
    %vm9021 = vcmp.lt.s32.totalorder %v9000, 3
    %vm9022 = vcmp.lt.s32.totalorder %v9000, 4
    %v9023 = vsel %vm9019, %v9003, %v9006
    %v9024 = vsel %vm9022, %v9012, 2102212464
    %v9025 = vsel %vm9021, %v9009, %v9024
    %v9026 = vsel %vm9020, %v9023, %v9025
    %v9027 = vsel %vm9019, %v9006, %v9009
    %v9028 = vsel %vm9022, %v9015, 920167782
    %v9029 = vsel %vm9021, %v9012, %v9028
    %v9030 = vsel %vm9020, %v9027, %v9029
    %v9031 = vsel %vm9019, %v9009, %v9012
    %v9032 = vsel %vm9022, %v9018, 1326507024
    %v9033 = vsel %vm9021, %v9015, %v9032
    %v9034 = vsel %vm9020, %v9031, %v9033
    %v9035 = vshll.u32 %v8995, 8
    %v9036 = vand.u32 %v9035, 65535
    %v9037 = vshrl.u32 %v9035, 16
    %v9038 = vand.u32 %v9034, 65535
    %v9039 = vshrl.u32 %v9034, 16
    %v9040 = vmul.u32 %v9036, %v9038
    %v9041 = vmul.u32 %v9036, %v9039
    %v9042 = vmul.u32 %v9037, %v9038
    %v9043 = vmul.u32 %v9037, %v9039
    %v9044 = vshll.u32 %v9041, 16
    %v9045 = vshrl.u32 %v9041, 16
    %v9046 = vshll.u32 %v9042, 16
    %v9047 = vshrl.u32 %v9042, 16
    %vm9048 = vc.u32 %v9040, %v9044
    %v9049 = vsel %vm9048, 1, 0
    %v9050 = vadd.s32 %v9040, %v9044
    %v9051 = vadd.s32 %v9043, %v9049
    %vm9052 = vc.u32 %v9050, %v9046
    %v9053 = vsel %vm9052, 1, 0
    %v9054 = vadd.s32 %v9050, %v9046
    %v9055 = vadd.s32 %v9051, %v9053
    %v9056 = vadd.s32 %v9055, %v9045
    %v9057 = vadd.s32 %v9056, %v9047
    %v9058 = vand.u32 %v9035, 65535
    %v9059 = vshrl.u32 %v9035, 16
    %v9060 = vand.u32 %v9030, 65535
    %v9061 = vshrl.u32 %v9030, 16
    %v9062 = vmul.u32 %v9058, %v9060
    %v9063 = vmul.u32 %v9058, %v9061
    %v9064 = vmul.u32 %v9059, %v9060
    %v9065 = vmul.u32 %v9059, %v9061
    %v9066 = vshll.u32 %v9063, 16
    %v9067 = vshrl.u32 %v9063, 16
    %v9068 = vshll.u32 %v9064, 16
    %v9069 = vshrl.u32 %v9064, 16
    %vm9070 = vc.u32 %v9062, %v9066
    %v9071 = vsel %vm9070, 1, 0
    %v9072 = vadd.s32 %v9062, %v9066
    %v9073 = vadd.s32 %v9065, %v9071
    %vm9074 = vc.u32 %v9072, %v9068
    %v9075 = vsel %vm9074, 1, 0
    %v9076 = vadd.s32 %v9072, %v9068
    %v9077 = vadd.s32 %v9073, %v9075
    %v9078 = vadd.s32 %v9077, %v9067
    %v9079 = vadd.s32 %v9078, %v9069
    %v9080 = vmul.u32 %v9035, %v9026
    %v9081 = vadd.s32 %v9057, %v9076
    %vm9082 = vc.u32 %v9057, %v9076
    %v9083 = vadd.s32 %v9079, 1
    %v9084 = vsel %vm9082, %v9083, %v9079
    %v9085 = vadd.s32 %v9080, %v9084
    %v9086 = vadd.s32 %v9085, 536870912
    %v9087 = vshrl.u32 %v9086, 30
    %v9088 = vshll.u32 %v9087, 30
    %v9089 = vsub.s32 %v9085, %v9088
    %vm9090 = vcmp.lt.s32.totalorder %v9089, 0
    %v9091 = vsub.s32 0, %v9089
    %v9092 = vsel %vm9090, %v9091, %v9089
    %v9093 = vclz %v9092
    %v9094 = vsub.s32 %v9093, 2
    %vm9095 = vcmp.gt.s32.totalorder 0, %v9094
    %v9096 = vsel %vm9095, 0, %v9094
    %v9097 = vsub.s32 32, %v9096
    %v9098 = vshll.u32 %v9089, %v9096
    %v9099 = vshrl.u32 %v9081, %v9097
    %v9100 = vor.u32 %v9098, %v9099
    %v9101 = vsub.s32 4294967266, %v9096
    %v9102 = vadd.s32 %v9101, 127
    %v9103 = vshll.u32 %v9102, 23
    %v9104 = vor.u32 4788187, %v9103
    %v9105 = vand.u32 2147483647, %v9104
    %v9107 = vcvt.s32.f32 %v9100
    %v9108 = vmul.f32 %v9107, %v9105
    %v9109 = vxor.u32 %v9108, 2147483648
    %v9110 = vsel %vm8989, %v9109, %v9108
    %v9111 = vsub.s32 4, %v9087
    %v9112 = vsel %vm8989, %v9111, %v9087
    %v9113 = vsel %vm8988, %v5548, %v9110
    %v9114 = vsel %vm8988, 0, %v9112
    %v9115 = vmul.f32 %v9113, %v9113
    %v9116 = vmul.f32 %v9115, -0.001358992
    %v9117 = vadd.f32 %v9116, 0.041655596
    %v9118 = vmul.f32 %v9115, %v9117
    %v9119 = vadd.f32 %v9118, -0.4999988
    %v9120 = vmul.f32 %v9115, %v9119
    %v9121 = vadd.f32 1.0, %v9120
    %v9122 = vmul.f32 %v9113, %v9113
    %v9123 = vmul.f32 %v9122, -0.00019511016
    %v9124 = vadd.f32 %v9123, 0.008332121
    %v9125 = vmul.f32 %v9122, %v9124
    %v9126 = vadd.f32 %v9125, -0.16666654
    %v9127 = vmul.f32 %v9122, %v9126
    %v9128 = vadd.f32 %v9127, 1.0
    %v9129 = vmul.f32 %v9128, %v9113
    %vm9130 = vweird.f32 %v5548
    %v9131 = vadd.s32 %v9114, 3
    %v9132 = vand.u32 %v9131, 3
    %vm9133 = vcmp.lt.s32.totalorder %v9132, 2
    %vm9134 = vcmp.eq.s32.totalorder %v9132, 0
    %v9135 = vxor.u32 %v9129, 2147483648
    %v9136 = vsel %vm9134, %v9121, %v9135
    %vm9137 = vcmp.eq.s32.totalorder %v9132, 2
    %v9138 = vxor.u32 %v9121, 2147483648
    %v9139 = vsel %vm9137, %v9138, %v9129
    %v9140 = vsel %vm9133, %v9136, %v9139
    %v9141 = vsel %vm9130, nan, %v9140
    %v9142 = vand.u32 2147483647, %v5551
    %vm9143 = vcmp.le.f32.partialorder %v9142, 0.7853982
    %vm9144 = vcmp.lt.s32.totalorder %v5551, 0
    %v9145 = vand.u32 %v5551, 2139095040
    %v9146 = vshrl.u32 %v9145, 23
    %v9147 = vsub.s32 %v9146, 127
    %v9148 = vand.u32 2147483647, %v5551
    %v9149 = vand.u32 %v9148, 8388607
    %v9150 = vor.u32 %v9149, 8388608
    %v9151 = vsub.s32 0, %v9150
    %v9152 = vadd.s32 %v9147, 1
    %vm9153 = vcmp.gt.s32.totalorder %v9152, 0
    %v9154 = vsel %vm9153, %v9152, 0
    %v9155 = vshrl.u32 %v9154, 5
    %v9156 = vand.u32 %v9154, 31
    %v9157 = vsub.s32 32, %v9156
    %v9158 = vshrl.u32 683565275, %v9157
    %v9159 = vshll.u32 683565275, %v9156
    %v9160 = vshrl.u32 2475754826, %v9157
    %v9161 = vor.u32 %v9159, %v9160
    %v9162 = vshll.u32 2475754826, %v9156
    %v9163 = vshrl.u32 2131351028, %v9157
    %v9164 = vor.u32 %v9162, %v9163
    %v9165 = vshll.u32 2131351028, %v9156
    %v9166 = vshrl.u32 2102212464, %v9157
    %v9167 = vor.u32 %v9165, %v9166
    %v9168 = vshll.u32 2102212464, %v9156
    %v9169 = vshrl.u32 920167782, %v9157
    %v9170 = vor.u32 %v9168, %v9169
    %v9171 = vshll.u32 920167782, %v9156
    %v9172 = vshrl.u32 1326507024, %v9157
    %v9173 = vor.u32 %v9171, %v9172
    %vm9174 = vcmp.lt.s32.totalorder %v9155, 1
    %vm9175 = vcmp.lt.s32.totalorder %v9155, 2
    %vm9176 = vcmp.lt.s32.totalorder %v9155, 3
    %vm9177 = vcmp.lt.s32.totalorder %v9155, 4
    %v9178 = vsel %vm9174, %v9158, %v9161
    %v9179 = vsel %vm9177, %v9167, 2102212464
    %v9180 = vsel %vm9176, %v9164, %v9179
    %v9181 = vsel %vm9175, %v9178, %v9180
    %v9182 = vsel %vm9174, %v9161, %v9164
    %v9183 = vsel %vm9177, %v9170, 920167782
    %v9184 = vsel %vm9176, %v9167, %v9183
    %v9185 = vsel %vm9175, %v9182, %v9184
    %v9186 = vsel %vm9174, %v9164, %v9167
    %v9187 = vsel %vm9177, %v9173, 1326507024
    %v9188 = vsel %vm9176, %v9170, %v9187
    %v9189 = vsel %vm9175, %v9186, %v9188
    %v9190 = vshll.u32 %v9150, 8
    %v9191 = vand.u32 %v9190, 65535
    %v9192 = vshrl.u32 %v9190, 16
    %v9193 = vand.u32 %v9189, 65535
    %v9194 = vshrl.u32 %v9189, 16
    %v9195 = vmul.u32 %v9191, %v9193
    %v9196 = vmul.u32 %v9191, %v9194
    %v9197 = vmul.u32 %v9192, %v9193
    %v9198 = vmul.u32 %v9192, %v9194
    %v9199 = vshll.u32 %v9196, 16
    %v9200 = vshrl.u32 %v9196, 16
    %v9201 = vshll.u32 %v9197, 16
    %v9202 = vshrl.u32 %v9197, 16
    %vm9203 = vc.u32 %v9195, %v9199
    %v9204 = vsel %vm9203, 1, 0
    %v9205 = vadd.s32 %v9195, %v9199
    %v9206 = vadd.s32 %v9198, %v9204
    %vm9207 = vc.u32 %v9205, %v9201
    %v9208 = vsel %vm9207, 1, 0
    %v9209 = vadd.s32 %v9205, %v9201
    %v9210 = vadd.s32 %v9206, %v9208
    %v9211 = vadd.s32 %v9210, %v9200
    %v9212 = vadd.s32 %v9211, %v9202
    %v9213 = vand.u32 %v9190, 65535
    %v9214 = vshrl.u32 %v9190, 16
    %v9215 = vand.u32 %v9185, 65535
    %v9216 = vshrl.u32 %v9185, 16
    %v9217 = vmul.u32 %v9213, %v9215
    %v9218 = vmul.u32 %v9213, %v9216
    %v9219 = vmul.u32 %v9214, %v9215
    %v9220 = vmul.u32 %v9214, %v9216
    %v9221 = vshll.u32 %v9218, 16
    %v9222 = vshrl.u32 %v9218, 16
    %v9223 = vshll.u32 %v9219, 16
    %v9224 = vshrl.u32 %v9219, 16
    %vm9225 = vc.u32 %v9217, %v9221
    %v9226 = vsel %vm9225, 1, 0
    %v9227 = vadd.s32 %v9217, %v9221
    %v9228 = vadd.s32 %v9220, %v9226
    %vm9229 = vc.u32 %v9227, %v9223
    %v9230 = vsel %vm9229, 1, 0
    %v9231 = vadd.s32 %v9227, %v9223
    %v9232 = vadd.s32 %v9228, %v9230
    %v9233 = vadd.s32 %v9232, %v9222
    %v9234 = vadd.s32 %v9233, %v9224
    %v9235 = vmul.u32 %v9190, %v9181
    %v9236 = vadd.s32 %v9212, %v9231
    %vm9237 = vc.u32 %v9212, %v9231
    %v9238 = vadd.s32 %v9234, 1
    %v9239 = vsel %vm9237, %v9238, %v9234
    %v9240 = vadd.s32 %v9235, %v9239
    %v9241 = vadd.s32 %v9240, 536870912
    %v9242 = vshrl.u32 %v9241, 30
    %v9243 = vshll.u32 %v9242, 30
    %v9244 = vsub.s32 %v9240, %v9243
    %vm9245 = vcmp.lt.s32.totalorder %v9244, 0
    %v9246 = vsub.s32 0, %v9244
    %v9247 = vsel %vm9245, %v9246, %v9244
    %v9248 = vclz %v9247
    %v9249 = vsub.s32 %v9248, 2
    %vm9250 = vcmp.gt.s32.totalorder 0, %v9249
    %v9251 = vsel %vm9250, 0, %v9249
    %v9252 = vsub.s32 32, %v9251
    %v9253 = vshll.u32 %v9244, %v9251
    %v9254 = vshrl.u32 %v9236, %v9252
    %v9255 = vor.u32 %v9253, %v9254
    %v9256 = vsub.s32 4294967266, %v9251
    %v9257 = vadd.s32 %v9256, 127
    %v9258 = vshll.u32 %v9257, 23
    %v9259 = vor.u32 4788187, %v9258
    %v9260 = vand.u32 2147483647, %v9259
    %v9262 = vcvt.s32.f32 %v9255
    %v9263 = vmul.f32 %v9262, %v9260
    %v9264 = vxor.u32 %v9263, 2147483648
    %v9265 = vsel %vm9144, %v9264, %v9263
    %v9266 = vsub.s32 4, %v9242
    %v9267 = vsel %vm9144, %v9266, %v9242
    %v9268 = vsel %vm9143, %v5551, %v9265
    %v9269 = vsel %vm9143, 0, %v9267
    %v9270 = vmul.f32 %v9268, %v9268
    %v9271 = vmul.f32 %v9270, -0.001358992
    %v9272 = vadd.f32 %v9271, 0.041655596
    %v9273 = vmul.f32 %v9270, %v9272
    %v9274 = vadd.f32 %v9273, -0.4999988
    %v9275 = vmul.f32 %v9270, %v9274
    %v9276 = vadd.f32 1.0, %v9275
    %v9277 = vmul.f32 %v9268, %v9268
    %v9278 = vmul.f32 %v9277, -0.00019511016
    %v9279 = vadd.f32 %v9278, 0.008332121
    %v9280 = vmul.f32 %v9277, %v9279
    %v9281 = vadd.f32 %v9280, -0.16666654
    %v9282 = vmul.f32 %v9277, %v9281
    %v9283 = vadd.f32 %v9282, 1.0
    %v9284 = vmul.f32 %v9283, %v9268
    %vm9285 = vweird.f32 %v5551
    %v9286 = vadd.s32 %v9269, 3
    %v9287 = vand.u32 %v9286, 3
    %vm9288 = vcmp.lt.s32.totalorder %v9287, 2
    %vm9289 = vcmp.eq.s32.totalorder %v9287, 0
    %v9290 = vxor.u32 %v9284, 2147483648
    %v9291 = vsel %vm9289, %v9276, %v9290
    %vm9292 = vcmp.eq.s32.totalorder %v9287, 2
    %v9293 = vxor.u32 %v9276, 2147483648
    %v9294 = vsel %vm9292, %v9293, %v9284
    %v9295 = vsel %vm9288, %v9291, %v9294
    %v9296 = vsel %vm9285, nan, %v9295
    %v9297 = vand.u32 2147483647, %v5554
    %vm9298 = vcmp.le.f32.partialorder %v9297, 0.7853982
    %vm9299 = vcmp.lt.s32.totalorder %v5554, 0
    %v9300 = vand.u32 %v5554, 2139095040
    %v9301 = vshrl.u32 %v9300, 23
    %v9302 = vsub.s32 %v9301, 127
    %v9303 = vand.u32 2147483647, %v5554
    %v9304 = vand.u32 %v9303, 8388607
    %v9305 = vor.u32 %v9304, 8388608
    %v9306 = vsub.s32 0, %v9305
    %v9307 = vadd.s32 %v9302, 1
    %vm9308 = vcmp.gt.s32.totalorder %v9307, 0
    %v9309 = vsel %vm9308, %v9307, 0
    %v9310 = vshrl.u32 %v9309, 5
    %v9311 = vand.u32 %v9309, 31
    %v9312 = vsub.s32 32, %v9311
    %v9313 = vshrl.u32 683565275, %v9312
    %v9314 = vshll.u32 683565275, %v9311
    %v9315 = vshrl.u32 2475754826, %v9312
    %v9316 = vor.u32 %v9314, %v9315
    %v9317 = vshll.u32 2475754826, %v9311
    %v9318 = vshrl.u32 2131351028, %v9312
    %v9319 = vor.u32 %v9317, %v9318
    %v9320 = vshll.u32 2131351028, %v9311
    %v9321 = vshrl.u32 2102212464, %v9312
    %v9322 = vor.u32 %v9320, %v9321
    %v9323 = vshll.u32 2102212464, %v9311
    %v9324 = vshrl.u32 920167782, %v9312
    %v9325 = vor.u32 %v9323, %v9324
    %v9326 = vshll.u32 920167782, %v9311
    %v9327 = vshrl.u32 1326507024, %v9312
    %v9328 = vor.u32 %v9326, %v9327
    %vm9329 = vcmp.lt.s32.totalorder %v9310, 1
    %vm9330 = vcmp.lt.s32.totalorder %v9310, 2
    %vm9331 = vcmp.lt.s32.totalorder %v9310, 3
    %vm9332 = vcmp.lt.s32.totalorder %v9310, 4
    %v9333 = vsel %vm9329, %v9313, %v9316
    %v9334 = vsel %vm9332, %v9322, 2102212464
    %v9335 = vsel %vm9331, %v9319, %v9334
    %v9336 = vsel %vm9330, %v9333, %v9335
    %v9337 = vsel %vm9329, %v9316, %v9319
    %v9338 = vsel %vm9332, %v9325, 920167782
    %v9339 = vsel %vm9331, %v9322, %v9338
    %v9340 = vsel %vm9330, %v9337, %v9339
    %v9341 = vsel %vm9329, %v9319, %v9322
    %v9342 = vsel %vm9332, %v9328, 1326507024
    %v9343 = vsel %vm9331, %v9325, %v9342
    %v9344 = vsel %vm9330, %v9341, %v9343
    %v9345 = vshll.u32 %v9305, 8
    %v9346 = vand.u32 %v9345, 65535
    %v9347 = vshrl.u32 %v9345, 16
    %v9348 = vand.u32 %v9344, 65535
    %v9349 = vshrl.u32 %v9344, 16
    %v9350 = vmul.u32 %v9346, %v9348
    %v9351 = vmul.u32 %v9346, %v9349
    %v9352 = vmul.u32 %v9347, %v9348
    %v9353 = vmul.u32 %v9347, %v9349
    %v9354 = vshll.u32 %v9351, 16
    %v9355 = vshrl.u32 %v9351, 16
    %v9356 = vshll.u32 %v9352, 16
    %v9357 = vshrl.u32 %v9352, 16
    %vm9358 = vc.u32 %v9350, %v9354
    %v9359 = vsel %vm9358, 1, 0
    %v9360 = vadd.s32 %v9350, %v9354
    %v9361 = vadd.s32 %v9353, %v9359
    %vm9362 = vc.u32 %v9360, %v9356
    %v9363 = vsel %vm9362, 1, 0
    %v9364 = vadd.s32 %v9360, %v9356
    %v9365 = vadd.s32 %v9361, %v9363
    %v9366 = vadd.s32 %v9365, %v9355
    %v9367 = vadd.s32 %v9366, %v9357
    %v9368 = vand.u32 %v9345, 65535
    %v9369 = vshrl.u32 %v9345, 16
    %v9370 = vand.u32 %v9340, 65535
    %v9371 = vshrl.u32 %v9340, 16
    %v9372 = vmul.u32 %v9368, %v9370
    %v9373 = vmul.u32 %v9368, %v9371
    %v9374 = vmul.u32 %v9369, %v9370
    %v9375 = vmul.u32 %v9369, %v9371
    %v9376 = vshll.u32 %v9373, 16
    %v9377 = vshrl.u32 %v9373, 16
    %v9378 = vshll.u32 %v9374, 16
    %v9379 = vshrl.u32 %v9374, 16
    %vm9380 = vc.u32 %v9372, %v9376
    %v9381 = vsel %vm9380, 1, 0
    %v9382 = vadd.s32 %v9372, %v9376
    %v9383 = vadd.s32 %v9375, %v9381
    %vm9384 = vc.u32 %v9382, %v9378
    %v9385 = vsel %vm9384, 1, 0
    %v9386 = vadd.s32 %v9382, %v9378
    %v9387 = vadd.s32 %v9383, %v9385
    %v9388 = vadd.s32 %v9387, %v9377
    %v9389 = vadd.s32 %v9388, %v9379
    %v9390 = vmul.u32 %v9345, %v9336
    %v9391 = vadd.s32 %v9367, %v9386
    %vm9392 = vc.u32 %v9367, %v9386
    %v9393 = vadd.s32 %v9389, 1
    %v9394 = vsel %vm9392, %v9393, %v9389
    %v9395 = vadd.s32 %v9390, %v9394
    %v9396 = vadd.s32 %v9395, 536870912
    %v9397 = vshrl.u32 %v9396, 30
    %v9398 = vshll.u32 %v9397, 30
    %v9399 = vsub.s32 %v9395, %v9398
    %vm9400 = vcmp.lt.s32.totalorder %v9399, 0
    %v9401 = vsub.s32 0, %v9399
    %v9402 = vsel %vm9400, %v9401, %v9399
    %v9403 = vclz %v9402
    %v9404 = vsub.s32 %v9403, 2
    %vm9405 = vcmp.gt.s32.totalorder 0, %v9404
    %v9406 = vsel %vm9405, 0, %v9404
    %v9407 = vsub.s32 32, %v9406
    %v9408 = vshll.u32 %v9399, %v9406
    %v9409 = vshrl.u32 %v9391, %v9407
    %v9410 = vor.u32 %v9408, %v9409
    %v9411 = vsub.s32 4294967266, %v9406
    %v9412 = vadd.s32 %v9411, 127
    %v9413 = vshll.u32 %v9412, 23
    %v9414 = vor.u32 4788187, %v9413
    %v9415 = vand.u32 2147483647, %v9414
    %v9417 = vcvt.s32.f32 %v9410
    %v9418 = vmul.f32 %v9417, %v9415
    %v9419 = vxor.u32 %v9418, 2147483648
    %v9420 = vsel %vm9299, %v9419, %v9418
    %v9421 = vsub.s32 4, %v9397
    %v9422 = vsel %vm9299, %v9421, %v9397
    %v9423 = vsel %vm9298, %v5554, %v9420
    %v9424 = vsel %vm9298, 0, %v9422
    %v9425 = vmul.f32 %v9423, %v9423
    %v9426 = vmul.f32 %v9425, -0.001358992
    %v9427 = vadd.f32 %v9426, 0.041655596
    %v9428 = vmul.f32 %v9425, %v9427
    %v9429 = vadd.f32 %v9428, -0.4999988
    %v9430 = vmul.f32 %v9425, %v9429
    %v9431 = vadd.f32 1.0, %v9430
    %v9432 = vmul.f32 %v9423, %v9423
    %v9433 = vmul.f32 %v9432, -0.00019511016
    %v9434 = vadd.f32 %v9433, 0.008332121
    %v9435 = vmul.f32 %v9432, %v9434
    %v9436 = vadd.f32 %v9435, -0.16666654
    %v9437 = vmul.f32 %v9432, %v9436
    %v9438 = vadd.f32 %v9437, 1.0
    %v9439 = vmul.f32 %v9438, %v9423
    %vm9440 = vweird.f32 %v5554
    %v9441 = vadd.s32 %v9424, 3
    %v9442 = vand.u32 %v9441, 3
    %vm9443 = vcmp.lt.s32.totalorder %v9442, 2
    %vm9444 = vcmp.eq.s32.totalorder %v9442, 0
    %v9445 = vxor.u32 %v9439, 2147483648
    %v9446 = vsel %vm9444, %v9431, %v9445
    %vm9447 = vcmp.eq.s32.totalorder %v9442, 2
    %v9448 = vxor.u32 %v9431, 2147483648
    %v9449 = vsel %vm9447, %v9448, %v9439
    %v9450 = vsel %vm9443, %v9446, %v9449
    %v9451 = vsel %vm9440, nan, %v9450
    %v9452 = vand.u32 2147483647, %v5557
    %vm9453 = vcmp.le.f32.partialorder %v9452, 0.7853982
    %vm9454 = vcmp.lt.s32.totalorder %v5557, 0
    %v9455 = vand.u32 %v5557, 2139095040
    %v9456 = vshrl.u32 %v9455, 23
    %v9457 = vsub.s32 %v9456, 127
    %v9458 = vand.u32 2147483647, %v5557
    %v9459 = vand.u32 %v9458, 8388607
    %v9460 = vor.u32 %v9459, 8388608
    %v9461 = vsub.s32 0, %v9460
    %v9462 = vadd.s32 %v9457, 1
    %vm9463 = vcmp.gt.s32.totalorder %v9462, 0
    %v9464 = vsel %vm9463, %v9462, 0
    %v9465 = vshrl.u32 %v9464, 5
    %v9466 = vand.u32 %v9464, 31
    %v9467 = vsub.s32 32, %v9466
    %v9468 = vshrl.u32 683565275, %v9467
    %v9469 = vshll.u32 683565275, %v9466
    %v9470 = vshrl.u32 2475754826, %v9467
    %v9471 = vor.u32 %v9469, %v9470
    %v9472 = vshll.u32 2475754826, %v9466
    %v9473 = vshrl.u32 2131351028, %v9467
    %v9474 = vor.u32 %v9472, %v9473
    %v9475 = vshll.u32 2131351028, %v9466
    %v9476 = vshrl.u32 2102212464, %v9467
    %v9477 = vor.u32 %v9475, %v9476
    %v9478 = vshll.u32 2102212464, %v9466
    %v9479 = vshrl.u32 920167782, %v9467
    %v9480 = vor.u32 %v9478, %v9479
    %v9481 = vshll.u32 920167782, %v9466
    %v9482 = vshrl.u32 1326507024, %v9467
    %v9483 = vor.u32 %v9481, %v9482
    %vm9484 = vcmp.lt.s32.totalorder %v9465, 1
    %vm9485 = vcmp.lt.s32.totalorder %v9465, 2
    %vm9486 = vcmp.lt.s32.totalorder %v9465, 3
    %vm9487 = vcmp.lt.s32.totalorder %v9465, 4
    %v9488 = vsel %vm9484, %v9468, %v9471
    %v9489 = vsel %vm9487, %v9477, 2102212464
    %v9490 = vsel %vm9486, %v9474, %v9489
    %v9491 = vsel %vm9485, %v9488, %v9490
    %v9492 = vsel %vm9484, %v9471, %v9474
    %v9493 = vsel %vm9487, %v9480, 920167782
    %v9494 = vsel %vm9486, %v9477, %v9493
    %v9495 = vsel %vm9485, %v9492, %v9494
    %v9496 = vsel %vm9484, %v9474, %v9477
    %v9497 = vsel %vm9487, %v9483, 1326507024
    %v9498 = vsel %vm9486, %v9480, %v9497
    %v9499 = vsel %vm9485, %v9496, %v9498
    %v9500 = vshll.u32 %v9460, 8
    %v9501 = vand.u32 %v9500, 65535
    %v9502 = vshrl.u32 %v9500, 16
    %v9503 = vand.u32 %v9499, 65535
    %v9504 = vshrl.u32 %v9499, 16
    %v9505 = vmul.u32 %v9501, %v9503
    %v9506 = vmul.u32 %v9501, %v9504
    %v9507 = vmul.u32 %v9502, %v9503
    %v9508 = vmul.u32 %v9502, %v9504
    %v9509 = vshll.u32 %v9506, 16
    %v9510 = vshrl.u32 %v9506, 16
    %v9511 = vshll.u32 %v9507, 16
    %v9512 = vshrl.u32 %v9507, 16
    %vm9513 = vc.u32 %v9505, %v9509
    %v9514 = vsel %vm9513, 1, 0
    %v9515 = vadd.s32 %v9505, %v9509
    %v9516 = vadd.s32 %v9508, %v9514
    %vm9517 = vc.u32 %v9515, %v9511
    %v9518 = vsel %vm9517, 1, 0
    %v9519 = vadd.s32 %v9515, %v9511
    %v9520 = vadd.s32 %v9516, %v9518
    %v9521 = vadd.s32 %v9520, %v9510
    %v9522 = vadd.s32 %v9521, %v9512
    %v9523 = vand.u32 %v9500, 65535
    %v9524 = vshrl.u32 %v9500, 16
    %v9525 = vand.u32 %v9495, 65535
    %v9526 = vshrl.u32 %v9495, 16
    %v9527 = vmul.u32 %v9523, %v9525
    %v9528 = vmul.u32 %v9523, %v9526
    %v9529 = vmul.u32 %v9524, %v9525
    %v9530 = vmul.u32 %v9524, %v9526
    %v9531 = vshll.u32 %v9528, 16
    %v9532 = vshrl.u32 %v9528, 16
    %v9533 = vshll.u32 %v9529, 16
    %v9534 = vshrl.u32 %v9529, 16
    %vm9535 = vc.u32 %v9527, %v9531
    %v9536 = vsel %vm9535, 1, 0
    %v9537 = vadd.s32 %v9527, %v9531
    %v9538 = vadd.s32 %v9530, %v9536
    %vm9539 = vc.u32 %v9537, %v9533
    %v9540 = vsel %vm9539, 1, 0
    %v9541 = vadd.s32 %v9537, %v9533
    %v9542 = vadd.s32 %v9538, %v9540
    %v9543 = vadd.s32 %v9542, %v9532
    %v9544 = vadd.s32 %v9543, %v9534
    %v9545 = vmul.u32 %v9500, %v9491
    %v9546 = vadd.s32 %v9522, %v9541
    %vm9547 = vc.u32 %v9522, %v9541
    %v9548 = vadd.s32 %v9544, 1
    %v9549 = vsel %vm9547, %v9548, %v9544
    %v9550 = vadd.s32 %v9545, %v9549
    %v9551 = vadd.s32 %v9550, 536870912
    %v9552 = vshrl.u32 %v9551, 30
    %v9553 = vshll.u32 %v9552, 30
    %v9554 = vsub.s32 %v9550, %v9553
    %vm9555 = vcmp.lt.s32.totalorder %v9554, 0
    %v9556 = vsub.s32 0, %v9554
    %v9557 = vsel %vm9555, %v9556, %v9554
    %v9558 = vclz %v9557
    %v9559 = vsub.s32 %v9558, 2
    %vm9560 = vcmp.gt.s32.totalorder 0, %v9559
    %v9561 = vsel %vm9560, 0, %v9559
    %v9562 = vsub.s32 32, %v9561
    %v9563 = vshll.u32 %v9554, %v9561
    %v9564 = vshrl.u32 %v9546, %v9562
    %v9565 = vor.u32 %v9563, %v9564
    %v9566 = vsub.s32 4294967266, %v9561
    %v9567 = vadd.s32 %v9566, 127
    %v9568 = vshll.u32 %v9567, 23
    %v9569 = vor.u32 4788187, %v9568
    %v9570 = vand.u32 2147483647, %v9569
    %v9572 = vcvt.s32.f32 %v9565
    %v9573 = vmul.f32 %v9572, %v9570
    %v9574 = vxor.u32 %v9573, 2147483648
    %v9575 = vsel %vm9454, %v9574, %v9573
    %v9576 = vsub.s32 4, %v9552
    %v9577 = vsel %vm9454, %v9576, %v9552
    %v9578 = vsel %vm9453, %v5557, %v9575
    %v9579 = vsel %vm9453, 0, %v9577
    %v9580 = vmul.f32 %v9578, %v9578
    %v9581 = vmul.f32 %v9580, -0.001358992
    %v9582 = vadd.f32 %v9581, 0.041655596
    %v9583 = vmul.f32 %v9580, %v9582
    %v9584 = vadd.f32 %v9583, -0.4999988
    %v9585 = vmul.f32 %v9580, %v9584
    %v9586 = vadd.f32 1.0, %v9585
    %v9587 = vmul.f32 %v9578, %v9578
    %v9588 = vmul.f32 %v9587, -0.00019511016
    %v9589 = vadd.f32 %v9588, 0.008332121
    %v9590 = vmul.f32 %v9587, %v9589
    %v9591 = vadd.f32 %v9590, -0.16666654
    %v9592 = vmul.f32 %v9587, %v9591
    %v9593 = vadd.f32 %v9592, 1.0
    %v9594 = vmul.f32 %v9593, %v9578
    %vm9595 = vweird.f32 %v5557
    %v9596 = vadd.s32 %v9579, 3
    %v9597 = vand.u32 %v9596, 3
    %vm9598 = vcmp.lt.s32.totalorder %v9597, 2
    %vm9599 = vcmp.eq.s32.totalorder %v9597, 0
    %v9600 = vxor.u32 %v9594, 2147483648
    %v9601 = vsel %vm9599, %v9586, %v9600
    %vm9602 = vcmp.eq.s32.totalorder %v9597, 2
    %v9603 = vxor.u32 %v9586, 2147483648
    %v9604 = vsel %vm9602, %v9603, %v9594
    %v9605 = vsel %vm9598, %v9601, %v9604
    %v9606 = vsel %vm9595, nan, %v9605
    %v9607 = vand.u32 2147483647, %v5560
    %vm9608 = vcmp.le.f32.partialorder %v9607, 0.7853982
    %vm9609 = vcmp.lt.s32.totalorder %v5560, 0
    %v9610 = vand.u32 %v5560, 2139095040
    %v9611 = vshrl.u32 %v9610, 23
    %v9612 = vsub.s32 %v9611, 127
    %v9613 = vand.u32 2147483647, %v5560
    %v9614 = vand.u32 %v9613, 8388607
    %v9615 = vor.u32 %v9614, 8388608
    %v9616 = vsub.s32 0, %v9615
    %v9617 = vadd.s32 %v9612, 1
    %vm9618 = vcmp.gt.s32.totalorder %v9617, 0
    %v9619 = vsel %vm9618, %v9617, 0
    %v9620 = vshrl.u32 %v9619, 5
    %v9621 = vand.u32 %v9619, 31
    %v9622 = vsub.s32 32, %v9621
    %v9623 = vshrl.u32 683565275, %v9622
    %v9624 = vshll.u32 683565275, %v9621
    %v9625 = vshrl.u32 2475754826, %v9622
    %v9626 = vor.u32 %v9624, %v9625
    %v9627 = vshll.u32 2475754826, %v9621
    %v9628 = vshrl.u32 2131351028, %v9622
    %v9629 = vor.u32 %v9627, %v9628
    %v9630 = vshll.u32 2131351028, %v9621
    %v9631 = vshrl.u32 2102212464, %v9622
    %v9632 = vor.u32 %v9630, %v9631
    %v9633 = vshll.u32 2102212464, %v9621
    %v9634 = vshrl.u32 920167782, %v9622
    %v9635 = vor.u32 %v9633, %v9634
    %v9636 = vshll.u32 920167782, %v9621
    %v9637 = vshrl.u32 1326507024, %v9622
    %v9638 = vor.u32 %v9636, %v9637
    %vm9639 = vcmp.lt.s32.totalorder %v9620, 1
    %vm9640 = vcmp.lt.s32.totalorder %v9620, 2
    %vm9641 = vcmp.lt.s32.totalorder %v9620, 3
    %vm9642 = vcmp.lt.s32.totalorder %v9620, 4
    %v9643 = vsel %vm9639, %v9623, %v9626
    %v9644 = vsel %vm9642, %v9632, 2102212464
    %v9645 = vsel %vm9641, %v9629, %v9644
    %v9646 = vsel %vm9640, %v9643, %v9645
    %v9647 = vsel %vm9639, %v9626, %v9629
    %v9648 = vsel %vm9642, %v9635, 920167782
    %v9649 = vsel %vm9641, %v9632, %v9648
    %v9650 = vsel %vm9640, %v9647, %v9649
    %v9651 = vsel %vm9639, %v9629, %v9632
    %v9652 = vsel %vm9642, %v9638, 1326507024
    %v9653 = vsel %vm9641, %v9635, %v9652
    %v9654 = vsel %vm9640, %v9651, %v9653
    %v9655 = vshll.u32 %v9615, 8
    %v9656 = vand.u32 %v9655, 65535
    %v9657 = vshrl.u32 %v9655, 16
    %v9658 = vand.u32 %v9654, 65535
    %v9659 = vshrl.u32 %v9654, 16
    %v9660 = vmul.u32 %v9656, %v9658
    %v9661 = vmul.u32 %v9656, %v9659
    %v9662 = vmul.u32 %v9657, %v9658
    %v9663 = vmul.u32 %v9657, %v9659
    %v9664 = vshll.u32 %v9661, 16
    %v9665 = vshrl.u32 %v9661, 16
    %v9666 = vshll.u32 %v9662, 16
    %v9667 = vshrl.u32 %v9662, 16
    %vm9668 = vc.u32 %v9660, %v9664
    %v9669 = vsel %vm9668, 1, 0
    %v9670 = vadd.s32 %v9660, %v9664
    %v9671 = vadd.s32 %v9663, %v9669
    %vm9672 = vc.u32 %v9670, %v9666
    %v9673 = vsel %vm9672, 1, 0
    %v9674 = vadd.s32 %v9670, %v9666
    %v9675 = vadd.s32 %v9671, %v9673
    %v9676 = vadd.s32 %v9675, %v9665
    %v9677 = vadd.s32 %v9676, %v9667
    %v9678 = vand.u32 %v9655, 65535
    %v9679 = vshrl.u32 %v9655, 16
    %v9680 = vand.u32 %v9650, 65535
    %v9681 = vshrl.u32 %v9650, 16
    %v9682 = vmul.u32 %v9678, %v9680
    %v9683 = vmul.u32 %v9678, %v9681
    %v9684 = vmul.u32 %v9679, %v9680
    %v9685 = vmul.u32 %v9679, %v9681
    %v9686 = vshll.u32 %v9683, 16
    %v9687 = vshrl.u32 %v9683, 16
    %v9688 = vshll.u32 %v9684, 16
    %v9689 = vshrl.u32 %v9684, 16
    %vm9690 = vc.u32 %v9682, %v9686
    %v9691 = vsel %vm9690, 1, 0
    %v9692 = vadd.s32 %v9682, %v9686
    %v9693 = vadd.s32 %v9685, %v9691
    %vm9694 = vc.u32 %v9692, %v9688
    %v9695 = vsel %vm9694, 1, 0
    %v9696 = vadd.s32 %v9692, %v9688
    %v9697 = vadd.s32 %v9693, %v9695
    %v9698 = vadd.s32 %v9697, %v9687
    %v9699 = vadd.s32 %v9698, %v9689
    %v9700 = vmul.u32 %v9655, %v9646
    %v9701 = vadd.s32 %v9677, %v9696
    %vm9702 = vc.u32 %v9677, %v9696
    %v9703 = vadd.s32 %v9699, 1
    %v9704 = vsel %vm9702, %v9703, %v9699
    %v9705 = vadd.s32 %v9700, %v9704
    %v9706 = vadd.s32 %v9705, 536870912
    %v9707 = vshrl.u32 %v9706, 30
    %v9708 = vshll.u32 %v9707, 30
    %v9709 = vsub.s32 %v9705, %v9708
    %vm9710 = vcmp.lt.s32.totalorder %v9709, 0
    %v9711 = vsub.s32 0, %v9709
    %v9712 = vsel %vm9710, %v9711, %v9709
    %v9713 = vclz %v9712
    %v9714 = vsub.s32 %v9713, 2
    %vm9715 = vcmp.gt.s32.totalorder 0, %v9714
    %v9716 = vsel %vm9715, 0, %v9714
    %v9717 = vsub.s32 32, %v9716
    %v9718 = vshll.u32 %v9709, %v9716
    %v9719 = vshrl.u32 %v9701, %v9717
    %v9720 = vor.u32 %v9718, %v9719
    %v9721 = vsub.s32 4294967266, %v9716
    %v9722 = vadd.s32 %v9721, 127
    %v9723 = vshll.u32 %v9722, 23
    %v9724 = vor.u32 4788187, %v9723
    %v9725 = vand.u32 2147483647, %v9724
    %v9727 = vcvt.s32.f32 %v9720
    %v9728 = vmul.f32 %v9727, %v9725
    %v9729 = vxor.u32 %v9728, 2147483648
    %v9730 = vsel %vm9609, %v9729, %v9728
    %v9731 = vsub.s32 4, %v9707
    %v9732 = vsel %vm9609, %v9731, %v9707
    %v9733 = vsel %vm9608, %v5560, %v9730
    %v9734 = vsel %vm9608, 0, %v9732
    %v9735 = vmul.f32 %v9733, %v9733
    %v9736 = vmul.f32 %v9735, -0.001358992
    %v9737 = vadd.f32 %v9736, 0.041655596
    %v9738 = vmul.f32 %v9735, %v9737
    %v9739 = vadd.f32 %v9738, -0.4999988
    %v9740 = vmul.f32 %v9735, %v9739
    %v9741 = vadd.f32 1.0, %v9740
    %v9742 = vmul.f32 %v9733, %v9733
    %v9743 = vmul.f32 %v9742, -0.00019511016
    %v9744 = vadd.f32 %v9743, 0.008332121
    %v9745 = vmul.f32 %v9742, %v9744
    %v9746 = vadd.f32 %v9745, -0.16666654
    %v9747 = vmul.f32 %v9742, %v9746
    %v9748 = vadd.f32 %v9747, 1.0
    %v9749 = vmul.f32 %v9748, %v9733
    %vm9750 = vweird.f32 %v5560
    %v9751 = vadd.s32 %v9734, 3
    %v9752 = vand.u32 %v9751, 3
    %vm9753 = vcmp.lt.s32.totalorder %v9752, 2
    %vm9754 = vcmp.eq.s32.totalorder %v9752, 0
    %v9755 = vxor.u32 %v9749, 2147483648
    %v9756 = vsel %vm9754, %v9741, %v9755
    %vm9757 = vcmp.eq.s32.totalorder %v9752, 2
    %v9758 = vxor.u32 %v9741, 2147483648
    %v9759 = vsel %vm9757, %v9758, %v9749
    %v9760 = vsel %vm9753, %v9756, %v9759
    %v9761 = vsel %vm9750, nan, %v9760
    %v9762 = vand.u32 2147483647, %v5563
    %vm9763 = vcmp.le.f32.partialorder %v9762, 0.7853982
    %vm9764 = vcmp.lt.s32.totalorder %v5563, 0
    %v9765 = vand.u32 %v5563, 2139095040
    %v9766 = vshrl.u32 %v9765, 23
    %v9767 = vsub.s32 %v9766, 127
    %v9768 = vand.u32 2147483647, %v5563
    %v9769 = vand.u32 %v9768, 8388607
    %v9770 = vor.u32 %v9769, 8388608
    %v9771 = vsub.s32 0, %v9770
    %v9772 = vadd.s32 %v9767, 1
    %vm9773 = vcmp.gt.s32.totalorder %v9772, 0
    %v9774 = vsel %vm9773, %v9772, 0
    %v9775 = vshrl.u32 %v9774, 5
    %v9776 = vand.u32 %v9774, 31
    %v9777 = vsub.s32 32, %v9776
    %v9778 = vshrl.u32 683565275, %v9777
    %v9779 = vshll.u32 683565275, %v9776
    %v9780 = vshrl.u32 2475754826, %v9777
    %v9781 = vor.u32 %v9779, %v9780
    %v9782 = vshll.u32 2475754826, %v9776
    %v9783 = vshrl.u32 2131351028, %v9777
    %v9784 = vor.u32 %v9782, %v9783
    %v9785 = vshll.u32 2131351028, %v9776
    %v9786 = vshrl.u32 2102212464, %v9777
    %v9787 = vor.u32 %v9785, %v9786
    %v9788 = vshll.u32 2102212464, %v9776
    %v9789 = vshrl.u32 920167782, %v9777
    %v9790 = vor.u32 %v9788, %v9789
    %v9791 = vshll.u32 920167782, %v9776
    %v9792 = vshrl.u32 1326507024, %v9777
    %v9793 = vor.u32 %v9791, %v9792
    %vm9794 = vcmp.lt.s32.totalorder %v9775, 1
    %vm9795 = vcmp.lt.s32.totalorder %v9775, 2
    %vm9796 = vcmp.lt.s32.totalorder %v9775, 3
    %vm9797 = vcmp.lt.s32.totalorder %v9775, 4
    %v9798 = vsel %vm9794, %v9778, %v9781
    %v9799 = vsel %vm9797, %v9787, 2102212464
    %v9800 = vsel %vm9796, %v9784, %v9799
    %v9801 = vsel %vm9795, %v9798, %v9800
    %v9802 = vsel %vm9794, %v9781, %v9784
    %v9803 = vsel %vm9797, %v9790, 920167782
    %v9804 = vsel %vm9796, %v9787, %v9803
    %v9805 = vsel %vm9795, %v9802, %v9804
    %v9806 = vsel %vm9794, %v9784, %v9787
    %v9807 = vsel %vm9797, %v9793, 1326507024
    %v9808 = vsel %vm9796, %v9790, %v9807
    %v9809 = vsel %vm9795, %v9806, %v9808
    %v9810 = vshll.u32 %v9770, 8
    %v9811 = vand.u32 %v9810, 65535
    %v9812 = vshrl.u32 %v9810, 16
    %v9813 = vand.u32 %v9809, 65535
    %v9814 = vshrl.u32 %v9809, 16
    %v9815 = vmul.u32 %v9811, %v9813
    %v9816 = vmul.u32 %v9811, %v9814
    %v9817 = vmul.u32 %v9812, %v9813
    %v9818 = vmul.u32 %v9812, %v9814
    %v9819 = vshll.u32 %v9816, 16
    %v9820 = vshrl.u32 %v9816, 16
    %v9821 = vshll.u32 %v9817, 16
    %v9822 = vshrl.u32 %v9817, 16
    %vm9823 = vc.u32 %v9815, %v9819
    %v9824 = vsel %vm9823, 1, 0
    %v9825 = vadd.s32 %v9815, %v9819
    %v9826 = vadd.s32 %v9818, %v9824
    %vm9827 = vc.u32 %v9825, %v9821
    %v9828 = vsel %vm9827, 1, 0
    %v9829 = vadd.s32 %v9825, %v9821
    %v9830 = vadd.s32 %v9826, %v9828
    %v9831 = vadd.s32 %v9830, %v9820
    %v9832 = vadd.s32 %v9831, %v9822
    %v9833 = vand.u32 %v9810, 65535
    %v9834 = vshrl.u32 %v9810, 16
    %v9835 = vand.u32 %v9805, 65535
    %v9836 = vshrl.u32 %v9805, 16
    %v9837 = vmul.u32 %v9833, %v9835
    %v9838 = vmul.u32 %v9833, %v9836
    %v9839 = vmul.u32 %v9834, %v9835
    %v9840 = vmul.u32 %v9834, %v9836
    %v9841 = vshll.u32 %v9838, 16
    %v9842 = vshrl.u32 %v9838, 16
    %v9843 = vshll.u32 %v9839, 16
    %v9844 = vshrl.u32 %v9839, 16
    %vm9845 = vc.u32 %v9837, %v9841
    %v9846 = vsel %vm9845, 1, 0
    %v9847 = vadd.s32 %v9837, %v9841
    %v9848 = vadd.s32 %v9840, %v9846
    %vm9849 = vc.u32 %v9847, %v9843
    %v9850 = vsel %vm9849, 1, 0
    %v9851 = vadd.s32 %v9847, %v9843
    %v9852 = vadd.s32 %v9848, %v9850
    %v9853 = vadd.s32 %v9852, %v9842
    %v9854 = vadd.s32 %v9853, %v9844
    %v9855 = vmul.u32 %v9810, %v9801
    %v9856 = vadd.s32 %v9832, %v9851
    %vm9857 = vc.u32 %v9832, %v9851
    %v9858 = vadd.s32 %v9854, 1
    %v9859 = vsel %vm9857, %v9858, %v9854
    %v9860 = vadd.s32 %v9855, %v9859
    %v9861 = vadd.s32 %v9860, 536870912
    %v9862 = vshrl.u32 %v9861, 30
    %v9863 = vshll.u32 %v9862, 30
    %v9864 = vsub.s32 %v9860, %v9863
    %vm9865 = vcmp.lt.s32.totalorder %v9864, 0
    %v9866 = vsub.s32 0, %v9864
    %v9867 = vsel %vm9865, %v9866, %v9864
    %v9868 = vclz %v9867
    %v9869 = vsub.s32 %v9868, 2
    %vm9870 = vcmp.gt.s32.totalorder 0, %v9869
    %v9871 = vsel %vm9870, 0, %v9869
    %v9872 = vsub.s32 32, %v9871
    %v9873 = vshll.u32 %v9864, %v9871
    %v9874 = vshrl.u32 %v9856, %v9872
    %v9875 = vor.u32 %v9873, %v9874
    %v9876 = vsub.s32 4294967266, %v9871
    %v9877 = vadd.s32 %v9876, 127
    %v9878 = vshll.u32 %v9877, 23
    %v9879 = vor.u32 4788187, %v9878
    %v9880 = vand.u32 2147483647, %v9879
    %v9882 = vcvt.s32.f32 %v9875
    %v9883 = vmul.f32 %v9882, %v9880
    %v9884 = vxor.u32 %v9883, 2147483648
    %v9885 = vsel %vm9764, %v9884, %v9883
    %v9886 = vsub.s32 4, %v9862
    %v9887 = vsel %vm9764, %v9886, %v9862
    %v9888 = vsel %vm9763, %v5563, %v9885
    %v9889 = vsel %vm9763, 0, %v9887
    %v9890 = vmul.f32 %v9888, %v9888
    %v9891 = vmul.f32 %v9890, -0.001358992
    %v9892 = vadd.f32 %v9891, 0.041655596
    %v9893 = vmul.f32 %v9890, %v9892
    %v9894 = vadd.f32 %v9893, -0.4999988
    %v9895 = vmul.f32 %v9890, %v9894
    %v9896 = vadd.f32 1.0, %v9895
    %v9897 = vmul.f32 %v9888, %v9888
    %v9898 = vmul.f32 %v9897, -0.00019511016
    %v9899 = vadd.f32 %v9898, 0.008332121
    %v9900 = vmul.f32 %v9897, %v9899
    %v9901 = vadd.f32 %v9900, -0.16666654
    %v9902 = vmul.f32 %v9897, %v9901
    %v9903 = vadd.f32 %v9902, 1.0
    %v9904 = vmul.f32 %v9903, %v9888
    %vm9905 = vweird.f32 %v5563
    %v9906 = vadd.s32 %v9889, 3
    %v9907 = vand.u32 %v9906, 3
    %vm9908 = vcmp.lt.s32.totalorder %v9907, 2
    %vm9909 = vcmp.eq.s32.totalorder %v9907, 0
    %v9910 = vxor.u32 %v9904, 2147483648
    %v9911 = vsel %vm9909, %v9896, %v9910
    %vm9912 = vcmp.eq.s32.totalorder %v9907, 2
    %v9913 = vxor.u32 %v9896, 2147483648
    %v9914 = vsel %vm9912, %v9913, %v9904
    %v9915 = vsel %vm9908, %v9911, %v9914
    %v9916 = vsel %vm9905, nan, %v9915
    %v9917 = vand.u32 2147483647, %v5566
    %vm9918 = vcmp.le.f32.partialorder %v9917, 0.7853982
    %vm9919 = vcmp.lt.s32.totalorder %v5566, 0
    %v9920 = vand.u32 %v5566, 2139095040
    %v9921 = vshrl.u32 %v9920, 23
    %v9922 = vsub.s32 %v9921, 127
    %v9923 = vand.u32 2147483647, %v5566
    %v9924 = vand.u32 %v9923, 8388607
    %v9925 = vor.u32 %v9924, 8388608
    %v9926 = vsub.s32 0, %v9925
    %v9927 = vadd.s32 %v9922, 1
    %vm9928 = vcmp.gt.s32.totalorder %v9927, 0
    %v9929 = vsel %vm9928, %v9927, 0
    %v9930 = vshrl.u32 %v9929, 5
    %v9931 = vand.u32 %v9929, 31
    %v9932 = vsub.s32 32, %v9931
    %v9933 = vshrl.u32 683565275, %v9932
    %v9934 = vshll.u32 683565275, %v9931
    %v9935 = vshrl.u32 2475754826, %v9932
    %v9936 = vor.u32 %v9934, %v9935
    %v9937 = vshll.u32 2475754826, %v9931
    %v9938 = vshrl.u32 2131351028, %v9932
    %v9939 = vor.u32 %v9937, %v9938
    %v9940 = vshll.u32 2131351028, %v9931
    %v9941 = vshrl.u32 2102212464, %v9932
    %v9942 = vor.u32 %v9940, %v9941
    %v9943 = vshll.u32 2102212464, %v9931
    %v9944 = vshrl.u32 920167782, %v9932
    %v9945 = vor.u32 %v9943, %v9944
    %v9946 = vshll.u32 920167782, %v9931
    %v9947 = vshrl.u32 1326507024, %v9932
    %v9948 = vor.u32 %v9946, %v9947
    %vm9949 = vcmp.lt.s32.totalorder %v9930, 1
    %vm9950 = vcmp.lt.s32.totalorder %v9930, 2
    %vm9951 = vcmp.lt.s32.totalorder %v9930, 3
    %vm9952 = vcmp.lt.s32.totalorder %v9930, 4
    %v9953 = vsel %vm9949, %v9933, %v9936
    %v9954 = vsel %vm9952, %v9942, 2102212464
    %v9955 = vsel %vm9951, %v9939, %v9954
    %v9956 = vsel %vm9950, %v9953, %v9955
    %v9957 = vsel %vm9949, %v9936, %v9939
    %v9958 = vsel %vm9952, %v9945, 920167782
    %v9959 = vsel %vm9951, %v9942, %v9958
    %v9960 = vsel %vm9950, %v9957, %v9959
    %v9961 = vsel %vm9949, %v9939, %v9942
    %v9962 = vsel %vm9952, %v9948, 1326507024
    %v9963 = vsel %vm9951, %v9945, %v9962
    %v9964 = vsel %vm9950, %v9961, %v9963
    %v9965 = vshll.u32 %v9925, 8
    %v9966 = vand.u32 %v9965, 65535
    %v9967 = vshrl.u32 %v9965, 16
    %v9968 = vand.u32 %v9964, 65535
    %v9969 = vshrl.u32 %v9964, 16
    %v9970 = vmul.u32 %v9966, %v9968
    %v9971 = vmul.u32 %v9966, %v9969
    %v9972 = vmul.u32 %v9967, %v9968
    %v9973 = vmul.u32 %v9967, %v9969
    %v9974 = vshll.u32 %v9971, 16
    %v9975 = vshrl.u32 %v9971, 16
    %v9976 = vshll.u32 %v9972, 16
    %v9977 = vshrl.u32 %v9972, 16
    %vm9978 = vc.u32 %v9970, %v9974
    %v9979 = vsel %vm9978, 1, 0
    %v9980 = vadd.s32 %v9970, %v9974
    %v9981 = vadd.s32 %v9973, %v9979
    %vm9982 = vc.u32 %v9980, %v9976
    %v9983 = vsel %vm9982, 1, 0
    %v9984 = vadd.s32 %v9980, %v9976
    %v9985 = vadd.s32 %v9981, %v9983
    %v9986 = vadd.s32 %v9985, %v9975
    %v9987 = vadd.s32 %v9986, %v9977
    %v9988 = vand.u32 %v9965, 65535
    %v9989 = vshrl.u32 %v9965, 16
    %v9990 = vand.u32 %v9960, 65535
    %v9991 = vshrl.u32 %v9960, 16
    %v9992 = vmul.u32 %v9988, %v9990
    %v9993 = vmul.u32 %v9988, %v9991
    %v9994 = vmul.u32 %v9989, %v9990
    %v9995 = vmul.u32 %v9989, %v9991
    %v9996 = vshll.u32 %v9993, 16
    %v9997 = vshrl.u32 %v9993, 16
    %v9998 = vshll.u32 %v9994, 16
    %v9999 = vshrl.u32 %v9994, 16
    %vm10000 = vc.u32 %v9992, %v9996
    %v10001 = vsel %vm10000, 1, 0
    %v10002 = vadd.s32 %v9992, %v9996
    %v10003 = vadd.s32 %v9995, %v10001
    %vm10004 = vc.u32 %v10002, %v9998
    %v10005 = vsel %vm10004, 1, 0
    %v10006 = vadd.s32 %v10002, %v9998
    %v10007 = vadd.s32 %v10003, %v10005
    %v10008 = vadd.s32 %v10007, %v9997
    %v10009 = vadd.s32 %v10008, %v9999
    %v10010 = vmul.u32 %v9965, %v9956
    %v10011 = vadd.s32 %v9987, %v10006
    %vm10012 = vc.u32 %v9987, %v10006
    %v10013 = vadd.s32 %v10009, 1
    %v10014 = vsel %vm10012, %v10013, %v10009
    %v10015 = vadd.s32 %v10010, %v10014
    %v10016 = vadd.s32 %v10015, 536870912
    %v10017 = vshrl.u32 %v10016, 30
    %v10018 = vshll.u32 %v10017, 30
    %v10019 = vsub.s32 %v10015, %v10018
    %vm10020 = vcmp.lt.s32.totalorder %v10019, 0
    %v10021 = vsub.s32 0, %v10019
    %v10022 = vsel %vm10020, %v10021, %v10019
    %v10023 = vclz %v10022
    %v10024 = vsub.s32 %v10023, 2
    %vm10025 = vcmp.gt.s32.totalorder 0, %v10024
    %v10026 = vsel %vm10025, 0, %v10024
    %v10027 = vsub.s32 32, %v10026
    %v10028 = vshll.u32 %v10019, %v10026
    %v10029 = vshrl.u32 %v10011, %v10027
    %v10030 = vor.u32 %v10028, %v10029
    %v10031 = vsub.s32 4294967266, %v10026
    %v10032 = vadd.s32 %v10031, 127
    %v10033 = vshll.u32 %v10032, 23
    %v10034 = vor.u32 4788187, %v10033
    %v10035 = vand.u32 2147483647, %v10034
    %v10037 = vcvt.s32.f32 %v10030
    %v10038 = vmul.f32 %v10037, %v10035
    %v10039 = vxor.u32 %v10038, 2147483648
    %v10040 = vsel %vm9919, %v10039, %v10038
    %v10041 = vsub.s32 4, %v10017
    %v10042 = vsel %vm9919, %v10041, %v10017
    %v10043 = vsel %vm9918, %v5566, %v10040
    %v10044 = vsel %vm9918, 0, %v10042
    %v10045 = vmul.f32 %v10043, %v10043
    %v10046 = vmul.f32 %v10045, -0.001358992
    %v10047 = vadd.f32 %v10046, 0.041655596
    %v10048 = vmul.f32 %v10045, %v10047
    %v10049 = vadd.f32 %v10048, -0.4999988
    %v10050 = vmul.f32 %v10045, %v10049
    %v10051 = vadd.f32 1.0, %v10050
    %v10052 = vmul.f32 %v10043, %v10043
    %v10053 = vmul.f32 %v10052, -0.00019511016
    %v10054 = vadd.f32 %v10053, 0.008332121
    %v10055 = vmul.f32 %v10052, %v10054
    %v10056 = vadd.f32 %v10055, -0.16666654
    %v10057 = vmul.f32 %v10052, %v10056
    %v10058 = vadd.f32 %v10057, 1.0
    %v10059 = vmul.f32 %v10058, %v10043
    %vm10060 = vweird.f32 %v5566
    %v10061 = vadd.s32 %v10044, 3
    %v10062 = vand.u32 %v10061, 3
    %vm10063 = vcmp.lt.s32.totalorder %v10062, 2
    %vm10064 = vcmp.eq.s32.totalorder %v10062, 0
    %v10065 = vxor.u32 %v10059, 2147483648
    %v10066 = vsel %vm10064, %v10051, %v10065
    %vm10067 = vcmp.eq.s32.totalorder %v10062, 2
    %v10068 = vxor.u32 %v10051, 2147483648
    %v10069 = vsel %vm10067, %v10068, %v10059
    %v10070 = vsel %vm10063, %v10066, %v10069
    %v10071 = vsel %vm10060, nan, %v10070
    %v10072 = vand.u32 2147483647, %v5569
    %vm10073 = vcmp.le.f32.partialorder %v10072, 0.7853982
    %vm10074 = vcmp.lt.s32.totalorder %v5569, 0
    %v10075 = vand.u32 %v5569, 2139095040
    %v10076 = vshrl.u32 %v10075, 23
    %v10077 = vsub.s32 %v10076, 127
    %v10078 = vand.u32 2147483647, %v5569
    %v10079 = vand.u32 %v10078, 8388607
    %v10080 = vor.u32 %v10079, 8388608
    %v10081 = vsub.s32 0, %v10080
    %v10082 = vadd.s32 %v10077, 1
    %vm10083 = vcmp.gt.s32.totalorder %v10082, 0
    %v10084 = vsel %vm10083, %v10082, 0
    %v10085 = vshrl.u32 %v10084, 5
    %v10086 = vand.u32 %v10084, 31
    %v10087 = vsub.s32 32, %v10086
    %v10088 = vshrl.u32 683565275, %v10087
    %v10089 = vshll.u32 683565275, %v10086
    %v10090 = vshrl.u32 2475754826, %v10087
    %v10091 = vor.u32 %v10089, %v10090
    %v10092 = vshll.u32 2475754826, %v10086
    %v10093 = vshrl.u32 2131351028, %v10087
    %v10094 = vor.u32 %v10092, %v10093
    %v10095 = vshll.u32 2131351028, %v10086
    %v10096 = vshrl.u32 2102212464, %v10087
    %v10097 = vor.u32 %v10095, %v10096
    %v10098 = vshll.u32 2102212464, %v10086
    %v10099 = vshrl.u32 920167782, %v10087
    %v10100 = vor.u32 %v10098, %v10099
    %v10101 = vshll.u32 920167782, %v10086
    %v10102 = vshrl.u32 1326507024, %v10087
    %v10103 = vor.u32 %v10101, %v10102
    %vm10104 = vcmp.lt.s32.totalorder %v10085, 1
    %vm10105 = vcmp.lt.s32.totalorder %v10085, 2
    %vm10106 = vcmp.lt.s32.totalorder %v10085, 3
    %vm10107 = vcmp.lt.s32.totalorder %v10085, 4
    %v10108 = vsel %vm10104, %v10088, %v10091
    %v10109 = vsel %vm10107, %v10097, 2102212464
    %v10110 = vsel %vm10106, %v10094, %v10109
    %v10111 = vsel %vm10105, %v10108, %v10110
    %v10112 = vsel %vm10104, %v10091, %v10094
    %v10113 = vsel %vm10107, %v10100, 920167782
    %v10114 = vsel %vm10106, %v10097, %v10113
    %v10115 = vsel %vm10105, %v10112, %v10114
    %v10116 = vsel %vm10104, %v10094, %v10097
    %v10117 = vsel %vm10107, %v10103, 1326507024
    %v10118 = vsel %vm10106, %v10100, %v10117
    %v10119 = vsel %vm10105, %v10116, %v10118
    %v10120 = vshll.u32 %v10080, 8
    %v10121 = vand.u32 %v10120, 65535
    %v10122 = vshrl.u32 %v10120, 16
    %v10123 = vand.u32 %v10119, 65535
    %v10124 = vshrl.u32 %v10119, 16
    %v10125 = vmul.u32 %v10121, %v10123
    %v10126 = vmul.u32 %v10121, %v10124
    %v10127 = vmul.u32 %v10122, %v10123
    %v10128 = vmul.u32 %v10122, %v10124
    %v10129 = vshll.u32 %v10126, 16
    %v10130 = vshrl.u32 %v10126, 16
    %v10131 = vshll.u32 %v10127, 16
    %v10132 = vshrl.u32 %v10127, 16
    %vm10133 = vc.u32 %v10125, %v10129
    %v10134 = vsel %vm10133, 1, 0
    %v10135 = vadd.s32 %v10125, %v10129
    %v10136 = vadd.s32 %v10128, %v10134
    %vm10137 = vc.u32 %v10135, %v10131
    %v10138 = vsel %vm10137, 1, 0
    %v10139 = vadd.s32 %v10135, %v10131
    %v10140 = vadd.s32 %v10136, %v10138
    %v10141 = vadd.s32 %v10140, %v10130
    %v10142 = vadd.s32 %v10141, %v10132
    %v10143 = vand.u32 %v10120, 65535
    %v10144 = vshrl.u32 %v10120, 16
    %v10145 = vand.u32 %v10115, 65535
    %v10146 = vshrl.u32 %v10115, 16
    %v10147 = vmul.u32 %v10143, %v10145
    %v10148 = vmul.u32 %v10143, %v10146
    %v10149 = vmul.u32 %v10144, %v10145
    %v10150 = vmul.u32 %v10144, %v10146
    %v10151 = vshll.u32 %v10148, 16
    %v10152 = vshrl.u32 %v10148, 16
    %v10153 = vshll.u32 %v10149, 16
    %v10154 = vshrl.u32 %v10149, 16
    %vm10155 = vc.u32 %v10147, %v10151
    %v10156 = vsel %vm10155, 1, 0
    %v10157 = vadd.s32 %v10147, %v10151
    %v10158 = vadd.s32 %v10150, %v10156
    %vm10159 = vc.u32 %v10157, %v10153
    %v10160 = vsel %vm10159, 1, 0
    %v10161 = vadd.s32 %v10157, %v10153
    %v10162 = vadd.s32 %v10158, %v10160
    %v10163 = vadd.s32 %v10162, %v10152
    %v10164 = vadd.s32 %v10163, %v10154
    %v10165 = vmul.u32 %v10120, %v10111
    %v10166 = vadd.s32 %v10142, %v10161
    %vm10167 = vc.u32 %v10142, %v10161
    %v10168 = vadd.s32 %v10164, 1
    %v10169 = vsel %vm10167, %v10168, %v10164
    %v10170 = vadd.s32 %v10165, %v10169
    %v10171 = vadd.s32 %v10170, 536870912
    %v10172 = vshrl.u32 %v10171, 30
    %v10173 = vshll.u32 %v10172, 30
    %v10174 = vsub.s32 %v10170, %v10173
    %vm10175 = vcmp.lt.s32.totalorder %v10174, 0
    %v10176 = vsub.s32 0, %v10174
    %v10177 = vsel %vm10175, %v10176, %v10174
    %v10178 = vclz %v10177
    %v10179 = vsub.s32 %v10178, 2
    %vm10180 = vcmp.gt.s32.totalorder 0, %v10179
    %v10181 = vsel %vm10180, 0, %v10179
    %v10182 = vsub.s32 32, %v10181
    %v10183 = vshll.u32 %v10174, %v10181
    %v10184 = vshrl.u32 %v10166, %v10182
    %v10185 = vor.u32 %v10183, %v10184
    %v10186 = vsub.s32 4294967266, %v10181
    %v10187 = vadd.s32 %v10186, 127
    %v10188 = vshll.u32 %v10187, 23
    %v10189 = vor.u32 4788187, %v10188
    %v10190 = vand.u32 2147483647, %v10189
    %v10192 = vcvt.s32.f32 %v10185
    %v10193 = vmul.f32 %v10192, %v10190
    %v10194 = vxor.u32 %v10193, 2147483648
    %v10195 = vsel %vm10074, %v10194, %v10193
    %v10196 = vsub.s32 4, %v10172
    %v10197 = vsel %vm10074, %v10196, %v10172
    %v10198 = vsel %vm10073, %v5569, %v10195
    %v10199 = vsel %vm10073, 0, %v10197
    %v10200 = vmul.f32 %v10198, %v10198
    %v10201 = vmul.f32 %v10200, -0.001358992
    %v10202 = vadd.f32 %v10201, 0.041655596
    %v10203 = vmul.f32 %v10200, %v10202
    %v10204 = vadd.f32 %v10203, -0.4999988
    %v10205 = vmul.f32 %v10200, %v10204
    %v10206 = vadd.f32 1.0, %v10205
    %v10207 = vmul.f32 %v10198, %v10198
    %v10208 = vmul.f32 %v10207, -0.00019511016
    %v10209 = vadd.f32 %v10208, 0.008332121
    %v10210 = vmul.f32 %v10207, %v10209
    %v10211 = vadd.f32 %v10210, -0.16666654
    %v10212 = vmul.f32 %v10207, %v10211
    %v10213 = vadd.f32 %v10212, 1.0
    %v10214 = vmul.f32 %v10213, %v10198
    %vm10215 = vweird.f32 %v5569
    %v10216 = vadd.s32 %v10199, 3
    %v10217 = vand.u32 %v10216, 3
    %vm10218 = vcmp.lt.s32.totalorder %v10217, 2
    %vm10219 = vcmp.eq.s32.totalorder %v10217, 0
    %v10220 = vxor.u32 %v10214, 2147483648
    %v10221 = vsel %vm10219, %v10206, %v10220
    %vm10222 = vcmp.eq.s32.totalorder %v10217, 2
    %v10223 = vxor.u32 %v10206, 2147483648
    %v10224 = vsel %vm10222, %v10223, %v10214
    %v10225 = vsel %vm10218, %v10221, %v10224
    %v10226 = vsel %vm10215, nan, %v10225
    %v10227 = vand.u32 2147483647, %v5572
    %vm10228 = vcmp.le.f32.partialorder %v10227, 0.7853982
    %vm10229 = vcmp.lt.s32.totalorder %v5572, 0
    %v10230 = vand.u32 %v5572, 2139095040
    %v10231 = vshrl.u32 %v10230, 23
    %v10232 = vsub.s32 %v10231, 127
    %v10233 = vand.u32 2147483647, %v5572
    %v10234 = vand.u32 %v10233, 8388607
    %v10235 = vor.u32 %v10234, 8388608
    %v10236 = vsub.s32 0, %v10235
    %v10237 = vadd.s32 %v10232, 1
    %vm10238 = vcmp.gt.s32.totalorder %v10237, 0
    %v10239 = vsel %vm10238, %v10237, 0
    %v10240 = vshrl.u32 %v10239, 5
    %v10241 = vand.u32 %v10239, 31
    %v10242 = vsub.s32 32, %v10241
    %v10243 = vshrl.u32 683565275, %v10242
    %v10244 = vshll.u32 683565275, %v10241
    %v10245 = vshrl.u32 2475754826, %v10242
    %v10246 = vor.u32 %v10244, %v10245
    %v10247 = vshll.u32 2475754826, %v10241
    %v10248 = vshrl.u32 2131351028, %v10242
    %v10249 = vor.u32 %v10247, %v10248
    %v10250 = vshll.u32 2131351028, %v10241
    %v10251 = vshrl.u32 2102212464, %v10242
    %v10252 = vor.u32 %v10250, %v10251
    %v10253 = vshll.u32 2102212464, %v10241
    %v10254 = vshrl.u32 920167782, %v10242
    %v10255 = vor.u32 %v10253, %v10254
    %v10256 = vshll.u32 920167782, %v10241
    %v10257 = vshrl.u32 1326507024, %v10242
    %v10258 = vor.u32 %v10256, %v10257
    %vm10259 = vcmp.lt.s32.totalorder %v10240, 1
    %vm10260 = vcmp.lt.s32.totalorder %v10240, 2
    %vm10261 = vcmp.lt.s32.totalorder %v10240, 3
    %vm10262 = vcmp.lt.s32.totalorder %v10240, 4
    %v10263 = vsel %vm10259, %v10243, %v10246
    %v10264 = vsel %vm10262, %v10252, 2102212464
    %v10265 = vsel %vm10261, %v10249, %v10264
    %v10266 = vsel %vm10260, %v10263, %v10265
    %v10267 = vsel %vm10259, %v10246, %v10249
    %v10268 = vsel %vm10262, %v10255, 920167782
    %v10269 = vsel %vm10261, %v10252, %v10268
    %v10270 = vsel %vm10260, %v10267, %v10269
    %v10271 = vsel %vm10259, %v10249, %v10252
    %v10272 = vsel %vm10262, %v10258, 1326507024
    %v10273 = vsel %vm10261, %v10255, %v10272
    %v10274 = vsel %vm10260, %v10271, %v10273
    %v10275 = vshll.u32 %v10235, 8
    %v10276 = vand.u32 %v10275, 65535
    %v10277 = vshrl.u32 %v10275, 16
    %v10278 = vand.u32 %v10274, 65535
    %v10279 = vshrl.u32 %v10274, 16
    %v10280 = vmul.u32 %v10276, %v10278
    %v10281 = vmul.u32 %v10276, %v10279
    %v10282 = vmul.u32 %v10277, %v10278
    %v10283 = vmul.u32 %v10277, %v10279
    %v10284 = vshll.u32 %v10281, 16
    %v10285 = vshrl.u32 %v10281, 16
    %v10286 = vshll.u32 %v10282, 16
    %v10287 = vshrl.u32 %v10282, 16
    %vm10288 = vc.u32 %v10280, %v10284
    %v10289 = vsel %vm10288, 1, 0
    %v10290 = vadd.s32 %v10280, %v10284
    %v10291 = vadd.s32 %v10283, %v10289
    %vm10292 = vc.u32 %v10290, %v10286
    %v10293 = vsel %vm10292, 1, 0
    %v10294 = vadd.s32 %v10290, %v10286
    %v10295 = vadd.s32 %v10291, %v10293
    %v10296 = vadd.s32 %v10295, %v10285
    %v10297 = vadd.s32 %v10296, %v10287
    %v10298 = vand.u32 %v10275, 65535
    %v10299 = vshrl.u32 %v10275, 16
    %v10300 = vand.u32 %v10270, 65535
    %v10301 = vshrl.u32 %v10270, 16
    %v10302 = vmul.u32 %v10298, %v10300
    %v10303 = vmul.u32 %v10298, %v10301
    %v10304 = vmul.u32 %v10299, %v10300
    %v10305 = vmul.u32 %v10299, %v10301
    %v10306 = vshll.u32 %v10303, 16
    %v10307 = vshrl.u32 %v10303, 16
    %v10308 = vshll.u32 %v10304, 16
    %v10309 = vshrl.u32 %v10304, 16
    %vm10310 = vc.u32 %v10302, %v10306
    %v10311 = vsel %vm10310, 1, 0
    %v10312 = vadd.s32 %v10302, %v10306
    %v10313 = vadd.s32 %v10305, %v10311
    %vm10314 = vc.u32 %v10312, %v10308
    %v10315 = vsel %vm10314, 1, 0
    %v10316 = vadd.s32 %v10312, %v10308
    %v10317 = vadd.s32 %v10313, %v10315
    %v10318 = vadd.s32 %v10317, %v10307
    %v10319 = vadd.s32 %v10318, %v10309
    %v10320 = vmul.u32 %v10275, %v10266
    %v10321 = vadd.s32 %v10297, %v10316
    %vm10322 = vc.u32 %v10297, %v10316
    %v10323 = vadd.s32 %v10319, 1
    %v10324 = vsel %vm10322, %v10323, %v10319
    %v10325 = vadd.s32 %v10320, %v10324
    %v10326 = vadd.s32 %v10325, 536870912
    %v10327 = vshrl.u32 %v10326, 30
    %v10328 = vshll.u32 %v10327, 30
    %v10329 = vsub.s32 %v10325, %v10328
    %vm10330 = vcmp.lt.s32.totalorder %v10329, 0
    %v10331 = vsub.s32 0, %v10329
    %v10332 = vsel %vm10330, %v10331, %v10329
    %v10333 = vclz %v10332
    %v10334 = vsub.s32 %v10333, 2
    %vm10335 = vcmp.gt.s32.totalorder 0, %v10334
    %v10336 = vsel %vm10335, 0, %v10334
    %v10337 = vsub.s32 32, %v10336
    %v10338 = vshll.u32 %v10329, %v10336
    %v10339 = vshrl.u32 %v10321, %v10337
    %v10340 = vor.u32 %v10338, %v10339
    %v10341 = vsub.s32 4294967266, %v10336
    %v10342 = vadd.s32 %v10341, 127
    %v10343 = vshll.u32 %v10342, 23
    %v10344 = vor.u32 4788187, %v10343
    %v10345 = vand.u32 2147483647, %v10344
    %v10347 = vcvt.s32.f32 %v10340
    %v10348 = vmul.f32 %v10347, %v10345
    %v10349 = vxor.u32 %v10348, 2147483648
    %v10350 = vsel %vm10229, %v10349, %v10348
    %v10351 = vsub.s32 4, %v10327
    %v10352 = vsel %vm10229, %v10351, %v10327
    %v10353 = vsel %vm10228, %v5572, %v10350
    %v10354 = vsel %vm10228, 0, %v10352
    %v10355 = vmul.f32 %v10353, %v10353
    %v10356 = vmul.f32 %v10355, -0.001358992
    %v10357 = vadd.f32 %v10356, 0.041655596
    %v10358 = vmul.f32 %v10355, %v10357
    %v10359 = vadd.f32 %v10358, -0.4999988
    %v10360 = vmul.f32 %v10355, %v10359
    %v10361 = vadd.f32 1.0, %v10360
    %v10362 = vmul.f32 %v10353, %v10353
    %v10363 = vmul.f32 %v10362, -0.00019511016
    %v10364 = vadd.f32 %v10363, 0.008332121
    %v10365 = vmul.f32 %v10362, %v10364
    %v10366 = vadd.f32 %v10365, -0.16666654
    %v10367 = vmul.f32 %v10362, %v10366
    %v10368 = vadd.f32 %v10367, 1.0
    %v10369 = vmul.f32 %v10368, %v10353
    %vm10370 = vweird.f32 %v5572
    %v10371 = vadd.s32 %v10354, 3
    %v10372 = vand.u32 %v10371, 3
    %vm10373 = vcmp.lt.s32.totalorder %v10372, 2
    %vm10374 = vcmp.eq.s32.totalorder %v10372, 0
    %v10375 = vxor.u32 %v10369, 2147483648
    %v10376 = vsel %vm10374, %v10361, %v10375
    %vm10377 = vcmp.eq.s32.totalorder %v10372, 2
    %v10378 = vxor.u32 %v10361, 2147483648
    %v10379 = vsel %vm10377, %v10378, %v10369
    %v10380 = vsel %vm10373, %v10376, %v10379
    %v10381 = vsel %vm10370, nan, %v10380
    %v10382 = vand.u32 2147483647, %v5575
    %vm10383 = vcmp.le.f32.partialorder %v10382, 0.7853982
    %vm10384 = vcmp.lt.s32.totalorder %v5575, 0
    %v10385 = vand.u32 %v5575, 2139095040
    %v10386 = vshrl.u32 %v10385, 23
    %v10387 = vsub.s32 %v10386, 127
    %v10388 = vand.u32 2147483647, %v5575
    %v10389 = vand.u32 %v10388, 8388607
    %v10390 = vor.u32 %v10389, 8388608
    %v10391 = vsub.s32 0, %v10390
    %v10392 = vadd.s32 %v10387, 1
    %vm10393 = vcmp.gt.s32.totalorder %v10392, 0
    %v10394 = vsel %vm10393, %v10392, 0
    %v10395 = vshrl.u32 %v10394, 5
    %v10396 = vand.u32 %v10394, 31
    %v10397 = vsub.s32 32, %v10396
    %v10398 = vshrl.u32 683565275, %v10397
    %v10399 = vshll.u32 683565275, %v10396
    %v10400 = vshrl.u32 2475754826, %v10397
    %v10401 = vor.u32 %v10399, %v10400
    %v10402 = vshll.u32 2475754826, %v10396
    %v10403 = vshrl.u32 2131351028, %v10397
    %v10404 = vor.u32 %v10402, %v10403
    %v10405 = vshll.u32 2131351028, %v10396
    %v10406 = vshrl.u32 2102212464, %v10397
    %v10407 = vor.u32 %v10405, %v10406
    %v10408 = vshll.u32 2102212464, %v10396
    %v10409 = vshrl.u32 920167782, %v10397
    %v10410 = vor.u32 %v10408, %v10409
    %v10411 = vshll.u32 920167782, %v10396
    %v10412 = vshrl.u32 1326507024, %v10397
    %v10413 = vor.u32 %v10411, %v10412
    %vm10414 = vcmp.lt.s32.totalorder %v10395, 1
    %vm10415 = vcmp.lt.s32.totalorder %v10395, 2
    %vm10416 = vcmp.lt.s32.totalorder %v10395, 3
    %vm10417 = vcmp.lt.s32.totalorder %v10395, 4
    %v10418 = vsel %vm10414, %v10398, %v10401
    %v10419 = vsel %vm10417, %v10407, 2102212464
    %v10420 = vsel %vm10416, %v10404, %v10419
    %v10421 = vsel %vm10415, %v10418, %v10420
    %v10422 = vsel %vm10414, %v10401, %v10404
    %v10423 = vsel %vm10417, %v10410, 920167782
    %v10424 = vsel %vm10416, %v10407, %v10423
    %v10425 = vsel %vm10415, %v10422, %v10424
    %v10426 = vsel %vm10414, %v10404, %v10407
    %v10427 = vsel %vm10417, %v10413, 1326507024
    %v10428 = vsel %vm10416, %v10410, %v10427
    %v10429 = vsel %vm10415, %v10426, %v10428
    %v10430 = vshll.u32 %v10390, 8
    %v10431 = vand.u32 %v10430, 65535
    %v10432 = vshrl.u32 %v10430, 16
    %v10433 = vand.u32 %v10429, 65535
    %v10434 = vshrl.u32 %v10429, 16
    %v10435 = vmul.u32 %v10431, %v10433
    %v10436 = vmul.u32 %v10431, %v10434
    %v10437 = vmul.u32 %v10432, %v10433
    %v10438 = vmul.u32 %v10432, %v10434
    %v10439 = vshll.u32 %v10436, 16
    %v10440 = vshrl.u32 %v10436, 16
    %v10441 = vshll.u32 %v10437, 16
    %v10442 = vshrl.u32 %v10437, 16
    %vm10443 = vc.u32 %v10435, %v10439
    %v10444 = vsel %vm10443, 1, 0
    %v10445 = vadd.s32 %v10435, %v10439
    %v10446 = vadd.s32 %v10438, %v10444
    %vm10447 = vc.u32 %v10445, %v10441
    %v10448 = vsel %vm10447, 1, 0
    %v10449 = vadd.s32 %v10445, %v10441
    %v10450 = vadd.s32 %v10446, %v10448
    %v10451 = vadd.s32 %v10450, %v10440
    %v10452 = vadd.s32 %v10451, %v10442
    %v10453 = vand.u32 %v10430, 65535
    %v10454 = vshrl.u32 %v10430, 16
    %v10455 = vand.u32 %v10425, 65535
    %v10456 = vshrl.u32 %v10425, 16
    %v10457 = vmul.u32 %v10453, %v10455
    %v10458 = vmul.u32 %v10453, %v10456
    %v10459 = vmul.u32 %v10454, %v10455
    %v10460 = vmul.u32 %v10454, %v10456
    %v10461 = vshll.u32 %v10458, 16
    %v10462 = vshrl.u32 %v10458, 16
    %v10463 = vshll.u32 %v10459, 16
    %v10464 = vshrl.u32 %v10459, 16
    %vm10465 = vc.u32 %v10457, %v10461
    %v10466 = vsel %vm10465, 1, 0
    %v10467 = vadd.s32 %v10457, %v10461
    %v10468 = vadd.s32 %v10460, %v10466
    %vm10469 = vc.u32 %v10467, %v10463
    %v10470 = vsel %vm10469, 1, 0
    %v10471 = vadd.s32 %v10467, %v10463
    %v10472 = vadd.s32 %v10468, %v10470
    %v10473 = vadd.s32 %v10472, %v10462
    %v10474 = vadd.s32 %v10473, %v10464
    %v10475 = vmul.u32 %v10430, %v10421
    %v10476 = vadd.s32 %v10452, %v10471
    %vm10477 = vc.u32 %v10452, %v10471
    %v10478 = vadd.s32 %v10474, 1
    %v10479 = vsel %vm10477, %v10478, %v10474
    %v10480 = vadd.s32 %v10475, %v10479
    %v10481 = vadd.s32 %v10480, 536870912
    %v10482 = vshrl.u32 %v10481, 30
    %v10483 = vshll.u32 %v10482, 30
    %v10484 = vsub.s32 %v10480, %v10483
    %vm10485 = vcmp.lt.s32.totalorder %v10484, 0
    %v10486 = vsub.s32 0, %v10484
    %v10487 = vsel %vm10485, %v10486, %v10484
    %v10488 = vclz %v10487
    %v10489 = vsub.s32 %v10488, 2
    %vm10490 = vcmp.gt.s32.totalorder 0, %v10489
    %v10491 = vsel %vm10490, 0, %v10489
    %v10492 = vsub.s32 32, %v10491
    %v10493 = vshll.u32 %v10484, %v10491
    %v10494 = vshrl.u32 %v10476, %v10492
    %v10495 = vor.u32 %v10493, %v10494
    %v10496 = vsub.s32 4294967266, %v10491
    %v10497 = vadd.s32 %v10496, 127
    %v10498 = vshll.u32 %v10497, 23
    %v10499 = vor.u32 4788187, %v10498
    %v10500 = vand.u32 2147483647, %v10499
    %v10502 = vcvt.s32.f32 %v10495
    %v10503 = vmul.f32 %v10502, %v10500
    %v10504 = vxor.u32 %v10503, 2147483648
    %v10505 = vsel %vm10384, %v10504, %v10503
    %v10506 = vsub.s32 4, %v10482
    %v10507 = vsel %vm10384, %v10506, %v10482
    %v10508 = vsel %vm10383, %v5575, %v10505
    %v10509 = vsel %vm10383, 0, %v10507
    %v10510 = vmul.f32 %v10508, %v10508
    %v10511 = vmul.f32 %v10510, -0.001358992
    %v10512 = vadd.f32 %v10511, 0.041655596
    %v10513 = vmul.f32 %v10510, %v10512
    %v10514 = vadd.f32 %v10513, -0.4999988
    %v10515 = vmul.f32 %v10510, %v10514
    %v10516 = vadd.f32 1.0, %v10515
    %v10517 = vmul.f32 %v10508, %v10508
    %v10518 = vmul.f32 %v10517, -0.00019511016
    %v10519 = vadd.f32 %v10518, 0.008332121
    %v10520 = vmul.f32 %v10517, %v10519
    %v10521 = vadd.f32 %v10520, -0.16666654
    %v10522 = vmul.f32 %v10517, %v10521
    %v10523 = vadd.f32 %v10522, 1.0
    %v10524 = vmul.f32 %v10523, %v10508
    %vm10525 = vweird.f32 %v5575
    %v10526 = vadd.s32 %v10509, 3
    %v10527 = vand.u32 %v10526, 3
    %vm10528 = vcmp.lt.s32.totalorder %v10527, 2
    %vm10529 = vcmp.eq.s32.totalorder %v10527, 0
    %v10530 = vxor.u32 %v10524, 2147483648
    %v10531 = vsel %vm10529, %v10516, %v10530
    %vm10532 = vcmp.eq.s32.totalorder %v10527, 2
    %v10533 = vxor.u32 %v10516, 2147483648
    %v10534 = vsel %vm10532, %v10533, %v10524
    %v10535 = vsel %vm10528, %v10531, %v10534
    %v10536 = vsel %vm10525, nan, %v10535
    %v10537 = vld [vmem:[%s5] sm:$0xff]
    %v10538 = vld [vmem:[%s5 + $0x8] sm:$0xff]
    %v10539 = vld [vmem:[%s5 + $0x10] sm:$0xff]
    %v10540 = vld [vmem:[%s5 + $0x18] sm:$0xff]
    %v10541 = vld [vmem:[%s5 + $0x20] sm:$0xff]
    %v10542 = vld [vmem:[%s5 + $0x28] sm:$0xff]
    %v10543 = vld [vmem:[%s5 + $0x30] sm:$0xff]
    %v10544 = vld [vmem:[%s5 + $0x38] sm:$0xff]
    %v10545 = vld [vmem:[%s5 + $0x40] sm:$0xff]
    %v10546 = vld [vmem:[%s5 + $0x48] sm:$0xff]
    %v10547 = vld [vmem:[%s5 + $0x50] sm:$0xff]
    %v10548 = vld [vmem:[%s5 + $0x58] sm:$0xff]
    %v10549 = vld [vmem:[%s5 + $0x60] sm:$0xff]
    %v10550 = vld [vmem:[%s5 + $0x68] sm:$0xff]
    %v10551 = vld [vmem:[%s5 + $0x70] sm:$0xff]
    %v10552 = vld [vmem:[%s5 + $0x78] sm:$0xff]
    %v10553 = vld [vmem:[%s6] sm:$0x1]
    %v10555 = vperm.slane %v10553, 0
    %10557 = vmatpush.msra.mxu0 %v10552
    %10558 = vmatpush.msra.mxu0 %v10551
    %10559 = vmatpush.msra.mxu0 %v10550
    %10560 = vmatpush.msra.mxu0 %v10549
    %10561 = vmatpush.msra.mxu0 %v10548
    %10562 = vmatpush.msra.mxu0 %v10547
    %10563 = vmatpush.msra.mxu0 %v10546
    %10564 = vmatpush.msra.mxu0 %v10545
    %10565 = vmatpush.msra.mxu0 %v10544
    %10566 = vmatpush.msra.mxu0 %v10543
    %10567 = vmatpush.msra.mxu0 %v10542
    %10568 = vmatpush.msra.mxu0 %v10541
    %10569 = vmatpush.msra.mxu0 %v10540
    %10570 = vmatpush.msra.mxu0 %v10539
    %10571 = vmatpush.msra.mxu0 %v10538
    %10572 = vmatpush.msra.mxu0 %v10537
    %10573 = vmatmul.f32.gmra.mxu0 %v5731
    %v10574 = vpop.f32.mrf.mxu0
    %v10575 = vadd.f32 %v10555, %v10574
    %10576 = vmatmul.f32.gmra.mxu0 %v5886
    %v10577 = vpop.f32.mrf.mxu0
    %v10578 = vadd.f32 %v10555, %v10577
    %10579 = vmatmul.f32.gmra.mxu0 %v6041
    %v10580 = vpop.f32.mrf.mxu0
    %v10581 = vadd.f32 %v10555, %v10580
    %10582 = vmatmul.f32.gmra.mxu0 %v6196
    %v10583 = vpop.f32.mrf.mxu0
    %v10584 = vadd.f32 %v10555, %v10583
    %10585 = vmatmul.f32.gmra.mxu0 %v6351
    %v10586 = vpop.f32.mrf.mxu0
    %v10587 = vadd.f32 %v10555, %v10586
    %10588 = vmatmul.f32.gmra.mxu0 %v6506
    %v10589 = vpop.f32.mrf.mxu0
    %v10590 = vadd.f32 %v10555, %v10589
    %10591 = vmatmul.f32.gmra.mxu0 %v6661
    %v10592 = vpop.f32.mrf.mxu0
    %v10593 = vadd.f32 %v10555, %v10592
    %10594 = vmatmul.f32.gmra.mxu0 %v6816
    %v10595 = vpop.f32.mrf.mxu0
    %v10596 = vadd.f32 %v10555, %v10595
    %10597 = vmatmul.f32.gmra.mxu0 %v6971
    %v10598 = vpop.f32.mrf.mxu0
    %v10599 = vadd.f32 %v10555, %v10598
    %10600 = vmatmul.f32.gmra.mxu0 %v7126
    %v10601 = vpop.f32.mrf.mxu0
    %v10602 = vadd.f32 %v10555, %v10601
    %10603 = vmatmul.f32.gmra.mxu0 %v7281
    %v10604 = vpop.f32.mrf.mxu0
    %v10605 = vadd.f32 %v10555, %v10604
    %10606 = vmatmul.f32.gmra.mxu0 %v7436
    %v10607 = vpop.f32.mrf.mxu0
    %v10608 = vadd.f32 %v10555, %v10607
    %10609 = vmatmul.f32.gmra.mxu0 %v7591
    %v10610 = vpop.f32.mrf.mxu0
    %v10611 = vadd.f32 %v10555, %v10610
    %10612 = vmatmul.f32.gmra.mxu0 %v7746
    %v10613 = vpop.f32.mrf.mxu0
    %v10614 = vadd.f32 %v10555, %v10613
    %10615 = vmatmul.f32.gmra.mxu0 %v7901
    %v10616 = vpop.f32.mrf.mxu0
    %v10617 = vadd.f32 %v10555, %v10616
    %10618 = vmatmul.f32.gmra.mxu0 %v8056
    %v10619 = vpop.f32.mrf.mxu0
    %v10620 = vadd.f32 %v10555, %v10619
    %10621 = vmatmul.f32.gmra.mxu0 %v8211
    %v10622 = vpop.f32.mrf.mxu0
    %v10623 = vadd.f32 %v10555, %v10622
    %10624 = vmatmul.f32.gmra.mxu0 %v8366
    %v10625 = vpop.f32.mrf.mxu0
    %v10626 = vadd.f32 %v10555, %v10625
    %10627 = vmatmul.f32.gmra.mxu0 %v8521
    %v10628 = vpop.f32.mrf.mxu0
    %v10629 = vadd.f32 %v10555, %v10628
    %10630 = vmatmul.f32.gmra.mxu0 %v8676
    %v10631 = vpop.f32.mrf.mxu0
    %v10632 = vadd.f32 %v10555, %v10631
    %10633 = vmatmul.f32.gmra.mxu0 %v8831
    %v10634 = vpop.f32.mrf.mxu0
    %v10635 = vadd.f32 %v10555, %v10634
    %10636 = vmatmul.f32.gmra.mxu0 %v8986
    %v10637 = vpop.f32.mrf.mxu0
    %v10638 = vadd.f32 %v10555, %v10637
    %10639 = vmatmul.f32.gmra.mxu0 %v9141
    %v10640 = vpop.f32.mrf.mxu0
    %v10641 = vadd.f32 %v10555, %v10640
    %10642 = vmatmul.f32.gmra.mxu0 %v9296
    %v10643 = vpop.f32.mrf.mxu0
    %v10644 = vadd.f32 %v10555, %v10643
    %10645 = vmatmul.f32.gmra.mxu0 %v9451
    %v10646 = vpop.f32.mrf.mxu0
    %v10647 = vadd.f32 %v10555, %v10646
    %10648 = vmatmul.f32.gmra.mxu0 %v9606
    %v10649 = vpop.f32.mrf.mxu0
    %v10650 = vadd.f32 %v10555, %v10649
    %10651 = vmatmul.f32.gmra.mxu0 %v9761
    %v10652 = vpop.f32.mrf.mxu0
    %v10653 = vadd.f32 %v10555, %v10652
    %10654 = vmatmul.f32.gmra.mxu0 %v9916
    %v10655 = vpop.f32.mrf.mxu0
    %v10656 = vadd.f32 %v10555, %v10655
    %10657 = vmatmul.f32.gmra.mxu0 %v10071
    %v10658 = vpop.f32.mrf.mxu0
    %v10659 = vadd.f32 %v10555, %v10658
    %10660 = vmatmul.f32.gmra.mxu0 %v10226
    %v10661 = vpop.f32.mrf.mxu0
    %v10662 = vadd.f32 %v10555, %v10661
    %10663 = vmatmul.f32.gmra.mxu0 %v10381
    %v10664 = vpop.f32.mrf.mxu0
    %v10665 = vadd.f32 %v10555, %v10664
    %10666 = vmatmul.f32.gmra.mxu0 %v10536
    %v10667 = vpop.f32.mrf.mxu0
    %v10668 = vadd.f32 %v10555, %v10667
    %10669 = vdwg.mxu0
    %10670 = vst [vmem:[#allocation2] sm:$0xff] %v10575
    %10671 = vst [vmem:[#allocation2 + $0x8] sm:$0xff] %v10578
    %10672 = vst [vmem:[#allocation2 + $0x10] sm:$0xff] %v10581
    %10673 = vst [vmem:[#allocation2 + $0x18] sm:$0xff] %v10584
    %10674 = vst [vmem:[#allocation2 + $0x20] sm:$0xff] %v10587
    %10675 = vst [vmem:[#allocation2 + $0x28] sm:$0xff] %v10590
    %10676 = vst [vmem:[#allocation2 + $0x30] sm:$0xff] %v10593
    %10677 = vst [vmem:[#allocation2 + $0x38] sm:$0xff] %v10596
    %10678 = vst [vmem:[#allocation2 + $0x40] sm:$0xff] %v10599
    %10679 = vst [vmem:[#allocation2 + $0x48] sm:$0xff] %v10602
    %10680 = vst [vmem:[#allocation2 + $0x50] sm:$0xff] %v10605
    %10681 = vst [vmem:[#allocation2 + $0x58] sm:$0xff] %v10608
    %10682 = vst [vmem:[#allocation2 + $0x60] sm:$0xff] %v10611
    %10683 = vst [vmem:[#allocation2 + $0x68] sm:$0xff] %v10614
    %10684 = vst [vmem:[#allocation2 + $0x70] sm:$0xff] %v10617
    %10685 = vst [vmem:[#allocation2 + $0x78] sm:$0xff] %v10620
    %10686 = vst [vmem:[#allocation2 + $0x80] sm:$0xff] %v10623
    %10687 = vst [vmem:[#allocation2 + $0x88] sm:$0xff] %v10626
    %10688 = vst [vmem:[#allocation2 + $0x90] sm:$0xff] %v10629
    %10689 = vst [vmem:[#allocation2 + $0x98] sm:$0xff] %v10632
    %10690 = vst [vmem:[#allocation2 + $0xa0] sm:$0xff] %v10635
    %10691 = vst [vmem:[#allocation2 + $0xa8] sm:$0xff] %v10638
    %10692 = vst [vmem:[#allocation2 + $0xb0] sm:$0xff] %v10641
    %10693 = vst [vmem:[#allocation2 + $0xb8] sm:$0xff] %v10644
    %10694 = vst [vmem:[#allocation2 + $0xc0] sm:$0xff] %v10647
    %10695 = vst [vmem:[#allocation2 + $0xc8] sm:$0xff] %v10650
    %10696 = vst [vmem:[#allocation2 + $0xd0] sm:$0xff] %v10653
    %10697 = vst [vmem:[#allocation2 + $0xd8] sm:$0xff] %v10656
    %10698 = vst [vmem:[#allocation2 + $0xe0] sm:$0xff] %v10659
    %10699 = vst [vmem:[#allocation2 + $0xe8] sm:$0xff] %v10662
    %10700 = vst [vmem:[#allocation2 + $0xf0] sm:$0xff] %v10665
    %10701 = vst [vmem:[#allocation2 + $0xf8] sm:$0xff] %v10668
    // Predicated region
    $region30: #{tpu_custom_call.1} parent=1 // pred_check
      _
    $region31: #{tpu_custom_call.1} parent=1 // pred_check_branch
      %10703 = sbr.rel (0) target = $region33
    $region32: #{tpu_custom_call.1} parent=1 // pred_region
      %10705 = vsyncadd [#allocation3], 0
      %s10706 = sshll.u32 [#allocation2], 4
      %s10707 = int_to_ptr.vmem [resolvable:$true] %s10706
      %s10708 = sshll.u32 %s7, 4
      %s10709 = int_to_ptr.hbm [resolvable:$true] %s10708
      %10714 = dma.vmem_to_hbm [thread:$0]  %s10707, 4096, %s10709, [#allocation3], 128, 128, 8
    $region33: #{tpu_custom_call.1} parent=1 // pred_fallthru
      _
    // Predicated region
    $region34: #{tpu_custom_call.1} parent=1 // pred_check
      _
    $region35: #{tpu_custom_call.1} parent=1 // pred_check_branch
      %10716 = sbr.rel (0) target = $region37
    $region36: #{tpu_custom_call.1} parent=1 // pred_region
      %10718 = dma.done [#allocation3], 4096
    $region37: #{tpu_custom_call.1} parent=1 // pred_fallthru
      _
    %10719 = vsyncpa [#allocation3], 1

</llo_original>
